<compile_context>
chip_gen: v7x
topology: tpu7x:2x2x1
jax: 0.10.0
libtpu: 0.0.40
codegen_flags: <defaults>
</compile_context>

<pallas_src>
import functools

import jax
import jax.numpy as jnp
from jax.experimental import pallas as pl
from jax.experimental.pallas import tpu as pltpu

# Output widths of the classifier layers.
LAYER_DIMS = (1024, 1024, 512, 256, 128, 64)
OUT_PAD = 128   # final 64-wide layer padded to a lane-dense 128 (unmasked vst)
K_ALIGN = 128   # input feature dim padded to a full lane width


def _round_up(x, m):
    return ((x + m - 1) // m) * m


@functools.lru_cache(maxsize=1)
def _vmem_limit_bytes():
    """32 MiB everywhere (safe on v7x's 64 MiB/TC); 64 MiB on 128-MiB parts."""
    try:
        cap = int(pltpu.get_tpu_info().vmem_capacity_bytes)
    except Exception:
        return 32 << 20
    return (64 << 20) if cap >= (128 << 20) else (32 << 20)


def mlps_kernel(x_ref,
                w1, b1, w2, b2, w3, b3, w4, b4, w5, b5, w6, b6,
                out_ref):
    """Fused 6x (Linear + ReLU) forward pass on one batch-row tile.

    bf16 weights (MXU-native), f32 MXU accumulation, f32 bias+ReLU epilogue,
    bf16 inter-layer activations, f32 final store (padded to 128 lanes).
    """
    def linear_relu_bf16(h, w_ref, b_ref):
        y = jnp.dot(h, w_ref[...], preferred_element_type=jnp.float32)
        y = y + b_ref[...]                      # (1, out) f32 bias broadcast
        return jnp.maximum(y, 0.0).astype(jnp.bfloat16)

    h = x_ref[...].astype(jnp.bfloat16)
    h = linear_relu_bf16(h, w1, b1)
    h = linear_relu_bf16(h, w2, b2)
    h = linear_relu_bf16(h, w3, b3)
    h = linear_relu_bf16(h, w4, b4)
    h = linear_relu_bf16(h, w5, b5)
    # Final layer: keep the epilogue and the store in f32.
    y = jnp.dot(h, w6[...], preferred_element_type=jnp.float32) + b6[...]
    out_ref[...] = jnp.maximum(y, 0.0).astype(out_ref.dtype)


def init_params(key, H, w_dtype=jnp.bfloat16):
    """PyTorch nn.Linear-style uniform init; bf16 weights, f32 biases."""
    params = []
    in_dim = H
    for out_dim in LAYER_DIMS:
        key, kw, kb = jax.random.split(key, 3)
        bound = 1.0 / float(in_dim) ** 0.5
        w = jax.random.uniform(kw, (in_dim, out_dim), jnp.float32, -bound, bound)
        b = jax.random.uniform(kb, (1, out_dim), jnp.float32, -bound, bound)
        params.append((w.astype(w_dtype), b))
        in_dim = out_dim
    return params


@functools.partial(jax.jit, static_argnames=("tm", "single_buffer_params"))
def _mlps_forward(x, params, *, tm=512, single_buffer_params=False):
    """x: [batch, H] float32. Returns [batch, 64] float32."""
    M, H = x.shape
    out_dim = LAYER_DIMS[-1]
    k_pad = _round_up(max(H, K_ALIGN), K_ALIGN)

    # ---- row tiling: >= 2 grid steps whenever there are >= 16 rows so both
    # v7x TensorCores get work; tiny batches use a single tile; non-divisible
    # batches are zero-padded.
    m8 = _round_up(M, 8)
    if m8 >= 2 * tm:
        tm_eff = tm
    elif m8 >= 16:
        tm_eff = _round_up((m8 + 1) // 2, 8)    # exactly 2 tiles
    else:
        tm_eff = m8                             # single small tile
    Mp = _round_up(M, tm_eff)
    grid_m = Mp // tm_eff

    x_pad = x
    if Mp != M or k_pad != H:
        x_pad = jnp.pad(x, ((0, Mp - M), (0, k_pad - H)))

    # ---- pad layer-1 K dim to lane width, final layer to 128 output lanes.
    padded = []
    for idx, (w, b) in enumerate(params):
        if idx == 0 and k_pad != H:
            w = jnp.pad(w, ((0, k_pad - H), (0, 0)))
        if idx == len(params) - 1 and OUT_PAD != out_dim:
            w = jnp.pad(w, ((0, 0), (0, OUT_PAD - out_dim)))
            b = jnp.pad(b, ((0, 0), (0, OUT_PAD - out_dim)))
        padded.append((w, b))
    flat_params = [t for wb in padded for t in wb]

    # Weights/biases: whole-array blocks, constant block index across the
    # grid.  Single-buffer them (they never change) to halve their VMEM
    # footprint; fallback path uses the default pipelining.
    def const_spec(shape):
        if single_buffer_params:
            return pl.BlockSpec(shape, lambda i: (0, 0),
                                pipeline_mode=pl.Buffered(1))
        return pl.BlockSpec(shape, lambda i: (0, 0))

    param_specs = []
    for w, b in padded:
        param_specs.append(const_spec(w.shape))
        param_specs.append(const_spec(b.shape))

    # Advisory cost estimate for the XLA scheduler.
    dims = (k_pad,) + LAYER_DIMS[:-1] + (OUT_PAD,)
    flops = 2 * Mp * sum(dims[i] * dims[i + 1] for i in range(len(LAYER_DIMS)))
    w_bytes = sum(int(w.size) * w.dtype.itemsize + int(b.size) * b.dtype.itemsize
                  for w, b in padded)
    bytes_accessed = int(x_pad.size) * 4 + Mp * OUT_PAD * 4 + w_bytes
    cost = pl.CostEstimate(flops=flops, transcendentals=0,
                           bytes_accessed=bytes_accessed)

    out = pl.pallas_call(
        mlps_kernel,
        out_shape=jax.ShapeDtypeStruct((Mp, OUT_PAD), x.dtype),
        grid_spec=pltpu.PrefetchScalarGridSpec(
            num_scalar_prefetch=0,
            grid=(grid_m,),
            in_specs=[pl.BlockSpec((tm_eff, k_pad), lambda i: (i, 0))]
                     + param_specs,
            out_specs=pl.BlockSpec((tm_eff, OUT_PAD), lambda i: (i, 0)),
        ),
        compiler_params=pltpu.CompilerParams(
            dimension_semantics=("parallel",),
            vmem_limit_bytes=_vmem_limit_bytes(),
        ),
        cost_estimate=cost,
    )(x_pad, *flat_params)

    return out[:M, :out_dim]


_SINGLE_BUFFER_OK = None   # probed once: does this jax accept pl.Buffered(1)?


def mlps_forward(x, params, *, tm=512):
    """Wrapper that probes pl.Buffered(1) support once and then sticks to it."""
    global _SINGLE_BUFFER_OK
    if _SINGLE_BUFFER_OK is None:
        try:
            out = _mlps_forward(x, params, tm=tm, single_buffer_params=True)
            jax.block_until_ready(out)
            _SINGLE_BUFFER_OK = True
            return out
        except Exception:
            # This jax build rejects pipeline_mode on a grid BlockSpec; fall
            # back to the default (still resident, just double-buffered) specs.
            _SINGLE_BUFFER_OK = False
    return _mlps_forward(x, params, tm=tm,
                         single_buffer_params=_SINGLE_BUFFER_OK)


def mlps_reference(x, params):
    """Pure-JAX reference with the same dtype strategy as the kernel
    (bf16 weights + bf16 inter-layer activations, f32 accumulate/epilogue)."""
    h = x.astype(jnp.bfloat16)
    n = len(params)
    for idx, (w, b) in enumerate(params):
        y = jnp.dot(h, w, preferred_element_type=jnp.float32) + b
        y = jnp.maximum(y, 0.0)
        h = y if idx == n - 1 else y.astype(jnp.bfloat16)
    return h


if __name__ == "__main__":
    H = 32   # hidden size of the incoming BERT tensor

    key = jax.random.PRNGKey(0)
    k_x, k_p, k_x2, k_x3 = jax.random.split(key, 4)
    params = init_params(k_p, H)

    # Small batch (module-scale test shape): single tile, latency path.
    batch = 8
    x = jax.random.normal(k_x, (batch, H), dtype=jnp.float32)
    out = jax.block_until_ready(mlps_forward(x, params))
    ref = mlps_reference(x, params)
    assert out.shape == (batch, LAYER_DIMS[-1])
    assert jnp.allclose(out, ref, atol=5e-3, rtol=2e-2), "mismatch (batch=8)"

    # Mid-size batch: exactly two tiles (both v7x TensorCores active).
    batch2 = 384
    x2 = jax.random.normal(k_x2, (batch2, H), dtype=jnp.float32)
    out2 = jax.block_until_ready(mlps_forward(x2, params))
    ref2 = mlps_reference(x2, params)
    assert out2.shape == (batch2, LAYER_DIMS[-1])
    assert jnp.allclose(out2, ref2, atol=5e-3, rtol=2e-2), "mismatch (batch=384)"

    # Large, non-divisible batch: exercises tm=512 tiles + row padding.
    batch3 = 1090
    x3 = jax.random.normal(k_x3, (batch3, H), dtype=jnp.float32)
    out3 = jax.block_until_ready(mlps_forward(x3, params))
    ref3 = mlps_reference(x3, params)
    assert out3.shape == (batch3, LAYER_DIMS[-1])
    assert jnp.allclose(out3, ref3, atol=5e-3, rtol=2e-2), "mismatch (batch=1090)"

    print("KERNEL_OK")
</pallas_src>

<mosaic_0001>
module attributes {stable_mosaic.version = 11 : i64} {
  func.func @mlps_kernel(%arg0: i32, %arg1: memref<8x128xf32, #tpu.memory_space<vmem>>, %arg2: memref<128x1024xbf16, #tpu.memory_space<vmem>>, %arg3: memref<1x1024xf32, #tpu.memory_space<vmem>>, %arg4: memref<1024x1024xbf16, #tpu.memory_space<vmem>>, %arg5: memref<1x1024xf32, #tpu.memory_space<vmem>>, %arg6: memref<1024x512xbf16, #tpu.memory_space<vmem>>, %arg7: memref<1x512xf32, #tpu.memory_space<vmem>>, %arg8: memref<512x256xbf16, #tpu.memory_space<vmem>>, %arg9: memref<1x256xf32, #tpu.memory_space<vmem>>, %arg10: memref<256x128xbf16, #tpu.memory_space<vmem>>, %arg11: memref<1x128xf32, #tpu.memory_space<vmem>>, %arg12: memref<128x128xbf16, #tpu.memory_space<vmem>>, %arg13: memref<1x128xf32, #tpu.memory_space<vmem>>, %arg14: memref<8x128xf32, #tpu.memory_space<vmem>>) attributes {dimension_semantics = [#tpu.dimension_semantics<parallel>], iteration_bounds = array<i64: 1>, scalar_prefetch = 0 : i64, scratch_operands = 0 : i64, tpu.core_type = #tpu.core_type<tc>, window_params = [{transform_indices = @transform_0, window_bounds = array<i64: 8, 128>}, {pipeline_mode = #tpu.pipeline_mode<synchronous>, transform_indices = @transform_1, window_bounds = array<i64: 128, 1024>}, {pipeline_mode = #tpu.pipeline_mode<synchronous>, transform_indices = @transform_2, window_bounds = array<i64: 1, 1024>}, {pipeline_mode = #tpu.pipeline_mode<synchronous>, transform_indices = @transform_3, window_bounds = array<i64: 1024, 1024>}, {pipeline_mode = #tpu.pipeline_mode<synchronous>, transform_indices = @transform_4, window_bounds = array<i64: 1, 1024>}, {pipeline_mode = #tpu.pipeline_mode<synchronous>, transform_indices = @transform_5, window_bounds = array<i64: 1024, 512>}, {pipeline_mode = #tpu.pipeline_mode<synchronous>, transform_indices = @transform_6, window_bounds = array<i64: 1, 512>}, {pipeline_mode = #tpu.pipeline_mode<synchronous>, transform_indices = @transform_7, window_bounds = array<i64: 512, 256>}, {pipeline_mode = #tpu.pipeline_mode<synchronous>, transform_indices = @transform_8, window_bounds = array<i64: 1, 256>}, {pipeline_mode = #tpu.pipeline_mode<synchronous>, transform_indices = @transform_9, window_bounds = array<i64: 256, 128>}, {pipeline_mode = #tpu.pipeline_mode<synchronous>, transform_indices = @transform_10, window_bounds = array<i64: 1, 128>}, {pipeline_mode = #tpu.pipeline_mode<synchronous>, transform_indices = @transform_11, window_bounds = array<i64: 128, 128>}, {pipeline_mode = #tpu.pipeline_mode<synchronous>, transform_indices = @transform_12, window_bounds = array<i64: 1, 128>}, {transform_indices = @transform_13, window_bounds = array<i64: 8, 128>}]} {
    %c0 = arith.constant 0 : index
    %c0_0 = arith.constant 0 : index
    %0 = vector.load %arg1[%c0, %c0_0] : memref<8x128xf32, #tpu.memory_space<vmem>>, vector<8x128xf32>
    %1 = arith.truncf %0 : vector<8x128xf32> to vector<8x128xbf16>
    %c0_1 = arith.constant 0 : index
    %c0_2 = arith.constant 0 : index
    %2 = vector.load %arg2[%c0_1, %c0_2] : memref<128x1024xbf16, #tpu.memory_space<vmem>>, vector<128x1024xbf16>
    %cst = arith.constant dense<0.000000e+00> : vector<8x1024xf32>
    %3 = tpu.matmul %1, %2, %cst {dimension_numbers = #tpu.dot_dimension_numbers<[1], [0], [0], [1], [0, 0, 1, 1], [], []>} : vector<8x128xbf16>, vector<128x1024xbf16>, vector<8x1024xf32> -> vector<8x1024xf32>
    %c0_3 = arith.constant 0 : index
    %c0_4 = arith.constant 0 : index
    %4 = vector.load %arg3[%c0_3, %c0_4] : memref<1x1024xf32, #tpu.memory_space<vmem>>, vector<1x1024xf32>
    %5 = vector.broadcast %4 : vector<1x1024xf32> to vector<8x1024xf32>
    %6 = arith.addf %3, %5 : vector<8x1024xf32>
    %cst_5 = arith.constant 0.000000e+00 : f32
    %7 = vector.broadcast %cst_5 : f32 to vector<8x1024xf32>
    %8 = arith.maximumf %6, %7 : vector<8x1024xf32>
    %9 = arith.truncf %8 : vector<8x1024xf32> to vector<8x1024xbf16>
    %c0_6 = arith.constant 0 : index
    %c0_7 = arith.constant 0 : index
    %10 = vector.load %arg4[%c0_6, %c0_7] : memref<1024x1024xbf16, #tpu.memory_space<vmem>>, vector<1024x1024xbf16>
    %cst_8 = arith.constant dense<0.000000e+00> : vector<8x1024xf32>
    %11 = tpu.matmul %9, %10, %cst_8 {dimension_numbers = #tpu.dot_dimension_numbers<[1], [0], [0], [1], [0, 0, 1, 1], [], []>} : vector<8x1024xbf16>, vector<1024x1024xbf16>, vector<8x1024xf32> -> vector<8x1024xf32>
    %c0_9 = arith.constant 0 : index
    %c0_10 = arith.constant 0 : index
    %12 = vector.load %arg5[%c0_9, %c0_10] : memref<1x1024xf32, #tpu.memory_space<vmem>>, vector<1x1024xf32>
    %13 = vector.broadcast %12 : vector<1x1024xf32> to vector<8x1024xf32>
    %14 = arith.addf %11, %13 : vector<8x1024xf32>
    %cst_11 = arith.constant 0.000000e+00 : f32
    %15 = vector.broadcast %cst_11 : f32 to vector<8x1024xf32>
    %16 = arith.maximumf %14, %15 : vector<8x1024xf32>
    %17 = arith.truncf %16 : vector<8x1024xf32> to vector<8x1024xbf16>
    %c0_12 = arith.constant 0 : index
    %c0_13 = arith.constant 0 : index
    %18 = vector.load %arg6[%c0_12, %c0_13] : memref<1024x512xbf16, #tpu.memory_space<vmem>>, vector<1024x512xbf16>
    %cst_14 = arith.constant dense<0.000000e+00> : vector<8x512xf32>
    %19 = tpu.matmul %17, %18, %cst_14 {dimension_numbers = #tpu.dot_dimension_numbers<[1], [0], [0], [1], [0, 0, 1, 1], [], []>} : vector<8x1024xbf16>, vector<1024x512xbf16>, vector<8x512xf32> -> vector<8x512xf32>
    %c0_15 = arith.constant 0 : index
    %c0_16 = arith.constant 0 : index
    %20 = vector.load %arg7[%c0_15, %c0_16] : memref<1x512xf32, #tpu.memory_space<vmem>>, vector<1x512xf32>
    %21 = vector.broadcast %20 : vector<1x512xf32> to vector<8x512xf32>
    %22 = arith.addf %19, %21 : vector<8x512xf32>
    %cst_17 = arith.constant 0.000000e+00 : f32
    %23 = vector.broadcast %cst_17 : f32 to vector<8x512xf32>
    %24 = arith.maximumf %22, %23 : vector<8x512xf32>
    %25 = arith.truncf %24 : vector<8x512xf32> to vector<8x512xbf16>
    %c0_18 = arith.constant 0 : index
    %c0_19 = arith.constant 0 : index
    %26 = vector.load %arg8[%c0_18, %c0_19] : memref<512x256xbf16, #tpu.memory_space<vmem>>, vector<512x256xbf16>
    %cst_20 = arith.constant dense<0.000000e+00> : vector<8x256xf32>
    %27 = tpu.matmul %25, %26, %cst_20 {dimension_numbers = #tpu.dot_dimension_numbers<[1], [0], [0], [1], [0, 0, 1, 1], [], []>} : vector<8x512xbf16>, vector<512x256xbf16>, vector<8x256xf32> -> vector<8x256xf32>
    %c0_21 = arith.constant 0 : index
    %c0_22 = arith.constant 0 : index
    %28 = vector.load %arg9[%c0_21, %c0_22] : memref<1x256xf32, #tpu.memory_space<vmem>>, vector<1x256xf32>
    %29 = vector.broadcast %28 : vector<1x256xf32> to vector<8x256xf32>
    %30 = arith.addf %27, %29 : vector<8x256xf32>
    %cst_23 = arith.constant 0.000000e+00 : f32
    %31 = vector.broadcast %cst_23 : f32 to vector<8x256xf32>
    %32 = arith.maximumf %30, %31 : vector<8x256xf32>
    %33 = arith.truncf %32 : vector<8x256xf32> to vector<8x256xbf16>
    %c0_24 = arith.constant 0 : index
    %c0_25 = arith.constant 0 : index
    %34 = vector.load %arg10[%c0_24, %c0_25] : memref<256x128xbf16, #tpu.memory_space<vmem>>, vector<256x128xbf16>
    %cst_26 = arith.constant dense<0.000000e+00> : vector<8x128xf32>
    %35 = tpu.matmul %33, %34, %cst_26 {dimension_numbers = #tpu.dot_dimension_numbers<[1], [0], [0], [1], [0, 0, 1, 1], [], []>} : vector<8x256xbf16>, vector<256x128xbf16>, vector<8x128xf32> -> vector<8x128xf32>
    %c0_27 = arith.constant 0 : index
    %c0_28 = arith.constant 0 : index
    %36 = vector.load %arg11[%c0_27, %c0_28] : memref<1x128xf32, #tpu.memory_space<vmem>>, vector<1x128xf32>
    %37 = vector.broadcast %36 : vector<1x128xf32> to vector<8x128xf32>
    %38 = arith.addf %35, %37 : vector<8x128xf32>
    %cst_29 = arith.constant 0.000000e+00 : f32
    %39 = vector.broadcast %cst_29 : f32 to vector<8x128xf32>
    %40 = arith.maximumf %38, %39 : vector<8x128xf32>
    %41 = arith.truncf %40 : vector<8x128xf32> to vector<8x128xbf16>
    %c0_30 = arith.constant 0 : index
    %c0_31 = arith.constant 0 : index
    %42 = vector.load %arg12[%c0_30, %c0_31] : memref<128x128xbf16, #tpu.memory_space<vmem>>, vector<128x128xbf16>
    %cst_32 = arith.constant dense<0.000000e+00> : vector<8x128xf32>
    %43 = tpu.matmul %41, %42, %cst_32 {dimension_numbers = #tpu.dot_dimension_numbers<[1], [0], [0], [1], [0, 0, 1, 1], [], []>} : vector<8x128xbf16>, vector<128x128xbf16>, vector<8x128xf32> -> vector<8x128xf32>
    %c0_33 = arith.constant 0 : index
    %c0_34 = arith.constant 0 : index
    %44 = vector.load %arg13[%c0_33, %c0_34] : memref<1x128xf32, #tpu.memory_space<vmem>>, vector<1x128xf32>
    %45 = vector.broadcast %44 : vector<1x128xf32> to vector<8x128xf32>
    %46 = arith.addf %43, %45 : vector<8x128xf32>
    %cst_35 = arith.constant 0.000000e+00 : f32
    %47 = vector.broadcast %cst_35 : f32 to vector<8x128xf32>
    %48 = arith.maximumf %46, %47 : vector<8x128xf32>
    %c0_36 = arith.constant 0 : index
    %c0_37 = arith.constant 0 : index
    %49 = vector.load %arg14[%c0_36, %c0_37] : memref<8x128xf32, #tpu.memory_space<vmem>>, vector<8x128xf32>
    tpu.vector_store %arg14[%c0_36, %c0_37], %48 {strides = array<i32>} : memref<8x128xf32, #tpu.memory_space<vmem>>, vector<8x128xf32>,
    return
  }
  func.func @transform_0(%arg0: i32) -> (i32, i32) {
    %c0_i32 = arith.constant 0 : i32
    %c0_i32_0 = arith.constant 0 : i32
    return %arg0, %c0_i32 : i32, i32
  }
  func.func @transform_1(%arg0: i32) -> (i32, i32) {
    %c0_i32 = arith.constant 0 : i32
    %c0_i32_0 = arith.constant 0 : i32
    %c0_i32_1 = arith.constant 0 : i32
    return %c0_i32, %c0_i32_0 : i32, i32
  }
  func.func @transform_2(%arg0: i32) -> (i32, i32) {
    %c0_i32 = arith.constant 0 : i32
    %c0_i32_0 = arith.constant 0 : i32
    %c0_i32_1 = arith.constant 0 : i32
    return %c0_i32, %c0_i32_0 : i32, i32
  }
  func.func @transform_3(%arg0: i32) -> (i32, i32) {
    %c0_i32 = arith.constant 0 : i32
    %c0_i32_0 = arith.constant 0 : i32
    %c0_i32_1 = arith.constant 0 : i32
    return %c0_i32, %c0_i32_0 : i32, i32
  }
  func.func @transform_4(%arg0: i32) -> (i32, i32) {
    %c0_i32 = arith.constant 0 : i32
    %c0_i32_0 = arith.constant 0 : i32
    %c0_i32_1 = arith.constant 0 : i32
    return %c0_i32, %c0_i32_0 : i32, i32
  }
  func.func @transform_5(%arg0: i32) -> (i32, i32) {
    %c0_i32 = arith.constant 0 : i32
    %c0_i32_0 = arith.constant 0 : i32
    %c0_i32_1 = arith.constant 0 : i32
    return %c0_i32, %c0_i32_0 : i32, i32
  }
  func.func @transform_6(%arg0: i32) -> (i32, i32) {
    %c0_i32 = arith.constant 0 : i32
    %c0_i32_0 = arith.constant 0 : i32
    %c0_i32_1 = arith.constant 0 : i32
    return %c0_i32, %c0_i32_0 : i32, i32
  }
  func.func @transform_7(%arg0: i32) -> (i32, i32) {
    %c0_i32 = arith.constant 0 : i32
    %c0_i32_0 = arith.constant 0 : i32
    %c0_i32_1 = arith.constant 0 : i32
    return %c0_i32, %c0_i32_0 : i32, i32
  }
  func.func @transform_8(%arg0: i32) -> (i32, i32) {
    %c0_i32 = arith.constant 0 : i32
    %c0_i32_0 = arith.constant 0 : i32
    %c0_i32_1 = arith.constant 0 : i32
    return %c0_i32, %c0_i32_0 : i32, i32
  }
  func.func @transform_9(%arg0: i32) -> (i32, i32) {
    %c0_i32 = arith.constant 0 : i32
    %c0_i32_0 = arith.constant 0 : i32
    %c0_i32_1 = arith.constant 0 : i32
    return %c0_i32, %c0_i32_0 : i32, i32
  }
  func.func @transform_10(%arg0: i32) -> (i32, i32) {
    %c0_i32 = arith.constant 0 : i32
    %c0_i32_0 = arith.constant 0 : i32
    %c0_i32_1 = arith.constant 0 : i32
    return %c0_i32, %c0_i32_0 : i32, i32
  }
  func.func @transform_11(%arg0: i32) -> (i32, i32) {
    %c0_i32 = arith.constant 0 : i32
    %c0_i32_0 = arith.constant 0 : i32
    %c0_i32_1 = arith.constant 0 : i32
    return %c0_i32, %c0_i32_0 : i32, i32
  }
  func.func @transform_12(%arg0: i32) -> (i32, i32) {
    %c0_i32 = arith.constant 0 : i32
    %c0_i32_0 = arith.constant 0 : i32
    %c0_i32_1 = arith.constant 0 : i32
    return %c0_i32, %c0_i32_0 : i32, i32
  }
  func.func @transform_13(%arg0: i32) -> (i32, i32) {
    %c0_i32 = arith.constant 0 : i32
    %c0_i32_0 = arith.constant 0 : i32
    return %arg0, %c0_i32 : i32, i32
  }
}

module attributes {stable_mosaic.version = 11 : i64} {
  func.func @mlps_kernel(%arg0: i32, %arg1: memref<8x128xf32, #tpu.memory_space<vmem>>, %arg2: memref<128x1024xbf16, #tpu.memory_space<vmem>>, %arg3: memref<1x1024xf32, #tpu.memory_space<vmem>>, %arg4: memref<1024x1024xbf16, #tpu.memory_space<vmem>>, %arg5: memref<1x1024xf32, #tpu.memory_space<vmem>>, %arg6: memref<1024x512xbf16, #tpu.memory_space<vmem>>, %arg7: memref<1x512xf32, #tpu.memory_space<vmem>>, %arg8: memref<512x256xbf16, #tpu.memory_space<vmem>>, %arg9: memref<1x256xf32, #tpu.memory_space<vmem>>, %arg10: memref<256x128xbf16, #tpu.memory_space<vmem>>, %arg11: memref<1x128xf32, #tpu.memory_space<vmem>>, %arg12: memref<128x128xbf16, #tpu.memory_space<vmem>>, %arg13: memref<1x128xf32, #tpu.memory_space<vmem>>, %arg14: memref<8x128xf32, #tpu.memory_space<vmem>>) attributes {dimension_semantics = [#tpu.dimension_semantics<parallel>], iteration_bounds = array<i64: 1>, scalar_prefetch = 0 : i64, scratch_operands = 0 : i64, tpu.core_type = #tpu.core_type<tc>, window_params = [{transform_indices = @transform_0, window_bounds = array<i64: 8, 128>}, {pipeline_mode = #tpu.pipeline_mode<synchronous>, transform_indices = @transform_1, window_bounds = array<i64: 128, 1024>}, {pipeline_mode = #tpu.pipeline_mode<synchronous>, transform_indices = @transform_2, window_bounds = array<i64: 1, 1024>}, {pipeline_mode = #tpu.pipeline_mode<synchronous>, transform_indices = @transform_3, window_bounds = array<i64: 1024, 1024>}, {pipeline_mode = #tpu.pipeline_mode<synchronous>, transform_indices = @transform_4, window_bounds = array<i64: 1, 1024>}, {pipeline_mode = #tpu.pipeline_mode<synchronous>, transform_indices = @transform_5, window_bounds = array<i64: 1024, 512>}, {pipeline_mode = #tpu.pipeline_mode<synchronous>, transform_indices = @transform_6, window_bounds = array<i64: 1, 512>}, {pipeline_mode = #tpu.pipeline_mode<synchronous>, transform_indices = @transform_7, window_bounds = array<i64: 512, 256>}, {pipeline_mode = #tpu.pipeline_mode<synchronous>, transform_indices = @transform_8, window_bounds = array<i64: 1, 256>}, {pipeline_mode = #tpu.pipeline_mode<synchronous>, transform_indices = @transform_9, window_bounds = array<i64: 256, 128>}, {pipeline_mode = #tpu.pipeline_mode<synchronous>, transform_indices = @transform_10, window_bounds = array<i64: 1, 128>}, {pipeline_mode = #tpu.pipeline_mode<synchronous>, transform_indices = @transform_11, window_bounds = array<i64: 128, 128>}, {pipeline_mode = #tpu.pipeline_mode<synchronous>, transform_indices = @transform_12, window_bounds = array<i64: 1, 128>}, {transform_indices = @transform_13, window_bounds = array<i64: 8, 128>}]} {
    %c0 = arith.constant 0 : index
    %c0_0 = arith.constant 0 : index
    %0 = vector.load %arg1[%c0, %c0_0] : memref<8x128xf32, #tpu.memory_space<vmem>>, vector<8x128xf32>
    %1 = arith.truncf %0 : vector<8x128xf32> to vector<8x128xbf16>
    %c0_1 = arith.constant 0 : index
    %c0_2 = arith.constant 0 : index
    %2 = vector.load %arg2[%c0_1, %c0_2] : memref<128x1024xbf16, #tpu.memory_space<vmem>>, vector<128x1024xbf16>
    %cst = arith.constant dense<0.000000e+00> : vector<8x1024xf32>
    %3 = tpu.matmul %1, %2, %cst {dimension_numbers = #tpu.dot_dimension_numbers<[1], [0], [0], [1], [0, 0, 1, 1], [], []>} : vector<8x128xbf16>, vector<128x1024xbf16>, vector<8x1024xf32> -> vector<8x1024xf32>
    %c0_3 = arith.constant 0 : index
    %c0_4 = arith.constant 0 : index
    %4 = vector.load %arg3[%c0_3, %c0_4] : memref<1x1024xf32, #tpu.memory_space<vmem>>, vector<1x1024xf32>
    %5 = vector.broadcast %4 : vector<1x1024xf32> to vector<8x1024xf32>
    %6 = arith.addf %3, %5 : vector<8x1024xf32>
    %cst_5 = arith.constant 0.000000e+00 : f32
    %7 = vector.broadcast %cst_5 : f32 to vector<8x1024xf32>
    %8 = arith.maximumf %6, %7 : vector<8x1024xf32>
    %9 = arith.truncf %8 : vector<8x1024xf32> to vector<8x1024xbf16>
    %c0_6 = arith.constant 0 : index
    %c0_7 = arith.constant 0 : index
    %10 = vector.load %arg4[%c0_6, %c0_7] : memref<1024x1024xbf16, #tpu.memory_space<vmem>>, vector<1024x1024xbf16>
    %cst_8 = arith.constant dense<0.000000e+00> : vector<8x1024xf32>
    %11 = tpu.matmul %9, %10, %cst_8 {dimension_numbers = #tpu.dot_dimension_numbers<[1], [0], [0], [1], [0, 0, 1, 1], [], []>} : vector<8x1024xbf16>, vector<1024x1024xbf16>, vector<8x1024xf32> -> vector<8x1024xf32>
    %c0_9 = arith.constant 0 : index
    %c0_10 = arith.constant 0 : index
    %12 = vector.load %arg5[%c0_9, %c0_10] : memref<1x1024xf32, #tpu.memory_space<vmem>>, vector<1x1024xf32>
    %13 = vector.broadcast %12 : vector<1x1024xf32> to vector<8x1024xf32>
    %14 = arith.addf %11, %13 : vector<8x1024xf32>
    %cst_11 = arith.constant 0.000000e+00 : f32
    %15 = vector.broadcast %cst_11 : f32 to vector<8x1024xf32>
    %16 = arith.maximumf %14, %15 : vector<8x1024xf32>
    %17 = arith.truncf %16 : vector<8x1024xf32> to vector<8x1024xbf16>
    %c0_12 = arith.constant 0 : index
    %c0_13 = arith.constant 0 : index
    %18 = vector.load %arg6[%c0_12, %c0_13] : memref<1024x512xbf16, #tpu.memory_space<vmem>>, vector<1024x512xbf16>
    %cst_14 = arith.constant dense<0.000000e+00> : vector<8x512xf32>
    %19 = tpu.matmul %17, %18, %cst_14 {dimension_numbers = #tpu.dot_dimension_numbers<[1], [0], [0], [1], [0, 0, 1, 1], [], []>} : vector<8x1024xbf16>, vector<1024x512xbf16>, vector<8x512xf32> -> vector<8x512xf32>
    %c0_15 = arith.constant 0 : index
    %c0_16 = arith.constant 0 : index
    %20 = vector.load %arg7[%c0_15, %c0_16] : memref<1x512xf32, #tpu.memory_space<vmem>>, vector<1x512xf32>
    %21 = vector.broadcast %20 : vector<1x512xf32> to vector<8x512xf32>
    %22 = arith.addf %19, %21 : vector<8x512xf32>
    %cst_17 = arith.constant 0.000000e+00 : f32
    %23 = vector.broadcast %cst_17 : f32 to vector<8x512xf32>
    %24 = arith.maximumf %22, %23 : vector<8x512xf32>
    %25 = arith.truncf %24 : vector<8x512xf32> to vector<8x512xbf16>
    %c0_18 = arith.constant 0 : index
    %c0_19 = arith.constant 0 : index
    %26 = vector.load %arg8[%c0_18, %c0_19] : memref<512x256xbf16, #tpu.memory_space<vmem>>, vector<512x256xbf16>
    %cst_20 = arith.constant dense<0.000000e+00> : vector<8x256xf32>
    %27 = tpu.matmul %25, %26, %cst_20 {dimension_numbers = #tpu.dot_dimension_numbers<[1], [0], [0], [1], [0, 0, 1, 1], [], []>} : vector<8x512xbf16>, vector<512x256xbf16>, vector<8x256xf32> -> vector<8x256xf32>
    %c0_21 = arith.constant 0 : index
    %c0_22 = arith.constant 0 : index
    %28 = vector.load %arg9[%c0_21, %c0_22] : memref<1x256xf32, #tpu.memory_space<vmem>>, vector<1x256xf32>
    %29 = vector.broadcast %28 : vector<1x256xf32> to vector<8x256xf32>
    %30 = arith.addf %27, %29 : vector<8x256xf32>
    %cst_23 = arith.constant 0.000000e+00 : f32
    %31 = vector.broadcast %cst_23 : f32 to vector<8x256xf32>
    %32 = arith.maximumf %30, %31 : vector<8x256xf32>
    %33 = arith.truncf %32 : vector<8x256xf32> to vector<8x256xbf16>
    %c0_24 = arith.constant 0 : index
    %c0_25 = arith.constant 0 : index
    %34 = vector.load %arg10[%c0_24, %c0_25] : memref<256x128xbf16, #tpu.memory_space<vmem>>, vector<256x128xbf16>
    %cst_26 = arith.constant dense<0.000000e+00> : vector<8x128xf32>
    %35 = tpu.matmul %33, %34, %cst_26 {dimension_numbers = #tpu.dot_dimension_numbers<[1], [0], [0], [1], [0, 0, 1, 1], [], []>} : vector<8x256xbf16>, vector<256x128xbf16>, vector<8x128xf32> -> vector<8x128xf32>
    %c0_27 = arith.constant 0 : index
    %c0_28 = arith.constant 0 : index
    %36 = vector.load %arg11[%c0_27, %c0_28] : memref<1x128xf32, #tpu.memory_space<vmem>>, vector<1x128xf32>
    %37 = vector.broadcast %36 : vector<1x128xf32> to vector<8x128xf32>
    %38 = arith.addf %35, %37 : vector<8x128xf32>
    %cst_29 = arith.constant 0.000000e+00 : f32
    %39 = vector.broadcast %cst_29 : f32 to vector<8x128xf32>
    %40 = arith.maximumf %38, %39 : vector<8x128xf32>
    %41 = arith.truncf %40 : vector<8x128xf32> to vector<8x128xbf16>
    %c0_30 = arith.constant 0 : index
    %c0_31 = arith.constant 0 : index
    %42 = vector.load %arg12[%c0_30, %c0_31] : memref<128x128xbf16, #tpu.memory_space<vmem>>, vector<128x128xbf16>
    %cst_32 = arith.constant dense<0.000000e+00> : vector<8x128xf32>
    %43 = tpu.matmul %41, %42, %cst_32 {dimension_numbers = #tpu.dot_dimension_numbers<[1], [0], [0], [1], [0, 0, 1, 1], [], []>} : vector<8x128xbf16>, vector<128x128xbf16>, vector<8x128xf32> -> vector<8x128xf32>
    %c0_33 = arith.constant 0 : index
    %c0_34 = arith.constant 0 : index
    %44 = vector.load %arg13[%c0_33, %c0_34] : memref<1x128xf32, #tpu.memory_space<vmem>>, vector<1x128xf32>
    %45 = vector.broadcast %44 : vector<1x128xf32> to vector<8x128xf32>
    %46 = arith.addf %43, %45 : vector<8x128xf32>
    %cst_35 = arith.constant 0.000000e+00 : f32
    %47 = vector.broadcast %cst_35 : f32 to vector<8x128xf32>
    %48 = arith.maximumf %46, %47 : vector<8x128xf32>
    %c0_36 = arith.constant 0 : index
    %c0_37 = arith.constant 0 : index
    %49 = vector.load %arg14[%c0_36, %c0_37] : memref<8x128xf32, #tpu.memory_space<vmem>>, vector<8x128xf32>
    tpu.vector_store %arg14[%c0_36, %c0_37], %48 {strides = array<i32>} : memref<8x128xf32, #tpu.memory_space<vmem>>, vector<8x128xf32>,
    return
  }
  func.func @transform_0(%arg0: i32) -> (i32, i32) {
    %c0_i32 = arith.constant 0 : i32
    %c0_i32_0 = arith.constant 0 : i32
    return %arg0, %c0_i32 : i32, i32
  }
  func.func @transform_1(%arg0: i32) -> (i32, i32) {
    %c0_i32 = arith.constant 0 : i32
    %c0_i32_0 = arith.constant 0 : i32
    %c0_i32_1 = arith.constant 0 : i32
    return %c0_i32, %c0_i32_0 : i32, i32
  }
  func.func @transform_2(%arg0: i32) -> (i32, i32) {
    %c0_i32 = arith.constant 0 : i32
    %c0_i32_0 = arith.constant 0 : i32
    %c0_i32_1 = arith.constant 0 : i32
    return %c0_i32, %c0_i32_0 : i32, i32
  }
  func.func @transform_3(%arg0: i32) -> (i32, i32) {
    %c0_i32 = arith.constant 0 : i32
    %c0_i32_0 = arith.constant 0 : i32
    %c0_i32_1 = arith.constant 0 : i32
    return %c0_i32, %c0_i32_0 : i32, i32
  }
  func.func @transform_4(%arg0: i32) -> (i32, i32) {
    %c0_i32 = arith.constant 0 : i32
    %c0_i32_0 = arith.constant 0 : i32
    %c0_i32_1 = arith.constant 0 : i32
    return %c0_i32, %c0_i32_0 : i32, i32
  }
  func.func @transform_5(%arg0: i32) -> (i32, i32) {
    %c0_i32 = arith.constant 0 : i32
    %c0_i32_0 = arith.constant 0 : i32
    %c0_i32_1 = arith.constant 0 : i32
    return %c0_i32, %c0_i32_0 : i32, i32
  }
  func.func @transform_6(%arg0: i32) -> (i32, i32) {
    %c0_i32 = arith.constant 0 : i32
    %c0_i32_0 = arith.constant 0 : i32
    %c0_i32_1 = arith.constant 0 : i32
    return %c0_i32, %c0_i32_0 : i32, i32
  }
  func.func @transform_7(%arg0: i32) -> (i32, i32) {
    %c0_i32 = arith.constant 0 : i32
    %c0_i32_0 = arith.constant 0 : i32
    %c0_i32_1 = arith.constant 0 : i32
    return %c0_i32, %c0_i32_0 : i32, i32
  }
  func.func @transform_8(%arg0: i32) -> (i32, i32) {
    %c0_i32 = arith.constant 0 : i32
    %c0_i32_0 = arith.constant 0 : i32
    %c0_i32_1 = arith.constant 0 : i32
    return %c0_i32, %c0_i32_0 : i32, i32
  }
  func.func @transform_9(%arg0: i32) -> (i32, i32) {
    %c0_i32 = arith.constant 0 : i32
    %c0_i32_0 = arith.constant 0 : i32
    %c0_i32_1 = arith.constant 0 : i32
    return %c0_i32, %c0_i32_0 : i32, i32
  }
  func.func @transform_10(%arg0: i32) -> (i32, i32) {
    %c0_i32 = arith.constant 0 : i32
    %c0_i32_0 = arith.constant 0 : i32
    %c0_i32_1 = arith.constant 0 : i32
    return %c0_i32, %c0_i32_0 : i32, i32
  }
  func.func @transform_11(%arg0: i32) -> (i32, i32) {
    %c0_i32 = arith.constant 0 : i32
    %c0_i32_0 = arith.constant 0 : i32
    %c0_i32_1 = arith.constant 0 : i32
    return %c0_i32, %c0_i32_0 : i32, i32
  }
  func.func @transform_12(%arg0: i32) -> (i32, i32) {
    %c0_i32 = arith.constant 0 : i32
    %c0_i32_0 = arith.constant 0 : i32
    %c0_i32_1 = arith.constant 0 : i32
    return %c0_i32, %c0_i32_0 : i32, i32
  }
  func.func @transform_13(%arg0: i32) -> (i32, i32) {
    %c0_i32 = arith.constant 0 : i32
    %c0_i32_0 = arith.constant 0 : i32
    return %arg0, %c0_i32 : i32, i32
  }
}

</mosaic_0001>

<llo_original>
// kernel: _mlps_forward.1
$region0: #{_mlps_forward.1}
  #allocation0 [shape = 'u32[]', space=smem, size = 0x4, offset = 0x4, fixed_abs, tag = 'smem constant byte address 0x4 - core index']
  #allocation1 [shape = 'u32[144,128]{1,0:T(1,128)}', space=vmem, size = 0x12000, scoped, tag = 'internal scratch']
  %s0 = inlined_call_operand.vmem [shape: f32[8,128], index: 0, kind: input, shape index: {}]
  %s1 = inlined_call_operand.vmem [shape: bf16[128,1024], index: 1, kind: input, shape index: {}]
  %s2 = inlined_call_operand.hbm [shape: f32[1,1024], index: 2, kind: input, shape index: {}]
  %s3 = inlined_call_operand.hbm [shape: bf16[1024,1024], index: 3, kind: input, shape index: {}]
  %s4 = inlined_call_operand.hbm [shape: f32[1,1024], index: 4, kind: input, shape index: {}]
  %s5 = inlined_call_operand.hbm [shape: bf16[1024,512], index: 5, kind: input, shape index: {}]
  %s6 = inlined_call_operand.hbm [shape: f32[1,512], index: 6, kind: input, shape index: {}]
  %s7 = inlined_call_operand.hbm [shape: bf16[512,256], index: 7, kind: input, shape index: {}]
  %s8 = inlined_call_operand.hbm [shape: f32[1,256], index: 8, kind: input, shape index: {}]
  %s9 = inlined_call_operand.hbm [shape: bf16[256,128], index: 9, kind: input, shape index: {}]
  %s10 = inlined_call_operand.hbm [shape: f32[1,128], index: 10, kind: input, shape index: {}]
  %s11 = inlined_call_operand.vmem [shape: bf16[128,128], index: 11, kind: input, shape index: {}]
  %s12 = inlined_call_operand.vmem [shape: f32[1,128], index: 12, kind: input, shape index: {}]
  %s13 = inlined_call_operand.hbm [shape: f32[8,128], index: 13, kind: output, shape index: {}]
  %s14 = sld [smem:[#allocation0]]
  $region98: #{_mlps_forward.1} parent=0
    _
  %s16 = ssub.s32 1, %s14
  %s17 = scalar_select 0, %s16, %s14
  $region1: #{_mlps_forward.1} parent=0
    #allocation2 [shape = 'u8[4096]{0}', space=vmem, size = 0x1000, scoped, tag = 'input window, operand 2, single buffered']
    #allocation3 [shape = 's32[1]{0}', space=sflag, size = 0x4, scoped, tag = 'scoped memory for _mlps_forward.1']
    #allocation4 [shape = 's32[1]{0}', space=sflag, size = 0x4, scoped, tag = 'scoped memory for _mlps_forward.1']
    #allocation5 [shape = 'u8[2097152]{0}', space=vmem, size = 0x200000, scoped, tag = 'input window, operand 3, single buffered']
    #allocation6 [shape = 's32[1]{0}', space=sflag, size = 0x4, scoped, tag = 'scoped memory for _mlps_forward.1']
    #allocation7 [shape = 'u8[4096]{0}', space=vmem, size = 0x1000, scoped, tag = 'input window, operand 4, single buffered']
    #allocation8 [shape = 'u8[1048576]{0}', space=vmem, size = 0x100000, scoped, tag = 'input window, operand 5, single buffered']
    #allocation9 [shape = 's32[1]{0}', space=sflag, size = 0x4, scoped, tag = 'scoped memory for _mlps_forward.1']
    #allocation10 [shape = 'u8[2048]{0}', space=vmem, size = 0x800, scoped, tag = 'input window, operand 6, single buffered']
    #allocation11 [shape = 'u8[262144]{0}', space=vmem, size = 0x40000, scoped, tag = 'input window, operand 7, single buffered']
    #allocation12 [shape = 's32[1]{0}', space=sflag, size = 0x4, scoped, tag = 'scoped memory for _mlps_forward.1']
    #allocation13 [shape = 'u8[1024]{0}', space=vmem, size = 0x400, scoped, tag = 'input window, operand 8, single buffered']
    #allocation14 [shape = 'u8[65536]{0}', space=vmem, size = 0x10000, scoped, tag = 'input window, operand 9, single buffered']
    #allocation15 [shape = 's32[1]{0}', space=sflag, size = 0x4, scoped, tag = 'scoped memory for _mlps_forward.1']
    #allocation16 [shape = 'u8[512]{0}', space=vmem, size = 0x400, scoped, tag = 'input window, operand 10, single buffered']
    #allocation17 [shape = 'u8[4096]{0}', space=vmem, size = 0x1000, scoped, tag = 'output window, operand 0, single buffered']
    %18 = vsyncpa [#allocation3], 0
    %19 = vsyncpa [#allocation6], 0
    %20 = vsyncpa [#allocation9], 0
    %21 = vsyncpa [#allocation12], 0
    %22 = vsyncpa [#allocation15], 0
    %23 = vsyncpa [#allocation4], 0
    // Predicated region
    $region2: #{_mlps_forward.1} parent=1 // pred_check
      _
    $region3: #{_mlps_forward.1} parent=1 // pred_check_branch
      %25 = sbr.rel (0) target = $region5
    $region4: #{_mlps_forward.1} parent=1 // pred_region
      _
    $region5: #{_mlps_forward.1} parent=1 // pred_fallthru
      _
    // Predicated region
    $region6: #{_mlps_forward.1} parent=1 // pred_check
      _
    $region7: #{_mlps_forward.1} parent=1 // pred_check_branch
      %27 = sbr.rel (0) target = $region9
    $region8: #{_mlps_forward.1} parent=1 // pred_region
      _
    $region9: #{_mlps_forward.1} parent=1 // pred_fallthru
      _
    // Predicated region
    $region10: #{_mlps_forward.1} parent=1 // pred_check
      _
    $region11: #{_mlps_forward.1} parent=1 // pred_check_branch
      %29 = sbr.rel (0) target = $region13
    $region12: #{_mlps_forward.1} parent=1 // pred_region
      %s31 = ssub.s32 128, 128
      %32 = vsyncadd [#allocation3], %s31
      %s34 = sshll.u32 [#allocation2], 4
      %s35 = int_to_ptr.vmem [resolvable:$true] %s34
      %37 = dma.hbm_to_vmem [thread:$0]  %s2, 128, %s35, [#allocation3]
    $region13: #{_mlps_forward.1} parent=1 // pred_fallthru
      _
    // Predicated region
    $region14: #{_mlps_forward.1} parent=1 // pred_check
      _
    $region15: #{_mlps_forward.1} parent=1 // pred_check_branch
      %39 = sbr.rel (0) target = $region17
    $region16: #{_mlps_forward.1} parent=1 // pred_region
      %s41 = ssub.s32 65536, 65536
      %42 = vsyncadd [#allocation6], %s41
      %s43 = sshll.u32 [#allocation5], 4
      %s44 = int_to_ptr.vmem [resolvable:$true] %s43
      %49 = dma.hbm_to_vmem [thread:$0]  %s3, 65536, %s44, [#allocation6], 512, 512, 32
    $region17: #{_mlps_forward.1} parent=1 // pred_fallthru
      _
    // Predicated region
    $region18: #{_mlps_forward.1} parent=1 // pred_check
      _
    $region19: #{_mlps_forward.1} parent=1 // pred_check_branch
      %51 = sbr.rel (0) target = $region21
    $region20: #{_mlps_forward.1} parent=1 // pred_region
      %s53 = ssub.s32 128, 128
      %54 = vsyncadd [#allocation6], %s53
      %s56 = sshll.u32 [#allocation7], 4
      %s57 = int_to_ptr.vmem [resolvable:$true] %s56
      %59 = dma.hbm_to_vmem [thread:$0]  %s4, 128, %s57, [#allocation6]
    $region21: #{_mlps_forward.1} parent=1 // pred_fallthru
      _
    // Predicated region
    $region22: #{_mlps_forward.1} parent=1 // pred_check
      _
    $region23: #{_mlps_forward.1} parent=1 // pred_check_branch
      %61 = sbr.rel (0) target = $region25
    $region24: #{_mlps_forward.1} parent=1 // pred_region
      %s63 = ssub.s32 32768, 32768
      %64 = vsyncadd [#allocation9], %s63
      %s65 = sshll.u32 [#allocation8], 4
      %s66 = int_to_ptr.vmem [resolvable:$true] %s65
      %71 = dma.hbm_to_vmem [thread:$0]  %s5, 32768, %s66, [#allocation9], 256, 256, 16
    $region25: #{_mlps_forward.1} parent=1 // pred_fallthru
      _
    // Predicated region
    $region26: #{_mlps_forward.1} parent=1 // pred_check
      _
    $region27: #{_mlps_forward.1} parent=1 // pred_check_branch
      %73 = sbr.rel (0) target = $region29
    $region28: #{_mlps_forward.1} parent=1 // pred_region
      %s75 = ssub.s32 64, 64
      %76 = vsyncadd [#allocation9], %s75
      %s78 = sshll.u32 [#allocation10], 4
      %s79 = int_to_ptr.vmem [resolvable:$true] %s78
      %81 = dma.hbm_to_vmem [thread:$0]  %s6, 64, %s79, [#allocation9]
    $region29: #{_mlps_forward.1} parent=1 // pred_fallthru
      _
    // Predicated region
    $region30: #{_mlps_forward.1} parent=1 // pred_check
      _
    $region31: #{_mlps_forward.1} parent=1 // pred_check_branch
      %83 = sbr.rel (0) target = $region33
    $region32: #{_mlps_forward.1} parent=1 // pred_region
      %s85 = ssub.s32 8192, 8192
      %86 = vsyncadd [#allocation12], %s85
      %s87 = sshll.u32 [#allocation11], 4
      %s88 = int_to_ptr.vmem [resolvable:$true] %s87
      %93 = dma.hbm_to_vmem [thread:$0]  %s7, 8192, %s88, [#allocation12], 128, 128, 8
    $region33: #{_mlps_forward.1} parent=1 // pred_fallthru
      _
    // Predicated region
    $region34: #{_mlps_forward.1} parent=1 // pred_check
      _
    $region35: #{_mlps_forward.1} parent=1 // pred_check_branch
      %95 = sbr.rel (0) target = $region37
    $region36: #{_mlps_forward.1} parent=1 // pred_region
      %s97 = ssub.s32 32, 32
      %98 = vsyncadd [#allocation12], %s97
      %s100 = sshll.u32 [#allocation13], 4
      %s101 = int_to_ptr.vmem [resolvable:$true] %s100
      %103 = dma.hbm_to_vmem [thread:$0]  %s8, 32, %s101, [#allocation12]
    $region37: #{_mlps_forward.1} parent=1 // pred_fallthru
      _
    // Predicated region
    $region38: #{_mlps_forward.1} parent=1 // pred_check
      _
    $region39: #{_mlps_forward.1} parent=1 // pred_check_branch
      %105 = sbr.rel (0) target = $region41
    $region40: #{_mlps_forward.1} parent=1 // pred_region
      %s107 = ssub.s32 2048, 2048
      %108 = vsyncadd [#allocation15], %s107
      %s109 = sshll.u32 [#allocation14], 4
      %s110 = int_to_ptr.vmem [resolvable:$true] %s109
      %115 = dma.hbm_to_vmem [thread:$0]  %s9, 2048, %s110, [#allocation15], 64, 64, 4
    $region41: #{_mlps_forward.1} parent=1 // pred_fallthru
      _
    // Predicated region
    $region42: #{_mlps_forward.1} parent=1 // pred_check
      _
    $region43: #{_mlps_forward.1} parent=1 // pred_check_branch
      %117 = sbr.rel (0) target = $region45
    $region44: #{_mlps_forward.1} parent=1 // pred_region
      %s119 = ssub.s32 16, 16
      %120 = vsyncadd [#allocation15], %s119
      %s122 = sshll.u32 [#allocation16], 4
      %s123 = int_to_ptr.vmem [resolvable:$true] %s122
      %125 = dma.hbm_to_vmem [thread:$0]  %s10, 16, %s123, [#allocation15]
    $region45: #{_mlps_forward.1} parent=1 // pred_fallthru
      _
    // Predicated region
    $region46: #{_mlps_forward.1} parent=1 // pred_check
      _
    $region47: #{_mlps_forward.1} parent=1 // pred_check_branch
      %127 = sbr.rel (0) target = $region49
    $region48: #{_mlps_forward.1} parent=1 // pred_region
      _
    $region49: #{_mlps_forward.1} parent=1 // pred_fallthru
      _
    // Predicated region
    $region50: #{_mlps_forward.1} parent=1 // pred_check
      _
    $region51: #{_mlps_forward.1} parent=1 // pred_check_branch
      %129 = sbr.rel (0) target = $region53
    $region52: #{_mlps_forward.1} parent=1 // pred_region
      _
    $region53: #{_mlps_forward.1} parent=1 // pred_fallthru
      _
    // Predicated region
    $region54: #{_mlps_forward.1} parent=1 // pred_check
      _
    $region55: #{_mlps_forward.1} parent=1 // pred_check_branch
      %131 = sbr.rel (0) target = $region57
    $region56: #{_mlps_forward.1} parent=1 // pred_region
      %132 = dma.done [#allocation3], 128
    $region57: #{_mlps_forward.1} parent=1 // pred_fallthru
      _
    // Predicated region
    $region58: #{_mlps_forward.1} parent=1 // pred_check
      _
    $region59: #{_mlps_forward.1} parent=1 // pred_check_branch
      %134 = sbr.rel (0) target = $region61
    $region60: #{_mlps_forward.1} parent=1 // pred_region
      %135 = dma.done [#allocation6], 65536
    $region61: #{_mlps_forward.1} parent=1 // pred_fallthru
      _
    // Predicated region
    $region62: #{_mlps_forward.1} parent=1 // pred_check
      _
    $region63: #{_mlps_forward.1} parent=1 // pred_check_branch
      %137 = sbr.rel (0) target = $region65
    $region64: #{_mlps_forward.1} parent=1 // pred_region
      %138 = dma.done [#allocation6], 128
    $region65: #{_mlps_forward.1} parent=1 // pred_fallthru
      _
    // Predicated region
    $region66: #{_mlps_forward.1} parent=1 // pred_check
      _
    $region67: #{_mlps_forward.1} parent=1 // pred_check_branch
      %140 = sbr.rel (0) target = $region69
    $region68: #{_mlps_forward.1} parent=1 // pred_region
      %141 = dma.done [#allocation9], 32768
    $region69: #{_mlps_forward.1} parent=1 // pred_fallthru
      _
    // Predicated region
    $region70: #{_mlps_forward.1} parent=1 // pred_check
      _
    $region71: #{_mlps_forward.1} parent=1 // pred_check_branch
      %143 = sbr.rel (0) target = $region73
    $region72: #{_mlps_forward.1} parent=1 // pred_region
      %144 = dma.done [#allocation9], 64
    $region73: #{_mlps_forward.1} parent=1 // pred_fallthru
      _
    // Predicated region
    $region74: #{_mlps_forward.1} parent=1 // pred_check
      _
    $region75: #{_mlps_forward.1} parent=1 // pred_check_branch
      %146 = sbr.rel (0) target = $region77
    $region76: #{_mlps_forward.1} parent=1 // pred_region
      %147 = dma.done [#allocation12], 8192
    $region77: #{_mlps_forward.1} parent=1 // pred_fallthru
      _
    // Predicated region
    $region78: #{_mlps_forward.1} parent=1 // pred_check
      _
    $region79: #{_mlps_forward.1} parent=1 // pred_check_branch
      %149 = sbr.rel (0) target = $region81
    $region80: #{_mlps_forward.1} parent=1 // pred_region
      %150 = dma.done [#allocation12], 32
    $region81: #{_mlps_forward.1} parent=1 // pred_fallthru
      _
    // Predicated region
    $region82: #{_mlps_forward.1} parent=1 // pred_check
      _
    $region83: #{_mlps_forward.1} parent=1 // pred_check_branch
      %152 = sbr.rel (0) target = $region85
    $region84: #{_mlps_forward.1} parent=1 // pred_region
      %153 = dma.done [#allocation15], 2048
    $region85: #{_mlps_forward.1} parent=1 // pred_fallthru
      _
    // Predicated region
    $region86: #{_mlps_forward.1} parent=1 // pred_check
      _
    $region87: #{_mlps_forward.1} parent=1 // pred_check_branch
      %155 = sbr.rel (0) target = $region89
    $region88: #{_mlps_forward.1} parent=1 // pred_region
      %156 = dma.done [#allocation15], 16
    $region89: #{_mlps_forward.1} parent=1 // pred_fallthru
      _
    %v158 = vld [vmem:[%s0] sm:$0xff]
    %v159 = vpack.c.bf16 %v158, %v158
    %v160 = vld [vmem:[%s1] sm:$0xff]
    %v161 = vld [vmem:[%s1 + $0x8] sm:$0xff]
    %v162 = vld [vmem:[%s1 + $0x10] sm:$0xff]
    %v163 = vld [vmem:[%s1 + $0x18] sm:$0xff]
    %v164 = vld [vmem:[%s1 + $0x20] sm:$0xff]
    %v165 = vld [vmem:[%s1 + $0x28] sm:$0xff]
    %v166 = vld [vmem:[%s1 + $0x30] sm:$0xff]
    %v167 = vld [vmem:[%s1 + $0x38] sm:$0xff]
    %v168 = vld [vmem:[%s1 + $0x40] sm:$0xff]
    %v169 = vld [vmem:[%s1 + $0x48] sm:$0xff]
    %v170 = vld [vmem:[%s1 + $0x50] sm:$0xff]
    %v171 = vld [vmem:[%s1 + $0x58] sm:$0xff]
    %v172 = vld [vmem:[%s1 + $0x60] sm:$0xff]
    %v173 = vld [vmem:[%s1 + $0x68] sm:$0xff]
    %v174 = vld [vmem:[%s1 + $0x70] sm:$0xff]
    %v175 = vld [vmem:[%s1 + $0x78] sm:$0xff]
    %v176 = vld [vmem:[%s1 + $0x80] sm:$0xff]
    %v177 = vld [vmem:[%s1 + $0x88] sm:$0xff]
    %v178 = vld [vmem:[%s1 + $0x90] sm:$0xff]
    %v179 = vld [vmem:[%s1 + $0x98] sm:$0xff]
    %v180 = vld [vmem:[%s1 + $0xa0] sm:$0xff]
    %v181 = vld [vmem:[%s1 + $0xa8] sm:$0xff]
    %v182 = vld [vmem:[%s1 + $0xb0] sm:$0xff]
    %v183 = vld [vmem:[%s1 + $0xb8] sm:$0xff]
    %v184 = vld [vmem:[%s1 + $0xc0] sm:$0xff]
    %v185 = vld [vmem:[%s1 + $0xc8] sm:$0xff]
    %v186 = vld [vmem:[%s1 + $0xd0] sm:$0xff]
    %v187 = vld [vmem:[%s1 + $0xd8] sm:$0xff]
    %v188 = vld [vmem:[%s1 + $0xe0] sm:$0xff]
    %v189 = vld [vmem:[%s1 + $0xe8] sm:$0xff]
    %v190 = vld [vmem:[%s1 + $0xf0] sm:$0xff]
    %v191 = vld [vmem:[%s1 + $0xf8] sm:$0xff]
    %v192 = vld [vmem:[%s1 + $0x100] sm:$0xff]
    %v193 = vld [vmem:[%s1 + $0x108] sm:$0xff]
    %v194 = vld [vmem:[%s1 + $0x110] sm:$0xff]
    %v195 = vld [vmem:[%s1 + $0x118] sm:$0xff]
    %v196 = vld [vmem:[%s1 + $0x120] sm:$0xff]
    %v197 = vld [vmem:[%s1 + $0x128] sm:$0xff]
    %v198 = vld [vmem:[%s1 + $0x130] sm:$0xff]
    %v199 = vld [vmem:[%s1 + $0x138] sm:$0xff]
    %v200 = vld [vmem:[%s1 + $0x140] sm:$0xff]
    %v201 = vld [vmem:[%s1 + $0x148] sm:$0xff]
    %v202 = vld [vmem:[%s1 + $0x150] sm:$0xff]
    %v203 = vld [vmem:[%s1 + $0x158] sm:$0xff]
    %v204 = vld [vmem:[%s1 + $0x160] sm:$0xff]
    %v205 = vld [vmem:[%s1 + $0x168] sm:$0xff]
    %v206 = vld [vmem:[%s1 + $0x170] sm:$0xff]
    %v207 = vld [vmem:[%s1 + $0x178] sm:$0xff]
    %v208 = vld [vmem:[%s1 + $0x180] sm:$0xff]
    %v209 = vld [vmem:[%s1 + $0x188] sm:$0xff]
    %v210 = vld [vmem:[%s1 + $0x190] sm:$0xff]
    %v211 = vld [vmem:[%s1 + $0x198] sm:$0xff]
    %v212 = vld [vmem:[%s1 + $0x1a0] sm:$0xff]
    %v213 = vld [vmem:[%s1 + $0x1a8] sm:$0xff]
    %v214 = vld [vmem:[%s1 + $0x1b0] sm:$0xff]
    %v215 = vld [vmem:[%s1 + $0x1b8] sm:$0xff]
    %v216 = vld [vmem:[%s1 + $0x1c0] sm:$0xff]
    %v217 = vld [vmem:[%s1 + $0x1c8] sm:$0xff]
    %v218 = vld [vmem:[%s1 + $0x1d0] sm:$0xff]
    %v219 = vld [vmem:[%s1 + $0x1d8] sm:$0xff]
    %v220 = vld [vmem:[%s1 + $0x1e0] sm:$0xff]
    %v221 = vld [vmem:[%s1 + $0x1e8] sm:$0xff]
    %v222 = vld [vmem:[%s1 + $0x1f0] sm:$0xff]
    %v223 = vld [vmem:[%s1 + $0x1f8] sm:$0xff]
    %v224 = vld [vmem:[#allocation2] sm:$0xff]
    %v226 = vlaneseq
    %v227 = vshrl.u32 %v226, 7
    %v228 = vsub.s32 0, %v227
    %v229 = vrot.slane %v224, %v228
    %v230 = vlaneseq
    %v231 = vshrl.u32 %v230, 7
    %v232 = vsub.s32 1, %v231
    %v233 = vrot.slane %v224, %v232
    %v234 = vlaneseq
    %v235 = vshrl.u32 %v234, 7
    %v236 = vsub.s32 2, %v235
    %v237 = vrot.slane %v224, %v236
    %v238 = vlaneseq
    %v239 = vshrl.u32 %v238, 7
    %v240 = vsub.s32 3, %v239
    %v241 = vrot.slane %v224, %v240
    %v242 = vlaneseq
    %v243 = vshrl.u32 %v242, 7
    %v244 = vsub.s32 4, %v243
    %v245 = vrot.slane %v224, %v244
    %v246 = vlaneseq
    %v247 = vshrl.u32 %v246, 7
    %v248 = vsub.s32 5, %v247
    %v249 = vrot.slane %v224, %v248
    %v250 = vlaneseq
    %v251 = vshrl.u32 %v250, 7
    %v252 = vsub.s32 6, %v251
    %v253 = vrot.slane %v224, %v252
    %v254 = vlaneseq
    %v255 = vshrl.u32 %v254, 7
    %v256 = vsub.s32 7, %v255
    %v257 = vrot.slane %v224, %v256
    %v330 = vunpack.c.l.b16 %v160
    %v331 = vunpack.c.h.b16 %v160
    %v332 = vunpack.c.l.b16 %v161
    %v333 = vunpack.c.h.b16 %v161
    %v334 = vunpack.c.l.b16 %v162
    %v335 = vunpack.c.h.b16 %v162
    %v336 = vunpack.c.l.b16 %v163
    %v337 = vunpack.c.h.b16 %v163
    %v338 = vunpack.c.l.b16 %v164
    %v339 = vunpack.c.h.b16 %v164
    %v340 = vunpack.c.l.b16 %v165
    %v341 = vunpack.c.h.b16 %v165
    %v342 = vunpack.c.l.b16 %v166
    %v343 = vunpack.c.h.b16 %v166
    %v344 = vunpack.c.l.b16 %v167
    %v345 = vunpack.c.h.b16 %v167
    %v346 = vunpack.c.l.b16 %v168
    %v347 = vunpack.c.h.b16 %v168
    %v348 = vunpack.c.l.b16 %v169
    %v349 = vunpack.c.h.b16 %v169
    %v350 = vunpack.c.l.b16 %v170
    %v351 = vunpack.c.h.b16 %v170
    %v352 = vunpack.c.l.b16 %v171
    %v353 = vunpack.c.h.b16 %v171
    %v354 = vunpack.c.l.b16 %v172
    %v355 = vunpack.c.h.b16 %v172
    %v356 = vunpack.c.l.b16 %v173
    %v357 = vunpack.c.h.b16 %v173
    %v358 = vunpack.c.l.b16 %v174
    %v359 = vunpack.c.h.b16 %v174
    %v360 = vunpack.c.l.b16 %v175
    %v361 = vunpack.c.h.b16 %v175
    %v362 = vunpack.c.l.b16 %v176
    %v363 = vunpack.c.h.b16 %v176
    %v364 = vunpack.c.l.b16 %v177
    %v365 = vunpack.c.h.b16 %v177
    %v366 = vunpack.c.l.b16 %v178
    %v367 = vunpack.c.h.b16 %v178
    %v368 = vunpack.c.l.b16 %v179
    %v369 = vunpack.c.h.b16 %v179
    %v370 = vunpack.c.l.b16 %v180
    %v371 = vunpack.c.h.b16 %v180
    %v372 = vunpack.c.l.b16 %v181
    %v373 = vunpack.c.h.b16 %v181
    %v374 = vunpack.c.l.b16 %v182
    %v375 = vunpack.c.h.b16 %v182
    %v376 = vunpack.c.l.b16 %v183
    %v377 = vunpack.c.h.b16 %v183
    %v378 = vunpack.c.l.b16 %v184
    %v379 = vunpack.c.h.b16 %v184
    %v380 = vunpack.c.l.b16 %v185
    %v381 = vunpack.c.h.b16 %v185
    %v382 = vunpack.c.l.b16 %v186
    %v383 = vunpack.c.h.b16 %v186
    %v384 = vunpack.c.l.b16 %v187
    %v385 = vunpack.c.h.b16 %v187
    %v386 = vunpack.c.l.b16 %v188
    %v387 = vunpack.c.h.b16 %v188
    %v388 = vunpack.c.l.b16 %v189
    %v389 = vunpack.c.h.b16 %v189
    %v390 = vunpack.c.l.b16 %v190
    %v391 = vunpack.c.h.b16 %v190
    %v392 = vunpack.c.l.b16 %v191
    %v393 = vunpack.c.h.b16 %v191
    %v394 = vunpack.c.l.b16 %v192
    %v395 = vunpack.c.h.b16 %v192
    %v396 = vunpack.c.l.b16 %v193
    %v397 = vunpack.c.h.b16 %v193
    %v398 = vunpack.c.l.b16 %v194
    %v399 = vunpack.c.h.b16 %v194
    %v400 = vunpack.c.l.b16 %v195
    %v401 = vunpack.c.h.b16 %v195
    %v402 = vunpack.c.l.b16 %v196
    %v403 = vunpack.c.h.b16 %v196
    %v404 = vunpack.c.l.b16 %v197
    %v405 = vunpack.c.h.b16 %v197
    %v406 = vunpack.c.l.b16 %v198
    %v407 = vunpack.c.h.b16 %v198
    %v408 = vunpack.c.l.b16 %v199
    %v409 = vunpack.c.h.b16 %v199
    %v410 = vunpack.c.l.b16 %v200
    %v411 = vunpack.c.h.b16 %v200
    %v412 = vunpack.c.l.b16 %v201
    %v413 = vunpack.c.h.b16 %v201
    %v414 = vunpack.c.l.b16 %v202
    %v415 = vunpack.c.h.b16 %v202
    %v416 = vunpack.c.l.b16 %v203
    %v417 = vunpack.c.h.b16 %v203
    %v418 = vunpack.c.l.b16 %v204
    %v419 = vunpack.c.h.b16 %v204
    %v420 = vunpack.c.l.b16 %v205
    %v421 = vunpack.c.h.b16 %v205
    %v422 = vunpack.c.l.b16 %v206
    %v423 = vunpack.c.h.b16 %v206
    %v424 = vunpack.c.l.b16 %v207
    %v425 = vunpack.c.h.b16 %v207
    %v426 = vunpack.c.l.b16 %v208
    %v427 = vunpack.c.h.b16 %v208
    %v428 = vunpack.c.l.b16 %v209
    %v429 = vunpack.c.h.b16 %v209
    %v430 = vunpack.c.l.b16 %v210
    %v431 = vunpack.c.h.b16 %v210
    %v432 = vunpack.c.l.b16 %v211
    %v433 = vunpack.c.h.b16 %v211
    %v434 = vunpack.c.l.b16 %v212
    %v435 = vunpack.c.h.b16 %v212
    %v436 = vunpack.c.l.b16 %v213
    %v437 = vunpack.c.h.b16 %v213
    %v438 = vunpack.c.l.b16 %v214
    %v439 = vunpack.c.h.b16 %v214
    %v440 = vunpack.c.l.b16 %v215
    %v441 = vunpack.c.h.b16 %v215
    %v442 = vunpack.c.l.b16 %v216
    %v443 = vunpack.c.h.b16 %v216
    %v444 = vunpack.c.l.b16 %v217
    %v445 = vunpack.c.h.b16 %v217
    %v446 = vunpack.c.l.b16 %v218
    %v447 = vunpack.c.h.b16 %v218
    %v448 = vunpack.c.l.b16 %v219
    %v449 = vunpack.c.h.b16 %v219
    %v450 = vunpack.c.l.b16 %v220
    %v451 = vunpack.c.h.b16 %v220
    %v452 = vunpack.c.l.b16 %v221
    %v453 = vunpack.c.h.b16 %v221
    %v454 = vunpack.c.l.b16 %v222
    %v455 = vunpack.c.h.b16 %v222
    %v456 = vunpack.c.l.b16 %v223
    %v457 = vunpack.c.h.b16 %v223
    %v458 = vpack.c.b16 %v338, %v330
    %v459 = vpack.c.b16 %v339, %v331
    %v460 = vpack.c.b16 %v340, %v332
    %v461 = vpack.c.b16 %v341, %v333
    %v462 = vpack.c.b16 %v342, %v334
    %v463 = vpack.c.b16 %v343, %v335
    %v464 = vpack.c.b16 %v344, %v336
    %v465 = vpack.c.b16 %v345, %v337
    %v466 = vpack.c.b16 %v354, %v346
    %v467 = vpack.c.b16 %v355, %v347
    %v468 = vpack.c.b16 %v356, %v348
    %v469 = vpack.c.b16 %v357, %v349
    %v470 = vpack.c.b16 %v358, %v350
    %v471 = vpack.c.b16 %v359, %v351
    %v472 = vpack.c.b16 %v360, %v352
    %v473 = vpack.c.b16 %v361, %v353
    %v474 = vpack.c.b16 %v370, %v362
    %v475 = vpack.c.b16 %v371, %v363
    %v476 = vpack.c.b16 %v372, %v364
    %v477 = vpack.c.b16 %v373, %v365
    %v478 = vpack.c.b16 %v374, %v366
    %v479 = vpack.c.b16 %v375, %v367
    %v480 = vpack.c.b16 %v376, %v368
    %v481 = vpack.c.b16 %v377, %v369
    %v482 = vpack.c.b16 %v386, %v378
    %v483 = vpack.c.b16 %v387, %v379
    %v484 = vpack.c.b16 %v388, %v380
    %v485 = vpack.c.b16 %v389, %v381
    %v486 = vpack.c.b16 %v390, %v382
    %v487 = vpack.c.b16 %v391, %v383
    %v488 = vpack.c.b16 %v392, %v384
    %v489 = vpack.c.b16 %v393, %v385
    %v490 = vpack.c.b16 %v402, %v394
    %v491 = vpack.c.b16 %v403, %v395
    %v492 = vpack.c.b16 %v404, %v396
    %v493 = vpack.c.b16 %v405, %v397
    %v494 = vpack.c.b16 %v406, %v398
    %v495 = vpack.c.b16 %v407, %v399
    %v496 = vpack.c.b16 %v408, %v400
    %v497 = vpack.c.b16 %v409, %v401
    %v498 = vpack.c.b16 %v418, %v410
    %v499 = vpack.c.b16 %v419, %v411
    %v500 = vpack.c.b16 %v420, %v412
    %v501 = vpack.c.b16 %v421, %v413
    %v502 = vpack.c.b16 %v422, %v414
    %v503 = vpack.c.b16 %v423, %v415
    %v504 = vpack.c.b16 %v424, %v416
    %v505 = vpack.c.b16 %v425, %v417
    %v506 = vpack.c.b16 %v434, %v426
    %v507 = vpack.c.b16 %v435, %v427
    %v508 = vpack.c.b16 %v436, %v428
    %v509 = vpack.c.b16 %v437, %v429
    %v510 = vpack.c.b16 %v438, %v430
    %v511 = vpack.c.b16 %v439, %v431
    %v512 = vpack.c.b16 %v440, %v432
    %v513 = vpack.c.b16 %v441, %v433
    %v514 = vpack.c.b16 %v450, %v442
    %v515 = vpack.c.b16 %v451, %v443
    %v516 = vpack.c.b16 %v452, %v444
    %v517 = vpack.c.b16 %v453, %v445
    %v518 = vpack.c.b16 %v454, %v446
    %v519 = vpack.c.b16 %v455, %v447
    %v520 = vpack.c.b16 %v456, %v448
    %v521 = vpack.c.b16 %v457, %v449
    %586 = vmatprep.subr.bf16.mxu0 %v459
    %587 = vmatpush1.bf16.msra.mxu0 %v458
    %588 = vmatprep.subr.bf16.mxu0 %v467
    %589 = vmatpush1.bf16.msra.mxu0 %v466
    %590 = vmatprep.subr.bf16.mxu0 %v475
    %591 = vmatpush1.bf16.msra.mxu0 %v474
    %592 = vmatprep.subr.bf16.mxu0 %v483
    %593 = vmatpush1.bf16.msra.mxu0 %v482
    %594 = vmatprep.subr.bf16.mxu0 %v491
    %595 = vmatpush1.bf16.msra.mxu0 %v490
    %596 = vmatprep.subr.bf16.mxu0 %v499
    %597 = vmatpush1.bf16.msra.mxu0 %v498
    %598 = vmatprep.subr.bf16.mxu0 %v507
    %599 = vmatpush1.bf16.msra.mxu0 %v506
    %600 = vmatprep.subr.bf16.mxu0 %v515
    %601 = vmatpush1.bf16.msra.mxu0 %v514
    %602 = vmatprep.subr.bf16.mxu0 0
    %603 = vmatpush1.bf16.msra.mxu0 0
    %604 = vmatprep.subr.bf16.mxu0 0
    %605 = vmatpush1.bf16.msra.mxu0 0
    %606 = vmatprep.subr.bf16.mxu0 0
    %607 = vmatpush1.bf16.msra.mxu0 0
    %608 = vmatprep.subr.bf16.mxu0 0
    %609 = vmatpush1.bf16.msra.mxu0 0
    %610 = vmatprep.subr.bf16.mxu0 0
    %611 = vmatpush1.bf16.msra.mxu0 0
    %612 = vmatprep.subr.bf16.mxu0 0
    %613 = vmatpush1.bf16.msra.mxu0 0
    %614 = vmatprep.subr.bf16.mxu0 0
    %615 = vmatpush1.bf16.msra.mxu0 0
    %616 = vmatprep.subr.bf16.mxu0 0
    %617 = vmatpush1.bf16.msra.mxu0 0
    %618 = vmatprep.mubr.bf16.mxu0 0
    %619 = vmatmul.mubr.bf16.gmra.mrb[0].mxu0 %v159
    %v620 = vpop.f32.mrb[0].mxu0
    %v621 = vadd.f32 %v229, %v620
    %v622 = vpop.f32.mrb[0].mxu0
    %v623 = vadd.f32 %v233, %v622
    %v624 = vpop.f32.mrb[0].mxu0
    %v625 = vpop.f32.mrb[0].mxu0
    %626 = vdwg.mxu0
    %627 = vmatprep.subr.bf16.mxu0 %v461
    %628 = vmatpush1.bf16.msra.mxu0 %v460
    %629 = vmatprep.subr.bf16.mxu0 %v469
    %630 = vmatpush1.bf16.msra.mxu0 %v468
    %631 = vmatprep.subr.bf16.mxu0 %v477
    %632 = vmatpush1.bf16.msra.mxu0 %v476
    %633 = vmatprep.subr.bf16.mxu0 %v485
    %634 = vmatpush1.bf16.msra.mxu0 %v484
    %635 = vmatprep.subr.bf16.mxu0 %v493
    %636 = vmatpush1.bf16.msra.mxu0 %v492
    %637 = vmatprep.subr.bf16.mxu0 %v501
    %638 = vmatpush1.bf16.msra.mxu0 %v500
    %639 = vmatprep.subr.bf16.mxu0 %v509
    %640 = vmatpush1.bf16.msra.mxu0 %v508
    %641 = vmatprep.subr.bf16.mxu0 %v517
    %642 = vmatpush1.bf16.msra.mxu0 %v516
    %643 = vmatprep.subr.bf16.mxu0 0
    %644 = vmatpush1.bf16.msra.mxu0 0
    %645 = vmatprep.subr.bf16.mxu0 0
    %646 = vmatpush1.bf16.msra.mxu0 0
    %647 = vmatprep.subr.bf16.mxu0 0
    %648 = vmatpush1.bf16.msra.mxu0 0
    %649 = vmatprep.subr.bf16.mxu0 0
    %650 = vmatpush1.bf16.msra.mxu0 0
    %651 = vmatprep.subr.bf16.mxu0 0
    %652 = vmatpush1.bf16.msra.mxu0 0
    %653 = vmatprep.subr.bf16.mxu0 0
    %654 = vmatpush1.bf16.msra.mxu0 0
    %655 = vmatprep.subr.bf16.mxu0 0
    %656 = vmatpush1.bf16.msra.mxu0 0
    %657 = vmatprep.subr.bf16.mxu0 0
    %658 = vmatpush1.bf16.msra.mxu0 0
    %659 = vmatprep.mubr.bf16.mxu0 0
    %660 = vmatmul.mubr.bf16.gmra.mrb[0].mxu0 %v159
    %v661 = vpop.f32.mrb[0].mxu0
    %v662 = vadd.f32 %v237, %v661
    %v663 = vpop.f32.mrb[0].mxu0
    %v664 = vadd.f32 %v241, %v663
    %v665 = vpop.f32.mrb[0].mxu0
    %v666 = vpop.f32.mrb[0].mxu0
    %667 = vdwg.mxu0
    %668 = vmatprep.subr.bf16.mxu0 %v463
    %669 = vmatpush1.bf16.msra.mxu0 %v462
    %670 = vmatprep.subr.bf16.mxu0 %v471
    %671 = vmatpush1.bf16.msra.mxu0 %v470
    %672 = vmatprep.subr.bf16.mxu0 %v479
    %673 = vmatpush1.bf16.msra.mxu0 %v478
    %674 = vmatprep.subr.bf16.mxu0 %v487
    %675 = vmatpush1.bf16.msra.mxu0 %v486
    %676 = vmatprep.subr.bf16.mxu0 %v495
    %677 = vmatpush1.bf16.msra.mxu0 %v494
    %678 = vmatprep.subr.bf16.mxu0 %v503
    %679 = vmatpush1.bf16.msra.mxu0 %v502
    %680 = vmatprep.subr.bf16.mxu0 %v511
    %681 = vmatpush1.bf16.msra.mxu0 %v510
    %682 = vmatprep.subr.bf16.mxu0 %v519
    %683 = vmatpush1.bf16.msra.mxu0 %v518
    %684 = vmatprep.subr.bf16.mxu0 0
    %685 = vmatpush1.bf16.msra.mxu0 0
    %686 = vmatprep.subr.bf16.mxu0 0
    %687 = vmatpush1.bf16.msra.mxu0 0
    %688 = vmatprep.subr.bf16.mxu0 0
    %689 = vmatpush1.bf16.msra.mxu0 0
    %690 = vmatprep.subr.bf16.mxu0 0
    %691 = vmatpush1.bf16.msra.mxu0 0
    %692 = vmatprep.subr.bf16.mxu0 0
    %693 = vmatpush1.bf16.msra.mxu0 0
    %694 = vmatprep.subr.bf16.mxu0 0
    %695 = vmatpush1.bf16.msra.mxu0 0
    %696 = vmatprep.subr.bf16.mxu0 0
    %697 = vmatpush1.bf16.msra.mxu0 0
    %698 = vmatprep.subr.bf16.mxu0 0
    %699 = vmatpush1.bf16.msra.mxu0 0
    %700 = vmatprep.mubr.bf16.mxu0 0
    %701 = vmatmul.mubr.bf16.gmra.mrb[0].mxu0 %v159
    %v702 = vpop.f32.mrb[0].mxu0
    %v703 = vadd.f32 %v245, %v702
    %v704 = vpop.f32.mrb[0].mxu0
    %v705 = vadd.f32 %v249, %v704
    %v706 = vpop.f32.mrb[0].mxu0
    %v707 = vpop.f32.mrb[0].mxu0
    %708 = vdwg.mxu0
    %709 = vmatprep.subr.bf16.mxu0 %v465
    %710 = vmatpush1.bf16.msra.mxu0 %v464
    %711 = vmatprep.subr.bf16.mxu0 %v473
    %712 = vmatpush1.bf16.msra.mxu0 %v472
    %713 = vmatprep.subr.bf16.mxu0 %v481
    %714 = vmatpush1.bf16.msra.mxu0 %v480
    %715 = vmatprep.subr.bf16.mxu0 %v489
    %716 = vmatpush1.bf16.msra.mxu0 %v488
    %717 = vmatprep.subr.bf16.mxu0 %v497
    %718 = vmatpush1.bf16.msra.mxu0 %v496
    %719 = vmatprep.subr.bf16.mxu0 %v505
    %720 = vmatpush1.bf16.msra.mxu0 %v504
    %721 = vmatprep.subr.bf16.mxu0 %v513
    %722 = vmatpush1.bf16.msra.mxu0 %v512
    %723 = vmatprep.subr.bf16.mxu0 %v521
    %724 = vmatpush1.bf16.msra.mxu0 %v520
    %725 = vmatprep.subr.bf16.mxu0 0
    %726 = vmatpush1.bf16.msra.mxu0 0
    %727 = vmatprep.subr.bf16.mxu0 0
    %728 = vmatpush1.bf16.msra.mxu0 0
    %729 = vmatprep.subr.bf16.mxu0 0
    %730 = vmatpush1.bf16.msra.mxu0 0
    %731 = vmatprep.subr.bf16.mxu0 0
    %732 = vmatpush1.bf16.msra.mxu0 0
    %733 = vmatprep.subr.bf16.mxu0 0
    %734 = vmatpush1.bf16.msra.mxu0 0
    %735 = vmatprep.subr.bf16.mxu0 0
    %736 = vmatpush1.bf16.msra.mxu0 0
    %737 = vmatprep.subr.bf16.mxu0 0
    %738 = vmatpush1.bf16.msra.mxu0 0
    %739 = vmatprep.subr.bf16.mxu0 0
    %740 = vmatpush1.bf16.msra.mxu0 0
    %741 = vmatprep.mubr.bf16.mxu0 0
    %742 = vmatmul.mubr.bf16.gmra.mrb[0].mxu0 %v159
    %v743 = vpop.f32.mrb[0].mxu0
    %v744 = vadd.f32 %v253, %v743
    %v745 = vpop.f32.mrb[0].mxu0
    %v746 = vadd.f32 %v257, %v745
    %v747 = vpop.f32.mrb[0].mxu0
    %v748 = vpop.f32.mrb[0].mxu0
    %749 = vdwg.mxu0
    %v750 = vmax.f32 %v621, 0.0
    %v751 = vmax.f32 %v623, 0.0
    %v752 = vmax.f32 %v662, 0.0
    %v753 = vmax.f32 %v664, 0.0
    %v754 = vmax.f32 %v703, 0.0
    %v755 = vmax.f32 %v705, 0.0
    %v756 = vmax.f32 %v744, 0.0
    %v757 = vmax.f32 %v746, 0.0
    %v758 = vpack.c.bf16 %v750, %v750
    %v759 = vpack.c.bf16 %v751, %v751
    %v760 = vpack.c.bf16 %v752, %v752
    %v761 = vpack.c.bf16 %v753, %v753
    %v762 = vpack.c.bf16 %v754, %v754
    %v763 = vpack.c.bf16 %v755, %v755
    %v764 = vpack.c.bf16 %v756, %v756
    %v765 = vpack.c.bf16 %v757, %v757
    %v766 = vld [vmem:[#allocation5] sm:$0xff]
    %v767 = vld [vmem:[#allocation5 + $0x8] sm:$0xff]
    %v768 = vld [vmem:[#allocation5 + $0x10] sm:$0xff]
    %v769 = vld [vmem:[#allocation5 + $0x18] sm:$0xff]
    %v770 = vld [vmem:[#allocation5 + $0x20] sm:$0xff]
    %v771 = vld [vmem:[#allocation5 + $0x28] sm:$0xff]
    %v772 = vld [vmem:[#allocation5 + $0x30] sm:$0xff]
    %v773 = vld [vmem:[#allocation5 + $0x38] sm:$0xff]
    %v774 = vld [vmem:[#allocation5 + $0x40] sm:$0xff]
    %v775 = vld [vmem:[#allocation5 + $0x48] sm:$0xff]
    %v776 = vld [vmem:[#allocation5 + $0x50] sm:$0xff]
    %v777 = vld [vmem:[#allocation5 + $0x58] sm:$0xff]
    %v778 = vld [vmem:[#allocation5 + $0x60] sm:$0xff]
    %v779 = vld [vmem:[#allocation5 + $0x68] sm:$0xff]
    %v780 = vld [vmem:[#allocation5 + $0x70] sm:$0xff]
    %v781 = vld [vmem:[#allocation5 + $0x78] sm:$0xff]
    %v782 = vld [vmem:[#allocation5 + $0x80] sm:$0xff]
    %v783 = vld [vmem:[#allocation5 + $0x88] sm:$0xff]
    %v784 = vld [vmem:[#allocation5 + $0x90] sm:$0xff]
    %v785 = vld [vmem:[#allocation5 + $0x98] sm:$0xff]
    %v786 = vld [vmem:[#allocation5 + $0xa0] sm:$0xff]
    %v787 = vld [vmem:[#allocation5 + $0xa8] sm:$0xff]
    %v788 = vld [vmem:[#allocation5 + $0xb0] sm:$0xff]
    %v789 = vld [vmem:[#allocation5 + $0xb8] sm:$0xff]
    %v790 = vld [vmem:[#allocation5 + $0xc0] sm:$0xff]
    %v791 = vld [vmem:[#allocation5 + $0xc8] sm:$0xff]
    %v792 = vld [vmem:[#allocation5 + $0xd0] sm:$0xff]
    %v793 = vld [vmem:[#allocation5 + $0xd8] sm:$0xff]
    %v794 = vld [vmem:[#allocation5 + $0xe0] sm:$0xff]
    %v795 = vld [vmem:[#allocation5 + $0xe8] sm:$0xff]
    %v796 = vld [vmem:[#allocation5 + $0xf0] sm:$0xff]
    %v797 = vld [vmem:[#allocation5 + $0xf8] sm:$0xff]
    %v798 = vld [vmem:[#allocation5 + $0x100] sm:$0xff]
    %v799 = vld [vmem:[#allocation5 + $0x108] sm:$0xff]
    %v800 = vld [vmem:[#allocation5 + $0x110] sm:$0xff]
    %v801 = vld [vmem:[#allocation5 + $0x118] sm:$0xff]
    %v802 = vld [vmem:[#allocation5 + $0x120] sm:$0xff]
    %v803 = vld [vmem:[#allocation5 + $0x128] sm:$0xff]
    %v804 = vld [vmem:[#allocation5 + $0x130] sm:$0xff]
    %v805 = vld [vmem:[#allocation5 + $0x138] sm:$0xff]
    %v806 = vld [vmem:[#allocation5 + $0x140] sm:$0xff]
    %v807 = vld [vmem:[#allocation5 + $0x148] sm:$0xff]
    %v808 = vld [vmem:[#allocation5 + $0x150] sm:$0xff]
    %v809 = vld [vmem:[#allocation5 + $0x158] sm:$0xff]
    %v810 = vld [vmem:[#allocation5 + $0x160] sm:$0xff]
    %v811 = vld [vmem:[#allocation5 + $0x168] sm:$0xff]
    %v812 = vld [vmem:[#allocation5 + $0x170] sm:$0xff]
    %v813 = vld [vmem:[#allocation5 + $0x178] sm:$0xff]
    %v814 = vld [vmem:[#allocation5 + $0x180] sm:$0xff]
    %v815 = vld [vmem:[#allocation5 + $0x188] sm:$0xff]
    %v816 = vld [vmem:[#allocation5 + $0x190] sm:$0xff]
    %v817 = vld [vmem:[#allocation5 + $0x198] sm:$0xff]
    %v818 = vld [vmem:[#allocation5 + $0x1a0] sm:$0xff]
    %v819 = vld [vmem:[#allocation5 + $0x1a8] sm:$0xff]
    %v820 = vld [vmem:[#allocation5 + $0x1b0] sm:$0xff]
    %v821 = vld [vmem:[#allocation5 + $0x1b8] sm:$0xff]
    %v822 = vld [vmem:[#allocation5 + $0x1c0] sm:$0xff]
    %v823 = vld [vmem:[#allocation5 + $0x1c8] sm:$0xff]
    %v824 = vld [vmem:[#allocation5 + $0x1d0] sm:$0xff]
    %v825 = vld [vmem:[#allocation5 + $0x1d8] sm:$0xff]
    %v826 = vld [vmem:[#allocation5 + $0x1e0] sm:$0xff]
    %v827 = vld [vmem:[#allocation5 + $0x1e8] sm:$0xff]
    %v828 = vld [vmem:[#allocation5 + $0x1f0] sm:$0xff]
    %v829 = vld [vmem:[#allocation5 + $0x1f8] sm:$0xff]
    %v830 = vld [vmem:[#allocation5 + $0x200] sm:$0xff]
    %v831 = vld [vmem:[#allocation5 + $0x208] sm:$0xff]
    %v832 = vld [vmem:[#allocation5 + $0x210] sm:$0xff]
    %v833 = vld [vmem:[#allocation5 + $0x218] sm:$0xff]
    %v834 = vld [vmem:[#allocation5 + $0x220] sm:$0xff]
    %v835 = vld [vmem:[#allocation5 + $0x228] sm:$0xff]
    %v836 = vld [vmem:[#allocation5 + $0x230] sm:$0xff]
    %v837 = vld [vmem:[#allocation5 + $0x238] sm:$0xff]
    %v838 = vld [vmem:[#allocation5 + $0x240] sm:$0xff]
    %v839 = vld [vmem:[#allocation5 + $0x248] sm:$0xff]
    %v840 = vld [vmem:[#allocation5 + $0x250] sm:$0xff]
    %v841 = vld [vmem:[#allocation5 + $0x258] sm:$0xff]
    %v842 = vld [vmem:[#allocation5 + $0x260] sm:$0xff]
    %v843 = vld [vmem:[#allocation5 + $0x268] sm:$0xff]
    %v844 = vld [vmem:[#allocation5 + $0x270] sm:$0xff]
    %v845 = vld [vmem:[#allocation5 + $0x278] sm:$0xff]
    %v846 = vld [vmem:[#allocation5 + $0x280] sm:$0xff]
    %v847 = vld [vmem:[#allocation5 + $0x288] sm:$0xff]
    %v848 = vld [vmem:[#allocation5 + $0x290] sm:$0xff]
    %v849 = vld [vmem:[#allocation5 + $0x298] sm:$0xff]
    %v850 = vld [vmem:[#allocation5 + $0x2a0] sm:$0xff]
    %v851 = vld [vmem:[#allocation5 + $0x2a8] sm:$0xff]
    %v852 = vld [vmem:[#allocation5 + $0x2b0] sm:$0xff]
    %v853 = vld [vmem:[#allocation5 + $0x2b8] sm:$0xff]
    %v854 = vld [vmem:[#allocation5 + $0x2c0] sm:$0xff]
    %v855 = vld [vmem:[#allocation5 + $0x2c8] sm:$0xff]
    %v856 = vld [vmem:[#allocation5 + $0x2d0] sm:$0xff]
    %v857 = vld [vmem:[#allocation5 + $0x2d8] sm:$0xff]
    %v858 = vld [vmem:[#allocation5 + $0x2e0] sm:$0xff]
    %v859 = vld [vmem:[#allocation5 + $0x2e8] sm:$0xff]
    %v860 = vld [vmem:[#allocation5 + $0x2f0] sm:$0xff]
    %v861 = vld [vmem:[#allocation5 + $0x2f8] sm:$0xff]
    %v862 = vld [vmem:[#allocation5 + $0x300] sm:$0xff]
    %v863 = vld [vmem:[#allocation5 + $0x308] sm:$0xff]
    %v864 = vld [vmem:[#allocation5 + $0x310] sm:$0xff]
    %v865 = vld [vmem:[#allocation5 + $0x318] sm:$0xff]
    %v866 = vld [vmem:[#allocation5 + $0x320] sm:$0xff]
    %v867 = vld [vmem:[#allocation5 + $0x328] sm:$0xff]
    %v868 = vld [vmem:[#allocation5 + $0x330] sm:$0xff]
    %v869 = vld [vmem:[#allocation5 + $0x338] sm:$0xff]
    %v870 = vld [vmem:[#allocation5 + $0x340] sm:$0xff]
    %v871 = vld [vmem:[#allocation5 + $0x348] sm:$0xff]
    %v872 = vld [vmem:[#allocation5 + $0x350] sm:$0xff]
    %v873 = vld [vmem:[#allocation5 + $0x358] sm:$0xff]
    %v874 = vld [vmem:[#allocation5 + $0x360] sm:$0xff]
    %v875 = vld [vmem:[#allocation5 + $0x368] sm:$0xff]
    %v876 = vld [vmem:[#allocation5 + $0x370] sm:$0xff]
    %v877 = vld [vmem:[#allocation5 + $0x378] sm:$0xff]
    %v878 = vld [vmem:[#allocation5 + $0x380] sm:$0xff]
    %v879 = vld [vmem:[#allocation5 + $0x388] sm:$0xff]
    %v880 = vld [vmem:[#allocation5 + $0x390] sm:$0xff]
    %v881 = vld [vmem:[#allocation5 + $0x398] sm:$0xff]
    %v882 = vld [vmem:[#allocation5 + $0x3a0] sm:$0xff]
    %v883 = vld [vmem:[#allocation5 + $0x3a8] sm:$0xff]
    %v884 = vld [vmem:[#allocation5 + $0x3b0] sm:$0xff]
    %v885 = vld [vmem:[#allocation5 + $0x3b8] sm:$0xff]
    %v886 = vld [vmem:[#allocation5 + $0x3c0] sm:$0xff]
    %v887 = vld [vmem:[#allocation5 + $0x3c8] sm:$0xff]
    %v888 = vld [vmem:[#allocation5 + $0x3d0] sm:$0xff]
    %v889 = vld [vmem:[#allocation5 + $0x3d8] sm:$0xff]
    %v890 = vld [vmem:[#allocation5 + $0x3e0] sm:$0xff]
    %v891 = vld [vmem:[#allocation5 + $0x3e8] sm:$0xff]
    %v892 = vld [vmem:[#allocation5 + $0x3f0] sm:$0xff]
    %v893 = vld [vmem:[#allocation5 + $0x3f8] sm:$0xff]
    %v894 = vld [vmem:[#allocation5 + $0x400] sm:$0xff]
    %v895 = vld [vmem:[#allocation5 + $0x408] sm:$0xff]
    %v896 = vld [vmem:[#allocation5 + $0x410] sm:$0xff]
    %v897 = vld [vmem:[#allocation5 + $0x418] sm:$0xff]
    %v898 = vld [vmem:[#allocation5 + $0x420] sm:$0xff]
    %v899 = vld [vmem:[#allocation5 + $0x428] sm:$0xff]
    %v900 = vld [vmem:[#allocation5 + $0x430] sm:$0xff]
    %v901 = vld [vmem:[#allocation5 + $0x438] sm:$0xff]
    %v902 = vld [vmem:[#allocation5 + $0x440] sm:$0xff]
    %v903 = vld [vmem:[#allocation5 + $0x448] sm:$0xff]
    %v904 = vld [vmem:[#allocation5 + $0x450] sm:$0xff]
    %v905 = vld [vmem:[#allocation5 + $0x458] sm:$0xff]
    %v906 = vld [vmem:[#allocation5 + $0x460] sm:$0xff]
    %v907 = vld [vmem:[#allocation5 + $0x468] sm:$0xff]
    %v908 = vld [vmem:[#allocation5 + $0x470] sm:$0xff]
    %v909 = vld [vmem:[#allocation5 + $0x478] sm:$0xff]
    %v910 = vld [vmem:[#allocation5 + $0x480] sm:$0xff]
    %v911 = vld [vmem:[#allocation5 + $0x488] sm:$0xff]
    %v912 = vld [vmem:[#allocation5 + $0x490] sm:$0xff]
    %v913 = vld [vmem:[#allocation5 + $0x498] sm:$0xff]
    %v914 = vld [vmem:[#allocation5 + $0x4a0] sm:$0xff]
    %v915 = vld [vmem:[#allocation5 + $0x4a8] sm:$0xff]
    %v916 = vld [vmem:[#allocation5 + $0x4b0] sm:$0xff]
    %v917 = vld [vmem:[#allocation5 + $0x4b8] sm:$0xff]
    %v918 = vld [vmem:[#allocation5 + $0x4c0] sm:$0xff]
    %v919 = vld [vmem:[#allocation5 + $0x4c8] sm:$0xff]
    %v920 = vld [vmem:[#allocation5 + $0x4d0] sm:$0xff]
    %v921 = vld [vmem:[#allocation5 + $0x4d8] sm:$0xff]
    %v922 = vld [vmem:[#allocation5 + $0x4e0] sm:$0xff]
    %v923 = vld [vmem:[#allocation5 + $0x4e8] sm:$0xff]
    %v924 = vld [vmem:[#allocation5 + $0x4f0] sm:$0xff]
    %v925 = vld [vmem:[#allocation5 + $0x4f8] sm:$0xff]
    %v926 = vld [vmem:[#allocation5 + $0x500] sm:$0xff]
    %v927 = vld [vmem:[#allocation5 + $0x508] sm:$0xff]
    %v928 = vld [vmem:[#allocation5 + $0x510] sm:$0xff]
    %v929 = vld [vmem:[#allocation5 + $0x518] sm:$0xff]
    %v930 = vld [vmem:[#allocation5 + $0x520] sm:$0xff]
    %v931 = vld [vmem:[#allocation5 + $0x528] sm:$0xff]
    %v932 = vld [vmem:[#allocation5 + $0x530] sm:$0xff]
    %v933 = vld [vmem:[#allocation5 + $0x538] sm:$0xff]
    %v934 = vld [vmem:[#allocation5 + $0x540] sm:$0xff]
    %v935 = vld [vmem:[#allocation5 + $0x548] sm:$0xff]
    %v936 = vld [vmem:[#allocation5 + $0x550] sm:$0xff]
    %v937 = vld [vmem:[#allocation5 + $0x558] sm:$0xff]
    %v938 = vld [vmem:[#allocation5 + $0x560] sm:$0xff]
    %v939 = vld [vmem:[#allocation5 + $0x568] sm:$0xff]
    %v940 = vld [vmem:[#allocation5 + $0x570] sm:$0xff]
    %v941 = vld [vmem:[#allocation5 + $0x578] sm:$0xff]
    %v942 = vld [vmem:[#allocation5 + $0x580] sm:$0xff]
    %v943 = vld [vmem:[#allocation5 + $0x588] sm:$0xff]
    %v944 = vld [vmem:[#allocation5 + $0x590] sm:$0xff]
    %v945 = vld [vmem:[#allocation5 + $0x598] sm:$0xff]
    %v946 = vld [vmem:[#allocation5 + $0x5a0] sm:$0xff]
    %v947 = vld [vmem:[#allocation5 + $0x5a8] sm:$0xff]
    %v948 = vld [vmem:[#allocation5 + $0x5b0] sm:$0xff]
    %v949 = vld [vmem:[#allocation5 + $0x5b8] sm:$0xff]
    %v950 = vld [vmem:[#allocation5 + $0x5c0] sm:$0xff]
    %v951 = vld [vmem:[#allocation5 + $0x5c8] sm:$0xff]
    %v952 = vld [vmem:[#allocation5 + $0x5d0] sm:$0xff]
    %v953 = vld [vmem:[#allocation5 + $0x5d8] sm:$0xff]
    %v954 = vld [vmem:[#allocation5 + $0x5e0] sm:$0xff]
    %v955 = vld [vmem:[#allocation5 + $0x5e8] sm:$0xff]
    %v956 = vld [vmem:[#allocation5 + $0x5f0] sm:$0xff]
    %v957 = vld [vmem:[#allocation5 + $0x5f8] sm:$0xff]
    %v958 = vld [vmem:[#allocation5 + $0x600] sm:$0xff]
    %v959 = vld [vmem:[#allocation5 + $0x608] sm:$0xff]
    %v960 = vld [vmem:[#allocation5 + $0x610] sm:$0xff]
    %v961 = vld [vmem:[#allocation5 + $0x618] sm:$0xff]
    %v962 = vld [vmem:[#allocation5 + $0x620] sm:$0xff]
    %v963 = vld [vmem:[#allocation5 + $0x628] sm:$0xff]
    %v964 = vld [vmem:[#allocation5 + $0x630] sm:$0xff]
    %v965 = vld [vmem:[#allocation5 + $0x638] sm:$0xff]
    %v966 = vld [vmem:[#allocation5 + $0x640] sm:$0xff]
    %v967 = vld [vmem:[#allocation5 + $0x648] sm:$0xff]
    %v968 = vld [vmem:[#allocation5 + $0x650] sm:$0xff]
    %v969 = vld [vmem:[#allocation5 + $0x658] sm:$0xff]
    %v970 = vld [vmem:[#allocation5 + $0x660] sm:$0xff]
    %v971 = vld [vmem:[#allocation5 + $0x668] sm:$0xff]
    %v972 = vld [vmem:[#allocation5 + $0x670] sm:$0xff]
    %v973 = vld [vmem:[#allocation5 + $0x678] sm:$0xff]
    %v974 = vld [vmem:[#allocation5 + $0x680] sm:$0xff]
    %v975 = vld [vmem:[#allocation5 + $0x688] sm:$0xff]
    %v976 = vld [vmem:[#allocation5 + $0x690] sm:$0xff]
    %v977 = vld [vmem:[#allocation5 + $0x698] sm:$0xff]
    %v978 = vld [vmem:[#allocation5 + $0x6a0] sm:$0xff]
    %v979 = vld [vmem:[#allocation5 + $0x6a8] sm:$0xff]
    %v980 = vld [vmem:[#allocation5 + $0x6b0] sm:$0xff]
    %v981 = vld [vmem:[#allocation5 + $0x6b8] sm:$0xff]
    %v982 = vld [vmem:[#allocation5 + $0x6c0] sm:$0xff]
    %v983 = vld [vmem:[#allocation5 + $0x6c8] sm:$0xff]
    %v984 = vld [vmem:[#allocation5 + $0x6d0] sm:$0xff]
    %v985 = vld [vmem:[#allocation5 + $0x6d8] sm:$0xff]
    %v986 = vld [vmem:[#allocation5 + $0x6e0] sm:$0xff]
    %v987 = vld [vmem:[#allocation5 + $0x6e8] sm:$0xff]
    %v988 = vld [vmem:[#allocation5 + $0x6f0] sm:$0xff]
    %v989 = vld [vmem:[#allocation5 + $0x6f8] sm:$0xff]
    %v990 = vld [vmem:[#allocation5 + $0x700] sm:$0xff]
    %v991 = vld [vmem:[#allocation5 + $0x708] sm:$0xff]
    %v992 = vld [vmem:[#allocation5 + $0x710] sm:$0xff]
    %v993 = vld [vmem:[#allocation5 + $0x718] sm:$0xff]
    %v994 = vld [vmem:[#allocation5 + $0x720] sm:$0xff]
    %v995 = vld [vmem:[#allocation5 + $0x728] sm:$0xff]
    %v996 = vld [vmem:[#allocation5 + $0x730] sm:$0xff]
    %v997 = vld [vmem:[#allocation5 + $0x738] sm:$0xff]
    %v998 = vld [vmem:[#allocation5 + $0x740] sm:$0xff]
    %v999 = vld [vmem:[#allocation5 + $0x748] sm:$0xff]
    %v1000 = vld [vmem:[#allocation5 + $0x750] sm:$0xff]
    %v1001 = vld [vmem:[#allocation5 + $0x758] sm:$0xff]
    %v1002 = vld [vmem:[#allocation5 + $0x760] sm:$0xff]
    %v1003 = vld [vmem:[#allocation5 + $0x768] sm:$0xff]
    %v1004 = vld [vmem:[#allocation5 + $0x770] sm:$0xff]
    %v1005 = vld [vmem:[#allocation5 + $0x778] sm:$0xff]
    %v1006 = vld [vmem:[#allocation5 + $0x780] sm:$0xff]
    %v1007 = vld [vmem:[#allocation5 + $0x788] sm:$0xff]
    %v1008 = vld [vmem:[#allocation5 + $0x790] sm:$0xff]
    %v1009 = vld [vmem:[#allocation5 + $0x798] sm:$0xff]
    %v1010 = vld [vmem:[#allocation5 + $0x7a0] sm:$0xff]
    %v1011 = vld [vmem:[#allocation5 + $0x7a8] sm:$0xff]
    %v1012 = vld [vmem:[#allocation5 + $0x7b0] sm:$0xff]
    %v1013 = vld [vmem:[#allocation5 + $0x7b8] sm:$0xff]
    %v1014 = vld [vmem:[#allocation5 + $0x7c0] sm:$0xff]
    %v1015 = vld [vmem:[#allocation5 + $0x7c8] sm:$0xff]
    %v1016 = vld [vmem:[#allocation5 + $0x7d0] sm:$0xff]
    %v1017 = vld [vmem:[#allocation5 + $0x7d8] sm:$0xff]
    %v1018 = vld [vmem:[#allocation5 + $0x7e0] sm:$0xff]
    %v1019 = vld [vmem:[#allocation5 + $0x7e8] sm:$0xff]
    %v1020 = vld [vmem:[#allocation5 + $0x7f0] sm:$0xff]
    %v1021 = vld [vmem:[#allocation5 + $0x7f8] sm:$0xff]
    %v1022 = vld [vmem:[#allocation5 + $0x800] sm:$0xff]
    %v1023 = vld [vmem:[#allocation5 + $0x808] sm:$0xff]
    %v1024 = vld [vmem:[#allocation5 + $0x810] sm:$0xff]
    %v1025 = vld [vmem:[#allocation5 + $0x818] sm:$0xff]
    %v1026 = vld [vmem:[#allocation5 + $0x820] sm:$0xff]
    %v1027 = vld [vmem:[#allocation5 + $0x828] sm:$0xff]
    %v1028 = vld [vmem:[#allocation5 + $0x830] sm:$0xff]
    %v1029 = vld [vmem:[#allocation5 + $0x838] sm:$0xff]
    %v1030 = vld [vmem:[#allocation5 + $0x840] sm:$0xff]
    %v1031 = vld [vmem:[#allocation5 + $0x848] sm:$0xff]
    %v1032 = vld [vmem:[#allocation5 + $0x850] sm:$0xff]
    %v1033 = vld [vmem:[#allocation5 + $0x858] sm:$0xff]
    %v1034 = vld [vmem:[#allocation5 + $0x860] sm:$0xff]
    %v1035 = vld [vmem:[#allocation5 + $0x868] sm:$0xff]
    %v1036 = vld [vmem:[#allocation5 + $0x870] sm:$0xff]
    %v1037 = vld [vmem:[#allocation5 + $0x878] sm:$0xff]
    %v1038 = vld [vmem:[#allocation5 + $0x880] sm:$0xff]
    %v1039 = vld [vmem:[#allocation5 + $0x888] sm:$0xff]
    %v1040 = vld [vmem:[#allocation5 + $0x890] sm:$0xff]
    %v1041 = vld [vmem:[#allocation5 + $0x898] sm:$0xff]
    %v1042 = vld [vmem:[#allocation5 + $0x8a0] sm:$0xff]
    %v1043 = vld [vmem:[#allocation5 + $0x8a8] sm:$0xff]
    %v1044 = vld [vmem:[#allocation5 + $0x8b0] sm:$0xff]
    %v1045 = vld [vmem:[#allocation5 + $0x8b8] sm:$0xff]
    %v1046 = vld [vmem:[#allocation5 + $0x8c0] sm:$0xff]
    %v1047 = vld [vmem:[#allocation5 + $0x8c8] sm:$0xff]
    %v1048 = vld [vmem:[#allocation5 + $0x8d0] sm:$0xff]
    %v1049 = vld [vmem:[#allocation5 + $0x8d8] sm:$0xff]
    %v1050 = vld [vmem:[#allocation5 + $0x8e0] sm:$0xff]
    %v1051 = vld [vmem:[#allocation5 + $0x8e8] sm:$0xff]
    %v1052 = vld [vmem:[#allocation5 + $0x8f0] sm:$0xff]
    %v1053 = vld [vmem:[#allocation5 + $0x8f8] sm:$0xff]
    %v1054 = vld [vmem:[#allocation5 + $0x900] sm:$0xff]
    %v1055 = vld [vmem:[#allocation5 + $0x908] sm:$0xff]
    %v1056 = vld [vmem:[#allocation5 + $0x910] sm:$0xff]
    %v1057 = vld [vmem:[#allocation5 + $0x918] sm:$0xff]
    %v1058 = vld [vmem:[#allocation5 + $0x920] sm:$0xff]
    %v1059 = vld [vmem:[#allocation5 + $0x928] sm:$0xff]
    %v1060 = vld [vmem:[#allocation5 + $0x930] sm:$0xff]
    %v1061 = vld [vmem:[#allocation5 + $0x938] sm:$0xff]
    %v1062 = vld [vmem:[#allocation5 + $0x940] sm:$0xff]
    %v1063 = vld [vmem:[#allocation5 + $0x948] sm:$0xff]
    %v1064 = vld [vmem:[#allocation5 + $0x950] sm:$0xff]
    %v1065 = vld [vmem:[#allocation5 + $0x958] sm:$0xff]
    %v1066 = vld [vmem:[#allocation5 + $0x960] sm:$0xff]
    %v1067 = vld [vmem:[#allocation5 + $0x968] sm:$0xff]
    %v1068 = vld [vmem:[#allocation5 + $0x970] sm:$0xff]
    %v1069 = vld [vmem:[#allocation5 + $0x978] sm:$0xff]
    %v1070 = vld [vmem:[#allocation5 + $0x980] sm:$0xff]
    %v1071 = vld [vmem:[#allocation5 + $0x988] sm:$0xff]
    %v1072 = vld [vmem:[#allocation5 + $0x990] sm:$0xff]
    %v1073 = vld [vmem:[#allocation5 + $0x998] sm:$0xff]
    %v1074 = vld [vmem:[#allocation5 + $0x9a0] sm:$0xff]
    %v1075 = vld [vmem:[#allocation5 + $0x9a8] sm:$0xff]
    %v1076 = vld [vmem:[#allocation5 + $0x9b0] sm:$0xff]
    %v1077 = vld [vmem:[#allocation5 + $0x9b8] sm:$0xff]
    %v1078 = vld [vmem:[#allocation5 + $0x9c0] sm:$0xff]
    %v1079 = vld [vmem:[#allocation5 + $0x9c8] sm:$0xff]
    %v1080 = vld [vmem:[#allocation5 + $0x9d0] sm:$0xff]
    %v1081 = vld [vmem:[#allocation5 + $0x9d8] sm:$0xff]
    %v1082 = vld [vmem:[#allocation5 + $0x9e0] sm:$0xff]
    %v1083 = vld [vmem:[#allocation5 + $0x9e8] sm:$0xff]
    %v1084 = vld [vmem:[#allocation5 + $0x9f0] sm:$0xff]
    %v1085 = vld [vmem:[#allocation5 + $0x9f8] sm:$0xff]
    %v1086 = vld [vmem:[#allocation5 + $0xa00] sm:$0xff]
    %v1087 = vld [vmem:[#allocation5 + $0xa08] sm:$0xff]
    %v1088 = vld [vmem:[#allocation5 + $0xa10] sm:$0xff]
    %v1089 = vld [vmem:[#allocation5 + $0xa18] sm:$0xff]
    %v1090 = vld [vmem:[#allocation5 + $0xa20] sm:$0xff]
    %v1091 = vld [vmem:[#allocation5 + $0xa28] sm:$0xff]
    %v1092 = vld [vmem:[#allocation5 + $0xa30] sm:$0xff]
    %v1093 = vld [vmem:[#allocation5 + $0xa38] sm:$0xff]
    %v1094 = vld [vmem:[#allocation5 + $0xa40] sm:$0xff]
    %v1095 = vld [vmem:[#allocation5 + $0xa48] sm:$0xff]
    %v1096 = vld [vmem:[#allocation5 + $0xa50] sm:$0xff]
    %v1097 = vld [vmem:[#allocation5 + $0xa58] sm:$0xff]
    %v1098 = vld [vmem:[#allocation5 + $0xa60] sm:$0xff]
    %v1099 = vld [vmem:[#allocation5 + $0xa68] sm:$0xff]
    %v1100 = vld [vmem:[#allocation5 + $0xa70] sm:$0xff]
    %v1101 = vld [vmem:[#allocation5 + $0xa78] sm:$0xff]
    %v1102 = vld [vmem:[#allocation5 + $0xa80] sm:$0xff]
    %v1103 = vld [vmem:[#allocation5 + $0xa88] sm:$0xff]
    %v1104 = vld [vmem:[#allocation5 + $0xa90] sm:$0xff]
    %v1105 = vld [vmem:[#allocation5 + $0xa98] sm:$0xff]
    %v1106 = vld [vmem:[#allocation5 + $0xaa0] sm:$0xff]
    %v1107 = vld [vmem:[#allocation5 + $0xaa8] sm:$0xff]
    %v1108 = vld [vmem:[#allocation5 + $0xab0] sm:$0xff]
    %v1109 = vld [vmem:[#allocation5 + $0xab8] sm:$0xff]
    %v1110 = vld [vmem:[#allocation5 + $0xac0] sm:$0xff]
    %v1111 = vld [vmem:[#allocation5 + $0xac8] sm:$0xff]
    %v1112 = vld [vmem:[#allocation5 + $0xad0] sm:$0xff]
    %v1113 = vld [vmem:[#allocation5 + $0xad8] sm:$0xff]
    %v1114 = vld [vmem:[#allocation5 + $0xae0] sm:$0xff]
    %v1115 = vld [vmem:[#allocation5 + $0xae8] sm:$0xff]
    %v1116 = vld [vmem:[#allocation5 + $0xaf0] sm:$0xff]
    %v1117 = vld [vmem:[#allocation5 + $0xaf8] sm:$0xff]
    %v1118 = vld [vmem:[#allocation5 + $0xb00] sm:$0xff]
    %v1119 = vld [vmem:[#allocation5 + $0xb08] sm:$0xff]
    %v1120 = vld [vmem:[#allocation5 + $0xb10] sm:$0xff]
    %v1121 = vld [vmem:[#allocation5 + $0xb18] sm:$0xff]
    %v1122 = vld [vmem:[#allocation5 + $0xb20] sm:$0xff]
    %v1123 = vld [vmem:[#allocation5 + $0xb28] sm:$0xff]
    %v1124 = vld [vmem:[#allocation5 + $0xb30] sm:$0xff]
    %v1125 = vld [vmem:[#allocation5 + $0xb38] sm:$0xff]
    %v1126 = vld [vmem:[#allocation5 + $0xb40] sm:$0xff]
    %v1127 = vld [vmem:[#allocation5 + $0xb48] sm:$0xff]
    %v1128 = vld [vmem:[#allocation5 + $0xb50] sm:$0xff]
    %v1129 = vld [vmem:[#allocation5 + $0xb58] sm:$0xff]
    %v1130 = vld [vmem:[#allocation5 + $0xb60] sm:$0xff]
    %v1131 = vld [vmem:[#allocation5 + $0xb68] sm:$0xff]
    %v1132 = vld [vmem:[#allocation5 + $0xb70] sm:$0xff]
    %v1133 = vld [vmem:[#allocation5 + $0xb78] sm:$0xff]
    %v1134 = vld [vmem:[#allocation5 + $0xb80] sm:$0xff]
    %v1135 = vld [vmem:[#allocation5 + $0xb88] sm:$0xff]
    %v1136 = vld [vmem:[#allocation5 + $0xb90] sm:$0xff]
    %v1137 = vld [vmem:[#allocation5 + $0xb98] sm:$0xff]
    %v1138 = vld [vmem:[#allocation5 + $0xba0] sm:$0xff]
    %v1139 = vld [vmem:[#allocation5 + $0xba8] sm:$0xff]
    %v1140 = vld [vmem:[#allocation5 + $0xbb0] sm:$0xff]
    %v1141 = vld [vmem:[#allocation5 + $0xbb8] sm:$0xff]
    %v1142 = vld [vmem:[#allocation5 + $0xbc0] sm:$0xff]
    %v1143 = vld [vmem:[#allocation5 + $0xbc8] sm:$0xff]
    %v1144 = vld [vmem:[#allocation5 + $0xbd0] sm:$0xff]
    %v1145 = vld [vmem:[#allocation5 + $0xbd8] sm:$0xff]
    %v1146 = vld [vmem:[#allocation5 + $0xbe0] sm:$0xff]
    %v1147 = vld [vmem:[#allocation5 + $0xbe8] sm:$0xff]
    %v1148 = vld [vmem:[#allocation5 + $0xbf0] sm:$0xff]
    %v1149 = vld [vmem:[#allocation5 + $0xbf8] sm:$0xff]
    %v1150 = vld [vmem:[#allocation5 + $0xc00] sm:$0xff]
    %v1151 = vld [vmem:[#allocation5 + $0xc08] sm:$0xff]
    %v1152 = vld [vmem:[#allocation5 + $0xc10] sm:$0xff]
    %v1153 = vld [vmem:[#allocation5 + $0xc18] sm:$0xff]
    %v1154 = vld [vmem:[#allocation5 + $0xc20] sm:$0xff]
    %v1155 = vld [vmem:[#allocation5 + $0xc28] sm:$0xff]
    %v1156 = vld [vmem:[#allocation5 + $0xc30] sm:$0xff]
    %v1157 = vld [vmem:[#allocation5 + $0xc38] sm:$0xff]
    %v1158 = vld [vmem:[#allocation5 + $0xc40] sm:$0xff]
    %v1159 = vld [vmem:[#allocation5 + $0xc48] sm:$0xff]
    %v1160 = vld [vmem:[#allocation5 + $0xc50] sm:$0xff]
    %v1161 = vld [vmem:[#allocation5 + $0xc58] sm:$0xff]
    %v1162 = vld [vmem:[#allocation5 + $0xc60] sm:$0xff]
    %v1163 = vld [vmem:[#allocation5 + $0xc68] sm:$0xff]
    %v1164 = vld [vmem:[#allocation5 + $0xc70] sm:$0xff]
    %v1165 = vld [vmem:[#allocation5 + $0xc78] sm:$0xff]
    %v1166 = vld [vmem:[#allocation5 + $0xc80] sm:$0xff]
    %v1167 = vld [vmem:[#allocation5 + $0xc88] sm:$0xff]
    %v1168 = vld [vmem:[#allocation5 + $0xc90] sm:$0xff]
    %v1169 = vld [vmem:[#allocation5 + $0xc98] sm:$0xff]
    %v1170 = vld [vmem:[#allocation5 + $0xca0] sm:$0xff]
    %v1171 = vld [vmem:[#allocation5 + $0xca8] sm:$0xff]
    %v1172 = vld [vmem:[#allocation5 + $0xcb0] sm:$0xff]
    %v1173 = vld [vmem:[#allocation5 + $0xcb8] sm:$0xff]
    %v1174 = vld [vmem:[#allocation5 + $0xcc0] sm:$0xff]
    %v1175 = vld [vmem:[#allocation5 + $0xcc8] sm:$0xff]
    %v1176 = vld [vmem:[#allocation5 + $0xcd0] sm:$0xff]
    %v1177 = vld [vmem:[#allocation5 + $0xcd8] sm:$0xff]
    %v1178 = vld [vmem:[#allocation5 + $0xce0] sm:$0xff]
    %v1179 = vld [vmem:[#allocation5 + $0xce8] sm:$0xff]
    %v1180 = vld [vmem:[#allocation5 + $0xcf0] sm:$0xff]
    %v1181 = vld [vmem:[#allocation5 + $0xcf8] sm:$0xff]
    %v1182 = vld [vmem:[#allocation5 + $0xd00] sm:$0xff]
    %v1183 = vld [vmem:[#allocation5 + $0xd08] sm:$0xff]
    %v1184 = vld [vmem:[#allocation5 + $0xd10] sm:$0xff]
    %v1185 = vld [vmem:[#allocation5 + $0xd18] sm:$0xff]
    %v1186 = vld [vmem:[#allocation5 + $0xd20] sm:$0xff]
    %v1187 = vld [vmem:[#allocation5 + $0xd28] sm:$0xff]
    %v1188 = vld [vmem:[#allocation5 + $0xd30] sm:$0xff]
    %v1189 = vld [vmem:[#allocation5 + $0xd38] sm:$0xff]
    %v1190 = vld [vmem:[#allocation5 + $0xd40] sm:$0xff]
    %v1191 = vld [vmem:[#allocation5 + $0xd48] sm:$0xff]
    %v1192 = vld [vmem:[#allocation5 + $0xd50] sm:$0xff]
    %v1193 = vld [vmem:[#allocation5 + $0xd58] sm:$0xff]
    %v1194 = vld [vmem:[#allocation5 + $0xd60] sm:$0xff]
    %v1195 = vld [vmem:[#allocation5 + $0xd68] sm:$0xff]
    %v1196 = vld [vmem:[#allocation5 + $0xd70] sm:$0xff]
    %v1197 = vld [vmem:[#allocation5 + $0xd78] sm:$0xff]
    %v1198 = vld [vmem:[#allocation5 + $0xd80] sm:$0xff]
    %v1199 = vld [vmem:[#allocation5 + $0xd88] sm:$0xff]
    %v1200 = vld [vmem:[#allocation5 + $0xd90] sm:$0xff]
    %v1201 = vld [vmem:[#allocation5 + $0xd98] sm:$0xff]
    %v1202 = vld [vmem:[#allocation5 + $0xda0] sm:$0xff]
    %v1203 = vld [vmem:[#allocation5 + $0xda8] sm:$0xff]
    %v1204 = vld [vmem:[#allocation5 + $0xdb0] sm:$0xff]
    %v1205 = vld [vmem:[#allocation5 + $0xdb8] sm:$0xff]
    %v1206 = vld [vmem:[#allocation5 + $0xdc0] sm:$0xff]
    %v1207 = vld [vmem:[#allocation5 + $0xdc8] sm:$0xff]
    %v1208 = vld [vmem:[#allocation5 + $0xdd0] sm:$0xff]
    %v1209 = vld [vmem:[#allocation5 + $0xdd8] sm:$0xff]
    %v1210 = vld [vmem:[#allocation5 + $0xde0] sm:$0xff]
    %v1211 = vld [vmem:[#allocation5 + $0xde8] sm:$0xff]
    %v1212 = vld [vmem:[#allocation5 + $0xdf0] sm:$0xff]
    %v1213 = vld [vmem:[#allocation5 + $0xdf8] sm:$0xff]
    %v1214 = vld [vmem:[#allocation5 + $0xe00] sm:$0xff]
    %v1215 = vld [vmem:[#allocation5 + $0xe08] sm:$0xff]
    %v1216 = vld [vmem:[#allocation5 + $0xe10] sm:$0xff]
    %v1217 = vld [vmem:[#allocation5 + $0xe18] sm:$0xff]
    %v1218 = vld [vmem:[#allocation5 + $0xe20] sm:$0xff]
    %v1219 = vld [vmem:[#allocation5 + $0xe28] sm:$0xff]
    %v1220 = vld [vmem:[#allocation5 + $0xe30] sm:$0xff]
    %v1221 = vld [vmem:[#allocation5 + $0xe38] sm:$0xff]
    %v1222 = vld [vmem:[#allocation5 + $0xe40] sm:$0xff]
    %v1223 = vld [vmem:[#allocation5 + $0xe48] sm:$0xff]
    %v1224 = vld [vmem:[#allocation5 + $0xe50] sm:$0xff]
    %v1225 = vld [vmem:[#allocation5 + $0xe58] sm:$0xff]
    %v1226 = vld [vmem:[#allocation5 + $0xe60] sm:$0xff]
    %v1227 = vld [vmem:[#allocation5 + $0xe68] sm:$0xff]
    %v1228 = vld [vmem:[#allocation5 + $0xe70] sm:$0xff]
    %v1229 = vld [vmem:[#allocation5 + $0xe78] sm:$0xff]
    %v1230 = vld [vmem:[#allocation5 + $0xe80] sm:$0xff]
    %v1231 = vld [vmem:[#allocation5 + $0xe88] sm:$0xff]
    %v1232 = vld [vmem:[#allocation5 + $0xe90] sm:$0xff]
    %v1233 = vld [vmem:[#allocation5 + $0xe98] sm:$0xff]
    %v1234 = vld [vmem:[#allocation5 + $0xea0] sm:$0xff]
    %v1235 = vld [vmem:[#allocation5 + $0xea8] sm:$0xff]
    %v1236 = vld [vmem:[#allocation5 + $0xeb0] sm:$0xff]
    %v1237 = vld [vmem:[#allocation5 + $0xeb8] sm:$0xff]
    %v1238 = vld [vmem:[#allocation5 + $0xec0] sm:$0xff]
    %v1239 = vld [vmem:[#allocation5 + $0xec8] sm:$0xff]
    %v1240 = vld [vmem:[#allocation5 + $0xed0] sm:$0xff]
    %v1241 = vld [vmem:[#allocation5 + $0xed8] sm:$0xff]
    %v1242 = vld [vmem:[#allocation5 + $0xee0] sm:$0xff]
    %v1243 = vld [vmem:[#allocation5 + $0xee8] sm:$0xff]
    %v1244 = vld [vmem:[#allocation5 + $0xef0] sm:$0xff]
    %v1245 = vld [vmem:[#allocation5 + $0xef8] sm:$0xff]
    %v1246 = vld [vmem:[#allocation5 + $0xf00] sm:$0xff]
    %v1247 = vld [vmem:[#allocation5 + $0xf08] sm:$0xff]
    %v1248 = vld [vmem:[#allocation5 + $0xf10] sm:$0xff]
    %v1249 = vld [vmem:[#allocation5 + $0xf18] sm:$0xff]
    %v1250 = vld [vmem:[#allocation5 + $0xf20] sm:$0xff]
    %v1251 = vld [vmem:[#allocation5 + $0xf28] sm:$0xff]
    %v1252 = vld [vmem:[#allocation5 + $0xf30] sm:$0xff]
    %v1253 = vld [vmem:[#allocation5 + $0xf38] sm:$0xff]
    %v1254 = vld [vmem:[#allocation5 + $0xf40] sm:$0xff]
    %v1255 = vld [vmem:[#allocation5 + $0xf48] sm:$0xff]
    %v1256 = vld [vmem:[#allocation5 + $0xf50] sm:$0xff]
    %v1257 = vld [vmem:[#allocation5 + $0xf58] sm:$0xff]
    %v1258 = vld [vmem:[#allocation5 + $0xf60] sm:$0xff]
    %v1259 = vld [vmem:[#allocation5 + $0xf68] sm:$0xff]
    %v1260 = vld [vmem:[#allocation5 + $0xf70] sm:$0xff]
    %v1261 = vld [vmem:[#allocation5 + $0xf78] sm:$0xff]
    %v1262 = vld [vmem:[#allocation5 + $0xf80] sm:$0xff]
    %v1263 = vld [vmem:[#allocation5 + $0xf88] sm:$0xff]
    %v1264 = vld [vmem:[#allocation5 + $0xf90] sm:$0xff]
    %v1265 = vld [vmem:[#allocation5 + $0xf98] sm:$0xff]
    %v1266 = vld [vmem:[#allocation5 + $0xfa0] sm:$0xff]
    %v1267 = vld [vmem:[#allocation5 + $0xfa8] sm:$0xff]
    %v1268 = vld [vmem:[#allocation5 + $0xfb0] sm:$0xff]
    %v1269 = vld [vmem:[#allocation5 + $0xfb8] sm:$0xff]
    %v1270 = vld [vmem:[#allocation5 + $0xfc0] sm:$0xff]
    %v1271 = vld [vmem:[#allocation5 + $0xfc8] sm:$0xff]
    %v1272 = vld [vmem:[#allocation5 + $0xfd0] sm:$0xff]
    %v1273 = vld [vmem:[#allocation5 + $0xfd8] sm:$0xff]
    %v1274 = vld [vmem:[#allocation5 + $0xfe0] sm:$0xff]
    %v1275 = vld [vmem:[#allocation5 + $0xfe8] sm:$0xff]
    %v1276 = vld [vmem:[#allocation5 + $0xff0] sm:$0xff]
    %v1277 = vld [vmem:[#allocation5 + $0xff8] sm:$0xff]
    %v1278 = vld [vmem:[#allocation7] sm:$0xff]
    %v1280 = vlaneseq
    %v1281 = vshrl.u32 %v1280, 7
    %v1282 = vsub.s32 0, %v1281
    %v1283 = vrot.slane %v1278, %v1282
    %v1284 = vlaneseq
    %v1285 = vshrl.u32 %v1284, 7
    %v1286 = vsub.s32 1, %v1285
    %v1287 = vrot.slane %v1278, %v1286
    %v1288 = vlaneseq
    %v1289 = vshrl.u32 %v1288, 7
    %v1290 = vsub.s32 2, %v1289
    %v1291 = vrot.slane %v1278, %v1290
    %v1292 = vlaneseq
    %v1293 = vshrl.u32 %v1292, 7
    %v1294 = vsub.s32 3, %v1293
    %v1295 = vrot.slane %v1278, %v1294
    %v1296 = vlaneseq
    %v1297 = vshrl.u32 %v1296, 7
    %v1298 = vsub.s32 4, %v1297
    %v1299 = vrot.slane %v1278, %v1298
    %v1300 = vlaneseq
    %v1301 = vshrl.u32 %v1300, 7
    %v1302 = vsub.s32 5, %v1301
    %v1303 = vrot.slane %v1278, %v1302
    %v1304 = vlaneseq
    %v1305 = vshrl.u32 %v1304, 7
    %v1306 = vsub.s32 6, %v1305
    %v1307 = vrot.slane %v1278, %v1306
    %v1308 = vlaneseq
    %v1309 = vshrl.u32 %v1308, 7
    %v1310 = vsub.s32 7, %v1309
    %v1311 = vrot.slane %v1278, %v1310
    %v1832 = vunpack.c.l.b16 %v766
    %v1833 = vunpack.c.h.b16 %v766
    %v1834 = vunpack.c.l.b16 %v767
    %v1835 = vunpack.c.h.b16 %v767
    %v1836 = vunpack.c.l.b16 %v768
    %v1837 = vunpack.c.h.b16 %v768
    %v1838 = vunpack.c.l.b16 %v769
    %v1839 = vunpack.c.h.b16 %v769
    %v1840 = vunpack.c.l.b16 %v770
    %v1841 = vunpack.c.h.b16 %v770
    %v1842 = vunpack.c.l.b16 %v771
    %v1843 = vunpack.c.h.b16 %v771
    %v1844 = vunpack.c.l.b16 %v772
    %v1845 = vunpack.c.h.b16 %v772
    %v1846 = vunpack.c.l.b16 %v773
    %v1847 = vunpack.c.h.b16 %v773
    %v1848 = vunpack.c.l.b16 %v774
    %v1849 = vunpack.c.h.b16 %v774
    %v1850 = vunpack.c.l.b16 %v775
    %v1851 = vunpack.c.h.b16 %v775
    %v1852 = vunpack.c.l.b16 %v776
    %v1853 = vunpack.c.h.b16 %v776
    %v1854 = vunpack.c.l.b16 %v777
    %v1855 = vunpack.c.h.b16 %v777
    %v1856 = vunpack.c.l.b16 %v778
    %v1857 = vunpack.c.h.b16 %v778
    %v1858 = vunpack.c.l.b16 %v779
    %v1859 = vunpack.c.h.b16 %v779
    %v1860 = vunpack.c.l.b16 %v780
    %v1861 = vunpack.c.h.b16 %v780
    %v1862 = vunpack.c.l.b16 %v781
    %v1863 = vunpack.c.h.b16 %v781
    %v1864 = vunpack.c.l.b16 %v782
    %v1865 = vunpack.c.h.b16 %v782
    %v1866 = vunpack.c.l.b16 %v783
    %v1867 = vunpack.c.h.b16 %v783
    %v1868 = vunpack.c.l.b16 %v784
    %v1869 = vunpack.c.h.b16 %v784
    %v1870 = vunpack.c.l.b16 %v785
    %v1871 = vunpack.c.h.b16 %v785
    %v1872 = vunpack.c.l.b16 %v786
    %v1873 = vunpack.c.h.b16 %v786
    %v1874 = vunpack.c.l.b16 %v787
    %v1875 = vunpack.c.h.b16 %v787
    %v1876 = vunpack.c.l.b16 %v788
    %v1877 = vunpack.c.h.b16 %v788
    %v1878 = vunpack.c.l.b16 %v789
    %v1879 = vunpack.c.h.b16 %v789
    %v1880 = vunpack.c.l.b16 %v790
    %v1881 = vunpack.c.h.b16 %v790
    %v1882 = vunpack.c.l.b16 %v791
    %v1883 = vunpack.c.h.b16 %v791
    %v1884 = vunpack.c.l.b16 %v792
    %v1885 = vunpack.c.h.b16 %v792
    %v1886 = vunpack.c.l.b16 %v793
    %v1887 = vunpack.c.h.b16 %v793
    %v1888 = vunpack.c.l.b16 %v794
    %v1889 = vunpack.c.h.b16 %v794
    %v1890 = vunpack.c.l.b16 %v795
    %v1891 = vunpack.c.h.b16 %v795
    %v1892 = vunpack.c.l.b16 %v796
    %v1893 = vunpack.c.h.b16 %v796
    %v1894 = vunpack.c.l.b16 %v797
    %v1895 = vunpack.c.h.b16 %v797
    %v1896 = vunpack.c.l.b16 %v798
    %v1897 = vunpack.c.h.b16 %v798
    %v1898 = vunpack.c.l.b16 %v799
    %v1899 = vunpack.c.h.b16 %v799
    %v1900 = vunpack.c.l.b16 %v800
    %v1901 = vunpack.c.h.b16 %v800
    %v1902 = vunpack.c.l.b16 %v801
    %v1903 = vunpack.c.h.b16 %v801
    %v1904 = vunpack.c.l.b16 %v802
    %v1905 = vunpack.c.h.b16 %v802
    %v1906 = vunpack.c.l.b16 %v803
    %v1907 = vunpack.c.h.b16 %v803
    %v1908 = vunpack.c.l.b16 %v804
    %v1909 = vunpack.c.h.b16 %v804
    %v1910 = vunpack.c.l.b16 %v805
    %v1911 = vunpack.c.h.b16 %v805
    %v1912 = vunpack.c.l.b16 %v806
    %v1913 = vunpack.c.h.b16 %v806
    %v1914 = vunpack.c.l.b16 %v807
    %v1915 = vunpack.c.h.b16 %v807
    %v1916 = vunpack.c.l.b16 %v808
    %v1917 = vunpack.c.h.b16 %v808
    %v1918 = vunpack.c.l.b16 %v809
    %v1919 = vunpack.c.h.b16 %v809
    %v1920 = vunpack.c.l.b16 %v810
    %v1921 = vunpack.c.h.b16 %v810
    %v1922 = vunpack.c.l.b16 %v811
    %v1923 = vunpack.c.h.b16 %v811
    %v1924 = vunpack.c.l.b16 %v812
    %v1925 = vunpack.c.h.b16 %v812
    %v1926 = vunpack.c.l.b16 %v813
    %v1927 = vunpack.c.h.b16 %v813
    %v1928 = vunpack.c.l.b16 %v814
    %v1929 = vunpack.c.h.b16 %v814
    %v1930 = vunpack.c.l.b16 %v815
    %v1931 = vunpack.c.h.b16 %v815
    %v1932 = vunpack.c.l.b16 %v816
    %v1933 = vunpack.c.h.b16 %v816
    %v1934 = vunpack.c.l.b16 %v817
    %v1935 = vunpack.c.h.b16 %v817
    %v1936 = vunpack.c.l.b16 %v818
    %v1937 = vunpack.c.h.b16 %v818
    %v1938 = vunpack.c.l.b16 %v819
    %v1939 = vunpack.c.h.b16 %v819
    %v1940 = vunpack.c.l.b16 %v820
    %v1941 = vunpack.c.h.b16 %v820
    %v1942 = vunpack.c.l.b16 %v821
    %v1943 = vunpack.c.h.b16 %v821
    %v1944 = vunpack.c.l.b16 %v822
    %v1945 = vunpack.c.h.b16 %v822
    %v1946 = vunpack.c.l.b16 %v823
    %v1947 = vunpack.c.h.b16 %v823
    %v1948 = vunpack.c.l.b16 %v824
    %v1949 = vunpack.c.h.b16 %v824
    %v1950 = vunpack.c.l.b16 %v825
    %v1951 = vunpack.c.h.b16 %v825
    %v1952 = vunpack.c.l.b16 %v826
    %v1953 = vunpack.c.h.b16 %v826
    %v1954 = vunpack.c.l.b16 %v827
    %v1955 = vunpack.c.h.b16 %v827
    %v1956 = vunpack.c.l.b16 %v828
    %v1957 = vunpack.c.h.b16 %v828
    %v1958 = vunpack.c.l.b16 %v829
    %v1959 = vunpack.c.h.b16 %v829
    %v1960 = vunpack.c.l.b16 %v830
    %v1961 = vunpack.c.h.b16 %v830
    %v1962 = vunpack.c.l.b16 %v831
    %v1963 = vunpack.c.h.b16 %v831
    %v1964 = vunpack.c.l.b16 %v832
    %v1965 = vunpack.c.h.b16 %v832
    %v1966 = vunpack.c.l.b16 %v833
    %v1967 = vunpack.c.h.b16 %v833
    %v1968 = vunpack.c.l.b16 %v834
    %v1969 = vunpack.c.h.b16 %v834
    %v1970 = vunpack.c.l.b16 %v835
    %v1971 = vunpack.c.h.b16 %v835
    %v1972 = vunpack.c.l.b16 %v836
    %v1973 = vunpack.c.h.b16 %v836
    %v1974 = vunpack.c.l.b16 %v837
    %v1975 = vunpack.c.h.b16 %v837
    %v1976 = vunpack.c.l.b16 %v838
    %v1977 = vunpack.c.h.b16 %v838
    %v1978 = vunpack.c.l.b16 %v839
    %v1979 = vunpack.c.h.b16 %v839
    %v1980 = vunpack.c.l.b16 %v840
    %v1981 = vunpack.c.h.b16 %v840
    %v1982 = vunpack.c.l.b16 %v841
    %v1983 = vunpack.c.h.b16 %v841
    %v1984 = vunpack.c.l.b16 %v842
    %v1985 = vunpack.c.h.b16 %v842
    %v1986 = vunpack.c.l.b16 %v843
    %v1987 = vunpack.c.h.b16 %v843
    %v1988 = vunpack.c.l.b16 %v844
    %v1989 = vunpack.c.h.b16 %v844
    %v1990 = vunpack.c.l.b16 %v845
    %v1991 = vunpack.c.h.b16 %v845
    %v1992 = vunpack.c.l.b16 %v846
    %v1993 = vunpack.c.h.b16 %v846
    %v1994 = vunpack.c.l.b16 %v847
    %v1995 = vunpack.c.h.b16 %v847
    %v1996 = vunpack.c.l.b16 %v848
    %v1997 = vunpack.c.h.b16 %v848
    %v1998 = vunpack.c.l.b16 %v849
    %v1999 = vunpack.c.h.b16 %v849
    %v2000 = vunpack.c.l.b16 %v850
    %v2001 = vunpack.c.h.b16 %v850
    %v2002 = vunpack.c.l.b16 %v851
    %v2003 = vunpack.c.h.b16 %v851
    %v2004 = vunpack.c.l.b16 %v852
    %v2005 = vunpack.c.h.b16 %v852
    %v2006 = vunpack.c.l.b16 %v853
    %v2007 = vunpack.c.h.b16 %v853
    %v2008 = vunpack.c.l.b16 %v854
    %v2009 = vunpack.c.h.b16 %v854
    %v2010 = vunpack.c.l.b16 %v855
    %v2011 = vunpack.c.h.b16 %v855
    %v2012 = vunpack.c.l.b16 %v856
    %v2013 = vunpack.c.h.b16 %v856
    %v2014 = vunpack.c.l.b16 %v857
    %v2015 = vunpack.c.h.b16 %v857
    %v2016 = vunpack.c.l.b16 %v858
    %v2017 = vunpack.c.h.b16 %v858
    %v2018 = vunpack.c.l.b16 %v859
    %v2019 = vunpack.c.h.b16 %v859
    %v2020 = vunpack.c.l.b16 %v860
    %v2021 = vunpack.c.h.b16 %v860
    %v2022 = vunpack.c.l.b16 %v861
    %v2023 = vunpack.c.h.b16 %v861
    %v2024 = vunpack.c.l.b16 %v862
    %v2025 = vunpack.c.h.b16 %v862
    %v2026 = vunpack.c.l.b16 %v863
    %v2027 = vunpack.c.h.b16 %v863
    %v2028 = vunpack.c.l.b16 %v864
    %v2029 = vunpack.c.h.b16 %v864
    %v2030 = vunpack.c.l.b16 %v865
    %v2031 = vunpack.c.h.b16 %v865
    %v2032 = vunpack.c.l.b16 %v866
    %v2033 = vunpack.c.h.b16 %v866
    %v2034 = vunpack.c.l.b16 %v867
    %v2035 = vunpack.c.h.b16 %v867
    %v2036 = vunpack.c.l.b16 %v868
    %v2037 = vunpack.c.h.b16 %v868
    %v2038 = vunpack.c.l.b16 %v869
    %v2039 = vunpack.c.h.b16 %v869
    %v2040 = vunpack.c.l.b16 %v870
    %v2041 = vunpack.c.h.b16 %v870
    %v2042 = vunpack.c.l.b16 %v871
    %v2043 = vunpack.c.h.b16 %v871
    %v2044 = vunpack.c.l.b16 %v872
    %v2045 = vunpack.c.h.b16 %v872
    %v2046 = vunpack.c.l.b16 %v873
    %v2047 = vunpack.c.h.b16 %v873
    %v2048 = vunpack.c.l.b16 %v874
    %v2049 = vunpack.c.h.b16 %v874
    %v2050 = vunpack.c.l.b16 %v875
    %v2051 = vunpack.c.h.b16 %v875
    %v2052 = vunpack.c.l.b16 %v876
    %v2053 = vunpack.c.h.b16 %v876
    %v2054 = vunpack.c.l.b16 %v877
    %v2055 = vunpack.c.h.b16 %v877
    %v2056 = vunpack.c.l.b16 %v878
    %v2057 = vunpack.c.h.b16 %v878
    %v2058 = vunpack.c.l.b16 %v879
    %v2059 = vunpack.c.h.b16 %v879
    %v2060 = vunpack.c.l.b16 %v880
    %v2061 = vunpack.c.h.b16 %v880
    %v2062 = vunpack.c.l.b16 %v881
    %v2063 = vunpack.c.h.b16 %v881
    %v2064 = vunpack.c.l.b16 %v882
    %v2065 = vunpack.c.h.b16 %v882
    %v2066 = vunpack.c.l.b16 %v883
    %v2067 = vunpack.c.h.b16 %v883
    %v2068 = vunpack.c.l.b16 %v884
    %v2069 = vunpack.c.h.b16 %v884
    %v2070 = vunpack.c.l.b16 %v885
    %v2071 = vunpack.c.h.b16 %v885
    %v2072 = vunpack.c.l.b16 %v886
    %v2073 = vunpack.c.h.b16 %v886
    %v2074 = vunpack.c.l.b16 %v887
    %v2075 = vunpack.c.h.b16 %v887
    %v2076 = vunpack.c.l.b16 %v888
    %v2077 = vunpack.c.h.b16 %v888
    %v2078 = vunpack.c.l.b16 %v889
    %v2079 = vunpack.c.h.b16 %v889
    %v2080 = vunpack.c.l.b16 %v890
    %v2081 = vunpack.c.h.b16 %v890
    %v2082 = vunpack.c.l.b16 %v891
    %v2083 = vunpack.c.h.b16 %v891
    %v2084 = vunpack.c.l.b16 %v892
    %v2085 = vunpack.c.h.b16 %v892
    %v2086 = vunpack.c.l.b16 %v893
    %v2087 = vunpack.c.h.b16 %v893
    %v2088 = vunpack.c.l.b16 %v894
    %v2089 = vunpack.c.h.b16 %v894
    %v2090 = vunpack.c.l.b16 %v895
    %v2091 = vunpack.c.h.b16 %v895
    %v2092 = vunpack.c.l.b16 %v896
    %v2093 = vunpack.c.h.b16 %v896
    %v2094 = vunpack.c.l.b16 %v897
    %v2095 = vunpack.c.h.b16 %v897
    %v2096 = vunpack.c.l.b16 %v898
    %v2097 = vunpack.c.h.b16 %v898
    %v2098 = vunpack.c.l.b16 %v899
    %v2099 = vunpack.c.h.b16 %v899
    %v2100 = vunpack.c.l.b16 %v900
    %v2101 = vunpack.c.h.b16 %v900
    %v2102 = vunpack.c.l.b16 %v901
    %v2103 = vunpack.c.h.b16 %v901
    %v2104 = vunpack.c.l.b16 %v902
    %v2105 = vunpack.c.h.b16 %v902
    %v2106 = vunpack.c.l.b16 %v903
    %v2107 = vunpack.c.h.b16 %v903
    %v2108 = vunpack.c.l.b16 %v904
    %v2109 = vunpack.c.h.b16 %v904
    %v2110 = vunpack.c.l.b16 %v905
    %v2111 = vunpack.c.h.b16 %v905
    %v2112 = vunpack.c.l.b16 %v906
    %v2113 = vunpack.c.h.b16 %v906
    %v2114 = vunpack.c.l.b16 %v907
    %v2115 = vunpack.c.h.b16 %v907
    %v2116 = vunpack.c.l.b16 %v908
    %v2117 = vunpack.c.h.b16 %v908
    %v2118 = vunpack.c.l.b16 %v909
    %v2119 = vunpack.c.h.b16 %v909
    %v2120 = vunpack.c.l.b16 %v910
    %v2121 = vunpack.c.h.b16 %v910
    %v2122 = vunpack.c.l.b16 %v911
    %v2123 = vunpack.c.h.b16 %v911
    %v2124 = vunpack.c.l.b16 %v912
    %v2125 = vunpack.c.h.b16 %v912
    %v2126 = vunpack.c.l.b16 %v913
    %v2127 = vunpack.c.h.b16 %v913
    %v2128 = vunpack.c.l.b16 %v914
    %v2129 = vunpack.c.h.b16 %v914
    %v2130 = vunpack.c.l.b16 %v915
    %v2131 = vunpack.c.h.b16 %v915
    %v2132 = vunpack.c.l.b16 %v916
    %v2133 = vunpack.c.h.b16 %v916
    %v2134 = vunpack.c.l.b16 %v917
    %v2135 = vunpack.c.h.b16 %v917
    %v2136 = vunpack.c.l.b16 %v918
    %v2137 = vunpack.c.h.b16 %v918
    %v2138 = vunpack.c.l.b16 %v919
    %v2139 = vunpack.c.h.b16 %v919
    %v2140 = vunpack.c.l.b16 %v920
    %v2141 = vunpack.c.h.b16 %v920
    %v2142 = vunpack.c.l.b16 %v921
    %v2143 = vunpack.c.h.b16 %v921
    %v2144 = vunpack.c.l.b16 %v922
    %v2145 = vunpack.c.h.b16 %v922
    %v2146 = vunpack.c.l.b16 %v923
    %v2147 = vunpack.c.h.b16 %v923
    %v2148 = vunpack.c.l.b16 %v924
    %v2149 = vunpack.c.h.b16 %v924
    %v2150 = vunpack.c.l.b16 %v925
    %v2151 = vunpack.c.h.b16 %v925
    %v2152 = vunpack.c.l.b16 %v926
    %v2153 = vunpack.c.h.b16 %v926
    %v2154 = vunpack.c.l.b16 %v927
    %v2155 = vunpack.c.h.b16 %v927
    %v2156 = vunpack.c.l.b16 %v928
    %v2157 = vunpack.c.h.b16 %v928
    %v2158 = vunpack.c.l.b16 %v929
    %v2159 = vunpack.c.h.b16 %v929
    %v2160 = vunpack.c.l.b16 %v930
    %v2161 = vunpack.c.h.b16 %v930
    %v2162 = vunpack.c.l.b16 %v931
    %v2163 = vunpack.c.h.b16 %v931
    %v2164 = vunpack.c.l.b16 %v932
    %v2165 = vunpack.c.h.b16 %v932
    %v2166 = vunpack.c.l.b16 %v933
    %v2167 = vunpack.c.h.b16 %v933
    %v2168 = vunpack.c.l.b16 %v934
    %v2169 = vunpack.c.h.b16 %v934
    %v2170 = vunpack.c.l.b16 %v935
    %v2171 = vunpack.c.h.b16 %v935
    %v2172 = vunpack.c.l.b16 %v936
    %v2173 = vunpack.c.h.b16 %v936
    %v2174 = vunpack.c.l.b16 %v937
    %v2175 = vunpack.c.h.b16 %v937
    %v2176 = vunpack.c.l.b16 %v938
    %v2177 = vunpack.c.h.b16 %v938
    %v2178 = vunpack.c.l.b16 %v939
    %v2179 = vunpack.c.h.b16 %v939
    %v2180 = vunpack.c.l.b16 %v940
    %v2181 = vunpack.c.h.b16 %v940
    %v2182 = vunpack.c.l.b16 %v941
    %v2183 = vunpack.c.h.b16 %v941
    %v2184 = vunpack.c.l.b16 %v942
    %v2185 = vunpack.c.h.b16 %v942
    %v2186 = vunpack.c.l.b16 %v943
    %v2187 = vunpack.c.h.b16 %v943
    %v2188 = vunpack.c.l.b16 %v944
    %v2189 = vunpack.c.h.b16 %v944
    %v2190 = vunpack.c.l.b16 %v945
    %v2191 = vunpack.c.h.b16 %v945
    %v2192 = vunpack.c.l.b16 %v946
    %v2193 = vunpack.c.h.b16 %v946
    %v2194 = vunpack.c.l.b16 %v947
    %v2195 = vunpack.c.h.b16 %v947
    %v2196 = vunpack.c.l.b16 %v948
    %v2197 = vunpack.c.h.b16 %v948
    %v2198 = vunpack.c.l.b16 %v949
    %v2199 = vunpack.c.h.b16 %v949
    %v2200 = vunpack.c.l.b16 %v950
    %v2201 = vunpack.c.h.b16 %v950
    %v2202 = vunpack.c.l.b16 %v951
    %v2203 = vunpack.c.h.b16 %v951
    %v2204 = vunpack.c.l.b16 %v952
    %v2205 = vunpack.c.h.b16 %v952
    %v2206 = vunpack.c.l.b16 %v953
    %v2207 = vunpack.c.h.b16 %v953
    %v2208 = vunpack.c.l.b16 %v954
    %v2209 = vunpack.c.h.b16 %v954
    %v2210 = vunpack.c.l.b16 %v955
    %v2211 = vunpack.c.h.b16 %v955
    %v2212 = vunpack.c.l.b16 %v956
    %v2213 = vunpack.c.h.b16 %v956
    %v2214 = vunpack.c.l.b16 %v957
    %v2215 = vunpack.c.h.b16 %v957
    %v2216 = vunpack.c.l.b16 %v958
    %v2217 = vunpack.c.h.b16 %v958
    %v2218 = vunpack.c.l.b16 %v959
    %v2219 = vunpack.c.h.b16 %v959
    %v2220 = vunpack.c.l.b16 %v960
    %v2221 = vunpack.c.h.b16 %v960
    %v2222 = vunpack.c.l.b16 %v961
    %v2223 = vunpack.c.h.b16 %v961
    %v2224 = vunpack.c.l.b16 %v962
    %v2225 = vunpack.c.h.b16 %v962
    %v2226 = vunpack.c.l.b16 %v963
    %v2227 = vunpack.c.h.b16 %v963
    %v2228 = vunpack.c.l.b16 %v964
    %v2229 = vunpack.c.h.b16 %v964
    %v2230 = vunpack.c.l.b16 %v965
    %v2231 = vunpack.c.h.b16 %v965
    %v2232 = vunpack.c.l.b16 %v966
    %v2233 = vunpack.c.h.b16 %v966
    %v2234 = vunpack.c.l.b16 %v967
    %v2235 = vunpack.c.h.b16 %v967
    %v2236 = vunpack.c.l.b16 %v968
    %v2237 = vunpack.c.h.b16 %v968
    %v2238 = vunpack.c.l.b16 %v969
    %v2239 = vunpack.c.h.b16 %v969
    %v2240 = vunpack.c.l.b16 %v970
    %v2241 = vunpack.c.h.b16 %v970
    %v2242 = vunpack.c.l.b16 %v971
    %v2243 = vunpack.c.h.b16 %v971
    %v2244 = vunpack.c.l.b16 %v972
    %v2245 = vunpack.c.h.b16 %v972
    %v2246 = vunpack.c.l.b16 %v973
    %v2247 = vunpack.c.h.b16 %v973
    %v2248 = vunpack.c.l.b16 %v974
    %v2249 = vunpack.c.h.b16 %v974
    %v2250 = vunpack.c.l.b16 %v975
    %v2251 = vunpack.c.h.b16 %v975
    %v2252 = vunpack.c.l.b16 %v976
    %v2253 = vunpack.c.h.b16 %v976
    %v2254 = vunpack.c.l.b16 %v977
    %v2255 = vunpack.c.h.b16 %v977
    %v2256 = vunpack.c.l.b16 %v978
    %v2257 = vunpack.c.h.b16 %v978
    %v2258 = vunpack.c.l.b16 %v979
    %v2259 = vunpack.c.h.b16 %v979
    %v2260 = vunpack.c.l.b16 %v980
    %v2261 = vunpack.c.h.b16 %v980
    %v2262 = vunpack.c.l.b16 %v981
    %v2263 = vunpack.c.h.b16 %v981
    %v2264 = vunpack.c.l.b16 %v982
    %v2265 = vunpack.c.h.b16 %v982
    %v2266 = vunpack.c.l.b16 %v983
    %v2267 = vunpack.c.h.b16 %v983
    %v2268 = vunpack.c.l.b16 %v984
    %v2269 = vunpack.c.h.b16 %v984
    %v2270 = vunpack.c.l.b16 %v985
    %v2271 = vunpack.c.h.b16 %v985
    %v2272 = vunpack.c.l.b16 %v986
    %v2273 = vunpack.c.h.b16 %v986
    %v2274 = vunpack.c.l.b16 %v987
    %v2275 = vunpack.c.h.b16 %v987
    %v2276 = vunpack.c.l.b16 %v988
    %v2277 = vunpack.c.h.b16 %v988
    %v2278 = vunpack.c.l.b16 %v989
    %v2279 = vunpack.c.h.b16 %v989
    %v2280 = vunpack.c.l.b16 %v990
    %v2281 = vunpack.c.h.b16 %v990
    %v2282 = vunpack.c.l.b16 %v991
    %v2283 = vunpack.c.h.b16 %v991
    %v2284 = vunpack.c.l.b16 %v992
    %v2285 = vunpack.c.h.b16 %v992
    %v2286 = vunpack.c.l.b16 %v993
    %v2287 = vunpack.c.h.b16 %v993
    %v2288 = vunpack.c.l.b16 %v994
    %v2289 = vunpack.c.h.b16 %v994
    %v2290 = vunpack.c.l.b16 %v995
    %v2291 = vunpack.c.h.b16 %v995
    %v2292 = vunpack.c.l.b16 %v996
    %v2293 = vunpack.c.h.b16 %v996
    %v2294 = vunpack.c.l.b16 %v997
    %v2295 = vunpack.c.h.b16 %v997
    %v2296 = vunpack.c.l.b16 %v998
    %v2297 = vunpack.c.h.b16 %v998
    %v2298 = vunpack.c.l.b16 %v999
    %v2299 = vunpack.c.h.b16 %v999
    %v2300 = vunpack.c.l.b16 %v1000
    %v2301 = vunpack.c.h.b16 %v1000
    %v2302 = vunpack.c.l.b16 %v1001
    %v2303 = vunpack.c.h.b16 %v1001
    %v2304 = vunpack.c.l.b16 %v1002
    %v2305 = vunpack.c.h.b16 %v1002
    %v2306 = vunpack.c.l.b16 %v1003
    %v2307 = vunpack.c.h.b16 %v1003
    %v2308 = vunpack.c.l.b16 %v1004
    %v2309 = vunpack.c.h.b16 %v1004
    %v2310 = vunpack.c.l.b16 %v1005
    %v2311 = vunpack.c.h.b16 %v1005
    %v2312 = vunpack.c.l.b16 %v1006
    %v2313 = vunpack.c.h.b16 %v1006
    %v2314 = vunpack.c.l.b16 %v1007
    %v2315 = vunpack.c.h.b16 %v1007
    %v2316 = vunpack.c.l.b16 %v1008
    %v2317 = vunpack.c.h.b16 %v1008
    %v2318 = vunpack.c.l.b16 %v1009
    %v2319 = vunpack.c.h.b16 %v1009
    %v2320 = vunpack.c.l.b16 %v1010
    %v2321 = vunpack.c.h.b16 %v1010
    %v2322 = vunpack.c.l.b16 %v1011
    %v2323 = vunpack.c.h.b16 %v1011
    %v2324 = vunpack.c.l.b16 %v1012
    %v2325 = vunpack.c.h.b16 %v1012
    %v2326 = vunpack.c.l.b16 %v1013
    %v2327 = vunpack.c.h.b16 %v1013
    %v2328 = vunpack.c.l.b16 %v1014
    %v2329 = vunpack.c.h.b16 %v1014
    %v2330 = vunpack.c.l.b16 %v1015
    %v2331 = vunpack.c.h.b16 %v1015
    %v2332 = vunpack.c.l.b16 %v1016
    %v2333 = vunpack.c.h.b16 %v1016
    %v2334 = vunpack.c.l.b16 %v1017
    %v2335 = vunpack.c.h.b16 %v1017
    %v2336 = vunpack.c.l.b16 %v1018
    %v2337 = vunpack.c.h.b16 %v1018
    %v2338 = vunpack.c.l.b16 %v1019
    %v2339 = vunpack.c.h.b16 %v1019
    %v2340 = vunpack.c.l.b16 %v1020
    %v2341 = vunpack.c.h.b16 %v1020
    %v2342 = vunpack.c.l.b16 %v1021
    %v2343 = vunpack.c.h.b16 %v1021
    %v2344 = vunpack.c.l.b16 %v1022
    %v2345 = vunpack.c.h.b16 %v1022
    %v2346 = vunpack.c.l.b16 %v1023
    %v2347 = vunpack.c.h.b16 %v1023
    %v2348 = vunpack.c.l.b16 %v1024
    %v2349 = vunpack.c.h.b16 %v1024
    %v2350 = vunpack.c.l.b16 %v1025
    %v2351 = vunpack.c.h.b16 %v1025
    %v2352 = vunpack.c.l.b16 %v1026
    %v2353 = vunpack.c.h.b16 %v1026
    %v2354 = vunpack.c.l.b16 %v1027
    %v2355 = vunpack.c.h.b16 %v1027
    %v2356 = vunpack.c.l.b16 %v1028
    %v2357 = vunpack.c.h.b16 %v1028
    %v2358 = vunpack.c.l.b16 %v1029
    %v2359 = vunpack.c.h.b16 %v1029
    %v2360 = vunpack.c.l.b16 %v1030
    %v2361 = vunpack.c.h.b16 %v1030
    %v2362 = vunpack.c.l.b16 %v1031
    %v2363 = vunpack.c.h.b16 %v1031
    %v2364 = vunpack.c.l.b16 %v1032
    %v2365 = vunpack.c.h.b16 %v1032
    %v2366 = vunpack.c.l.b16 %v1033
    %v2367 = vunpack.c.h.b16 %v1033
    %v2368 = vunpack.c.l.b16 %v1034
    %v2369 = vunpack.c.h.b16 %v1034
    %v2370 = vunpack.c.l.b16 %v1035
    %v2371 = vunpack.c.h.b16 %v1035
    %v2372 = vunpack.c.l.b16 %v1036
    %v2373 = vunpack.c.h.b16 %v1036
    %v2374 = vunpack.c.l.b16 %v1037
    %v2375 = vunpack.c.h.b16 %v1037
    %v2376 = vunpack.c.l.b16 %v1038
    %v2377 = vunpack.c.h.b16 %v1038
    %v2378 = vunpack.c.l.b16 %v1039
    %v2379 = vunpack.c.h.b16 %v1039
    %v2380 = vunpack.c.l.b16 %v1040
    %v2381 = vunpack.c.h.b16 %v1040
    %v2382 = vunpack.c.l.b16 %v1041
    %v2383 = vunpack.c.h.b16 %v1041
    %v2384 = vunpack.c.l.b16 %v1042
    %v2385 = vunpack.c.h.b16 %v1042
    %v2386 = vunpack.c.l.b16 %v1043
    %v2387 = vunpack.c.h.b16 %v1043
    %v2388 = vunpack.c.l.b16 %v1044
    %v2389 = vunpack.c.h.b16 %v1044
    %v2390 = vunpack.c.l.b16 %v1045
    %v2391 = vunpack.c.h.b16 %v1045
    %v2392 = vunpack.c.l.b16 %v1046
    %v2393 = vunpack.c.h.b16 %v1046
    %v2394 = vunpack.c.l.b16 %v1047
    %v2395 = vunpack.c.h.b16 %v1047
    %v2396 = vunpack.c.l.b16 %v1048
    %v2397 = vunpack.c.h.b16 %v1048
    %v2398 = vunpack.c.l.b16 %v1049
    %v2399 = vunpack.c.h.b16 %v1049
    %v2400 = vunpack.c.l.b16 %v1050
    %v2401 = vunpack.c.h.b16 %v1050
    %v2402 = vunpack.c.l.b16 %v1051
    %v2403 = vunpack.c.h.b16 %v1051
    %v2404 = vunpack.c.l.b16 %v1052
    %v2405 = vunpack.c.h.b16 %v1052
    %v2406 = vunpack.c.l.b16 %v1053
    %v2407 = vunpack.c.h.b16 %v1053
    %v2408 = vunpack.c.l.b16 %v1054
    %v2409 = vunpack.c.h.b16 %v1054
    %v2410 = vunpack.c.l.b16 %v1055
    %v2411 = vunpack.c.h.b16 %v1055
    %v2412 = vunpack.c.l.b16 %v1056
    %v2413 = vunpack.c.h.b16 %v1056
    %v2414 = vunpack.c.l.b16 %v1057
    %v2415 = vunpack.c.h.b16 %v1057
    %v2416 = vunpack.c.l.b16 %v1058
    %v2417 = vunpack.c.h.b16 %v1058
    %v2418 = vunpack.c.l.b16 %v1059
    %v2419 = vunpack.c.h.b16 %v1059
    %v2420 = vunpack.c.l.b16 %v1060
    %v2421 = vunpack.c.h.b16 %v1060
    %v2422 = vunpack.c.l.b16 %v1061
    %v2423 = vunpack.c.h.b16 %v1061
    %v2424 = vunpack.c.l.b16 %v1062
    %v2425 = vunpack.c.h.b16 %v1062
    %v2426 = vunpack.c.l.b16 %v1063
    %v2427 = vunpack.c.h.b16 %v1063
    %v2428 = vunpack.c.l.b16 %v1064
    %v2429 = vunpack.c.h.b16 %v1064
    %v2430 = vunpack.c.l.b16 %v1065
    %v2431 = vunpack.c.h.b16 %v1065
    %v2432 = vunpack.c.l.b16 %v1066
    %v2433 = vunpack.c.h.b16 %v1066
    %v2434 = vunpack.c.l.b16 %v1067
    %v2435 = vunpack.c.h.b16 %v1067
    %v2436 = vunpack.c.l.b16 %v1068
    %v2437 = vunpack.c.h.b16 %v1068
    %v2438 = vunpack.c.l.b16 %v1069
    %v2439 = vunpack.c.h.b16 %v1069
    %v2440 = vunpack.c.l.b16 %v1070
    %v2441 = vunpack.c.h.b16 %v1070
    %v2442 = vunpack.c.l.b16 %v1071
    %v2443 = vunpack.c.h.b16 %v1071
    %v2444 = vunpack.c.l.b16 %v1072
    %v2445 = vunpack.c.h.b16 %v1072
    %v2446 = vunpack.c.l.b16 %v1073
    %v2447 = vunpack.c.h.b16 %v1073
    %v2448 = vunpack.c.l.b16 %v1074
    %v2449 = vunpack.c.h.b16 %v1074
    %v2450 = vunpack.c.l.b16 %v1075
    %v2451 = vunpack.c.h.b16 %v1075
    %v2452 = vunpack.c.l.b16 %v1076
    %v2453 = vunpack.c.h.b16 %v1076
    %v2454 = vunpack.c.l.b16 %v1077
    %v2455 = vunpack.c.h.b16 %v1077
    %v2456 = vunpack.c.l.b16 %v1078
    %v2457 = vunpack.c.h.b16 %v1078
    %v2458 = vunpack.c.l.b16 %v1079
    %v2459 = vunpack.c.h.b16 %v1079
    %v2460 = vunpack.c.l.b16 %v1080
    %v2461 = vunpack.c.h.b16 %v1080
    %v2462 = vunpack.c.l.b16 %v1081
    %v2463 = vunpack.c.h.b16 %v1081
    %v2464 = vunpack.c.l.b16 %v1082
    %v2465 = vunpack.c.h.b16 %v1082
    %v2466 = vunpack.c.l.b16 %v1083
    %v2467 = vunpack.c.h.b16 %v1083
    %v2468 = vunpack.c.l.b16 %v1084
    %v2469 = vunpack.c.h.b16 %v1084
    %v2470 = vunpack.c.l.b16 %v1085
    %v2471 = vunpack.c.h.b16 %v1085
    %v2472 = vunpack.c.l.b16 %v1086
    %v2473 = vunpack.c.h.b16 %v1086
    %v2474 = vunpack.c.l.b16 %v1087
    %v2475 = vunpack.c.h.b16 %v1087
    %v2476 = vunpack.c.l.b16 %v1088
    %v2477 = vunpack.c.h.b16 %v1088
    %v2478 = vunpack.c.l.b16 %v1089
    %v2479 = vunpack.c.h.b16 %v1089
    %v2480 = vunpack.c.l.b16 %v1090
    %v2481 = vunpack.c.h.b16 %v1090
    %v2482 = vunpack.c.l.b16 %v1091
    %v2483 = vunpack.c.h.b16 %v1091
    %v2484 = vunpack.c.l.b16 %v1092
    %v2485 = vunpack.c.h.b16 %v1092
    %v2486 = vunpack.c.l.b16 %v1093
    %v2487 = vunpack.c.h.b16 %v1093
    %v2488 = vunpack.c.l.b16 %v1094
    %v2489 = vunpack.c.h.b16 %v1094
    %v2490 = vunpack.c.l.b16 %v1095
    %v2491 = vunpack.c.h.b16 %v1095
    %v2492 = vunpack.c.l.b16 %v1096
    %v2493 = vunpack.c.h.b16 %v1096
    %v2494 = vunpack.c.l.b16 %v1097
    %v2495 = vunpack.c.h.b16 %v1097
    %v2496 = vunpack.c.l.b16 %v1098
    %v2497 = vunpack.c.h.b16 %v1098
    %v2498 = vunpack.c.l.b16 %v1099
    %v2499 = vunpack.c.h.b16 %v1099
    %v2500 = vunpack.c.l.b16 %v1100
    %v2501 = vunpack.c.h.b16 %v1100
    %v2502 = vunpack.c.l.b16 %v1101
    %v2503 = vunpack.c.h.b16 %v1101
    %v2504 = vunpack.c.l.b16 %v1102
    %v2505 = vunpack.c.h.b16 %v1102
    %v2506 = vunpack.c.l.b16 %v1103
    %v2507 = vunpack.c.h.b16 %v1103
    %v2508 = vunpack.c.l.b16 %v1104
    %v2509 = vunpack.c.h.b16 %v1104
    %v2510 = vunpack.c.l.b16 %v1105
    %v2511 = vunpack.c.h.b16 %v1105
    %v2512 = vunpack.c.l.b16 %v1106
    %v2513 = vunpack.c.h.b16 %v1106
    %v2514 = vunpack.c.l.b16 %v1107
    %v2515 = vunpack.c.h.b16 %v1107
    %v2516 = vunpack.c.l.b16 %v1108
    %v2517 = vunpack.c.h.b16 %v1108
    %v2518 = vunpack.c.l.b16 %v1109
    %v2519 = vunpack.c.h.b16 %v1109
    %v2520 = vunpack.c.l.b16 %v1110
    %v2521 = vunpack.c.h.b16 %v1110
    %v2522 = vunpack.c.l.b16 %v1111
    %v2523 = vunpack.c.h.b16 %v1111
    %v2524 = vunpack.c.l.b16 %v1112
    %v2525 = vunpack.c.h.b16 %v1112
    %v2526 = vunpack.c.l.b16 %v1113
    %v2527 = vunpack.c.h.b16 %v1113
    %v2528 = vunpack.c.l.b16 %v1114
    %v2529 = vunpack.c.h.b16 %v1114
    %v2530 = vunpack.c.l.b16 %v1115
    %v2531 = vunpack.c.h.b16 %v1115
    %v2532 = vunpack.c.l.b16 %v1116
    %v2533 = vunpack.c.h.b16 %v1116
    %v2534 = vunpack.c.l.b16 %v1117
    %v2535 = vunpack.c.h.b16 %v1117
    %v2536 = vunpack.c.l.b16 %v1118
    %v2537 = vunpack.c.h.b16 %v1118
    %v2538 = vunpack.c.l.b16 %v1119
    %v2539 = vunpack.c.h.b16 %v1119
    %v2540 = vunpack.c.l.b16 %v1120
    %v2541 = vunpack.c.h.b16 %v1120
    %v2542 = vunpack.c.l.b16 %v1121
    %v2543 = vunpack.c.h.b16 %v1121
    %v2544 = vunpack.c.l.b16 %v1122
    %v2545 = vunpack.c.h.b16 %v1122
    %v2546 = vunpack.c.l.b16 %v1123
    %v2547 = vunpack.c.h.b16 %v1123
    %v2548 = vunpack.c.l.b16 %v1124
    %v2549 = vunpack.c.h.b16 %v1124
    %v2550 = vunpack.c.l.b16 %v1125
    %v2551 = vunpack.c.h.b16 %v1125
    %v2552 = vunpack.c.l.b16 %v1126
    %v2553 = vunpack.c.h.b16 %v1126
    %v2554 = vunpack.c.l.b16 %v1127
    %v2555 = vunpack.c.h.b16 %v1127
    %v2556 = vunpack.c.l.b16 %v1128
    %v2557 = vunpack.c.h.b16 %v1128
    %v2558 = vunpack.c.l.b16 %v1129
    %v2559 = vunpack.c.h.b16 %v1129
    %v2560 = vunpack.c.l.b16 %v1130
    %v2561 = vunpack.c.h.b16 %v1130
    %v2562 = vunpack.c.l.b16 %v1131
    %v2563 = vunpack.c.h.b16 %v1131
    %v2564 = vunpack.c.l.b16 %v1132
    %v2565 = vunpack.c.h.b16 %v1132
    %v2566 = vunpack.c.l.b16 %v1133
    %v2567 = vunpack.c.h.b16 %v1133
    %v2568 = vunpack.c.l.b16 %v1134
    %v2569 = vunpack.c.h.b16 %v1134
    %v2570 = vunpack.c.l.b16 %v1135
    %v2571 = vunpack.c.h.b16 %v1135
    %v2572 = vunpack.c.l.b16 %v1136
    %v2573 = vunpack.c.h.b16 %v1136
    %v2574 = vunpack.c.l.b16 %v1137
    %v2575 = vunpack.c.h.b16 %v1137
    %v2576 = vunpack.c.l.b16 %v1138
    %v2577 = vunpack.c.h.b16 %v1138
    %v2578 = vunpack.c.l.b16 %v1139
    %v2579 = vunpack.c.h.b16 %v1139
    %v2580 = vunpack.c.l.b16 %v1140
    %v2581 = vunpack.c.h.b16 %v1140
    %v2582 = vunpack.c.l.b16 %v1141
    %v2583 = vunpack.c.h.b16 %v1141
    %v2584 = vunpack.c.l.b16 %v1142
    %v2585 = vunpack.c.h.b16 %v1142
    %v2586 = vunpack.c.l.b16 %v1143
    %v2587 = vunpack.c.h.b16 %v1143
    %v2588 = vunpack.c.l.b16 %v1144
    %v2589 = vunpack.c.h.b16 %v1144
    %v2590 = vunpack.c.l.b16 %v1145
    %v2591 = vunpack.c.h.b16 %v1145
    %v2592 = vunpack.c.l.b16 %v1146
    %v2593 = vunpack.c.h.b16 %v1146
    %v2594 = vunpack.c.l.b16 %v1147
    %v2595 = vunpack.c.h.b16 %v1147
    %v2596 = vunpack.c.l.b16 %v1148
    %v2597 = vunpack.c.h.b16 %v1148
    %v2598 = vunpack.c.l.b16 %v1149
    %v2599 = vunpack.c.h.b16 %v1149
    %v2600 = vunpack.c.l.b16 %v1150
    %v2601 = vunpack.c.h.b16 %v1150
    %v2602 = vunpack.c.l.b16 %v1151
    %v2603 = vunpack.c.h.b16 %v1151
    %v2604 = vunpack.c.l.b16 %v1152
    %v2605 = vunpack.c.h.b16 %v1152
    %v2606 = vunpack.c.l.b16 %v1153
    %v2607 = vunpack.c.h.b16 %v1153
    %v2608 = vunpack.c.l.b16 %v1154
    %v2609 = vunpack.c.h.b16 %v1154
    %v2610 = vunpack.c.l.b16 %v1155
    %v2611 = vunpack.c.h.b16 %v1155
    %v2612 = vunpack.c.l.b16 %v1156
    %v2613 = vunpack.c.h.b16 %v1156
    %v2614 = vunpack.c.l.b16 %v1157
    %v2615 = vunpack.c.h.b16 %v1157
    %v2616 = vunpack.c.l.b16 %v1158
    %v2617 = vunpack.c.h.b16 %v1158
    %v2618 = vunpack.c.l.b16 %v1159
    %v2619 = vunpack.c.h.b16 %v1159
    %v2620 = vunpack.c.l.b16 %v1160
    %v2621 = vunpack.c.h.b16 %v1160
    %v2622 = vunpack.c.l.b16 %v1161
    %v2623 = vunpack.c.h.b16 %v1161
    %v2624 = vunpack.c.l.b16 %v1162
    %v2625 = vunpack.c.h.b16 %v1162
    %v2626 = vunpack.c.l.b16 %v1163
    %v2627 = vunpack.c.h.b16 %v1163
    %v2628 = vunpack.c.l.b16 %v1164
    %v2629 = vunpack.c.h.b16 %v1164
    %v2630 = vunpack.c.l.b16 %v1165
    %v2631 = vunpack.c.h.b16 %v1165
    %v2632 = vunpack.c.l.b16 %v1166
    %v2633 = vunpack.c.h.b16 %v1166
    %v2634 = vunpack.c.l.b16 %v1167
    %v2635 = vunpack.c.h.b16 %v1167
    %v2636 = vunpack.c.l.b16 %v1168
    %v2637 = vunpack.c.h.b16 %v1168
    %v2638 = vunpack.c.l.b16 %v1169
    %v2639 = vunpack.c.h.b16 %v1169
    %v2640 = vunpack.c.l.b16 %v1170
    %v2641 = vunpack.c.h.b16 %v1170
    %v2642 = vunpack.c.l.b16 %v1171
    %v2643 = vunpack.c.h.b16 %v1171
    %v2644 = vunpack.c.l.b16 %v1172
    %v2645 = vunpack.c.h.b16 %v1172
    %v2646 = vunpack.c.l.b16 %v1173
    %v2647 = vunpack.c.h.b16 %v1173
    %v2648 = vunpack.c.l.b16 %v1174
    %v2649 = vunpack.c.h.b16 %v1174
    %v2650 = vunpack.c.l.b16 %v1175
    %v2651 = vunpack.c.h.b16 %v1175
    %v2652 = vunpack.c.l.b16 %v1176
    %v2653 = vunpack.c.h.b16 %v1176
    %v2654 = vunpack.c.l.b16 %v1177
    %v2655 = vunpack.c.h.b16 %v1177
    %v2656 = vunpack.c.l.b16 %v1178
    %v2657 = vunpack.c.h.b16 %v1178
    %v2658 = vunpack.c.l.b16 %v1179
    %v2659 = vunpack.c.h.b16 %v1179
    %v2660 = vunpack.c.l.b16 %v1180
    %v2661 = vunpack.c.h.b16 %v1180
    %v2662 = vunpack.c.l.b16 %v1181
    %v2663 = vunpack.c.h.b16 %v1181
    %v2664 = vunpack.c.l.b16 %v1182
    %v2665 = vunpack.c.h.b16 %v1182
    %v2666 = vunpack.c.l.b16 %v1183
    %v2667 = vunpack.c.h.b16 %v1183
    %v2668 = vunpack.c.l.b16 %v1184
    %v2669 = vunpack.c.h.b16 %v1184
    %v2670 = vunpack.c.l.b16 %v1185
    %v2671 = vunpack.c.h.b16 %v1185
    %v2672 = vunpack.c.l.b16 %v1186
    %v2673 = vunpack.c.h.b16 %v1186
    %v2674 = vunpack.c.l.b16 %v1187
    %v2675 = vunpack.c.h.b16 %v1187
    %v2676 = vunpack.c.l.b16 %v1188
    %v2677 = vunpack.c.h.b16 %v1188
    %v2678 = vunpack.c.l.b16 %v1189
    %v2679 = vunpack.c.h.b16 %v1189
    %v2680 = vunpack.c.l.b16 %v1190
    %v2681 = vunpack.c.h.b16 %v1190
    %v2682 = vunpack.c.l.b16 %v1191
    %v2683 = vunpack.c.h.b16 %v1191
    %v2684 = vunpack.c.l.b16 %v1192
    %v2685 = vunpack.c.h.b16 %v1192
    %v2686 = vunpack.c.l.b16 %v1193
    %v2687 = vunpack.c.h.b16 %v1193
    %v2688 = vunpack.c.l.b16 %v1194
    %v2689 = vunpack.c.h.b16 %v1194
    %v2690 = vunpack.c.l.b16 %v1195
    %v2691 = vunpack.c.h.b16 %v1195
    %v2692 = vunpack.c.l.b16 %v1196
    %v2693 = vunpack.c.h.b16 %v1196
    %v2694 = vunpack.c.l.b16 %v1197
    %v2695 = vunpack.c.h.b16 %v1197
    %v2696 = vunpack.c.l.b16 %v1198
    %v2697 = vunpack.c.h.b16 %v1198
    %v2698 = vunpack.c.l.b16 %v1199
    %v2699 = vunpack.c.h.b16 %v1199
    %v2700 = vunpack.c.l.b16 %v1200
    %v2701 = vunpack.c.h.b16 %v1200
    %v2702 = vunpack.c.l.b16 %v1201
    %v2703 = vunpack.c.h.b16 %v1201
    %v2704 = vunpack.c.l.b16 %v1202
    %v2705 = vunpack.c.h.b16 %v1202
    %v2706 = vunpack.c.l.b16 %v1203
    %v2707 = vunpack.c.h.b16 %v1203
    %v2708 = vunpack.c.l.b16 %v1204
    %v2709 = vunpack.c.h.b16 %v1204
    %v2710 = vunpack.c.l.b16 %v1205
    %v2711 = vunpack.c.h.b16 %v1205
    %v2712 = vunpack.c.l.b16 %v1206
    %v2713 = vunpack.c.h.b16 %v1206
    %v2714 = vunpack.c.l.b16 %v1207
    %v2715 = vunpack.c.h.b16 %v1207
    %v2716 = vunpack.c.l.b16 %v1208
    %v2717 = vunpack.c.h.b16 %v1208
    %v2718 = vunpack.c.l.b16 %v1209
    %v2719 = vunpack.c.h.b16 %v1209
    %v2720 = vunpack.c.l.b16 %v1210
    %v2721 = vunpack.c.h.b16 %v1210
    %v2722 = vunpack.c.l.b16 %v1211
    %v2723 = vunpack.c.h.b16 %v1211
    %v2724 = vunpack.c.l.b16 %v1212
    %v2725 = vunpack.c.h.b16 %v1212
    %v2726 = vunpack.c.l.b16 %v1213
    %v2727 = vunpack.c.h.b16 %v1213
    %v2728 = vunpack.c.l.b16 %v1214
    %v2729 = vunpack.c.h.b16 %v1214
    %v2730 = vunpack.c.l.b16 %v1215
    %v2731 = vunpack.c.h.b16 %v1215
    %v2732 = vunpack.c.l.b16 %v1216
    %v2733 = vunpack.c.h.b16 %v1216
    %v2734 = vunpack.c.l.b16 %v1217
    %v2735 = vunpack.c.h.b16 %v1217
    %v2736 = vunpack.c.l.b16 %v1218
    %v2737 = vunpack.c.h.b16 %v1218
    %v2738 = vunpack.c.l.b16 %v1219
    %v2739 = vunpack.c.h.b16 %v1219
    %v2740 = vunpack.c.l.b16 %v1220
    %v2741 = vunpack.c.h.b16 %v1220
    %v2742 = vunpack.c.l.b16 %v1221
    %v2743 = vunpack.c.h.b16 %v1221
    %v2744 = vunpack.c.l.b16 %v1222
    %v2745 = vunpack.c.h.b16 %v1222
    %v2746 = vunpack.c.l.b16 %v1223
    %v2747 = vunpack.c.h.b16 %v1223
    %v2748 = vunpack.c.l.b16 %v1224
    %v2749 = vunpack.c.h.b16 %v1224
    %v2750 = vunpack.c.l.b16 %v1225
    %v2751 = vunpack.c.h.b16 %v1225
    %v2752 = vunpack.c.l.b16 %v1226
    %v2753 = vunpack.c.h.b16 %v1226
    %v2754 = vunpack.c.l.b16 %v1227
    %v2755 = vunpack.c.h.b16 %v1227
    %v2756 = vunpack.c.l.b16 %v1228
    %v2757 = vunpack.c.h.b16 %v1228
    %v2758 = vunpack.c.l.b16 %v1229
    %v2759 = vunpack.c.h.b16 %v1229
    %v2760 = vunpack.c.l.b16 %v1230
    %v2761 = vunpack.c.h.b16 %v1230
    %v2762 = vunpack.c.l.b16 %v1231
    %v2763 = vunpack.c.h.b16 %v1231
    %v2764 = vunpack.c.l.b16 %v1232
    %v2765 = vunpack.c.h.b16 %v1232
    %v2766 = vunpack.c.l.b16 %v1233
    %v2767 = vunpack.c.h.b16 %v1233
    %v2768 = vunpack.c.l.b16 %v1234
    %v2769 = vunpack.c.h.b16 %v1234
    %v2770 = vunpack.c.l.b16 %v1235
    %v2771 = vunpack.c.h.b16 %v1235
    %v2772 = vunpack.c.l.b16 %v1236
    %v2773 = vunpack.c.h.b16 %v1236
    %v2774 = vunpack.c.l.b16 %v1237
    %v2775 = vunpack.c.h.b16 %v1237
    %v2776 = vunpack.c.l.b16 %v1238
    %v2777 = vunpack.c.h.b16 %v1238
    %v2778 = vunpack.c.l.b16 %v1239
    %v2779 = vunpack.c.h.b16 %v1239
    %v2780 = vunpack.c.l.b16 %v1240
    %v2781 = vunpack.c.h.b16 %v1240
    %v2782 = vunpack.c.l.b16 %v1241
    %v2783 = vunpack.c.h.b16 %v1241
    %v2784 = vunpack.c.l.b16 %v1242
    %v2785 = vunpack.c.h.b16 %v1242
    %v2786 = vunpack.c.l.b16 %v1243
    %v2787 = vunpack.c.h.b16 %v1243
    %v2788 = vunpack.c.l.b16 %v1244
    %v2789 = vunpack.c.h.b16 %v1244
    %v2790 = vunpack.c.l.b16 %v1245
    %v2791 = vunpack.c.h.b16 %v1245
    %v2792 = vunpack.c.l.b16 %v1246
    %v2793 = vunpack.c.h.b16 %v1246
    %v2794 = vunpack.c.l.b16 %v1247
    %v2795 = vunpack.c.h.b16 %v1247
    %v2796 = vunpack.c.l.b16 %v1248
    %v2797 = vunpack.c.h.b16 %v1248
    %v2798 = vunpack.c.l.b16 %v1249
    %v2799 = vunpack.c.h.b16 %v1249
    %v2800 = vunpack.c.l.b16 %v1250
    %v2801 = vunpack.c.h.b16 %v1250
    %v2802 = vunpack.c.l.b16 %v1251
    %v2803 = vunpack.c.h.b16 %v1251
    %v2804 = vunpack.c.l.b16 %v1252
    %v2805 = vunpack.c.h.b16 %v1252
    %v2806 = vunpack.c.l.b16 %v1253
    %v2807 = vunpack.c.h.b16 %v1253
    %v2808 = vunpack.c.l.b16 %v1254
    %v2809 = vunpack.c.h.b16 %v1254
    %v2810 = vunpack.c.l.b16 %v1255
    %v2811 = vunpack.c.h.b16 %v1255
    %v2812 = vunpack.c.l.b16 %v1256
    %v2813 = vunpack.c.h.b16 %v1256
    %v2814 = vunpack.c.l.b16 %v1257
    %v2815 = vunpack.c.h.b16 %v1257
    %v2816 = vunpack.c.l.b16 %v1258
    %v2817 = vunpack.c.h.b16 %v1258
    %v2818 = vunpack.c.l.b16 %v1259
    %v2819 = vunpack.c.h.b16 %v1259
    %v2820 = vunpack.c.l.b16 %v1260
    %v2821 = vunpack.c.h.b16 %v1260
    %v2822 = vunpack.c.l.b16 %v1261
    %v2823 = vunpack.c.h.b16 %v1261
    %v2824 = vunpack.c.l.b16 %v1262
    %v2825 = vunpack.c.h.b16 %v1262
    %v2826 = vunpack.c.l.b16 %v1263
    %v2827 = vunpack.c.h.b16 %v1263
    %v2828 = vunpack.c.l.b16 %v1264
    %v2829 = vunpack.c.h.b16 %v1264
    %v2830 = vunpack.c.l.b16 %v1265
    %v2831 = vunpack.c.h.b16 %v1265
    %v2832 = vunpack.c.l.b16 %v1266
    %v2833 = vunpack.c.h.b16 %v1266
    %v2834 = vunpack.c.l.b16 %v1267
    %v2835 = vunpack.c.h.b16 %v1267
    %v2836 = vunpack.c.l.b16 %v1268
    %v2837 = vunpack.c.h.b16 %v1268
    %v2838 = vunpack.c.l.b16 %v1269
    %v2839 = vunpack.c.h.b16 %v1269
    %v2840 = vunpack.c.l.b16 %v1270
    %v2841 = vunpack.c.h.b16 %v1270
    %v2842 = vunpack.c.l.b16 %v1271
    %v2843 = vunpack.c.h.b16 %v1271
    %v2844 = vunpack.c.l.b16 %v1272
    %v2845 = vunpack.c.h.b16 %v1272
    %v2846 = vunpack.c.l.b16 %v1273
    %v2847 = vunpack.c.h.b16 %v1273
    %v2848 = vunpack.c.l.b16 %v1274
    %v2849 = vunpack.c.h.b16 %v1274
    %v2850 = vunpack.c.l.b16 %v1275
    %v2851 = vunpack.c.h.b16 %v1275
    %v2852 = vunpack.c.l.b16 %v1276
    %v2853 = vunpack.c.h.b16 %v1276
    %v2854 = vunpack.c.l.b16 %v1277
    %v2855 = vunpack.c.h.b16 %v1277
    %v2856 = vpack.c.b16 %v1840, %v1832
    %v2857 = vpack.c.b16 %v1841, %v1833
    %v2858 = vpack.c.b16 %v1842, %v1834
    %v2859 = vpack.c.b16 %v1843, %v1835
    %v2860 = vpack.c.b16 %v1844, %v1836
    %v2861 = vpack.c.b16 %v1845, %v1837
    %v2862 = vpack.c.b16 %v1846, %v1838
    %v2863 = vpack.c.b16 %v1847, %v1839
    %v2864 = vpack.c.b16 %v1856, %v1848
    %v2865 = vpack.c.b16 %v1857, %v1849
    %v2866 = vpack.c.b16 %v1858, %v1850
    %v2867 = vpack.c.b16 %v1859, %v1851
    %v2868 = vpack.c.b16 %v1860, %v1852
    %v2869 = vpack.c.b16 %v1861, %v1853
    %v2870 = vpack.c.b16 %v1862, %v1854
    %v2871 = vpack.c.b16 %v1863, %v1855
    %v2872 = vpack.c.b16 %v1872, %v1864
    %v2873 = vpack.c.b16 %v1873, %v1865
    %v2874 = vpack.c.b16 %v1874, %v1866
    %v2875 = vpack.c.b16 %v1875, %v1867
    %v2876 = vpack.c.b16 %v1876, %v1868
    %v2877 = vpack.c.b16 %v1877, %v1869
    %v2878 = vpack.c.b16 %v1878, %v1870
    %v2879 = vpack.c.b16 %v1879, %v1871
    %v2880 = vpack.c.b16 %v1888, %v1880
    %v2881 = vpack.c.b16 %v1889, %v1881
    %v2882 = vpack.c.b16 %v1890, %v1882
    %v2883 = vpack.c.b16 %v1891, %v1883
    %v2884 = vpack.c.b16 %v1892, %v1884
    %v2885 = vpack.c.b16 %v1893, %v1885
    %v2886 = vpack.c.b16 %v1894, %v1886
    %v2887 = vpack.c.b16 %v1895, %v1887
    %v2888 = vpack.c.b16 %v1904, %v1896
    %v2889 = vpack.c.b16 %v1905, %v1897
    %v2890 = vpack.c.b16 %v1906, %v1898
    %v2891 = vpack.c.b16 %v1907, %v1899
    %v2892 = vpack.c.b16 %v1908, %v1900
    %v2893 = vpack.c.b16 %v1909, %v1901
    %v2894 = vpack.c.b16 %v1910, %v1902
    %v2895 = vpack.c.b16 %v1911, %v1903
    %v2896 = vpack.c.b16 %v1920, %v1912
    %v2897 = vpack.c.b16 %v1921, %v1913
    %v2898 = vpack.c.b16 %v1922, %v1914
    %v2899 = vpack.c.b16 %v1923, %v1915
    %v2900 = vpack.c.b16 %v1924, %v1916
    %v2901 = vpack.c.b16 %v1925, %v1917
    %v2902 = vpack.c.b16 %v1926, %v1918
    %v2903 = vpack.c.b16 %v1927, %v1919
    %v2904 = vpack.c.b16 %v1936, %v1928
    %v2905 = vpack.c.b16 %v1937, %v1929
    %v2906 = vpack.c.b16 %v1938, %v1930
    %v2907 = vpack.c.b16 %v1939, %v1931
    %v2908 = vpack.c.b16 %v1940, %v1932
    %v2909 = vpack.c.b16 %v1941, %v1933
    %v2910 = vpack.c.b16 %v1942, %v1934
    %v2911 = vpack.c.b16 %v1943, %v1935
    %v2912 = vpack.c.b16 %v1952, %v1944
    %v2913 = vpack.c.b16 %v1953, %v1945
    %v2914 = vpack.c.b16 %v1954, %v1946
    %v2915 = vpack.c.b16 %v1955, %v1947
    %v2916 = vpack.c.b16 %v1956, %v1948
    %v2917 = vpack.c.b16 %v1957, %v1949
    %v2918 = vpack.c.b16 %v1958, %v1950
    %v2919 = vpack.c.b16 %v1959, %v1951
    %v2920 = vpack.c.b16 %v1968, %v1960
    %v2921 = vpack.c.b16 %v1969, %v1961
    %v2922 = vpack.c.b16 %v1970, %v1962
    %v2923 = vpack.c.b16 %v1971, %v1963
    %v2924 = vpack.c.b16 %v1972, %v1964
    %v2925 = vpack.c.b16 %v1973, %v1965
    %v2926 = vpack.c.b16 %v1974, %v1966
    %v2927 = vpack.c.b16 %v1975, %v1967
    %v2928 = vpack.c.b16 %v1984, %v1976
    %v2929 = vpack.c.b16 %v1985, %v1977
    %v2930 = vpack.c.b16 %v1986, %v1978
    %v2931 = vpack.c.b16 %v1987, %v1979
    %v2932 = vpack.c.b16 %v1988, %v1980
    %v2933 = vpack.c.b16 %v1989, %v1981
    %v2934 = vpack.c.b16 %v1990, %v1982
    %v2935 = vpack.c.b16 %v1991, %v1983
    %v2936 = vpack.c.b16 %v2000, %v1992
    %v2937 = vpack.c.b16 %v2001, %v1993
    %v2938 = vpack.c.b16 %v2002, %v1994
    %v2939 = vpack.c.b16 %v2003, %v1995
    %v2940 = vpack.c.b16 %v2004, %v1996
    %v2941 = vpack.c.b16 %v2005, %v1997
    %v2942 = vpack.c.b16 %v2006, %v1998
    %v2943 = vpack.c.b16 %v2007, %v1999
    %v2944 = vpack.c.b16 %v2016, %v2008
    %v2945 = vpack.c.b16 %v2017, %v2009
    %v2946 = vpack.c.b16 %v2018, %v2010
    %v2947 = vpack.c.b16 %v2019, %v2011
    %v2948 = vpack.c.b16 %v2020, %v2012
    %v2949 = vpack.c.b16 %v2021, %v2013
    %v2950 = vpack.c.b16 %v2022, %v2014
    %v2951 = vpack.c.b16 %v2023, %v2015
    %v2952 = vpack.c.b16 %v2032, %v2024
    %v2953 = vpack.c.b16 %v2033, %v2025
    %v2954 = vpack.c.b16 %v2034, %v2026
    %v2955 = vpack.c.b16 %v2035, %v2027
    %v2956 = vpack.c.b16 %v2036, %v2028
    %v2957 = vpack.c.b16 %v2037, %v2029
    %v2958 = vpack.c.b16 %v2038, %v2030
    %v2959 = vpack.c.b16 %v2039, %v2031
    %v2960 = vpack.c.b16 %v2048, %v2040
    %v2961 = vpack.c.b16 %v2049, %v2041
    %v2962 = vpack.c.b16 %v2050, %v2042
    %v2963 = vpack.c.b16 %v2051, %v2043
    %v2964 = vpack.c.b16 %v2052, %v2044
    %v2965 = vpack.c.b16 %v2053, %v2045
    %v2966 = vpack.c.b16 %v2054, %v2046
    %v2967 = vpack.c.b16 %v2055, %v2047
    %v2968 = vpack.c.b16 %v2064, %v2056
    %v2969 = vpack.c.b16 %v2065, %v2057
    %v2970 = vpack.c.b16 %v2066, %v2058
    %v2971 = vpack.c.b16 %v2067, %v2059
    %v2972 = vpack.c.b16 %v2068, %v2060
    %v2973 = vpack.c.b16 %v2069, %v2061
    %v2974 = vpack.c.b16 %v2070, %v2062
    %v2975 = vpack.c.b16 %v2071, %v2063
    %v2976 = vpack.c.b16 %v2080, %v2072
    %v2977 = vpack.c.b16 %v2081, %v2073
    %v2978 = vpack.c.b16 %v2082, %v2074
    %v2979 = vpack.c.b16 %v2083, %v2075
    %v2980 = vpack.c.b16 %v2084, %v2076
    %v2981 = vpack.c.b16 %v2085, %v2077
    %v2982 = vpack.c.b16 %v2086, %v2078
    %v2983 = vpack.c.b16 %v2087, %v2079
    %v2984 = vpack.c.b16 %v2096, %v2088
    %v2985 = vpack.c.b16 %v2097, %v2089
    %v2986 = vpack.c.b16 %v2098, %v2090
    %v2987 = vpack.c.b16 %v2099, %v2091
    %v2988 = vpack.c.b16 %v2100, %v2092
    %v2989 = vpack.c.b16 %v2101, %v2093
    %v2990 = vpack.c.b16 %v2102, %v2094
    %v2991 = vpack.c.b16 %v2103, %v2095
    %v2992 = vpack.c.b16 %v2112, %v2104
    %v2993 = vpack.c.b16 %v2113, %v2105
    %v2994 = vpack.c.b16 %v2114, %v2106
    %v2995 = vpack.c.b16 %v2115, %v2107
    %v2996 = vpack.c.b16 %v2116, %v2108
    %v2997 = vpack.c.b16 %v2117, %v2109
    %v2998 = vpack.c.b16 %v2118, %v2110
    %v2999 = vpack.c.b16 %v2119, %v2111
    %v3000 = vpack.c.b16 %v2128, %v2120
    %v3001 = vpack.c.b16 %v2129, %v2121
    %v3002 = vpack.c.b16 %v2130, %v2122
    %v3003 = vpack.c.b16 %v2131, %v2123
    %v3004 = vpack.c.b16 %v2132, %v2124
    %v3005 = vpack.c.b16 %v2133, %v2125
    %v3006 = vpack.c.b16 %v2134, %v2126
    %v3007 = vpack.c.b16 %v2135, %v2127
    %v3008 = vpack.c.b16 %v2144, %v2136
    %v3009 = vpack.c.b16 %v2145, %v2137
    %v3010 = vpack.c.b16 %v2146, %v2138
    %v3011 = vpack.c.b16 %v2147, %v2139
    %v3012 = vpack.c.b16 %v2148, %v2140
    %v3013 = vpack.c.b16 %v2149, %v2141
    %v3014 = vpack.c.b16 %v2150, %v2142
    %v3015 = vpack.c.b16 %v2151, %v2143
    %v3016 = vpack.c.b16 %v2160, %v2152
    %v3017 = vpack.c.b16 %v2161, %v2153
    %v3018 = vpack.c.b16 %v2162, %v2154
    %v3019 = vpack.c.b16 %v2163, %v2155
    %v3020 = vpack.c.b16 %v2164, %v2156
    %v3021 = vpack.c.b16 %v2165, %v2157
    %v3022 = vpack.c.b16 %v2166, %v2158
    %v3023 = vpack.c.b16 %v2167, %v2159
    %v3024 = vpack.c.b16 %v2176, %v2168
    %v3025 = vpack.c.b16 %v2177, %v2169
    %v3026 = vpack.c.b16 %v2178, %v2170
    %v3027 = vpack.c.b16 %v2179, %v2171
    %v3028 = vpack.c.b16 %v2180, %v2172
    %v3029 = vpack.c.b16 %v2181, %v2173
    %v3030 = vpack.c.b16 %v2182, %v2174
    %v3031 = vpack.c.b16 %v2183, %v2175
    %v3032 = vpack.c.b16 %v2192, %v2184
    %v3033 = vpack.c.b16 %v2193, %v2185
    %v3034 = vpack.c.b16 %v2194, %v2186
    %v3035 = vpack.c.b16 %v2195, %v2187
    %v3036 = vpack.c.b16 %v2196, %v2188
    %v3037 = vpack.c.b16 %v2197, %v2189
    %v3038 = vpack.c.b16 %v2198, %v2190
    %v3039 = vpack.c.b16 %v2199, %v2191
    %v3040 = vpack.c.b16 %v2208, %v2200
    %v3041 = vpack.c.b16 %v2209, %v2201
    %v3042 = vpack.c.b16 %v2210, %v2202
    %v3043 = vpack.c.b16 %v2211, %v2203
    %v3044 = vpack.c.b16 %v2212, %v2204
    %v3045 = vpack.c.b16 %v2213, %v2205
    %v3046 = vpack.c.b16 %v2214, %v2206
    %v3047 = vpack.c.b16 %v2215, %v2207
    %v3048 = vpack.c.b16 %v2224, %v2216
    %v3049 = vpack.c.b16 %v2225, %v2217
    %v3050 = vpack.c.b16 %v2226, %v2218
    %v3051 = vpack.c.b16 %v2227, %v2219
    %v3052 = vpack.c.b16 %v2228, %v2220
    %v3053 = vpack.c.b16 %v2229, %v2221
    %v3054 = vpack.c.b16 %v2230, %v2222
    %v3055 = vpack.c.b16 %v2231, %v2223
    %v3056 = vpack.c.b16 %v2240, %v2232
    %v3057 = vpack.c.b16 %v2241, %v2233
    %v3058 = vpack.c.b16 %v2242, %v2234
    %v3059 = vpack.c.b16 %v2243, %v2235
    %v3060 = vpack.c.b16 %v2244, %v2236
    %v3061 = vpack.c.b16 %v2245, %v2237
    %v3062 = vpack.c.b16 %v2246, %v2238
    %v3063 = vpack.c.b16 %v2247, %v2239
    %v3064 = vpack.c.b16 %v2256, %v2248
    %v3065 = vpack.c.b16 %v2257, %v2249
    %v3066 = vpack.c.b16 %v2258, %v2250
    %v3067 = vpack.c.b16 %v2259, %v2251
    %v3068 = vpack.c.b16 %v2260, %v2252
    %v3069 = vpack.c.b16 %v2261, %v2253
    %v3070 = vpack.c.b16 %v2262, %v2254
    %v3071 = vpack.c.b16 %v2263, %v2255
    %v3072 = vpack.c.b16 %v2272, %v2264
    %v3073 = vpack.c.b16 %v2273, %v2265
    %v3074 = vpack.c.b16 %v2274, %v2266
    %v3075 = vpack.c.b16 %v2275, %v2267
    %v3076 = vpack.c.b16 %v2276, %v2268
    %v3077 = vpack.c.b16 %v2277, %v2269
    %v3078 = vpack.c.b16 %v2278, %v2270
    %v3079 = vpack.c.b16 %v2279, %v2271
    %v3080 = vpack.c.b16 %v2288, %v2280
    %v3081 = vpack.c.b16 %v2289, %v2281
    %v3082 = vpack.c.b16 %v2290, %v2282
    %v3083 = vpack.c.b16 %v2291, %v2283
    %v3084 = vpack.c.b16 %v2292, %v2284
    %v3085 = vpack.c.b16 %v2293, %v2285
    %v3086 = vpack.c.b16 %v2294, %v2286
    %v3087 = vpack.c.b16 %v2295, %v2287
    %v3088 = vpack.c.b16 %v2304, %v2296
    %v3089 = vpack.c.b16 %v2305, %v2297
    %v3090 = vpack.c.b16 %v2306, %v2298
    %v3091 = vpack.c.b16 %v2307, %v2299
    %v3092 = vpack.c.b16 %v2308, %v2300
    %v3093 = vpack.c.b16 %v2309, %v2301
    %v3094 = vpack.c.b16 %v2310, %v2302
    %v3095 = vpack.c.b16 %v2311, %v2303
    %v3096 = vpack.c.b16 %v2320, %v2312
    %v3097 = vpack.c.b16 %v2321, %v2313
    %v3098 = vpack.c.b16 %v2322, %v2314
    %v3099 = vpack.c.b16 %v2323, %v2315
    %v3100 = vpack.c.b16 %v2324, %v2316
    %v3101 = vpack.c.b16 %v2325, %v2317
    %v3102 = vpack.c.b16 %v2326, %v2318
    %v3103 = vpack.c.b16 %v2327, %v2319
    %v3104 = vpack.c.b16 %v2336, %v2328
    %v3105 = vpack.c.b16 %v2337, %v2329
    %v3106 = vpack.c.b16 %v2338, %v2330
    %v3107 = vpack.c.b16 %v2339, %v2331
    %v3108 = vpack.c.b16 %v2340, %v2332
    %v3109 = vpack.c.b16 %v2341, %v2333
    %v3110 = vpack.c.b16 %v2342, %v2334
    %v3111 = vpack.c.b16 %v2343, %v2335
    %v3112 = vpack.c.b16 %v2352, %v2344
    %v3113 = vpack.c.b16 %v2353, %v2345
    %v3114 = vpack.c.b16 %v2354, %v2346
    %v3115 = vpack.c.b16 %v2355, %v2347
    %v3116 = vpack.c.b16 %v2356, %v2348
    %v3117 = vpack.c.b16 %v2357, %v2349
    %v3118 = vpack.c.b16 %v2358, %v2350
    %v3119 = vpack.c.b16 %v2359, %v2351
    %v3120 = vpack.c.b16 %v2368, %v2360
    %v3121 = vpack.c.b16 %v2369, %v2361
    %v3122 = vpack.c.b16 %v2370, %v2362
    %v3123 = vpack.c.b16 %v2371, %v2363
    %v3124 = vpack.c.b16 %v2372, %v2364
    %v3125 = vpack.c.b16 %v2373, %v2365
    %v3126 = vpack.c.b16 %v2374, %v2366
    %v3127 = vpack.c.b16 %v2375, %v2367
    %v3128 = vpack.c.b16 %v2384, %v2376
    %v3129 = vpack.c.b16 %v2385, %v2377
    %v3130 = vpack.c.b16 %v2386, %v2378
    %v3131 = vpack.c.b16 %v2387, %v2379
    %v3132 = vpack.c.b16 %v2388, %v2380
    %v3133 = vpack.c.b16 %v2389, %v2381
    %v3134 = vpack.c.b16 %v2390, %v2382
    %v3135 = vpack.c.b16 %v2391, %v2383
    %v3136 = vpack.c.b16 %v2400, %v2392
    %v3137 = vpack.c.b16 %v2401, %v2393
    %v3138 = vpack.c.b16 %v2402, %v2394
    %v3139 = vpack.c.b16 %v2403, %v2395
    %v3140 = vpack.c.b16 %v2404, %v2396
    %v3141 = vpack.c.b16 %v2405, %v2397
    %v3142 = vpack.c.b16 %v2406, %v2398
    %v3143 = vpack.c.b16 %v2407, %v2399
    %v3144 = vpack.c.b16 %v2416, %v2408
    %v3145 = vpack.c.b16 %v2417, %v2409
    %v3146 = vpack.c.b16 %v2418, %v2410
    %v3147 = vpack.c.b16 %v2419, %v2411
    %v3148 = vpack.c.b16 %v2420, %v2412
    %v3149 = vpack.c.b16 %v2421, %v2413
    %v3150 = vpack.c.b16 %v2422, %v2414
    %v3151 = vpack.c.b16 %v2423, %v2415
    %v3152 = vpack.c.b16 %v2432, %v2424
    %v3153 = vpack.c.b16 %v2433, %v2425
    %v3154 = vpack.c.b16 %v2434, %v2426
    %v3155 = vpack.c.b16 %v2435, %v2427
    %v3156 = vpack.c.b16 %v2436, %v2428
    %v3157 = vpack.c.b16 %v2437, %v2429
    %v3158 = vpack.c.b16 %v2438, %v2430
    %v3159 = vpack.c.b16 %v2439, %v2431
    %v3160 = vpack.c.b16 %v2448, %v2440
    %v3161 = vpack.c.b16 %v2449, %v2441
    %v3162 = vpack.c.b16 %v2450, %v2442
    %v3163 = vpack.c.b16 %v2451, %v2443
    %v3164 = vpack.c.b16 %v2452, %v2444
    %v3165 = vpack.c.b16 %v2453, %v2445
    %v3166 = vpack.c.b16 %v2454, %v2446
    %v3167 = vpack.c.b16 %v2455, %v2447
    %v3168 = vpack.c.b16 %v2464, %v2456
    %v3169 = vpack.c.b16 %v2465, %v2457
    %v3170 = vpack.c.b16 %v2466, %v2458
    %v3171 = vpack.c.b16 %v2467, %v2459
    %v3172 = vpack.c.b16 %v2468, %v2460
    %v3173 = vpack.c.b16 %v2469, %v2461
    %v3174 = vpack.c.b16 %v2470, %v2462
    %v3175 = vpack.c.b16 %v2471, %v2463
    %v3176 = vpack.c.b16 %v2480, %v2472
    %v3177 = vpack.c.b16 %v2481, %v2473
    %v3178 = vpack.c.b16 %v2482, %v2474
    %v3179 = vpack.c.b16 %v2483, %v2475
    %v3180 = vpack.c.b16 %v2484, %v2476
    %v3181 = vpack.c.b16 %v2485, %v2477
    %v3182 = vpack.c.b16 %v2486, %v2478
    %v3183 = vpack.c.b16 %v2487, %v2479
    %v3184 = vpack.c.b16 %v2496, %v2488
    %v3185 = vpack.c.b16 %v2497, %v2489
    %v3186 = vpack.c.b16 %v2498, %v2490
    %v3187 = vpack.c.b16 %v2499, %v2491
    %v3188 = vpack.c.b16 %v2500, %v2492
    %v3189 = vpack.c.b16 %v2501, %v2493
    %v3190 = vpack.c.b16 %v2502, %v2494
    %v3191 = vpack.c.b16 %v2503, %v2495
    %v3192 = vpack.c.b16 %v2512, %v2504
    %v3193 = vpack.c.b16 %v2513, %v2505
    %v3194 = vpack.c.b16 %v2514, %v2506
    %v3195 = vpack.c.b16 %v2515, %v2507
    %v3196 = vpack.c.b16 %v2516, %v2508
    %v3197 = vpack.c.b16 %v2517, %v2509
    %v3198 = vpack.c.b16 %v2518, %v2510
    %v3199 = vpack.c.b16 %v2519, %v2511
    %v3200 = vpack.c.b16 %v2528, %v2520
    %v3201 = vpack.c.b16 %v2529, %v2521
    %v3202 = vpack.c.b16 %v2530, %v2522
    %v3203 = vpack.c.b16 %v2531, %v2523
    %v3204 = vpack.c.b16 %v2532, %v2524
    %v3205 = vpack.c.b16 %v2533, %v2525
    %v3206 = vpack.c.b16 %v2534, %v2526
    %v3207 = vpack.c.b16 %v2535, %v2527
    %v3208 = vpack.c.b16 %v2544, %v2536
    %v3209 = vpack.c.b16 %v2545, %v2537
    %v3210 = vpack.c.b16 %v2546, %v2538
    %v3211 = vpack.c.b16 %v2547, %v2539
    %v3212 = vpack.c.b16 %v2548, %v2540
    %v3213 = vpack.c.b16 %v2549, %v2541
    %v3214 = vpack.c.b16 %v2550, %v2542
    %v3215 = vpack.c.b16 %v2551, %v2543
    %v3216 = vpack.c.b16 %v2560, %v2552
    %v3217 = vpack.c.b16 %v2561, %v2553
    %v3218 = vpack.c.b16 %v2562, %v2554
    %v3219 = vpack.c.b16 %v2563, %v2555
    %v3220 = vpack.c.b16 %v2564, %v2556
    %v3221 = vpack.c.b16 %v2565, %v2557
    %v3222 = vpack.c.b16 %v2566, %v2558
    %v3223 = vpack.c.b16 %v2567, %v2559
    %v3224 = vpack.c.b16 %v2576, %v2568
    %v3225 = vpack.c.b16 %v2577, %v2569
    %v3226 = vpack.c.b16 %v2578, %v2570
    %v3227 = vpack.c.b16 %v2579, %v2571
    %v3228 = vpack.c.b16 %v2580, %v2572
    %v3229 = vpack.c.b16 %v2581, %v2573
    %v3230 = vpack.c.b16 %v2582, %v2574
    %v3231 = vpack.c.b16 %v2583, %v2575
    %v3232 = vpack.c.b16 %v2592, %v2584
    %v3233 = vpack.c.b16 %v2593, %v2585
    %v3234 = vpack.c.b16 %v2594, %v2586
    %v3235 = vpack.c.b16 %v2595, %v2587
    %v3236 = vpack.c.b16 %v2596, %v2588
    %v3237 = vpack.c.b16 %v2597, %v2589
    %v3238 = vpack.c.b16 %v2598, %v2590
    %v3239 = vpack.c.b16 %v2599, %v2591
    %v3240 = vpack.c.b16 %v2608, %v2600
    %v3241 = vpack.c.b16 %v2609, %v2601
    %v3242 = vpack.c.b16 %v2610, %v2602
    %v3243 = vpack.c.b16 %v2611, %v2603
    %v3244 = vpack.c.b16 %v2612, %v2604
    %v3245 = vpack.c.b16 %v2613, %v2605
    %v3246 = vpack.c.b16 %v2614, %v2606
    %v3247 = vpack.c.b16 %v2615, %v2607
    %v3248 = vpack.c.b16 %v2624, %v2616
    %v3249 = vpack.c.b16 %v2625, %v2617
    %v3250 = vpack.c.b16 %v2626, %v2618
    %v3251 = vpack.c.b16 %v2627, %v2619
    %v3252 = vpack.c.b16 %v2628, %v2620
    %v3253 = vpack.c.b16 %v2629, %v2621
    %v3254 = vpack.c.b16 %v2630, %v2622
    %v3255 = vpack.c.b16 %v2631, %v2623
    %v3256 = vpack.c.b16 %v2640, %v2632
    %v3257 = vpack.c.b16 %v2641, %v2633
    %v3258 = vpack.c.b16 %v2642, %v2634
    %v3259 = vpack.c.b16 %v2643, %v2635
    %v3260 = vpack.c.b16 %v2644, %v2636
    %v3261 = vpack.c.b16 %v2645, %v2637
    %v3262 = vpack.c.b16 %v2646, %v2638
    %v3263 = vpack.c.b16 %v2647, %v2639
    %v3264 = vpack.c.b16 %v2656, %v2648
    %v3265 = vpack.c.b16 %v2657, %v2649
    %v3266 = vpack.c.b16 %v2658, %v2650
    %v3267 = vpack.c.b16 %v2659, %v2651
    %v3268 = vpack.c.b16 %v2660, %v2652
    %v3269 = vpack.c.b16 %v2661, %v2653
    %v3270 = vpack.c.b16 %v2662, %v2654
    %v3271 = vpack.c.b16 %v2663, %v2655
    %v3272 = vpack.c.b16 %v2672, %v2664
    %v3273 = vpack.c.b16 %v2673, %v2665
    %v3274 = vpack.c.b16 %v2674, %v2666
    %v3275 = vpack.c.b16 %v2675, %v2667
    %v3276 = vpack.c.b16 %v2676, %v2668
    %v3277 = vpack.c.b16 %v2677, %v2669
    %v3278 = vpack.c.b16 %v2678, %v2670
    %v3279 = vpack.c.b16 %v2679, %v2671
    %v3280 = vpack.c.b16 %v2688, %v2680
    %v3281 = vpack.c.b16 %v2689, %v2681
    %v3282 = vpack.c.b16 %v2690, %v2682
    %v3283 = vpack.c.b16 %v2691, %v2683
    %v3284 = vpack.c.b16 %v2692, %v2684
    %v3285 = vpack.c.b16 %v2693, %v2685
    %v3286 = vpack.c.b16 %v2694, %v2686
    %v3287 = vpack.c.b16 %v2695, %v2687
    %v3288 = vpack.c.b16 %v2704, %v2696
    %v3289 = vpack.c.b16 %v2705, %v2697
    %v3290 = vpack.c.b16 %v2706, %v2698
    %v3291 = vpack.c.b16 %v2707, %v2699
    %v3292 = vpack.c.b16 %v2708, %v2700
    %v3293 = vpack.c.b16 %v2709, %v2701
    %v3294 = vpack.c.b16 %v2710, %v2702
    %v3295 = vpack.c.b16 %v2711, %v2703
    %v3296 = vpack.c.b16 %v2720, %v2712
    %v3297 = vpack.c.b16 %v2721, %v2713
    %v3298 = vpack.c.b16 %v2722, %v2714
    %v3299 = vpack.c.b16 %v2723, %v2715
    %v3300 = vpack.c.b16 %v2724, %v2716
    %v3301 = vpack.c.b16 %v2725, %v2717
    %v3302 = vpack.c.b16 %v2726, %v2718
    %v3303 = vpack.c.b16 %v2727, %v2719
    %v3304 = vpack.c.b16 %v2736, %v2728
    %v3305 = vpack.c.b16 %v2737, %v2729
    %v3306 = vpack.c.b16 %v2738, %v2730
    %v3307 = vpack.c.b16 %v2739, %v2731
    %v3308 = vpack.c.b16 %v2740, %v2732
    %v3309 = vpack.c.b16 %v2741, %v2733
    %v3310 = vpack.c.b16 %v2742, %v2734
    %v3311 = vpack.c.b16 %v2743, %v2735
    %v3312 = vpack.c.b16 %v2752, %v2744
    %v3313 = vpack.c.b16 %v2753, %v2745
    %v3314 = vpack.c.b16 %v2754, %v2746
    %v3315 = vpack.c.b16 %v2755, %v2747
    %v3316 = vpack.c.b16 %v2756, %v2748
    %v3317 = vpack.c.b16 %v2757, %v2749
    %v3318 = vpack.c.b16 %v2758, %v2750
    %v3319 = vpack.c.b16 %v2759, %v2751
    %v3320 = vpack.c.b16 %v2768, %v2760
    %v3321 = vpack.c.b16 %v2769, %v2761
    %v3322 = vpack.c.b16 %v2770, %v2762
    %v3323 = vpack.c.b16 %v2771, %v2763
    %v3324 = vpack.c.b16 %v2772, %v2764
    %v3325 = vpack.c.b16 %v2773, %v2765
    %v3326 = vpack.c.b16 %v2774, %v2766
    %v3327 = vpack.c.b16 %v2775, %v2767
    %v3328 = vpack.c.b16 %v2784, %v2776
    %v3329 = vpack.c.b16 %v2785, %v2777
    %v3330 = vpack.c.b16 %v2786, %v2778
    %v3331 = vpack.c.b16 %v2787, %v2779
    %v3332 = vpack.c.b16 %v2788, %v2780
    %v3333 = vpack.c.b16 %v2789, %v2781
    %v3334 = vpack.c.b16 %v2790, %v2782
    %v3335 = vpack.c.b16 %v2791, %v2783
    %v3336 = vpack.c.b16 %v2800, %v2792
    %v3337 = vpack.c.b16 %v2801, %v2793
    %v3338 = vpack.c.b16 %v2802, %v2794
    %v3339 = vpack.c.b16 %v2803, %v2795
    %v3340 = vpack.c.b16 %v2804, %v2796
    %v3341 = vpack.c.b16 %v2805, %v2797
    %v3342 = vpack.c.b16 %v2806, %v2798
    %v3343 = vpack.c.b16 %v2807, %v2799
    %v3344 = vpack.c.b16 %v2816, %v2808
    %v3345 = vpack.c.b16 %v2817, %v2809
    %v3346 = vpack.c.b16 %v2818, %v2810
    %v3347 = vpack.c.b16 %v2819, %v2811
    %v3348 = vpack.c.b16 %v2820, %v2812
    %v3349 = vpack.c.b16 %v2821, %v2813
    %v3350 = vpack.c.b16 %v2822, %v2814
    %v3351 = vpack.c.b16 %v2823, %v2815
    %v3352 = vpack.c.b16 %v2832, %v2824
    %v3353 = vpack.c.b16 %v2833, %v2825
    %v3354 = vpack.c.b16 %v2834, %v2826
    %v3355 = vpack.c.b16 %v2835, %v2827
    %v3356 = vpack.c.b16 %v2836, %v2828
    %v3357 = vpack.c.b16 %v2837, %v2829
    %v3358 = vpack.c.b16 %v2838, %v2830
    %v3359 = vpack.c.b16 %v2839, %v2831
    %v3360 = vpack.c.b16 %v2848, %v2840
    %v3361 = vpack.c.b16 %v2849, %v2841
    %v3362 = vpack.c.b16 %v2850, %v2842
    %v3363 = vpack.c.b16 %v2851, %v2843
    %v3364 = vpack.c.b16 %v2852, %v2844
    %v3365 = vpack.c.b16 %v2853, %v2845
    %v3366 = vpack.c.b16 %v2854, %v2846
    %v3367 = vpack.c.b16 %v2855, %v2847
    %3880 = vmatprep.subr.bf16.mxu0 %v2857
    %3881 = vmatpush1.bf16.msra.mxu0 %v2856
    %3882 = vmatprep.subr.bf16.mxu0 %v2865
    %3883 = vmatpush1.bf16.msra.mxu0 %v2864
    %3884 = vmatprep.subr.bf16.mxu0 %v2873
    %3885 = vmatpush1.bf16.msra.mxu0 %v2872
    %3886 = vmatprep.subr.bf16.mxu0 %v2881
    %3887 = vmatpush1.bf16.msra.mxu0 %v2880
    %3888 = vmatprep.subr.bf16.mxu0 %v2889
    %3889 = vmatpush1.bf16.msra.mxu0 %v2888
    %3890 = vmatprep.subr.bf16.mxu0 %v2897
    %3891 = vmatpush1.bf16.msra.mxu0 %v2896
    %3892 = vmatprep.subr.bf16.mxu0 %v2905
    %3893 = vmatpush1.bf16.msra.mxu0 %v2904
    %3894 = vmatprep.subr.bf16.mxu0 %v2913
    %3895 = vmatpush1.bf16.msra.mxu0 %v2912
    %3896 = vmatprep.subr.bf16.mxu0 %v2921
    %3897 = vmatpush1.bf16.msra.mxu0 %v2920
    %3898 = vmatprep.subr.bf16.mxu0 %v2929
    %3899 = vmatpush1.bf16.msra.mxu0 %v2928
    %3900 = vmatprep.subr.bf16.mxu0 %v2937
    %3901 = vmatpush1.bf16.msra.mxu0 %v2936
    %3902 = vmatprep.subr.bf16.mxu0 %v2945
    %3903 = vmatpush1.bf16.msra.mxu0 %v2944
    %3904 = vmatprep.subr.bf16.mxu0 %v2953
    %3905 = vmatpush1.bf16.msra.mxu0 %v2952
    %3906 = vmatprep.subr.bf16.mxu0 %v2961
    %3907 = vmatpush1.bf16.msra.mxu0 %v2960
    %3908 = vmatprep.subr.bf16.mxu0 %v2969
    %3909 = vmatpush1.bf16.msra.mxu0 %v2968
    %3910 = vmatprep.subr.bf16.mxu0 %v2977
    %3911 = vmatpush1.bf16.msra.mxu0 %v2976
    %3912 = vmatprep.mubr.bf16.mxu0 %v759
    %3913 = vmatmul.mubr.bf16.gmra.mrb[0].mxu0 %v758
    %v3914 = vpop.f32.mrb[0].mxu0
    %v3915 = vadd.f32 %v1283, %v3914
    %v3916 = vpop.f32.mrb[0].mxu0
    %v3917 = vadd.f32 %v1287, %v3916
    %v3918 = vpop.f32.mrb[0].mxu0
    %v3919 = vpop.f32.mrb[0].mxu0
    %3920 = vdwg.mxu0
    %3921 = vmatprep.subr.bf16.mxu0 %v2985
    %3922 = vmatpush1.bf16.msra.mxu0 %v2984
    %3923 = vmatprep.subr.bf16.mxu0 %v2993
    %3924 = vmatpush1.bf16.msra.mxu0 %v2992
    %3925 = vmatprep.subr.bf16.mxu0 %v3001
    %3926 = vmatpush1.bf16.msra.mxu0 %v3000
    %3927 = vmatprep.subr.bf16.mxu0 %v3009
    %3928 = vmatpush1.bf16.msra.mxu0 %v3008
    %3929 = vmatprep.subr.bf16.mxu0 %v3017
    %3930 = vmatpush1.bf16.msra.mxu0 %v3016
    %3931 = vmatprep.subr.bf16.mxu0 %v3025
    %3932 = vmatpush1.bf16.msra.mxu0 %v3024
    %3933 = vmatprep.subr.bf16.mxu0 %v3033
    %3934 = vmatpush1.bf16.msra.mxu0 %v3032
    %3935 = vmatprep.subr.bf16.mxu0 %v3041
    %3936 = vmatpush1.bf16.msra.mxu0 %v3040
    %3937 = vmatprep.subr.bf16.mxu0 %v3049
    %3938 = vmatpush1.bf16.msra.mxu0 %v3048
    %3939 = vmatprep.subr.bf16.mxu0 %v3057
    %3940 = vmatpush1.bf16.msra.mxu0 %v3056
    %3941 = vmatprep.subr.bf16.mxu0 %v3065
    %3942 = vmatpush1.bf16.msra.mxu0 %v3064
    %3943 = vmatprep.subr.bf16.mxu0 %v3073
    %3944 = vmatpush1.bf16.msra.mxu0 %v3072
    %3945 = vmatprep.subr.bf16.mxu0 %v3081
    %3946 = vmatpush1.bf16.msra.mxu0 %v3080
    %3947 = vmatprep.subr.bf16.mxu0 %v3089
    %3948 = vmatpush1.bf16.msra.mxu0 %v3088
    %3949 = vmatprep.subr.bf16.mxu0 %v3097
    %3950 = vmatpush1.bf16.msra.mxu0 %v3096
    %3951 = vmatprep.subr.bf16.mxu0 %v3105
    %3952 = vmatpush1.bf16.msra.mxu0 %v3104
    %3953 = vmatprep.mubr.bf16.mxu0 %v761
    %3954 = vmatmul.mubr.bf16.gmra.mrb[0].mxu0 %v760
    %v3955 = vpop.f32.mrb[0].mxu0
    %v3956 = vadd.f32 %v3915, %v3955
    %v3957 = vpop.f32.mrb[0].mxu0
    %v3958 = vadd.f32 %v3917, %v3957
    %v3959 = vpop.f32.mrb[0].mxu0
    %v3960 = vpop.f32.mrb[0].mxu0
    %3961 = vdwg.mxu0
    %3962 = vmatprep.subr.bf16.mxu0 %v3113
    %3963 = vmatpush1.bf16.msra.mxu0 %v3112
    %3964 = vmatprep.subr.bf16.mxu0 %v3121
    %3965 = vmatpush1.bf16.msra.mxu0 %v3120
    %3966 = vmatprep.subr.bf16.mxu0 %v3129
    %3967 = vmatpush1.bf16.msra.mxu0 %v3128
    %3968 = vmatprep.subr.bf16.mxu0 %v3137
    %3969 = vmatpush1.bf16.msra.mxu0 %v3136
    %3970 = vmatprep.subr.bf16.mxu0 %v3145
    %3971 = vmatpush1.bf16.msra.mxu0 %v3144
    %3972 = vmatprep.subr.bf16.mxu0 %v3153
    %3973 = vmatpush1.bf16.msra.mxu0 %v3152
    %3974 = vmatprep.subr.bf16.mxu0 %v3161
    %3975 = vmatpush1.bf16.msra.mxu0 %v3160
    %3976 = vmatprep.subr.bf16.mxu0 %v3169
    %3977 = vmatpush1.bf16.msra.mxu0 %v3168
    %3978 = vmatprep.subr.bf16.mxu0 %v3177
    %3979 = vmatpush1.bf16.msra.mxu0 %v3176
    %3980 = vmatprep.subr.bf16.mxu0 %v3185
    %3981 = vmatpush1.bf16.msra.mxu0 %v3184
    %3982 = vmatprep.subr.bf16.mxu0 %v3193
    %3983 = vmatpush1.bf16.msra.mxu0 %v3192
    %3984 = vmatprep.subr.bf16.mxu0 %v3201
    %3985 = vmatpush1.bf16.msra.mxu0 %v3200
    %3986 = vmatprep.subr.bf16.mxu0 %v3209
    %3987 = vmatpush1.bf16.msra.mxu0 %v3208
    %3988 = vmatprep.subr.bf16.mxu0 %v3217
    %3989 = vmatpush1.bf16.msra.mxu0 %v3216
    %3990 = vmatprep.subr.bf16.mxu0 %v3225
    %3991 = vmatpush1.bf16.msra.mxu0 %v3224
    %3992 = vmatprep.subr.bf16.mxu0 %v3233
    %3993 = vmatpush1.bf16.msra.mxu0 %v3232
    %3994 = vmatprep.mubr.bf16.mxu0 %v763
    %3995 = vmatmul.mubr.bf16.gmra.mrb[0].mxu0 %v762
    %v3996 = vpop.f32.mrb[0].mxu0
    %v3997 = vadd.f32 %v3956, %v3996
    %v3998 = vpop.f32.mrb[0].mxu0
    %v3999 = vadd.f32 %v3958, %v3998
    %v4000 = vpop.f32.mrb[0].mxu0
    %v4001 = vpop.f32.mrb[0].mxu0
    %4002 = vdwg.mxu0
    %4003 = vmatprep.subr.bf16.mxu0 %v3241
    %4004 = vmatpush1.bf16.msra.mxu0 %v3240
    %4005 = vmatprep.subr.bf16.mxu0 %v3249
    %4006 = vmatpush1.bf16.msra.mxu0 %v3248
    %4007 = vmatprep.subr.bf16.mxu0 %v3257
    %4008 = vmatpush1.bf16.msra.mxu0 %v3256
    %4009 = vmatprep.subr.bf16.mxu0 %v3265
    %4010 = vmatpush1.bf16.msra.mxu0 %v3264
    %4011 = vmatprep.subr.bf16.mxu0 %v3273
    %4012 = vmatpush1.bf16.msra.mxu0 %v3272
    %4013 = vmatprep.subr.bf16.mxu0 %v3281
    %4014 = vmatpush1.bf16.msra.mxu0 %v3280
    %4015 = vmatprep.subr.bf16.mxu0 %v3289
    %4016 = vmatpush1.bf16.msra.mxu0 %v3288
    %4017 = vmatprep.subr.bf16.mxu0 %v3297
    %4018 = vmatpush1.bf16.msra.mxu0 %v3296
    %4019 = vmatprep.subr.bf16.mxu0 %v3305
    %4020 = vmatpush1.bf16.msra.mxu0 %v3304
    %4021 = vmatprep.subr.bf16.mxu0 %v3313
    %4022 = vmatpush1.bf16.msra.mxu0 %v3312
    %4023 = vmatprep.subr.bf16.mxu0 %v3321
    %4024 = vmatpush1.bf16.msra.mxu0 %v3320
    %4025 = vmatprep.subr.bf16.mxu0 %v3329
    %4026 = vmatpush1.bf16.msra.mxu0 %v3328
    %4027 = vmatprep.subr.bf16.mxu0 %v3337
    %4028 = vmatpush1.bf16.msra.mxu0 %v3336
    %4029 = vmatprep.subr.bf16.mxu0 %v3345
    %4030 = vmatpush1.bf16.msra.mxu0 %v3344
    %4031 = vmatprep.subr.bf16.mxu0 %v3353
    %4032 = vmatpush1.bf16.msra.mxu0 %v3352
    %4033 = vmatprep.subr.bf16.mxu0 %v3361
    %4034 = vmatpush1.bf16.msra.mxu0 %v3360
    %4035 = vmatprep.mubr.bf16.mxu0 %v765
    %4036 = vmatmul.mubr.bf16.gmra.mrb[0].mxu0 %v764
    %v4037 = vpop.f32.mrb[0].mxu0
    %v4038 = vadd.f32 %v3997, %v4037
    %v4039 = vpop.f32.mrb[0].mxu0
    %v4040 = vadd.f32 %v3999, %v4039
    %v4041 = vpop.f32.mrb[0].mxu0
    %v4042 = vpop.f32.mrb[0].mxu0
    %4043 = vdwg.mxu0
    %4044 = vmatprep.subr.bf16.mxu0 %v2859
    %4045 = vmatpush1.bf16.msra.mxu0 %v2858
    %4046 = vmatprep.subr.bf16.mxu0 %v2867
    %4047 = vmatpush1.bf16.msra.mxu0 %v2866
    %4048 = vmatprep.subr.bf16.mxu0 %v2875
    %4049 = vmatpush1.bf16.msra.mxu0 %v2874
    %4050 = vmatprep.subr.bf16.mxu0 %v2883
    %4051 = vmatpush1.bf16.msra.mxu0 %v2882
    %4052 = vmatprep.subr.bf16.mxu0 %v2891
    %4053 = vmatpush1.bf16.msra.mxu0 %v2890
    %4054 = vmatprep.subr.bf16.mxu0 %v2899
    %4055 = vmatpush1.bf16.msra.mxu0 %v2898
    %4056 = vmatprep.subr.bf16.mxu0 %v2907
    %4057 = vmatpush1.bf16.msra.mxu0 %v2906
    %4058 = vmatprep.subr.bf16.mxu0 %v2915
    %4059 = vmatpush1.bf16.msra.mxu0 %v2914
    %4060 = vmatprep.subr.bf16.mxu0 %v2923
    %4061 = vmatpush1.bf16.msra.mxu0 %v2922
    %4062 = vmatprep.subr.bf16.mxu0 %v2931
    %4063 = vmatpush1.bf16.msra.mxu0 %v2930
    %4064 = vmatprep.subr.bf16.mxu0 %v2939
    %4065 = vmatpush1.bf16.msra.mxu0 %v2938
    %4066 = vmatprep.subr.bf16.mxu0 %v2947
    %4067 = vmatpush1.bf16.msra.mxu0 %v2946
    %4068 = vmatprep.subr.bf16.mxu0 %v2955
    %4069 = vmatpush1.bf16.msra.mxu0 %v2954
    %4070 = vmatprep.subr.bf16.mxu0 %v2963
    %4071 = vmatpush1.bf16.msra.mxu0 %v2962
    %4072 = vmatprep.subr.bf16.mxu0 %v2971
    %4073 = vmatpush1.bf16.msra.mxu0 %v2970
    %4074 = vmatprep.subr.bf16.mxu0 %v2979
    %4075 = vmatpush1.bf16.msra.mxu0 %v2978
    %4076 = vmatprep.mubr.bf16.mxu0 %v759
    %4077 = vmatmul.mubr.bf16.gmra.mrb[0].mxu0 %v758
    %v4078 = vpop.f32.mrb[0].mxu0
    %v4079 = vadd.f32 %v1291, %v4078
    %v4080 = vpop.f32.mrb[0].mxu0
    %v4081 = vadd.f32 %v1295, %v4080
    %v4082 = vpop.f32.mrb[0].mxu0
    %v4083 = vpop.f32.mrb[0].mxu0
    %4084 = vdwg.mxu0
    %4085 = vmatprep.subr.bf16.mxu0 %v2987
    %4086 = vmatpush1.bf16.msra.mxu0 %v2986
    %4087 = vmatprep.subr.bf16.mxu0 %v2995
    %4088 = vmatpush1.bf16.msra.mxu0 %v2994
    %4089 = vmatprep.subr.bf16.mxu0 %v3003
    %4090 = vmatpush1.bf16.msra.mxu0 %v3002
    %4091 = vmatprep.subr.bf16.mxu0 %v3011
    %4092 = vmatpush1.bf16.msra.mxu0 %v3010
    %4093 = vmatprep.subr.bf16.mxu0 %v3019
    %4094 = vmatpush1.bf16.msra.mxu0 %v3018
    %4095 = vmatprep.subr.bf16.mxu0 %v3027
    %4096 = vmatpush1.bf16.msra.mxu0 %v3026
    %4097 = vmatprep.subr.bf16.mxu0 %v3035
    %4098 = vmatpush1.bf16.msra.mxu0 %v3034
    %4099 = vmatprep.subr.bf16.mxu0 %v3043
    %4100 = vmatpush1.bf16.msra.mxu0 %v3042
    %4101 = vmatprep.subr.bf16.mxu0 %v3051
    %4102 = vmatpush1.bf16.msra.mxu0 %v3050
    %4103 = vmatprep.subr.bf16.mxu0 %v3059
    %4104 = vmatpush1.bf16.msra.mxu0 %v3058
    %4105 = vmatprep.subr.bf16.mxu0 %v3067
    %4106 = vmatpush1.bf16.msra.mxu0 %v3066
    %4107 = vmatprep.subr.bf16.mxu0 %v3075
    %4108 = vmatpush1.bf16.msra.mxu0 %v3074
    %4109 = vmatprep.subr.bf16.mxu0 %v3083
    %4110 = vmatpush1.bf16.msra.mxu0 %v3082
    %4111 = vmatprep.subr.bf16.mxu0 %v3091
    %4112 = vmatpush1.bf16.msra.mxu0 %v3090
    %4113 = vmatprep.subr.bf16.mxu0 %v3099
    %4114 = vmatpush1.bf16.msra.mxu0 %v3098
    %4115 = vmatprep.subr.bf16.mxu0 %v3107
    %4116 = vmatpush1.bf16.msra.mxu0 %v3106
    %4117 = vmatprep.mubr.bf16.mxu0 %v761
    %4118 = vmatmul.mubr.bf16.gmra.mrb[0].mxu0 %v760
    %v4119 = vpop.f32.mrb[0].mxu0
    %v4120 = vadd.f32 %v4079, %v4119
    %v4121 = vpop.f32.mrb[0].mxu0
    %v4122 = vadd.f32 %v4081, %v4121
    %v4123 = vpop.f32.mrb[0].mxu0
    %v4124 = vpop.f32.mrb[0].mxu0
    %4125 = vdwg.mxu0
    %4126 = vmatprep.subr.bf16.mxu0 %v3115
    %4127 = vmatpush1.bf16.msra.mxu0 %v3114
    %4128 = vmatprep.subr.bf16.mxu0 %v3123
    %4129 = vmatpush1.bf16.msra.mxu0 %v3122
    %4130 = vmatprep.subr.bf16.mxu0 %v3131
    %4131 = vmatpush1.bf16.msra.mxu0 %v3130
    %4132 = vmatprep.subr.bf16.mxu0 %v3139
    %4133 = vmatpush1.bf16.msra.mxu0 %v3138
    %4134 = vmatprep.subr.bf16.mxu0 %v3147
    %4135 = vmatpush1.bf16.msra.mxu0 %v3146
    %4136 = vmatprep.subr.bf16.mxu0 %v3155
    %4137 = vmatpush1.bf16.msra.mxu0 %v3154
    %4138 = vmatprep.subr.bf16.mxu0 %v3163
    %4139 = vmatpush1.bf16.msra.mxu0 %v3162
    %4140 = vmatprep.subr.bf16.mxu0 %v3171
    %4141 = vmatpush1.bf16.msra.mxu0 %v3170
    %4142 = vmatprep.subr.bf16.mxu0 %v3179
    %4143 = vmatpush1.bf16.msra.mxu0 %v3178
    %4144 = vmatprep.subr.bf16.mxu0 %v3187
    %4145 = vmatpush1.bf16.msra.mxu0 %v3186
    %4146 = vmatprep.subr.bf16.mxu0 %v3195
    %4147 = vmatpush1.bf16.msra.mxu0 %v3194
    %4148 = vmatprep.subr.bf16.mxu0 %v3203
    %4149 = vmatpush1.bf16.msra.mxu0 %v3202
    %4150 = vmatprep.subr.bf16.mxu0 %v3211
    %4151 = vmatpush1.bf16.msra.mxu0 %v3210
    %4152 = vmatprep.subr.bf16.mxu0 %v3219
    %4153 = vmatpush1.bf16.msra.mxu0 %v3218
    %4154 = vmatprep.subr.bf16.mxu0 %v3227
    %4155 = vmatpush1.bf16.msra.mxu0 %v3226
    %4156 = vmatprep.subr.bf16.mxu0 %v3235
    %4157 = vmatpush1.bf16.msra.mxu0 %v3234
    %4158 = vmatprep.mubr.bf16.mxu0 %v763
    %4159 = vmatmul.mubr.bf16.gmra.mrb[0].mxu0 %v762
    %v4160 = vpop.f32.mrb[0].mxu0
    %v4161 = vadd.f32 %v4120, %v4160
    %v4162 = vpop.f32.mrb[0].mxu0
    %v4163 = vadd.f32 %v4122, %v4162
    %v4164 = vpop.f32.mrb[0].mxu0
    %v4165 = vpop.f32.mrb[0].mxu0
    %4166 = vdwg.mxu0
    %4167 = vmatprep.subr.bf16.mxu0 %v3243
    %4168 = vmatpush1.bf16.msra.mxu0 %v3242
    %4169 = vmatprep.subr.bf16.mxu0 %v3251
    %4170 = vmatpush1.bf16.msra.mxu0 %v3250
    %4171 = vmatprep.subr.bf16.mxu0 %v3259
    %4172 = vmatpush1.bf16.msra.mxu0 %v3258
    %4173 = vmatprep.subr.bf16.mxu0 %v3267
    %4174 = vmatpush1.bf16.msra.mxu0 %v3266
    %4175 = vmatprep.subr.bf16.mxu0 %v3275
    %4176 = vmatpush1.bf16.msra.mxu0 %v3274
    %4177 = vmatprep.subr.bf16.mxu0 %v3283
    %4178 = vmatpush1.bf16.msra.mxu0 %v3282
    %4179 = vmatprep.subr.bf16.mxu0 %v3291
    %4180 = vmatpush1.bf16.msra.mxu0 %v3290
    %4181 = vmatprep.subr.bf16.mxu0 %v3299
    %4182 = vmatpush1.bf16.msra.mxu0 %v3298
    %4183 = vmatprep.subr.bf16.mxu0 %v3307
    %4184 = vmatpush1.bf16.msra.mxu0 %v3306
    %4185 = vmatprep.subr.bf16.mxu0 %v3315
    %4186 = vmatpush1.bf16.msra.mxu0 %v3314
    %4187 = vmatprep.subr.bf16.mxu0 %v3323
    %4188 = vmatpush1.bf16.msra.mxu0 %v3322
    %4189 = vmatprep.subr.bf16.mxu0 %v3331
    %4190 = vmatpush1.bf16.msra.mxu0 %v3330
    %4191 = vmatprep.subr.bf16.mxu0 %v3339
    %4192 = vmatpush1.bf16.msra.mxu0 %v3338
    %4193 = vmatprep.subr.bf16.mxu0 %v3347
    %4194 = vmatpush1.bf16.msra.mxu0 %v3346
    %4195 = vmatprep.subr.bf16.mxu0 %v3355
    %4196 = vmatpush1.bf16.msra.mxu0 %v3354
    %4197 = vmatprep.subr.bf16.mxu0 %v3363
    %4198 = vmatpush1.bf16.msra.mxu0 %v3362
    %4199 = vmatprep.mubr.bf16.mxu0 %v765
    %4200 = vmatmul.mubr.bf16.gmra.mrb[0].mxu0 %v764
    %v4201 = vpop.f32.mrb[0].mxu0
    %v4202 = vadd.f32 %v4161, %v4201
    %v4203 = vpop.f32.mrb[0].mxu0
    %v4204 = vadd.f32 %v4163, %v4203
    %v4205 = vpop.f32.mrb[0].mxu0
    %v4206 = vpop.f32.mrb[0].mxu0
    %4207 = vdwg.mxu0
    %4208 = vmatprep.subr.bf16.mxu0 %v2861
    %4209 = vmatpush1.bf16.msra.mxu0 %v2860
    %4210 = vmatprep.subr.bf16.mxu0 %v2869
    %4211 = vmatpush1.bf16.msra.mxu0 %v2868
    %4212 = vmatprep.subr.bf16.mxu0 %v2877
    %4213 = vmatpush1.bf16.msra.mxu0 %v2876
    %4214 = vmatprep.subr.bf16.mxu0 %v2885
    %4215 = vmatpush1.bf16.msra.mxu0 %v2884
    %4216 = vmatprep.subr.bf16.mxu0 %v2893
    %4217 = vmatpush1.bf16.msra.mxu0 %v2892
    %4218 = vmatprep.subr.bf16.mxu0 %v2901
    %4219 = vmatpush1.bf16.msra.mxu0 %v2900
    %4220 = vmatprep.subr.bf16.mxu0 %v2909
    %4221 = vmatpush1.bf16.msra.mxu0 %v2908
    %4222 = vmatprep.subr.bf16.mxu0 %v2917
    %4223 = vmatpush1.bf16.msra.mxu0 %v2916
    %4224 = vmatprep.subr.bf16.mxu0 %v2925
    %4225 = vmatpush1.bf16.msra.mxu0 %v2924
    %4226 = vmatprep.subr.bf16.mxu0 %v2933
    %4227 = vmatpush1.bf16.msra.mxu0 %v2932
    %4228 = vmatprep.subr.bf16.mxu0 %v2941
    %4229 = vmatpush1.bf16.msra.mxu0 %v2940
    %4230 = vmatprep.subr.bf16.mxu0 %v2949
    %4231 = vmatpush1.bf16.msra.mxu0 %v2948
    %4232 = vmatprep.subr.bf16.mxu0 %v2957
    %4233 = vmatpush1.bf16.msra.mxu0 %v2956
    %4234 = vmatprep.subr.bf16.mxu0 %v2965
    %4235 = vmatpush1.bf16.msra.mxu0 %v2964
    %4236 = vmatprep.subr.bf16.mxu0 %v2973
    %4237 = vmatpush1.bf16.msra.mxu0 %v2972
    %4238 = vmatprep.subr.bf16.mxu0 %v2981
    %4239 = vmatpush1.bf16.msra.mxu0 %v2980
    %4240 = vmatprep.mubr.bf16.mxu0 %v759
    %4241 = vmatmul.mubr.bf16.gmra.mrb[0].mxu0 %v758
    %v4242 = vpop.f32.mrb[0].mxu0
    %v4243 = vadd.f32 %v1299, %v4242
    %v4244 = vpop.f32.mrb[0].mxu0
    %v4245 = vadd.f32 %v1303, %v4244
    %v4246 = vpop.f32.mrb[0].mxu0
    %v4247 = vpop.f32.mrb[0].mxu0
    %4248 = vdwg.mxu0
    %4249 = vmatprep.subr.bf16.mxu0 %v2989
    %4250 = vmatpush1.bf16.msra.mxu0 %v2988
    %4251 = vmatprep.subr.bf16.mxu0 %v2997
    %4252 = vmatpush1.bf16.msra.mxu0 %v2996
    %4253 = vmatprep.subr.bf16.mxu0 %v3005
    %4254 = vmatpush1.bf16.msra.mxu0 %v3004
    %4255 = vmatprep.subr.bf16.mxu0 %v3013
    %4256 = vmatpush1.bf16.msra.mxu0 %v3012
    %4257 = vmatprep.subr.bf16.mxu0 %v3021
    %4258 = vmatpush1.bf16.msra.mxu0 %v3020
    %4259 = vmatprep.subr.bf16.mxu0 %v3029
    %4260 = vmatpush1.bf16.msra.mxu0 %v3028
    %4261 = vmatprep.subr.bf16.mxu0 %v3037
    %4262 = vmatpush1.bf16.msra.mxu0 %v3036
    %4263 = vmatprep.subr.bf16.mxu0 %v3045
    %4264 = vmatpush1.bf16.msra.mxu0 %v3044
    %4265 = vmatprep.subr.bf16.mxu0 %v3053
    %4266 = vmatpush1.bf16.msra.mxu0 %v3052
    %4267 = vmatprep.subr.bf16.mxu0 %v3061
    %4268 = vmatpush1.bf16.msra.mxu0 %v3060
    %4269 = vmatprep.subr.bf16.mxu0 %v3069
    %4270 = vmatpush1.bf16.msra.mxu0 %v3068
    %4271 = vmatprep.subr.bf16.mxu0 %v3077
    %4272 = vmatpush1.bf16.msra.mxu0 %v3076
    %4273 = vmatprep.subr.bf16.mxu0 %v3085
    %4274 = vmatpush1.bf16.msra.mxu0 %v3084
    %4275 = vmatprep.subr.bf16.mxu0 %v3093
    %4276 = vmatpush1.bf16.msra.mxu0 %v3092
    %4277 = vmatprep.subr.bf16.mxu0 %v3101
    %4278 = vmatpush1.bf16.msra.mxu0 %v3100
    %4279 = vmatprep.subr.bf16.mxu0 %v3109
    %4280 = vmatpush1.bf16.msra.mxu0 %v3108
    %4281 = vmatprep.mubr.bf16.mxu0 %v761
    %4282 = vmatmul.mubr.bf16.gmra.mrb[0].mxu0 %v760
    %v4283 = vpop.f32.mrb[0].mxu0
    %v4284 = vadd.f32 %v4243, %v4283
    %v4285 = vpop.f32.mrb[0].mxu0
    %v4286 = vadd.f32 %v4245, %v4285
    %v4287 = vpop.f32.mrb[0].mxu0
    %v4288 = vpop.f32.mrb[0].mxu0
    %4289 = vdwg.mxu0
    %4290 = vmatprep.subr.bf16.mxu0 %v3117
    %4291 = vmatpush1.bf16.msra.mxu0 %v3116
    %4292 = vmatprep.subr.bf16.mxu0 %v3125
    %4293 = vmatpush1.bf16.msra.mxu0 %v3124
    %4294 = vmatprep.subr.bf16.mxu0 %v3133
    %4295 = vmatpush1.bf16.msra.mxu0 %v3132
    %4296 = vmatprep.subr.bf16.mxu0 %v3141
    %4297 = vmatpush1.bf16.msra.mxu0 %v3140
    %4298 = vmatprep.subr.bf16.mxu0 %v3149
    %4299 = vmatpush1.bf16.msra.mxu0 %v3148
    %4300 = vmatprep.subr.bf16.mxu0 %v3157
    %4301 = vmatpush1.bf16.msra.mxu0 %v3156
    %4302 = vmatprep.subr.bf16.mxu0 %v3165
    %4303 = vmatpush1.bf16.msra.mxu0 %v3164
    %4304 = vmatprep.subr.bf16.mxu0 %v3173
    %4305 = vmatpush1.bf16.msra.mxu0 %v3172
    %4306 = vmatprep.subr.bf16.mxu0 %v3181
    %4307 = vmatpush1.bf16.msra.mxu0 %v3180
    %4308 = vmatprep.subr.bf16.mxu0 %v3189
    %4309 = vmatpush1.bf16.msra.mxu0 %v3188
    %4310 = vmatprep.subr.bf16.mxu0 %v3197
    %4311 = vmatpush1.bf16.msra.mxu0 %v3196
    %4312 = vmatprep.subr.bf16.mxu0 %v3205
    %4313 = vmatpush1.bf16.msra.mxu0 %v3204
    %4314 = vmatprep.subr.bf16.mxu0 %v3213
    %4315 = vmatpush1.bf16.msra.mxu0 %v3212
    %4316 = vmatprep.subr.bf16.mxu0 %v3221
    %4317 = vmatpush1.bf16.msra.mxu0 %v3220
    %4318 = vmatprep.subr.bf16.mxu0 %v3229
    %4319 = vmatpush1.bf16.msra.mxu0 %v3228
    %4320 = vmatprep.subr.bf16.mxu0 %v3237
    %4321 = vmatpush1.bf16.msra.mxu0 %v3236
    %4322 = vmatprep.mubr.bf16.mxu0 %v763
    %4323 = vmatmul.mubr.bf16.gmra.mrb[0].mxu0 %v762
    %v4324 = vpop.f32.mrb[0].mxu0
    %v4325 = vadd.f32 %v4284, %v4324
    %v4326 = vpop.f32.mrb[0].mxu0
    %v4327 = vadd.f32 %v4286, %v4326
    %v4328 = vpop.f32.mrb[0].mxu0
    %v4329 = vpop.f32.mrb[0].mxu0
    %4330 = vdwg.mxu0
    %4331 = vmatprep.subr.bf16.mxu0 %v3245
    %4332 = vmatpush1.bf16.msra.mxu0 %v3244
    %4333 = vmatprep.subr.bf16.mxu0 %v3253
    %4334 = vmatpush1.bf16.msra.mxu0 %v3252
    %4335 = vmatprep.subr.bf16.mxu0 %v3261
    %4336 = vmatpush1.bf16.msra.mxu0 %v3260
    %4337 = vmatprep.subr.bf16.mxu0 %v3269
    %4338 = vmatpush1.bf16.msra.mxu0 %v3268
    %4339 = vmatprep.subr.bf16.mxu0 %v3277
    %4340 = vmatpush1.bf16.msra.mxu0 %v3276
    %4341 = vmatprep.subr.bf16.mxu0 %v3285
    %4342 = vmatpush1.bf16.msra.mxu0 %v3284
    %4343 = vmatprep.subr.bf16.mxu0 %v3293
    %4344 = vmatpush1.bf16.msra.mxu0 %v3292
    %4345 = vmatprep.subr.bf16.mxu0 %v3301
    %4346 = vmatpush1.bf16.msra.mxu0 %v3300
    %4347 = vmatprep.subr.bf16.mxu0 %v3309
    %4348 = vmatpush1.bf16.msra.mxu0 %v3308
    %4349 = vmatprep.subr.bf16.mxu0 %v3317
    %4350 = vmatpush1.bf16.msra.mxu0 %v3316
    %4351 = vmatprep.subr.bf16.mxu0 %v3325
    %4352 = vmatpush1.bf16.msra.mxu0 %v3324
    %4353 = vmatprep.subr.bf16.mxu0 %v3333
    %4354 = vmatpush1.bf16.msra.mxu0 %v3332
    %4355 = vmatprep.subr.bf16.mxu0 %v3341
    %4356 = vmatpush1.bf16.msra.mxu0 %v3340
    %4357 = vmatprep.subr.bf16.mxu0 %v3349
    %4358 = vmatpush1.bf16.msra.mxu0 %v3348
    %4359 = vmatprep.subr.bf16.mxu0 %v3357
    %4360 = vmatpush1.bf16.msra.mxu0 %v3356
    %4361 = vmatprep.subr.bf16.mxu0 %v3365
    %4362 = vmatpush1.bf16.msra.mxu0 %v3364
    %4363 = vmatprep.mubr.bf16.mxu0 %v765
    %4364 = vmatmul.mubr.bf16.gmra.mrb[0].mxu0 %v764
    %v4365 = vpop.f32.mrb[0].mxu0
    %v4366 = vadd.f32 %v4325, %v4365
    %v4367 = vpop.f32.mrb[0].mxu0
    %v4368 = vadd.f32 %v4327, %v4367
    %v4369 = vpop.f32.mrb[0].mxu0
    %v4370 = vpop.f32.mrb[0].mxu0
    %4371 = vdwg.mxu0
    %4372 = vmatprep.subr.bf16.mxu0 %v2863
    %4373 = vmatpush1.bf16.msra.mxu0 %v2862
    %4374 = vmatprep.subr.bf16.mxu0 %v2871
    %4375 = vmatpush1.bf16.msra.mxu0 %v2870
    %4376 = vmatprep.subr.bf16.mxu0 %v2879
    %4377 = vmatpush1.bf16.msra.mxu0 %v2878
    %4378 = vmatprep.subr.bf16.mxu0 %v2887
    %4379 = vmatpush1.bf16.msra.mxu0 %v2886
    %4380 = vmatprep.subr.bf16.mxu0 %v2895
    %4381 = vmatpush1.bf16.msra.mxu0 %v2894
    %4382 = vmatprep.subr.bf16.mxu0 %v2903
    %4383 = vmatpush1.bf16.msra.mxu0 %v2902
    %4384 = vmatprep.subr.bf16.mxu0 %v2911
    %4385 = vmatpush1.bf16.msra.mxu0 %v2910
    %4386 = vmatprep.subr.bf16.mxu0 %v2919
    %4387 = vmatpush1.bf16.msra.mxu0 %v2918
    %4388 = vmatprep.subr.bf16.mxu0 %v2927
    %4389 = vmatpush1.bf16.msra.mxu0 %v2926
    %4390 = vmatprep.subr.bf16.mxu0 %v2935
    %4391 = vmatpush1.bf16.msra.mxu0 %v2934
    %4392 = vmatprep.subr.bf16.mxu0 %v2943
    %4393 = vmatpush1.bf16.msra.mxu0 %v2942
    %4394 = vmatprep.subr.bf16.mxu0 %v2951
    %4395 = vmatpush1.bf16.msra.mxu0 %v2950
    %4396 = vmatprep.subr.bf16.mxu0 %v2959
    %4397 = vmatpush1.bf16.msra.mxu0 %v2958
    %4398 = vmatprep.subr.bf16.mxu0 %v2967
    %4399 = vmatpush1.bf16.msra.mxu0 %v2966
    %4400 = vmatprep.subr.bf16.mxu0 %v2975
    %4401 = vmatpush1.bf16.msra.mxu0 %v2974
    %4402 = vmatprep.subr.bf16.mxu0 %v2983
    %4403 = vmatpush1.bf16.msra.mxu0 %v2982
    %4404 = vmatprep.mubr.bf16.mxu0 %v759
    %4405 = vmatmul.mubr.bf16.gmra.mrb[0].mxu0 %v758
    %v4406 = vpop.f32.mrb[0].mxu0
    %v4407 = vadd.f32 %v1307, %v4406
    %v4408 = vpop.f32.mrb[0].mxu0
    %v4409 = vadd.f32 %v1311, %v4408
    %v4410 = vpop.f32.mrb[0].mxu0
    %v4411 = vpop.f32.mrb[0].mxu0
    %4412 = vdwg.mxu0
    %4413 = vmatprep.subr.bf16.mxu0 %v2991
    %4414 = vmatpush1.bf16.msra.mxu0 %v2990
    %4415 = vmatprep.subr.bf16.mxu0 %v2999
    %4416 = vmatpush1.bf16.msra.mxu0 %v2998
    %4417 = vmatprep.subr.bf16.mxu0 %v3007
    %4418 = vmatpush1.bf16.msra.mxu0 %v3006
    %4419 = vmatprep.subr.bf16.mxu0 %v3015
    %4420 = vmatpush1.bf16.msra.mxu0 %v3014
    %4421 = vmatprep.subr.bf16.mxu0 %v3023
    %4422 = vmatpush1.bf16.msra.mxu0 %v3022
    %4423 = vmatprep.subr.bf16.mxu0 %v3031
    %4424 = vmatpush1.bf16.msra.mxu0 %v3030
    %4425 = vmatprep.subr.bf16.mxu0 %v3039
    %4426 = vmatpush1.bf16.msra.mxu0 %v3038
    %4427 = vmatprep.subr.bf16.mxu0 %v3047
    %4428 = vmatpush1.bf16.msra.mxu0 %v3046
    %4429 = vmatprep.subr.bf16.mxu0 %v3055
    %4430 = vmatpush1.bf16.msra.mxu0 %v3054
    %4431 = vmatprep.subr.bf16.mxu0 %v3063
    %4432 = vmatpush1.bf16.msra.mxu0 %v3062
    %4433 = vmatprep.subr.bf16.mxu0 %v3071
    %4434 = vmatpush1.bf16.msra.mxu0 %v3070
    %4435 = vmatprep.subr.bf16.mxu0 %v3079
    %4436 = vmatpush1.bf16.msra.mxu0 %v3078
    %4437 = vmatprep.subr.bf16.mxu0 %v3087
    %4438 = vmatpush1.bf16.msra.mxu0 %v3086
    %4439 = vmatprep.subr.bf16.mxu0 %v3095
    %4440 = vmatpush1.bf16.msra.mxu0 %v3094
    %4441 = vmatprep.subr.bf16.mxu0 %v3103
    %4442 = vmatpush1.bf16.msra.mxu0 %v3102
    %4443 = vmatprep.subr.bf16.mxu0 %v3111
    %4444 = vmatpush1.bf16.msra.mxu0 %v3110
    %4445 = vmatprep.mubr.bf16.mxu0 %v761
    %4446 = vmatmul.mubr.bf16.gmra.mrb[0].mxu0 %v760
    %v4447 = vpop.f32.mrb[0].mxu0
    %v4448 = vadd.f32 %v4407, %v4447
    %v4449 = vpop.f32.mrb[0].mxu0
    %v4450 = vadd.f32 %v4409, %v4449
    %v4451 = vpop.f32.mrb[0].mxu0
    %v4452 = vpop.f32.mrb[0].mxu0
    %4453 = vdwg.mxu0
    %4454 = vmatprep.subr.bf16.mxu0 %v3119
    %4455 = vmatpush1.bf16.msra.mxu0 %v3118
    %4456 = vmatprep.subr.bf16.mxu0 %v3127
    %4457 = vmatpush1.bf16.msra.mxu0 %v3126
    %4458 = vmatprep.subr.bf16.mxu0 %v3135
    %4459 = vmatpush1.bf16.msra.mxu0 %v3134
    %4460 = vmatprep.subr.bf16.mxu0 %v3143
    %4461 = vmatpush1.bf16.msra.mxu0 %v3142
    %4462 = vmatprep.subr.bf16.mxu0 %v3151
    %4463 = vmatpush1.bf16.msra.mxu0 %v3150
    %4464 = vmatprep.subr.bf16.mxu0 %v3159
    %4465 = vmatpush1.bf16.msra.mxu0 %v3158
    %4466 = vmatprep.subr.bf16.mxu0 %v3167
    %4467 = vmatpush1.bf16.msra.mxu0 %v3166
    %4468 = vmatprep.subr.bf16.mxu0 %v3175
    %4469 = vmatpush1.bf16.msra.mxu0 %v3174
    %4470 = vmatprep.subr.bf16.mxu0 %v3183
    %4471 = vmatpush1.bf16.msra.mxu0 %v3182
    %4472 = vmatprep.subr.bf16.mxu0 %v3191
    %4473 = vmatpush1.bf16.msra.mxu0 %v3190
    %4474 = vmatprep.subr.bf16.mxu0 %v3199
    %4475 = vmatpush1.bf16.msra.mxu0 %v3198
    %4476 = vmatprep.subr.bf16.mxu0 %v3207
    %4477 = vmatpush1.bf16.msra.mxu0 %v3206
    %4478 = vmatprep.subr.bf16.mxu0 %v3215
    %4479 = vmatpush1.bf16.msra.mxu0 %v3214
    %4480 = vmatprep.subr.bf16.mxu0 %v3223
    %4481 = vmatpush1.bf16.msra.mxu0 %v3222
    %4482 = vmatprep.subr.bf16.mxu0 %v3231
    %4483 = vmatpush1.bf16.msra.mxu0 %v3230
    %4484 = vmatprep.subr.bf16.mxu0 %v3239
    %4485 = vmatpush1.bf16.msra.mxu0 %v3238
    %4486 = vmatprep.mubr.bf16.mxu0 %v763
    %4487 = vmatmul.mubr.bf16.gmra.mrb[0].mxu0 %v762
    %v4488 = vpop.f32.mrb[0].mxu0
    %v4489 = vadd.f32 %v4448, %v4488
    %v4490 = vpop.f32.mrb[0].mxu0
    %v4491 = vadd.f32 %v4450, %v4490
    %v4492 = vpop.f32.mrb[0].mxu0
    %v4493 = vpop.f32.mrb[0].mxu0
    %4494 = vdwg.mxu0
    %4495 = vmatprep.subr.bf16.mxu0 %v3247
    %4496 = vmatpush1.bf16.msra.mxu0 %v3246
    %4497 = vmatprep.subr.bf16.mxu0 %v3255
    %4498 = vmatpush1.bf16.msra.mxu0 %v3254
    %4499 = vmatprep.subr.bf16.mxu0 %v3263
    %4500 = vmatpush1.bf16.msra.mxu0 %v3262
    %4501 = vmatprep.subr.bf16.mxu0 %v3271
    %4502 = vmatpush1.bf16.msra.mxu0 %v3270
    %4503 = vmatprep.subr.bf16.mxu0 %v3279
    %4504 = vmatpush1.bf16.msra.mxu0 %v3278
    %4505 = vmatprep.subr.bf16.mxu0 %v3287
    %4506 = vmatpush1.bf16.msra.mxu0 %v3286
    %4507 = vmatprep.subr.bf16.mxu0 %v3295
    %4508 = vmatpush1.bf16.msra.mxu0 %v3294
    %4509 = vmatprep.subr.bf16.mxu0 %v3303
    %4510 = vmatpush1.bf16.msra.mxu0 %v3302
    %4511 = vmatprep.subr.bf16.mxu0 %v3311
    %4512 = vmatpush1.bf16.msra.mxu0 %v3310
    %4513 = vmatprep.subr.bf16.mxu0 %v3319
    %4514 = vmatpush1.bf16.msra.mxu0 %v3318
    %4515 = vmatprep.subr.bf16.mxu0 %v3327
    %4516 = vmatpush1.bf16.msra.mxu0 %v3326
    %4517 = vmatprep.subr.bf16.mxu0 %v3335
    %4518 = vmatpush1.bf16.msra.mxu0 %v3334
    %4519 = vmatprep.subr.bf16.mxu0 %v3343
    %4520 = vmatpush1.bf16.msra.mxu0 %v3342
    %4521 = vmatprep.subr.bf16.mxu0 %v3351
    %4522 = vmatpush1.bf16.msra.mxu0 %v3350
    %4523 = vmatprep.subr.bf16.mxu0 %v3359
    %4524 = vmatpush1.bf16.msra.mxu0 %v3358
    %4525 = vmatprep.subr.bf16.mxu0 %v3367
    %4526 = vmatpush1.bf16.msra.mxu0 %v3366
    %4527 = vmatprep.mubr.bf16.mxu0 %v765
    %4528 = vmatmul.mubr.bf16.gmra.mrb[0].mxu0 %v764
    %v4529 = vpop.f32.mrb[0].mxu0
    %v4530 = vadd.f32 %v4489, %v4529
    %v4531 = vpop.f32.mrb[0].mxu0
    %v4532 = vadd.f32 %v4491, %v4531
    %v4533 = vpop.f32.mrb[0].mxu0
    %v4534 = vpop.f32.mrb[0].mxu0
    %4535 = vdwg.mxu0
    %v4536 = vmax.f32 %v4038, 0.0
    %v4537 = vmax.f32 %v4040, 0.0
    %v4538 = vmax.f32 %v4202, 0.0
    %v4539 = vmax.f32 %v4204, 0.0
    %v4540 = vmax.f32 %v4366, 0.0
    %v4541 = vmax.f32 %v4368, 0.0
    %v4542 = vmax.f32 %v4530, 0.0
    %v4543 = vmax.f32 %v4532, 0.0
    %v4544 = vpack.c.bf16 %v4536, %v4536
    %v4545 = vpack.c.bf16 %v4537, %v4537
    %v4546 = vpack.c.bf16 %v4538, %v4538
    %v4547 = vpack.c.bf16 %v4539, %v4539
    %v4548 = vpack.c.bf16 %v4540, %v4540
    %v4549 = vpack.c.bf16 %v4541, %v4541
    %v4550 = vpack.c.bf16 %v4542, %v4542
    %v4551 = vpack.c.bf16 %v4543, %v4543
    %v4552 = vld [vmem:[#allocation8] sm:$0xff]
    %v4553 = vld [vmem:[#allocation8 + $0x8] sm:$0xff]
    %v4554 = vld [vmem:[#allocation8 + $0x10] sm:$0xff]
    %v4555 = vld [vmem:[#allocation8 + $0x18] sm:$0xff]
    %v4556 = vld [vmem:[#allocation8 + $0x20] sm:$0xff]
    %v4557 = vld [vmem:[#allocation8 + $0x28] sm:$0xff]
    %v4558 = vld [vmem:[#allocation8 + $0x30] sm:$0xff]
    %v4559 = vld [vmem:[#allocation8 + $0x38] sm:$0xff]
    %v4560 = vld [vmem:[#allocation8 + $0x40] sm:$0xff]
    %v4561 = vld [vmem:[#allocation8 + $0x48] sm:$0xff]
    %v4562 = vld [vmem:[#allocation8 + $0x50] sm:$0xff]
    %v4563 = vld [vmem:[#allocation8 + $0x58] sm:$0xff]
    %v4564 = vld [vmem:[#allocation8 + $0x60] sm:$0xff]
    %v4565 = vld [vmem:[#allocation8 + $0x68] sm:$0xff]
    %v4566 = vld [vmem:[#allocation8 + $0x70] sm:$0xff]
    %v4567 = vld [vmem:[#allocation8 + $0x78] sm:$0xff]
    %v4568 = vld [vmem:[#allocation8 + $0x80] sm:$0xff]
    %v4569 = vld [vmem:[#allocation8 + $0x88] sm:$0xff]
    %v4570 = vld [vmem:[#allocation8 + $0x90] sm:$0xff]
    %v4571 = vld [vmem:[#allocation8 + $0x98] sm:$0xff]
    %v4572 = vld [vmem:[#allocation8 + $0xa0] sm:$0xff]
    %v4573 = vld [vmem:[#allocation8 + $0xa8] sm:$0xff]
    %v4574 = vld [vmem:[#allocation8 + $0xb0] sm:$0xff]
    %v4575 = vld [vmem:[#allocation8 + $0xb8] sm:$0xff]
    %v4576 = vld [vmem:[#allocation8 + $0xc0] sm:$0xff]
    %v4577 = vld [vmem:[#allocation8 + $0xc8] sm:$0xff]
    %v4578 = vld [vmem:[#allocation8 + $0xd0] sm:$0xff]
    %v4579 = vld [vmem:[#allocation8 + $0xd8] sm:$0xff]
    %v4580 = vld [vmem:[#allocation8 + $0xe0] sm:$0xff]
    %v4581 = vld [vmem:[#allocation8 + $0xe8] sm:$0xff]
    %v4582 = vld [vmem:[#allocation8 + $0xf0] sm:$0xff]
    %v4583 = vld [vmem:[#allocation8 + $0xf8] sm:$0xff]
    %v4584 = vld [vmem:[#allocation8 + $0x100] sm:$0xff]
    %v4585 = vld [vmem:[#allocation8 + $0x108] sm:$0xff]
    %v4586 = vld [vmem:[#allocation8 + $0x110] sm:$0xff]
    %v4587 = vld [vmem:[#allocation8 + $0x118] sm:$0xff]
    %v4588 = vld [vmem:[#allocation8 + $0x120] sm:$0xff]
    %v4589 = vld [vmem:[#allocation8 + $0x128] sm:$0xff]
    %v4590 = vld [vmem:[#allocation8 + $0x130] sm:$0xff]
    %v4591 = vld [vmem:[#allocation8 + $0x138] sm:$0xff]
    %v4592 = vld [vmem:[#allocation8 + $0x140] sm:$0xff]
    %v4593 = vld [vmem:[#allocation8 + $0x148] sm:$0xff]
    %v4594 = vld [vmem:[#allocation8 + $0x150] sm:$0xff]
    %v4595 = vld [vmem:[#allocation8 + $0x158] sm:$0xff]
    %v4596 = vld [vmem:[#allocation8 + $0x160] sm:$0xff]
    %v4597 = vld [vmem:[#allocation8 + $0x168] sm:$0xff]
    %v4598 = vld [vmem:[#allocation8 + $0x170] sm:$0xff]
    %v4599 = vld [vmem:[#allocation8 + $0x178] sm:$0xff]
    %v4600 = vld [vmem:[#allocation8 + $0x180] sm:$0xff]
    %v4601 = vld [vmem:[#allocation8 + $0x188] sm:$0xff]
    %v4602 = vld [vmem:[#allocation8 + $0x190] sm:$0xff]
    %v4603 = vld [vmem:[#allocation8 + $0x198] sm:$0xff]
    %v4604 = vld [vmem:[#allocation8 + $0x1a0] sm:$0xff]
    %v4605 = vld [vmem:[#allocation8 + $0x1a8] sm:$0xff]
    %v4606 = vld [vmem:[#allocation8 + $0x1b0] sm:$0xff]
    %v4607 = vld [vmem:[#allocation8 + $0x1b8] sm:$0xff]
    %v4608 = vld [vmem:[#allocation8 + $0x1c0] sm:$0xff]
    %v4609 = vld [vmem:[#allocation8 + $0x1c8] sm:$0xff]
    %v4610 = vld [vmem:[#allocation8 + $0x1d0] sm:$0xff]
    %v4611 = vld [vmem:[#allocation8 + $0x1d8] sm:$0xff]
    %v4612 = vld [vmem:[#allocation8 + $0x1e0] sm:$0xff]
    %v4613 = vld [vmem:[#allocation8 + $0x1e8] sm:$0xff]
    %v4614 = vld [vmem:[#allocation8 + $0x1f0] sm:$0xff]
    %v4615 = vld [vmem:[#allocation8 + $0x1f8] sm:$0xff]
    %v4616 = vld [vmem:[#allocation8 + $0x200] sm:$0xff]
    %v4617 = vld [vmem:[#allocation8 + $0x208] sm:$0xff]
    %v4618 = vld [vmem:[#allocation8 + $0x210] sm:$0xff]
    %v4619 = vld [vmem:[#allocation8 + $0x218] sm:$0xff]
    %v4620 = vld [vmem:[#allocation8 + $0x220] sm:$0xff]
    %v4621 = vld [vmem:[#allocation8 + $0x228] sm:$0xff]
    %v4622 = vld [vmem:[#allocation8 + $0x230] sm:$0xff]
    %v4623 = vld [vmem:[#allocation8 + $0x238] sm:$0xff]
    %v4624 = vld [vmem:[#allocation8 + $0x240] sm:$0xff]
    %v4625 = vld [vmem:[#allocation8 + $0x248] sm:$0xff]
    %v4626 = vld [vmem:[#allocation8 + $0x250] sm:$0xff]
    %v4627 = vld [vmem:[#allocation8 + $0x258] sm:$0xff]
    %v4628 = vld [vmem:[#allocation8 + $0x260] sm:$0xff]
    %v4629 = vld [vmem:[#allocation8 + $0x268] sm:$0xff]
    %v4630 = vld [vmem:[#allocation8 + $0x270] sm:$0xff]
    %v4631 = vld [vmem:[#allocation8 + $0x278] sm:$0xff]
    %v4632 = vld [vmem:[#allocation8 + $0x280] sm:$0xff]
    %v4633 = vld [vmem:[#allocation8 + $0x288] sm:$0xff]
    %v4634 = vld [vmem:[#allocation8 + $0x290] sm:$0xff]
    %v4635 = vld [vmem:[#allocation8 + $0x298] sm:$0xff]
    %v4636 = vld [vmem:[#allocation8 + $0x2a0] sm:$0xff]
    %v4637 = vld [vmem:[#allocation8 + $0x2a8] sm:$0xff]
    %v4638 = vld [vmem:[#allocation8 + $0x2b0] sm:$0xff]
    %v4639 = vld [vmem:[#allocation8 + $0x2b8] sm:$0xff]
    %v4640 = vld [vmem:[#allocation8 + $0x2c0] sm:$0xff]
    %v4641 = vld [vmem:[#allocation8 + $0x2c8] sm:$0xff]
    %v4642 = vld [vmem:[#allocation8 + $0x2d0] sm:$0xff]
    %v4643 = vld [vmem:[#allocation8 + $0x2d8] sm:$0xff]
    %v4644 = vld [vmem:[#allocation8 + $0x2e0] sm:$0xff]
    %v4645 = vld [vmem:[#allocation8 + $0x2e8] sm:$0xff]
    %v4646 = vld [vmem:[#allocation8 + $0x2f0] sm:$0xff]
    %v4647 = vld [vmem:[#allocation8 + $0x2f8] sm:$0xff]
    %v4648 = vld [vmem:[#allocation8 + $0x300] sm:$0xff]
    %v4649 = vld [vmem:[#allocation8 + $0x308] sm:$0xff]
    %v4650 = vld [vmem:[#allocation8 + $0x310] sm:$0xff]
    %v4651 = vld [vmem:[#allocation8 + $0x318] sm:$0xff]
    %v4652 = vld [vmem:[#allocation8 + $0x320] sm:$0xff]
    %v4653 = vld [vmem:[#allocation8 + $0x328] sm:$0xff]
    %v4654 = vld [vmem:[#allocation8 + $0x330] sm:$0xff]
    %v4655 = vld [vmem:[#allocation8 + $0x338] sm:$0xff]
    %v4656 = vld [vmem:[#allocation8 + $0x340] sm:$0xff]
    %v4657 = vld [vmem:[#allocation8 + $0x348] sm:$0xff]
    %v4658 = vld [vmem:[#allocation8 + $0x350] sm:$0xff]
    %v4659 = vld [vmem:[#allocation8 + $0x358] sm:$0xff]
    %v4660 = vld [vmem:[#allocation8 + $0x360] sm:$0xff]
    %v4661 = vld [vmem:[#allocation8 + $0x368] sm:$0xff]
    %v4662 = vld [vmem:[#allocation8 + $0x370] sm:$0xff]
    %v4663 = vld [vmem:[#allocation8 + $0x378] sm:$0xff]
    %v4664 = vld [vmem:[#allocation8 + $0x380] sm:$0xff]
    %v4665 = vld [vmem:[#allocation8 + $0x388] sm:$0xff]
    %v4666 = vld [vmem:[#allocation8 + $0x390] sm:$0xff]
    %v4667 = vld [vmem:[#allocation8 + $0x398] sm:$0xff]
    %v4668 = vld [vmem:[#allocation8 + $0x3a0] sm:$0xff]
    %v4669 = vld [vmem:[#allocation8 + $0x3a8] sm:$0xff]
    %v4670 = vld [vmem:[#allocation8 + $0x3b0] sm:$0xff]
    %v4671 = vld [vmem:[#allocation8 + $0x3b8] sm:$0xff]
    %v4672 = vld [vmem:[#allocation8 + $0x3c0] sm:$0xff]
    %v4673 = vld [vmem:[#allocation8 + $0x3c8] sm:$0xff]
    %v4674 = vld [vmem:[#allocation8 + $0x3d0] sm:$0xff]
    %v4675 = vld [vmem:[#allocation8 + $0x3d8] sm:$0xff]
    %v4676 = vld [vmem:[#allocation8 + $0x3e0] sm:$0xff]
    %v4677 = vld [vmem:[#allocation8 + $0x3e8] sm:$0xff]
    %v4678 = vld [vmem:[#allocation8 + $0x3f0] sm:$0xff]
    %v4679 = vld [vmem:[#allocation8 + $0x3f8] sm:$0xff]
    %v4680 = vld [vmem:[#allocation8 + $0x400] sm:$0xff]
    %v4681 = vld [vmem:[#allocation8 + $0x408] sm:$0xff]
    %v4682 = vld [vmem:[#allocation8 + $0x410] sm:$0xff]
    %v4683 = vld [vmem:[#allocation8 + $0x418] sm:$0xff]
    %v4684 = vld [vmem:[#allocation8 + $0x420] sm:$0xff]
    %v4685 = vld [vmem:[#allocation8 + $0x428] sm:$0xff]
    %v4686 = vld [vmem:[#allocation8 + $0x430] sm:$0xff]
    %v4687 = vld [vmem:[#allocation8 + $0x438] sm:$0xff]
    %v4688 = vld [vmem:[#allocation8 + $0x440] sm:$0xff]
    %v4689 = vld [vmem:[#allocation8 + $0x448] sm:$0xff]
    %v4690 = vld [vmem:[#allocation8 + $0x450] sm:$0xff]
    %v4691 = vld [vmem:[#allocation8 + $0x458] sm:$0xff]
    %v4692 = vld [vmem:[#allocation8 + $0x460] sm:$0xff]
    %v4693 = vld [vmem:[#allocation8 + $0x468] sm:$0xff]
    %v4694 = vld [vmem:[#allocation8 + $0x470] sm:$0xff]
    %v4695 = vld [vmem:[#allocation8 + $0x478] sm:$0xff]
    %v4696 = vld [vmem:[#allocation8 + $0x480] sm:$0xff]
    %v4697 = vld [vmem:[#allocation8 + $0x488] sm:$0xff]
    %v4698 = vld [vmem:[#allocation8 + $0x490] sm:$0xff]
    %v4699 = vld [vmem:[#allocation8 + $0x498] sm:$0xff]
    %v4700 = vld [vmem:[#allocation8 + $0x4a0] sm:$0xff]
    %v4701 = vld [vmem:[#allocation8 + $0x4a8] sm:$0xff]
    %v4702 = vld [vmem:[#allocation8 + $0x4b0] sm:$0xff]
    %v4703 = vld [vmem:[#allocation8 + $0x4b8] sm:$0xff]
    %v4704 = vld [vmem:[#allocation8 + $0x4c0] sm:$0xff]
    %v4705 = vld [vmem:[#allocation8 + $0x4c8] sm:$0xff]
    %v4706 = vld [vmem:[#allocation8 + $0x4d0] sm:$0xff]
    %v4707 = vld [vmem:[#allocation8 + $0x4d8] sm:$0xff]
    %v4708 = vld [vmem:[#allocation8 + $0x4e0] sm:$0xff]
    %v4709 = vld [vmem:[#allocation8 + $0x4e8] sm:$0xff]
    %v4710 = vld [vmem:[#allocation8 + $0x4f0] sm:$0xff]
    %v4711 = vld [vmem:[#allocation8 + $0x4f8] sm:$0xff]
    %v4712 = vld [vmem:[#allocation8 + $0x500] sm:$0xff]
    %v4713 = vld [vmem:[#allocation8 + $0x508] sm:$0xff]
    %v4714 = vld [vmem:[#allocation8 + $0x510] sm:$0xff]
    %v4715 = vld [vmem:[#allocation8 + $0x518] sm:$0xff]
    %v4716 = vld [vmem:[#allocation8 + $0x520] sm:$0xff]
    %v4717 = vld [vmem:[#allocation8 + $0x528] sm:$0xff]
    %v4718 = vld [vmem:[#allocation8 + $0x530] sm:$0xff]
    %v4719 = vld [vmem:[#allocation8 + $0x538] sm:$0xff]
    %v4720 = vld [vmem:[#allocation8 + $0x540] sm:$0xff]
    %v4721 = vld [vmem:[#allocation8 + $0x548] sm:$0xff]
    %v4722 = vld [vmem:[#allocation8 + $0x550] sm:$0xff]
    %v4723 = vld [vmem:[#allocation8 + $0x558] sm:$0xff]
    %v4724 = vld [vmem:[#allocation8 + $0x560] sm:$0xff]
    %v4725 = vld [vmem:[#allocation8 + $0x568] sm:$0xff]
    %v4726 = vld [vmem:[#allocation8 + $0x570] sm:$0xff]
    %v4727 = vld [vmem:[#allocation8 + $0x578] sm:$0xff]
    %v4728 = vld [vmem:[#allocation8 + $0x580] sm:$0xff]
    %v4729 = vld [vmem:[#allocation8 + $0x588] sm:$0xff]
    %v4730 = vld [vmem:[#allocation8 + $0x590] sm:$0xff]
    %v4731 = vld [vmem:[#allocation8 + $0x598] sm:$0xff]
    %v4732 = vld [vmem:[#allocation8 + $0x5a0] sm:$0xff]
    %v4733 = vld [vmem:[#allocation8 + $0x5a8] sm:$0xff]
    %v4734 = vld [vmem:[#allocation8 + $0x5b0] sm:$0xff]
    %v4735 = vld [vmem:[#allocation8 + $0x5b8] sm:$0xff]
    %v4736 = vld [vmem:[#allocation8 + $0x5c0] sm:$0xff]
    %v4737 = vld [vmem:[#allocation8 + $0x5c8] sm:$0xff]
    %v4738 = vld [vmem:[#allocation8 + $0x5d0] sm:$0xff]
    %v4739 = vld [vmem:[#allocation8 + $0x5d8] sm:$0xff]
    %v4740 = vld [vmem:[#allocation8 + $0x5e0] sm:$0xff]
    %v4741 = vld [vmem:[#allocation8 + $0x5e8] sm:$0xff]
    %v4742 = vld [vmem:[#allocation8 + $0x5f0] sm:$0xff]
    %v4743 = vld [vmem:[#allocation8 + $0x5f8] sm:$0xff]
    %v4744 = vld [vmem:[#allocation8 + $0x600] sm:$0xff]
    %v4745 = vld [vmem:[#allocation8 + $0x608] sm:$0xff]
    %v4746 = vld [vmem:[#allocation8 + $0x610] sm:$0xff]
    %v4747 = vld [vmem:[#allocation8 + $0x618] sm:$0xff]
    %v4748 = vld [vmem:[#allocation8 + $0x620] sm:$0xff]
    %v4749 = vld [vmem:[#allocation8 + $0x628] sm:$0xff]
    %v4750 = vld [vmem:[#allocation8 + $0x630] sm:$0xff]
    %v4751 = vld [vmem:[#allocation8 + $0x638] sm:$0xff]
    %v4752 = vld [vmem:[#allocation8 + $0x640] sm:$0xff]
    %v4753 = vld [vmem:[#allocation8 + $0x648] sm:$0xff]
    %v4754 = vld [vmem:[#allocation8 + $0x650] sm:$0xff]
    %v4755 = vld [vmem:[#allocation8 + $0x658] sm:$0xff]
    %v4756 = vld [vmem:[#allocation8 + $0x660] sm:$0xff]
    %v4757 = vld [vmem:[#allocation8 + $0x668] sm:$0xff]
    %v4758 = vld [vmem:[#allocation8 + $0x670] sm:$0xff]
    %v4759 = vld [vmem:[#allocation8 + $0x678] sm:$0xff]
    %v4760 = vld [vmem:[#allocation8 + $0x680] sm:$0xff]
    %v4761 = vld [vmem:[#allocation8 + $0x688] sm:$0xff]
    %v4762 = vld [vmem:[#allocation8 + $0x690] sm:$0xff]
    %v4763 = vld [vmem:[#allocation8 + $0x698] sm:$0xff]
    %v4764 = vld [vmem:[#allocation8 + $0x6a0] sm:$0xff]
    %v4765 = vld [vmem:[#allocation8 + $0x6a8] sm:$0xff]
    %v4766 = vld [vmem:[#allocation8 + $0x6b0] sm:$0xff]
    %v4767 = vld [vmem:[#allocation8 + $0x6b8] sm:$0xff]
    %v4768 = vld [vmem:[#allocation8 + $0x6c0] sm:$0xff]
    %v4769 = vld [vmem:[#allocation8 + $0x6c8] sm:$0xff]
    %v4770 = vld [vmem:[#allocation8 + $0x6d0] sm:$0xff]
    %v4771 = vld [vmem:[#allocation8 + $0x6d8] sm:$0xff]
    %v4772 = vld [vmem:[#allocation8 + $0x6e0] sm:$0xff]
    %v4773 = vld [vmem:[#allocation8 + $0x6e8] sm:$0xff]
    %v4774 = vld [vmem:[#allocation8 + $0x6f0] sm:$0xff]
    %v4775 = vld [vmem:[#allocation8 + $0x6f8] sm:$0xff]
    %v4776 = vld [vmem:[#allocation8 + $0x700] sm:$0xff]
    %v4777 = vld [vmem:[#allocation8 + $0x708] sm:$0xff]
    %v4778 = vld [vmem:[#allocation8 + $0x710] sm:$0xff]
    %v4779 = vld [vmem:[#allocation8 + $0x718] sm:$0xff]
    %v4780 = vld [vmem:[#allocation8 + $0x720] sm:$0xff]
    %v4781 = vld [vmem:[#allocation8 + $0x728] sm:$0xff]
    %v4782 = vld [vmem:[#allocation8 + $0x730] sm:$0xff]
    %v4783 = vld [vmem:[#allocation8 + $0x738] sm:$0xff]
    %v4784 = vld [vmem:[#allocation8 + $0x740] sm:$0xff]
    %v4785 = vld [vmem:[#allocation8 + $0x748] sm:$0xff]
    %v4786 = vld [vmem:[#allocation8 + $0x750] sm:$0xff]
    %v4787 = vld [vmem:[#allocation8 + $0x758] sm:$0xff]
    %v4788 = vld [vmem:[#allocation8 + $0x760] sm:$0xff]
    %v4789 = vld [vmem:[#allocation8 + $0x768] sm:$0xff]
    %v4790 = vld [vmem:[#allocation8 + $0x770] sm:$0xff]
    %v4791 = vld [vmem:[#allocation8 + $0x778] sm:$0xff]
    %v4792 = vld [vmem:[#allocation8 + $0x780] sm:$0xff]
    %v4793 = vld [vmem:[#allocation8 + $0x788] sm:$0xff]
    %v4794 = vld [vmem:[#allocation8 + $0x790] sm:$0xff]
    %v4795 = vld [vmem:[#allocation8 + $0x798] sm:$0xff]
    %v4796 = vld [vmem:[#allocation8 + $0x7a0] sm:$0xff]
    %v4797 = vld [vmem:[#allocation8 + $0x7a8] sm:$0xff]
    %v4798 = vld [vmem:[#allocation8 + $0x7b0] sm:$0xff]
    %v4799 = vld [vmem:[#allocation8 + $0x7b8] sm:$0xff]
    %v4800 = vld [vmem:[#allocation8 + $0x7c0] sm:$0xff]
    %v4801 = vld [vmem:[#allocation8 + $0x7c8] sm:$0xff]
    %v4802 = vld [vmem:[#allocation8 + $0x7d0] sm:$0xff]
    %v4803 = vld [vmem:[#allocation8 + $0x7d8] sm:$0xff]
    %v4804 = vld [vmem:[#allocation8 + $0x7e0] sm:$0xff]
    %v4805 = vld [vmem:[#allocation8 + $0x7e8] sm:$0xff]
    %v4806 = vld [vmem:[#allocation8 + $0x7f0] sm:$0xff]
    %v4807 = vld [vmem:[#allocation8 + $0x7f8] sm:$0xff]
    %v4808 = vld [vmem:[#allocation10] sm:$0xf]
    %v4810 = vlaneseq
    %v4811 = vshrl.u32 %v4810, 7
    %v4812 = vsub.s32 0, %v4811
    %v4813 = vrot.slane %v4808, %v4812
    %v4814 = vlaneseq
    %v4815 = vshrl.u32 %v4814, 7
    %v4816 = vsub.s32 1, %v4815
    %v4817 = vrot.slane %v4808, %v4816
    %v4818 = vlaneseq
    %v4819 = vshrl.u32 %v4818, 7
    %v4820 = vsub.s32 2, %v4819
    %v4821 = vrot.slane %v4808, %v4820
    %v4822 = vlaneseq
    %v4823 = vshrl.u32 %v4822, 7
    %v4824 = vsub.s32 3, %v4823
    %v4825 = vrot.slane %v4808, %v4824
    %v5086 = vunpack.c.l.b16 %v4552
    %v5087 = vunpack.c.h.b16 %v4552
    %v5088 = vunpack.c.l.b16 %v4553
    %v5089 = vunpack.c.h.b16 %v4553
    %v5090 = vunpack.c.l.b16 %v4554
    %v5091 = vunpack.c.h.b16 %v4554
    %v5092 = vunpack.c.l.b16 %v4555
    %v5093 = vunpack.c.h.b16 %v4555
    %v5094 = vunpack.c.l.b16 %v4556
    %v5095 = vunpack.c.h.b16 %v4556
    %v5096 = vunpack.c.l.b16 %v4557
    %v5097 = vunpack.c.h.b16 %v4557
    %v5098 = vunpack.c.l.b16 %v4558
    %v5099 = vunpack.c.h.b16 %v4558
    %v5100 = vunpack.c.l.b16 %v4559
    %v5101 = vunpack.c.h.b16 %v4559
    %v5102 = vunpack.c.l.b16 %v4560
    %v5103 = vunpack.c.h.b16 %v4560
    %v5104 = vunpack.c.l.b16 %v4561
    %v5105 = vunpack.c.h.b16 %v4561
    %v5106 = vunpack.c.l.b16 %v4562
    %v5107 = vunpack.c.h.b16 %v4562
    %v5108 = vunpack.c.l.b16 %v4563
    %v5109 = vunpack.c.h.b16 %v4563
    %v5110 = vunpack.c.l.b16 %v4564
    %v5111 = vunpack.c.h.b16 %v4564
    %v5112 = vunpack.c.l.b16 %v4565
    %v5113 = vunpack.c.h.b16 %v4565
    %v5114 = vunpack.c.l.b16 %v4566
    %v5115 = vunpack.c.h.b16 %v4566
    %v5116 = vunpack.c.l.b16 %v4567
    %v5117 = vunpack.c.h.b16 %v4567
    %v5118 = vunpack.c.l.b16 %v4568
    %v5119 = vunpack.c.h.b16 %v4568
    %v5120 = vunpack.c.l.b16 %v4569
    %v5121 = vunpack.c.h.b16 %v4569
    %v5122 = vunpack.c.l.b16 %v4570
    %v5123 = vunpack.c.h.b16 %v4570
    %v5124 = vunpack.c.l.b16 %v4571
    %v5125 = vunpack.c.h.b16 %v4571
    %v5126 = vunpack.c.l.b16 %v4572
    %v5127 = vunpack.c.h.b16 %v4572
    %v5128 = vunpack.c.l.b16 %v4573
    %v5129 = vunpack.c.h.b16 %v4573
    %v5130 = vunpack.c.l.b16 %v4574
    %v5131 = vunpack.c.h.b16 %v4574
    %v5132 = vunpack.c.l.b16 %v4575
    %v5133 = vunpack.c.h.b16 %v4575
    %v5134 = vunpack.c.l.b16 %v4576
    %v5135 = vunpack.c.h.b16 %v4576
    %v5136 = vunpack.c.l.b16 %v4577
    %v5137 = vunpack.c.h.b16 %v4577
    %v5138 = vunpack.c.l.b16 %v4578
    %v5139 = vunpack.c.h.b16 %v4578
    %v5140 = vunpack.c.l.b16 %v4579
    %v5141 = vunpack.c.h.b16 %v4579
    %v5142 = vunpack.c.l.b16 %v4580
    %v5143 = vunpack.c.h.b16 %v4580
    %v5144 = vunpack.c.l.b16 %v4581
    %v5145 = vunpack.c.h.b16 %v4581
    %v5146 = vunpack.c.l.b16 %v4582
    %v5147 = vunpack.c.h.b16 %v4582
    %v5148 = vunpack.c.l.b16 %v4583
    %v5149 = vunpack.c.h.b16 %v4583
    %v5150 = vunpack.c.l.b16 %v4584
    %v5151 = vunpack.c.h.b16 %v4584
    %v5152 = vunpack.c.l.b16 %v4585
    %v5153 = vunpack.c.h.b16 %v4585
    %v5154 = vunpack.c.l.b16 %v4586
    %v5155 = vunpack.c.h.b16 %v4586
    %v5156 = vunpack.c.l.b16 %v4587
    %v5157 = vunpack.c.h.b16 %v4587
    %v5158 = vunpack.c.l.b16 %v4588
    %v5159 = vunpack.c.h.b16 %v4588
    %v5160 = vunpack.c.l.b16 %v4589
    %v5161 = vunpack.c.h.b16 %v4589
    %v5162 = vunpack.c.l.b16 %v4590
    %v5163 = vunpack.c.h.b16 %v4590
    %v5164 = vunpack.c.l.b16 %v4591
    %v5165 = vunpack.c.h.b16 %v4591
    %v5166 = vunpack.c.l.b16 %v4592
    %v5167 = vunpack.c.h.b16 %v4592
    %v5168 = vunpack.c.l.b16 %v4593
    %v5169 = vunpack.c.h.b16 %v4593
    %v5170 = vunpack.c.l.b16 %v4594
    %v5171 = vunpack.c.h.b16 %v4594
    %v5172 = vunpack.c.l.b16 %v4595
    %v5173 = vunpack.c.h.b16 %v4595
    %v5174 = vunpack.c.l.b16 %v4596
    %v5175 = vunpack.c.h.b16 %v4596
    %v5176 = vunpack.c.l.b16 %v4597
    %v5177 = vunpack.c.h.b16 %v4597
    %v5178 = vunpack.c.l.b16 %v4598
    %v5179 = vunpack.c.h.b16 %v4598
    %v5180 = vunpack.c.l.b16 %v4599
    %v5181 = vunpack.c.h.b16 %v4599
    %v5182 = vunpack.c.l.b16 %v4600
    %v5183 = vunpack.c.h.b16 %v4600
    %v5184 = vunpack.c.l.b16 %v4601
    %v5185 = vunpack.c.h.b16 %v4601
    %v5186 = vunpack.c.l.b16 %v4602
    %v5187 = vunpack.c.h.b16 %v4602
    %v5188 = vunpack.c.l.b16 %v4603
    %v5189 = vunpack.c.h.b16 %v4603
    %v5190 = vunpack.c.l.b16 %v4604
    %v5191 = vunpack.c.h.b16 %v4604
    %v5192 = vunpack.c.l.b16 %v4605
    %v5193 = vunpack.c.h.b16 %v4605
    %v5194 = vunpack.c.l.b16 %v4606
    %v5195 = vunpack.c.h.b16 %v4606
    %v5196 = vunpack.c.l.b16 %v4607
    %v5197 = vunpack.c.h.b16 %v4607
    %v5198 = vunpack.c.l.b16 %v4608
    %v5199 = vunpack.c.h.b16 %v4608
    %v5200 = vunpack.c.l.b16 %v4609
    %v5201 = vunpack.c.h.b16 %v4609
    %v5202 = vunpack.c.l.b16 %v4610
    %v5203 = vunpack.c.h.b16 %v4610
    %v5204 = vunpack.c.l.b16 %v4611
    %v5205 = vunpack.c.h.b16 %v4611
    %v5206 = vunpack.c.l.b16 %v4612
    %v5207 = vunpack.c.h.b16 %v4612
    %v5208 = vunpack.c.l.b16 %v4613
    %v5209 = vunpack.c.h.b16 %v4613
    %v5210 = vunpack.c.l.b16 %v4614
    %v5211 = vunpack.c.h.b16 %v4614
    %v5212 = vunpack.c.l.b16 %v4615
    %v5213 = vunpack.c.h.b16 %v4615
    %v5214 = vunpack.c.l.b16 %v4616
    %v5215 = vunpack.c.h.b16 %v4616
    %v5216 = vunpack.c.l.b16 %v4617
    %v5217 = vunpack.c.h.b16 %v4617
    %v5218 = vunpack.c.l.b16 %v4618
    %v5219 = vunpack.c.h.b16 %v4618
    %v5220 = vunpack.c.l.b16 %v4619
    %v5221 = vunpack.c.h.b16 %v4619
    %v5222 = vunpack.c.l.b16 %v4620
    %v5223 = vunpack.c.h.b16 %v4620
    %v5224 = vunpack.c.l.b16 %v4621
    %v5225 = vunpack.c.h.b16 %v4621
    %v5226 = vunpack.c.l.b16 %v4622
    %v5227 = vunpack.c.h.b16 %v4622
    %v5228 = vunpack.c.l.b16 %v4623
    %v5229 = vunpack.c.h.b16 %v4623
    %v5230 = vunpack.c.l.b16 %v4624
    %v5231 = vunpack.c.h.b16 %v4624
    %v5232 = vunpack.c.l.b16 %v4625
    %v5233 = vunpack.c.h.b16 %v4625
    %v5234 = vunpack.c.l.b16 %v4626
    %v5235 = vunpack.c.h.b16 %v4626
    %v5236 = vunpack.c.l.b16 %v4627
    %v5237 = vunpack.c.h.b16 %v4627
    %v5238 = vunpack.c.l.b16 %v4628
    %v5239 = vunpack.c.h.b16 %v4628
    %v5240 = vunpack.c.l.b16 %v4629
    %v5241 = vunpack.c.h.b16 %v4629
    %v5242 = vunpack.c.l.b16 %v4630
    %v5243 = vunpack.c.h.b16 %v4630
    %v5244 = vunpack.c.l.b16 %v4631
    %v5245 = vunpack.c.h.b16 %v4631
    %v5246 = vunpack.c.l.b16 %v4632
    %v5247 = vunpack.c.h.b16 %v4632
    %v5248 = vunpack.c.l.b16 %v4633
    %v5249 = vunpack.c.h.b16 %v4633
    %v5250 = vunpack.c.l.b16 %v4634
    %v5251 = vunpack.c.h.b16 %v4634
    %v5252 = vunpack.c.l.b16 %v4635
    %v5253 = vunpack.c.h.b16 %v4635
    %v5254 = vunpack.c.l.b16 %v4636
    %v5255 = vunpack.c.h.b16 %v4636
    %v5256 = vunpack.c.l.b16 %v4637
    %v5257 = vunpack.c.h.b16 %v4637
    %v5258 = vunpack.c.l.b16 %v4638
    %v5259 = vunpack.c.h.b16 %v4638
    %v5260 = vunpack.c.l.b16 %v4639
    %v5261 = vunpack.c.h.b16 %v4639
    %v5262 = vunpack.c.l.b16 %v4640
    %v5263 = vunpack.c.h.b16 %v4640
    %v5264 = vunpack.c.l.b16 %v4641
    %v5265 = vunpack.c.h.b16 %v4641
    %v5266 = vunpack.c.l.b16 %v4642
    %v5267 = vunpack.c.h.b16 %v4642
    %v5268 = vunpack.c.l.b16 %v4643
    %v5269 = vunpack.c.h.b16 %v4643
    %v5270 = vunpack.c.l.b16 %v4644
    %v5271 = vunpack.c.h.b16 %v4644
    %v5272 = vunpack.c.l.b16 %v4645
    %v5273 = vunpack.c.h.b16 %v4645
    %v5274 = vunpack.c.l.b16 %v4646
    %v5275 = vunpack.c.h.b16 %v4646
    %v5276 = vunpack.c.l.b16 %v4647
    %v5277 = vunpack.c.h.b16 %v4647
    %v5278 = vunpack.c.l.b16 %v4648
    %v5279 = vunpack.c.h.b16 %v4648
    %v5280 = vunpack.c.l.b16 %v4649
    %v5281 = vunpack.c.h.b16 %v4649
    %v5282 = vunpack.c.l.b16 %v4650
    %v5283 = vunpack.c.h.b16 %v4650
    %v5284 = vunpack.c.l.b16 %v4651
    %v5285 = vunpack.c.h.b16 %v4651
    %v5286 = vunpack.c.l.b16 %v4652
    %v5287 = vunpack.c.h.b16 %v4652
    %v5288 = vunpack.c.l.b16 %v4653
    %v5289 = vunpack.c.h.b16 %v4653
    %v5290 = vunpack.c.l.b16 %v4654
    %v5291 = vunpack.c.h.b16 %v4654
    %v5292 = vunpack.c.l.b16 %v4655
    %v5293 = vunpack.c.h.b16 %v4655
    %v5294 = vunpack.c.l.b16 %v4656
    %v5295 = vunpack.c.h.b16 %v4656
    %v5296 = vunpack.c.l.b16 %v4657
    %v5297 = vunpack.c.h.b16 %v4657
    %v5298 = vunpack.c.l.b16 %v4658
    %v5299 = vunpack.c.h.b16 %v4658
    %v5300 = vunpack.c.l.b16 %v4659
    %v5301 = vunpack.c.h.b16 %v4659
    %v5302 = vunpack.c.l.b16 %v4660
    %v5303 = vunpack.c.h.b16 %v4660
    %v5304 = vunpack.c.l.b16 %v4661
    %v5305 = vunpack.c.h.b16 %v4661
    %v5306 = vunpack.c.l.b16 %v4662
    %v5307 = vunpack.c.h.b16 %v4662
    %v5308 = vunpack.c.l.b16 %v4663
    %v5309 = vunpack.c.h.b16 %v4663
    %v5310 = vunpack.c.l.b16 %v4664
    %v5311 = vunpack.c.h.b16 %v4664
    %v5312 = vunpack.c.l.b16 %v4665
    %v5313 = vunpack.c.h.b16 %v4665
    %v5314 = vunpack.c.l.b16 %v4666
    %v5315 = vunpack.c.h.b16 %v4666
    %v5316 = vunpack.c.l.b16 %v4667
    %v5317 = vunpack.c.h.b16 %v4667
    %v5318 = vunpack.c.l.b16 %v4668
    %v5319 = vunpack.c.h.b16 %v4668
    %v5320 = vunpack.c.l.b16 %v4669
    %v5321 = vunpack.c.h.b16 %v4669
    %v5322 = vunpack.c.l.b16 %v4670
    %v5323 = vunpack.c.h.b16 %v4670
    %v5324 = vunpack.c.l.b16 %v4671
    %v5325 = vunpack.c.h.b16 %v4671
    %v5326 = vunpack.c.l.b16 %v4672
    %v5327 = vunpack.c.h.b16 %v4672
    %v5328 = vunpack.c.l.b16 %v4673
    %v5329 = vunpack.c.h.b16 %v4673
    %v5330 = vunpack.c.l.b16 %v4674
    %v5331 = vunpack.c.h.b16 %v4674
    %v5332 = vunpack.c.l.b16 %v4675
    %v5333 = vunpack.c.h.b16 %v4675
    %v5334 = vunpack.c.l.b16 %v4676
    %v5335 = vunpack.c.h.b16 %v4676
    %v5336 = vunpack.c.l.b16 %v4677
    %v5337 = vunpack.c.h.b16 %v4677
    %v5338 = vunpack.c.l.b16 %v4678
    %v5339 = vunpack.c.h.b16 %v4678
    %v5340 = vunpack.c.l.b16 %v4679
    %v5341 = vunpack.c.h.b16 %v4679
    %v5342 = vunpack.c.l.b16 %v4680
    %v5343 = vunpack.c.h.b16 %v4680
    %v5344 = vunpack.c.l.b16 %v4681
    %v5345 = vunpack.c.h.b16 %v4681
    %v5346 = vunpack.c.l.b16 %v4682
    %v5347 = vunpack.c.h.b16 %v4682
    %v5348 = vunpack.c.l.b16 %v4683
    %v5349 = vunpack.c.h.b16 %v4683
    %v5350 = vunpack.c.l.b16 %v4684
    %v5351 = vunpack.c.h.b16 %v4684
    %v5352 = vunpack.c.l.b16 %v4685
    %v5353 = vunpack.c.h.b16 %v4685
    %v5354 = vunpack.c.l.b16 %v4686
    %v5355 = vunpack.c.h.b16 %v4686
    %v5356 = vunpack.c.l.b16 %v4687
    %v5357 = vunpack.c.h.b16 %v4687
    %v5358 = vunpack.c.l.b16 %v4688
    %v5359 = vunpack.c.h.b16 %v4688
    %v5360 = vunpack.c.l.b16 %v4689
    %v5361 = vunpack.c.h.b16 %v4689
    %v5362 = vunpack.c.l.b16 %v4690
    %v5363 = vunpack.c.h.b16 %v4690
    %v5364 = vunpack.c.l.b16 %v4691
    %v5365 = vunpack.c.h.b16 %v4691
    %v5366 = vunpack.c.l.b16 %v4692
    %v5367 = vunpack.c.h.b16 %v4692
    %v5368 = vunpack.c.l.b16 %v4693
    %v5369 = vunpack.c.h.b16 %v4693
    %v5370 = vunpack.c.l.b16 %v4694
    %v5371 = vunpack.c.h.b16 %v4694
    %v5372 = vunpack.c.l.b16 %v4695
    %v5373 = vunpack.c.h.b16 %v4695
    %v5374 = vunpack.c.l.b16 %v4696
    %v5375 = vunpack.c.h.b16 %v4696
    %v5376 = vunpack.c.l.b16 %v4697
    %v5377 = vunpack.c.h.b16 %v4697
    %v5378 = vunpack.c.l.b16 %v4698
    %v5379 = vunpack.c.h.b16 %v4698
    %v5380 = vunpack.c.l.b16 %v4699
    %v5381 = vunpack.c.h.b16 %v4699
    %v5382 = vunpack.c.l.b16 %v4700
    %v5383 = vunpack.c.h.b16 %v4700
    %v5384 = vunpack.c.l.b16 %v4701
    %v5385 = vunpack.c.h.b16 %v4701
    %v5386 = vunpack.c.l.b16 %v4702
    %v5387 = vunpack.c.h.b16 %v4702
    %v5388 = vunpack.c.l.b16 %v4703
    %v5389 = vunpack.c.h.b16 %v4703
    %v5390 = vunpack.c.l.b16 %v4704
    %v5391 = vunpack.c.h.b16 %v4704
    %v5392 = vunpack.c.l.b16 %v4705
    %v5393 = vunpack.c.h.b16 %v4705
    %v5394 = vunpack.c.l.b16 %v4706
    %v5395 = vunpack.c.h.b16 %v4706
    %v5396 = vunpack.c.l.b16 %v4707
    %v5397 = vunpack.c.h.b16 %v4707
    %v5398 = vunpack.c.l.b16 %v4708
    %v5399 = vunpack.c.h.b16 %v4708
    %v5400 = vunpack.c.l.b16 %v4709
    %v5401 = vunpack.c.h.b16 %v4709
    %v5402 = vunpack.c.l.b16 %v4710
    %v5403 = vunpack.c.h.b16 %v4710
    %v5404 = vunpack.c.l.b16 %v4711
    %v5405 = vunpack.c.h.b16 %v4711
    %v5406 = vunpack.c.l.b16 %v4712
    %v5407 = vunpack.c.h.b16 %v4712
    %v5408 = vunpack.c.l.b16 %v4713
    %v5409 = vunpack.c.h.b16 %v4713
    %v5410 = vunpack.c.l.b16 %v4714
    %v5411 = vunpack.c.h.b16 %v4714
    %v5412 = vunpack.c.l.b16 %v4715
    %v5413 = vunpack.c.h.b16 %v4715
    %v5414 = vunpack.c.l.b16 %v4716
    %v5415 = vunpack.c.h.b16 %v4716
    %v5416 = vunpack.c.l.b16 %v4717
    %v5417 = vunpack.c.h.b16 %v4717
    %v5418 = vunpack.c.l.b16 %v4718
    %v5419 = vunpack.c.h.b16 %v4718
    %v5420 = vunpack.c.l.b16 %v4719
    %v5421 = vunpack.c.h.b16 %v4719
    %v5422 = vunpack.c.l.b16 %v4720
    %v5423 = vunpack.c.h.b16 %v4720
    %v5424 = vunpack.c.l.b16 %v4721
    %v5425 = vunpack.c.h.b16 %v4721
    %v5426 = vunpack.c.l.b16 %v4722
    %v5427 = vunpack.c.h.b16 %v4722
    %v5428 = vunpack.c.l.b16 %v4723
    %v5429 = vunpack.c.h.b16 %v4723
    %v5430 = vunpack.c.l.b16 %v4724
    %v5431 = vunpack.c.h.b16 %v4724
    %v5432 = vunpack.c.l.b16 %v4725
    %v5433 = vunpack.c.h.b16 %v4725
    %v5434 = vunpack.c.l.b16 %v4726
    %v5435 = vunpack.c.h.b16 %v4726
    %v5436 = vunpack.c.l.b16 %v4727
    %v5437 = vunpack.c.h.b16 %v4727
    %v5438 = vunpack.c.l.b16 %v4728
    %v5439 = vunpack.c.h.b16 %v4728
    %v5440 = vunpack.c.l.b16 %v4729
    %v5441 = vunpack.c.h.b16 %v4729
    %v5442 = vunpack.c.l.b16 %v4730
    %v5443 = vunpack.c.h.b16 %v4730
    %v5444 = vunpack.c.l.b16 %v4731
    %v5445 = vunpack.c.h.b16 %v4731
    %v5446 = vunpack.c.l.b16 %v4732
    %v5447 = vunpack.c.h.b16 %v4732
    %v5448 = vunpack.c.l.b16 %v4733
    %v5449 = vunpack.c.h.b16 %v4733
    %v5450 = vunpack.c.l.b16 %v4734
    %v5451 = vunpack.c.h.b16 %v4734
    %v5452 = vunpack.c.l.b16 %v4735
    %v5453 = vunpack.c.h.b16 %v4735
    %v5454 = vunpack.c.l.b16 %v4736
    %v5455 = vunpack.c.h.b16 %v4736
    %v5456 = vunpack.c.l.b16 %v4737
    %v5457 = vunpack.c.h.b16 %v4737
    %v5458 = vunpack.c.l.b16 %v4738
    %v5459 = vunpack.c.h.b16 %v4738
    %v5460 = vunpack.c.l.b16 %v4739
    %v5461 = vunpack.c.h.b16 %v4739
    %v5462 = vunpack.c.l.b16 %v4740
    %v5463 = vunpack.c.h.b16 %v4740
    %v5464 = vunpack.c.l.b16 %v4741
    %v5465 = vunpack.c.h.b16 %v4741
    %v5466 = vunpack.c.l.b16 %v4742
    %v5467 = vunpack.c.h.b16 %v4742
    %v5468 = vunpack.c.l.b16 %v4743
    %v5469 = vunpack.c.h.b16 %v4743
    %v5470 = vunpack.c.l.b16 %v4744
    %v5471 = vunpack.c.h.b16 %v4744
    %v5472 = vunpack.c.l.b16 %v4745
    %v5473 = vunpack.c.h.b16 %v4745
    %v5474 = vunpack.c.l.b16 %v4746
    %v5475 = vunpack.c.h.b16 %v4746
    %v5476 = vunpack.c.l.b16 %v4747
    %v5477 = vunpack.c.h.b16 %v4747
    %v5478 = vunpack.c.l.b16 %v4748
    %v5479 = vunpack.c.h.b16 %v4748
    %v5480 = vunpack.c.l.b16 %v4749
    %v5481 = vunpack.c.h.b16 %v4749
    %v5482 = vunpack.c.l.b16 %v4750
    %v5483 = vunpack.c.h.b16 %v4750
    %v5484 = vunpack.c.l.b16 %v4751
    %v5485 = vunpack.c.h.b16 %v4751
    %v5486 = vunpack.c.l.b16 %v4752
    %v5487 = vunpack.c.h.b16 %v4752
    %v5488 = vunpack.c.l.b16 %v4753
    %v5489 = vunpack.c.h.b16 %v4753
    %v5490 = vunpack.c.l.b16 %v4754
    %v5491 = vunpack.c.h.b16 %v4754
    %v5492 = vunpack.c.l.b16 %v4755
    %v5493 = vunpack.c.h.b16 %v4755
    %v5494 = vunpack.c.l.b16 %v4756
    %v5495 = vunpack.c.h.b16 %v4756
    %v5496 = vunpack.c.l.b16 %v4757
    %v5497 = vunpack.c.h.b16 %v4757
    %v5498 = vunpack.c.l.b16 %v4758
    %v5499 = vunpack.c.h.b16 %v4758
    %v5500 = vunpack.c.l.b16 %v4759
    %v5501 = vunpack.c.h.b16 %v4759
    %v5502 = vunpack.c.l.b16 %v4760
    %v5503 = vunpack.c.h.b16 %v4760
    %v5504 = vunpack.c.l.b16 %v4761
    %v5505 = vunpack.c.h.b16 %v4761
    %v5506 = vunpack.c.l.b16 %v4762
    %v5507 = vunpack.c.h.b16 %v4762
    %v5508 = vunpack.c.l.b16 %v4763
    %v5509 = vunpack.c.h.b16 %v4763
    %v5510 = vunpack.c.l.b16 %v4764
    %v5511 = vunpack.c.h.b16 %v4764
    %v5512 = vunpack.c.l.b16 %v4765
    %v5513 = vunpack.c.h.b16 %v4765
    %v5514 = vunpack.c.l.b16 %v4766
    %v5515 = vunpack.c.h.b16 %v4766
    %v5516 = vunpack.c.l.b16 %v4767
    %v5517 = vunpack.c.h.b16 %v4767
    %v5518 = vunpack.c.l.b16 %v4768
    %v5519 = vunpack.c.h.b16 %v4768
    %v5520 = vunpack.c.l.b16 %v4769
    %v5521 = vunpack.c.h.b16 %v4769
    %v5522 = vunpack.c.l.b16 %v4770
    %v5523 = vunpack.c.h.b16 %v4770
    %v5524 = vunpack.c.l.b16 %v4771
    %v5525 = vunpack.c.h.b16 %v4771
    %v5526 = vunpack.c.l.b16 %v4772
    %v5527 = vunpack.c.h.b16 %v4772
    %v5528 = vunpack.c.l.b16 %v4773
    %v5529 = vunpack.c.h.b16 %v4773
    %v5530 = vunpack.c.l.b16 %v4774
    %v5531 = vunpack.c.h.b16 %v4774
    %v5532 = vunpack.c.l.b16 %v4775
    %v5533 = vunpack.c.h.b16 %v4775
    %v5534 = vunpack.c.l.b16 %v4776
    %v5535 = vunpack.c.h.b16 %v4776
    %v5536 = vunpack.c.l.b16 %v4777
    %v5537 = vunpack.c.h.b16 %v4777
    %v5538 = vunpack.c.l.b16 %v4778
    %v5539 = vunpack.c.h.b16 %v4778
    %v5540 = vunpack.c.l.b16 %v4779
    %v5541 = vunpack.c.h.b16 %v4779
    %v5542 = vunpack.c.l.b16 %v4780
    %v5543 = vunpack.c.h.b16 %v4780
    %v5544 = vunpack.c.l.b16 %v4781
    %v5545 = vunpack.c.h.b16 %v4781
    %v5546 = vunpack.c.l.b16 %v4782
    %v5547 = vunpack.c.h.b16 %v4782
    %v5548 = vunpack.c.l.b16 %v4783
    %v5549 = vunpack.c.h.b16 %v4783
    %v5550 = vunpack.c.l.b16 %v4784
    %v5551 = vunpack.c.h.b16 %v4784
    %v5552 = vunpack.c.l.b16 %v4785
    %v5553 = vunpack.c.h.b16 %v4785
    %v5554 = vunpack.c.l.b16 %v4786
    %v5555 = vunpack.c.h.b16 %v4786
    %v5556 = vunpack.c.l.b16 %v4787
    %v5557 = vunpack.c.h.b16 %v4787
    %v5558 = vunpack.c.l.b16 %v4788
    %v5559 = vunpack.c.h.b16 %v4788
    %v5560 = vunpack.c.l.b16 %v4789
    %v5561 = vunpack.c.h.b16 %v4789
    %v5562 = vunpack.c.l.b16 %v4790
    %v5563 = vunpack.c.h.b16 %v4790
    %v5564 = vunpack.c.l.b16 %v4791
    %v5565 = vunpack.c.h.b16 %v4791
    %v5566 = vunpack.c.l.b16 %v4792
    %v5567 = vunpack.c.h.b16 %v4792
    %v5568 = vunpack.c.l.b16 %v4793
    %v5569 = vunpack.c.h.b16 %v4793
    %v5570 = vunpack.c.l.b16 %v4794
    %v5571 = vunpack.c.h.b16 %v4794
    %v5572 = vunpack.c.l.b16 %v4795
    %v5573 = vunpack.c.h.b16 %v4795
    %v5574 = vunpack.c.l.b16 %v4796
    %v5575 = vunpack.c.h.b16 %v4796
    %v5576 = vunpack.c.l.b16 %v4797
    %v5577 = vunpack.c.h.b16 %v4797
    %v5578 = vunpack.c.l.b16 %v4798
    %v5579 = vunpack.c.h.b16 %v4798
    %v5580 = vunpack.c.l.b16 %v4799
    %v5581 = vunpack.c.h.b16 %v4799
    %v5582 = vunpack.c.l.b16 %v4800
    %v5583 = vunpack.c.h.b16 %v4800
    %v5584 = vunpack.c.l.b16 %v4801
    %v5585 = vunpack.c.h.b16 %v4801
    %v5586 = vunpack.c.l.b16 %v4802
    %v5587 = vunpack.c.h.b16 %v4802
    %v5588 = vunpack.c.l.b16 %v4803
    %v5589 = vunpack.c.h.b16 %v4803
    %v5590 = vunpack.c.l.b16 %v4804
    %v5591 = vunpack.c.h.b16 %v4804
    %v5592 = vunpack.c.l.b16 %v4805
    %v5593 = vunpack.c.h.b16 %v4805
    %v5594 = vunpack.c.l.b16 %v4806
    %v5595 = vunpack.c.h.b16 %v4806
    %v5596 = vunpack.c.l.b16 %v4807
    %v5597 = vunpack.c.h.b16 %v4807
    %v5598 = vpack.c.b16 %v5090, %v5086
    %v5599 = vpack.c.b16 %v5091, %v5087
    %v5600 = vpack.c.b16 %v5092, %v5088
    %v5601 = vpack.c.b16 %v5093, %v5089
    %v5602 = vpack.c.b16 %v5098, %v5094
    %v5603 = vpack.c.b16 %v5099, %v5095
    %v5604 = vpack.c.b16 %v5100, %v5096
    %v5605 = vpack.c.b16 %v5101, %v5097
    %v5606 = vpack.c.b16 %v5106, %v5102
    %v5607 = vpack.c.b16 %v5107, %v5103
    %v5608 = vpack.c.b16 %v5108, %v5104
    %v5609 = vpack.c.b16 %v5109, %v5105
    %v5610 = vpack.c.b16 %v5114, %v5110
    %v5611 = vpack.c.b16 %v5115, %v5111
    %v5612 = vpack.c.b16 %v5116, %v5112
    %v5613 = vpack.c.b16 %v5117, %v5113
    %v5614 = vpack.c.b16 %v5122, %v5118
    %v5615 = vpack.c.b16 %v5123, %v5119
    %v5616 = vpack.c.b16 %v5124, %v5120
    %v5617 = vpack.c.b16 %v5125, %v5121
    %v5618 = vpack.c.b16 %v5130, %v5126
    %v5619 = vpack.c.b16 %v5131, %v5127
    %v5620 = vpack.c.b16 %v5132, %v5128
    %v5621 = vpack.c.b16 %v5133, %v5129
    %v5622 = vpack.c.b16 %v5138, %v5134
    %v5623 = vpack.c.b16 %v5139, %v5135
    %v5624 = vpack.c.b16 %v5140, %v5136
    %v5625 = vpack.c.b16 %v5141, %v5137
    %v5626 = vpack.c.b16 %v5146, %v5142
    %v5627 = vpack.c.b16 %v5147, %v5143
    %v5628 = vpack.c.b16 %v5148, %v5144
    %v5629 = vpack.c.b16 %v5149, %v5145
    %v5630 = vpack.c.b16 %v5154, %v5150
    %v5631 = vpack.c.b16 %v5155, %v5151
    %v5632 = vpack.c.b16 %v5156, %v5152
    %v5633 = vpack.c.b16 %v5157, %v5153
    %v5634 = vpack.c.b16 %v5162, %v5158
    %v5635 = vpack.c.b16 %v5163, %v5159
    %v5636 = vpack.c.b16 %v5164, %v5160
    %v5637 = vpack.c.b16 %v5165, %v5161
    %v5638 = vpack.c.b16 %v5170, %v5166
    %v5639 = vpack.c.b16 %v5171, %v5167
    %v5640 = vpack.c.b16 %v5172, %v5168
    %v5641 = vpack.c.b16 %v5173, %v5169
    %v5642 = vpack.c.b16 %v5178, %v5174
    %v5643 = vpack.c.b16 %v5179, %v5175
    %v5644 = vpack.c.b16 %v5180, %v5176
    %v5645 = vpack.c.b16 %v5181, %v5177
    %v5646 = vpack.c.b16 %v5186, %v5182
    %v5647 = vpack.c.b16 %v5187, %v5183
    %v5648 = vpack.c.b16 %v5188, %v5184
    %v5649 = vpack.c.b16 %v5189, %v5185
    %v5650 = vpack.c.b16 %v5194, %v5190
    %v5651 = vpack.c.b16 %v5195, %v5191
    %v5652 = vpack.c.b16 %v5196, %v5192
    %v5653 = vpack.c.b16 %v5197, %v5193
    %v5654 = vpack.c.b16 %v5202, %v5198
    %v5655 = vpack.c.b16 %v5203, %v5199
    %v5656 = vpack.c.b16 %v5204, %v5200
    %v5657 = vpack.c.b16 %v5205, %v5201
    %v5658 = vpack.c.b16 %v5210, %v5206
    %v5659 = vpack.c.b16 %v5211, %v5207
    %v5660 = vpack.c.b16 %v5212, %v5208
    %v5661 = vpack.c.b16 %v5213, %v5209
    %v5662 = vpack.c.b16 %v5218, %v5214
    %v5663 = vpack.c.b16 %v5219, %v5215
    %v5664 = vpack.c.b16 %v5220, %v5216
    %v5665 = vpack.c.b16 %v5221, %v5217
    %v5666 = vpack.c.b16 %v5226, %v5222
    %v5667 = vpack.c.b16 %v5227, %v5223
    %v5668 = vpack.c.b16 %v5228, %v5224
    %v5669 = vpack.c.b16 %v5229, %v5225
    %v5670 = vpack.c.b16 %v5234, %v5230
    %v5671 = vpack.c.b16 %v5235, %v5231
    %v5672 = vpack.c.b16 %v5236, %v5232
    %v5673 = vpack.c.b16 %v5237, %v5233
    %v5674 = vpack.c.b16 %v5242, %v5238
    %v5675 = vpack.c.b16 %v5243, %v5239
    %v5676 = vpack.c.b16 %v5244, %v5240
    %v5677 = vpack.c.b16 %v5245, %v5241
    %v5678 = vpack.c.b16 %v5250, %v5246
    %v5679 = vpack.c.b16 %v5251, %v5247
    %v5680 = vpack.c.b16 %v5252, %v5248
    %v5681 = vpack.c.b16 %v5253, %v5249
    %v5682 = vpack.c.b16 %v5258, %v5254
    %v5683 = vpack.c.b16 %v5259, %v5255
    %v5684 = vpack.c.b16 %v5260, %v5256
    %v5685 = vpack.c.b16 %v5261, %v5257
    %v5686 = vpack.c.b16 %v5266, %v5262
    %v5687 = vpack.c.b16 %v5267, %v5263
    %v5688 = vpack.c.b16 %v5268, %v5264
    %v5689 = vpack.c.b16 %v5269, %v5265
    %v5690 = vpack.c.b16 %v5274, %v5270
    %v5691 = vpack.c.b16 %v5275, %v5271
    %v5692 = vpack.c.b16 %v5276, %v5272
    %v5693 = vpack.c.b16 %v5277, %v5273
    %v5694 = vpack.c.b16 %v5282, %v5278
    %v5695 = vpack.c.b16 %v5283, %v5279
    %v5696 = vpack.c.b16 %v5284, %v5280
    %v5697 = vpack.c.b16 %v5285, %v5281
    %v5698 = vpack.c.b16 %v5290, %v5286
    %v5699 = vpack.c.b16 %v5291, %v5287
    %v5700 = vpack.c.b16 %v5292, %v5288
    %v5701 = vpack.c.b16 %v5293, %v5289
    %v5702 = vpack.c.b16 %v5298, %v5294
    %v5703 = vpack.c.b16 %v5299, %v5295
    %v5704 = vpack.c.b16 %v5300, %v5296
    %v5705 = vpack.c.b16 %v5301, %v5297
    %v5706 = vpack.c.b16 %v5306, %v5302
    %v5707 = vpack.c.b16 %v5307, %v5303
    %v5708 = vpack.c.b16 %v5308, %v5304
    %v5709 = vpack.c.b16 %v5309, %v5305
    %v5710 = vpack.c.b16 %v5314, %v5310
    %v5711 = vpack.c.b16 %v5315, %v5311
    %v5712 = vpack.c.b16 %v5316, %v5312
    %v5713 = vpack.c.b16 %v5317, %v5313
    %v5714 = vpack.c.b16 %v5322, %v5318
    %v5715 = vpack.c.b16 %v5323, %v5319
    %v5716 = vpack.c.b16 %v5324, %v5320
    %v5717 = vpack.c.b16 %v5325, %v5321
    %v5718 = vpack.c.b16 %v5330, %v5326
    %v5719 = vpack.c.b16 %v5331, %v5327
    %v5720 = vpack.c.b16 %v5332, %v5328
    %v5721 = vpack.c.b16 %v5333, %v5329
    %v5722 = vpack.c.b16 %v5338, %v5334
    %v5723 = vpack.c.b16 %v5339, %v5335
    %v5724 = vpack.c.b16 %v5340, %v5336
    %v5725 = vpack.c.b16 %v5341, %v5337
    %v5726 = vpack.c.b16 %v5346, %v5342
    %v5727 = vpack.c.b16 %v5347, %v5343
    %v5728 = vpack.c.b16 %v5348, %v5344
    %v5729 = vpack.c.b16 %v5349, %v5345
    %v5730 = vpack.c.b16 %v5354, %v5350
    %v5731 = vpack.c.b16 %v5355, %v5351
    %v5732 = vpack.c.b16 %v5356, %v5352
    %v5733 = vpack.c.b16 %v5357, %v5353
    %v5734 = vpack.c.b16 %v5362, %v5358
    %v5735 = vpack.c.b16 %v5363, %v5359
    %v5736 = vpack.c.b16 %v5364, %v5360
    %v5737 = vpack.c.b16 %v5365, %v5361
    %v5738 = vpack.c.b16 %v5370, %v5366
    %v5739 = vpack.c.b16 %v5371, %v5367
    %v5740 = vpack.c.b16 %v5372, %v5368
    %v5741 = vpack.c.b16 %v5373, %v5369
    %v5742 = vpack.c.b16 %v5378, %v5374
    %v5743 = vpack.c.b16 %v5379, %v5375
    %v5744 = vpack.c.b16 %v5380, %v5376
    %v5745 = vpack.c.b16 %v5381, %v5377
    %v5746 = vpack.c.b16 %v5386, %v5382
    %v5747 = vpack.c.b16 %v5387, %v5383
    %v5748 = vpack.c.b16 %v5388, %v5384
    %v5749 = vpack.c.b16 %v5389, %v5385
    %v5750 = vpack.c.b16 %v5394, %v5390
    %v5751 = vpack.c.b16 %v5395, %v5391
    %v5752 = vpack.c.b16 %v5396, %v5392
    %v5753 = vpack.c.b16 %v5397, %v5393
    %v5754 = vpack.c.b16 %v5402, %v5398
    %v5755 = vpack.c.b16 %v5403, %v5399
    %v5756 = vpack.c.b16 %v5404, %v5400
    %v5757 = vpack.c.b16 %v5405, %v5401
    %v5758 = vpack.c.b16 %v5410, %v5406
    %v5759 = vpack.c.b16 %v5411, %v5407
    %v5760 = vpack.c.b16 %v5412, %v5408
    %v5761 = vpack.c.b16 %v5413, %v5409
    %v5762 = vpack.c.b16 %v5418, %v5414
    %v5763 = vpack.c.b16 %v5419, %v5415
    %v5764 = vpack.c.b16 %v5420, %v5416
    %v5765 = vpack.c.b16 %v5421, %v5417
    %v5766 = vpack.c.b16 %v5426, %v5422
    %v5767 = vpack.c.b16 %v5427, %v5423
    %v5768 = vpack.c.b16 %v5428, %v5424
    %v5769 = vpack.c.b16 %v5429, %v5425
    %v5770 = vpack.c.b16 %v5434, %v5430
    %v5771 = vpack.c.b16 %v5435, %v5431
    %v5772 = vpack.c.b16 %v5436, %v5432
    %v5773 = vpack.c.b16 %v5437, %v5433
    %v5774 = vpack.c.b16 %v5442, %v5438
    %v5775 = vpack.c.b16 %v5443, %v5439
    %v5776 = vpack.c.b16 %v5444, %v5440
    %v5777 = vpack.c.b16 %v5445, %v5441
    %v5778 = vpack.c.b16 %v5450, %v5446
    %v5779 = vpack.c.b16 %v5451, %v5447
    %v5780 = vpack.c.b16 %v5452, %v5448
    %v5781 = vpack.c.b16 %v5453, %v5449
    %v5782 = vpack.c.b16 %v5458, %v5454
    %v5783 = vpack.c.b16 %v5459, %v5455
    %v5784 = vpack.c.b16 %v5460, %v5456
    %v5785 = vpack.c.b16 %v5461, %v5457
    %v5786 = vpack.c.b16 %v5466, %v5462
    %v5787 = vpack.c.b16 %v5467, %v5463
    %v5788 = vpack.c.b16 %v5468, %v5464
    %v5789 = vpack.c.b16 %v5469, %v5465
    %v5790 = vpack.c.b16 %v5474, %v5470
    %v5791 = vpack.c.b16 %v5475, %v5471
    %v5792 = vpack.c.b16 %v5476, %v5472
    %v5793 = vpack.c.b16 %v5477, %v5473
    %v5794 = vpack.c.b16 %v5482, %v5478
    %v5795 = vpack.c.b16 %v5483, %v5479
    %v5796 = vpack.c.b16 %v5484, %v5480
    %v5797 = vpack.c.b16 %v5485, %v5481
    %v5798 = vpack.c.b16 %v5490, %v5486
    %v5799 = vpack.c.b16 %v5491, %v5487
    %v5800 = vpack.c.b16 %v5492, %v5488
    %v5801 = vpack.c.b16 %v5493, %v5489
    %v5802 = vpack.c.b16 %v5498, %v5494
    %v5803 = vpack.c.b16 %v5499, %v5495
    %v5804 = vpack.c.b16 %v5500, %v5496
    %v5805 = vpack.c.b16 %v5501, %v5497
    %v5806 = vpack.c.b16 %v5506, %v5502
    %v5807 = vpack.c.b16 %v5507, %v5503
    %v5808 = vpack.c.b16 %v5508, %v5504
    %v5809 = vpack.c.b16 %v5509, %v5505
    %v5810 = vpack.c.b16 %v5514, %v5510
    %v5811 = vpack.c.b16 %v5515, %v5511
    %v5812 = vpack.c.b16 %v5516, %v5512
    %v5813 = vpack.c.b16 %v5517, %v5513
    %v5814 = vpack.c.b16 %v5522, %v5518
    %v5815 = vpack.c.b16 %v5523, %v5519
    %v5816 = vpack.c.b16 %v5524, %v5520
    %v5817 = vpack.c.b16 %v5525, %v5521
    %v5818 = vpack.c.b16 %v5530, %v5526
    %v5819 = vpack.c.b16 %v5531, %v5527
    %v5820 = vpack.c.b16 %v5532, %v5528
    %v5821 = vpack.c.b16 %v5533, %v5529
    %v5822 = vpack.c.b16 %v5538, %v5534
    %v5823 = vpack.c.b16 %v5539, %v5535
    %v5824 = vpack.c.b16 %v5540, %v5536
    %v5825 = vpack.c.b16 %v5541, %v5537
    %v5826 = vpack.c.b16 %v5546, %v5542
    %v5827 = vpack.c.b16 %v5547, %v5543
    %v5828 = vpack.c.b16 %v5548, %v5544
    %v5829 = vpack.c.b16 %v5549, %v5545
    %v5830 = vpack.c.b16 %v5554, %v5550
    %v5831 = vpack.c.b16 %v5555, %v5551
    %v5832 = vpack.c.b16 %v5556, %v5552
    %v5833 = vpack.c.b16 %v5557, %v5553
    %v5834 = vpack.c.b16 %v5562, %v5558
    %v5835 = vpack.c.b16 %v5563, %v5559
    %v5836 = vpack.c.b16 %v5564, %v5560
    %v5837 = vpack.c.b16 %v5565, %v5561
    %v5838 = vpack.c.b16 %v5570, %v5566
    %v5839 = vpack.c.b16 %v5571, %v5567
    %v5840 = vpack.c.b16 %v5572, %v5568
    %v5841 = vpack.c.b16 %v5573, %v5569
    %v5842 = vpack.c.b16 %v5578, %v5574
    %v5843 = vpack.c.b16 %v5579, %v5575
    %v5844 = vpack.c.b16 %v5580, %v5576
    %v5845 = vpack.c.b16 %v5581, %v5577
    %v5846 = vpack.c.b16 %v5586, %v5582
    %v5847 = vpack.c.b16 %v5587, %v5583
    %v5848 = vpack.c.b16 %v5588, %v5584
    %v5849 = vpack.c.b16 %v5589, %v5585
    %v5850 = vpack.c.b16 %v5594, %v5590
    %v5851 = vpack.c.b16 %v5595, %v5591
    %v5852 = vpack.c.b16 %v5596, %v5592
    %v5853 = vpack.c.b16 %v5597, %v5593
    %6110 = vmatprep.subr.bf16.mxu0 %v5599
    %6111 = vmatpush1.bf16.msra.mxu0 %v5598
    %6112 = vmatprep.subr.bf16.mxu0 %v5603
    %6113 = vmatpush1.bf16.msra.mxu0 %v5602
    %6114 = vmatprep.subr.bf16.mxu0 %v5607
    %6115 = vmatpush1.bf16.msra.mxu0 %v5606
    %6116 = vmatprep.subr.bf16.mxu0 %v5611
    %6117 = vmatpush1.bf16.msra.mxu0 %v5610
    %6118 = vmatprep.subr.bf16.mxu0 %v5615
    %6119 = vmatpush1.bf16.msra.mxu0 %v5614
    %6120 = vmatprep.subr.bf16.mxu0 %v5619
    %6121 = vmatpush1.bf16.msra.mxu0 %v5618
    %6122 = vmatprep.subr.bf16.mxu0 %v5623
    %6123 = vmatpush1.bf16.msra.mxu0 %v5622
    %6124 = vmatprep.subr.bf16.mxu0 %v5627
    %6125 = vmatpush1.bf16.msra.mxu0 %v5626
    %6126 = vmatprep.subr.bf16.mxu0 %v5631
    %6127 = vmatpush1.bf16.msra.mxu0 %v5630
    %6128 = vmatprep.subr.bf16.mxu0 %v5635
    %6129 = vmatpush1.bf16.msra.mxu0 %v5634
    %6130 = vmatprep.subr.bf16.mxu0 %v5639
    %6131 = vmatpush1.bf16.msra.mxu0 %v5638
    %6132 = vmatprep.subr.bf16.mxu0 %v5643
    %6133 = vmatpush1.bf16.msra.mxu0 %v5642
    %6134 = vmatprep.subr.bf16.mxu0 %v5647
    %6135 = vmatpush1.bf16.msra.mxu0 %v5646
    %6136 = vmatprep.subr.bf16.mxu0 %v5651
    %6137 = vmatpush1.bf16.msra.mxu0 %v5650
    %6138 = vmatprep.subr.bf16.mxu0 %v5655
    %6139 = vmatpush1.bf16.msra.mxu0 %v5654
    %6140 = vmatprep.subr.bf16.mxu0 %v5659
    %6141 = vmatpush1.bf16.msra.mxu0 %v5658
    %6142 = vmatprep.mubr.bf16.mxu0 %v4545
    %6143 = vmatmul.mubr.bf16.gmra.mrb[0].mxu0 %v4544
    %v6144 = vpop.f32.mrb[0].mxu0
    %v6145 = vadd.f32 %v4813, %v6144
    %v6146 = vpop.f32.mrb[0].mxu0
    %v6147 = vadd.f32 %v4817, %v6146
    %v6148 = vpop.f32.mrb[0].mxu0
    %v6149 = vpop.f32.mrb[0].mxu0
    %6150 = vdwg.mxu0
    %6151 = vmatprep.subr.bf16.mxu0 %v5663
    %6152 = vmatpush1.bf16.msra.mxu0 %v5662
    %6153 = vmatprep.subr.bf16.mxu0 %v5667
    %6154 = vmatpush1.bf16.msra.mxu0 %v5666
    %6155 = vmatprep.subr.bf16.mxu0 %v5671
    %6156 = vmatpush1.bf16.msra.mxu0 %v5670
    %6157 = vmatprep.subr.bf16.mxu0 %v5675
    %6158 = vmatpush1.bf16.msra.mxu0 %v5674
    %6159 = vmatprep.subr.bf16.mxu0 %v5679
    %6160 = vmatpush1.bf16.msra.mxu0 %v5678
    %6161 = vmatprep.subr.bf16.mxu0 %v5683
    %6162 = vmatpush1.bf16.msra.mxu0 %v5682
    %6163 = vmatprep.subr.bf16.mxu0 %v5687
    %6164 = vmatpush1.bf16.msra.mxu0 %v5686
    %6165 = vmatprep.subr.bf16.mxu0 %v5691
    %6166 = vmatpush1.bf16.msra.mxu0 %v5690
    %6167 = vmatprep.subr.bf16.mxu0 %v5695
    %6168 = vmatpush1.bf16.msra.mxu0 %v5694
    %6169 = vmatprep.subr.bf16.mxu0 %v5699
    %6170 = vmatpush1.bf16.msra.mxu0 %v5698
    %6171 = vmatprep.subr.bf16.mxu0 %v5703
    %6172 = vmatpush1.bf16.msra.mxu0 %v5702
    %6173 = vmatprep.subr.bf16.mxu0 %v5707
    %6174 = vmatpush1.bf16.msra.mxu0 %v5706
    %6175 = vmatprep.subr.bf16.mxu0 %v5711
    %6176 = vmatpush1.bf16.msra.mxu0 %v5710
    %6177 = vmatprep.subr.bf16.mxu0 %v5715
    %6178 = vmatpush1.bf16.msra.mxu0 %v5714
    %6179 = vmatprep.subr.bf16.mxu0 %v5719
    %6180 = vmatpush1.bf16.msra.mxu0 %v5718
    %6181 = vmatprep.subr.bf16.mxu0 %v5723
    %6182 = vmatpush1.bf16.msra.mxu0 %v5722
    %6183 = vmatprep.mubr.bf16.mxu0 %v4547
    %6184 = vmatmul.mubr.bf16.gmra.mrb[0].mxu0 %v4546
    %v6185 = vpop.f32.mrb[0].mxu0
    %v6186 = vadd.f32 %v6145, %v6185
    %v6187 = vpop.f32.mrb[0].mxu0
    %v6188 = vadd.f32 %v6147, %v6187
    %v6189 = vpop.f32.mrb[0].mxu0
    %v6190 = vpop.f32.mrb[0].mxu0
    %6191 = vdwg.mxu0
    %6192 = vmatprep.subr.bf16.mxu0 %v5727
    %6193 = vmatpush1.bf16.msra.mxu0 %v5726
    %6194 = vmatprep.subr.bf16.mxu0 %v5731
    %6195 = vmatpush1.bf16.msra.mxu0 %v5730
    %6196 = vmatprep.subr.bf16.mxu0 %v5735
    %6197 = vmatpush1.bf16.msra.mxu0 %v5734
    %6198 = vmatprep.subr.bf16.mxu0 %v5739
    %6199 = vmatpush1.bf16.msra.mxu0 %v5738
    %6200 = vmatprep.subr.bf16.mxu0 %v5743
    %6201 = vmatpush1.bf16.msra.mxu0 %v5742
    %6202 = vmatprep.subr.bf16.mxu0 %v5747
    %6203 = vmatpush1.bf16.msra.mxu0 %v5746
    %6204 = vmatprep.subr.bf16.mxu0 %v5751
    %6205 = vmatpush1.bf16.msra.mxu0 %v5750
    %6206 = vmatprep.subr.bf16.mxu0 %v5755
    %6207 = vmatpush1.bf16.msra.mxu0 %v5754
    %6208 = vmatprep.subr.bf16.mxu0 %v5759
    %6209 = vmatpush1.bf16.msra.mxu0 %v5758
    %6210 = vmatprep.subr.bf16.mxu0 %v5763
    %6211 = vmatpush1.bf16.msra.mxu0 %v5762
    %6212 = vmatprep.subr.bf16.mxu0 %v5767
    %6213 = vmatpush1.bf16.msra.mxu0 %v5766
    %6214 = vmatprep.subr.bf16.mxu0 %v5771
    %6215 = vmatpush1.bf16.msra.mxu0 %v5770
    %6216 = vmatprep.subr.bf16.mxu0 %v5775
    %6217 = vmatpush1.bf16.msra.mxu0 %v5774
    %6218 = vmatprep.subr.bf16.mxu0 %v5779
    %6219 = vmatpush1.bf16.msra.mxu0 %v5778
    %6220 = vmatprep.subr.bf16.mxu0 %v5783
    %6221 = vmatpush1.bf16.msra.mxu0 %v5782
    %6222 = vmatprep.subr.bf16.mxu0 %v5787
    %6223 = vmatpush1.bf16.msra.mxu0 %v5786
    %6224 = vmatprep.mubr.bf16.mxu0 %v4549
    %6225 = vmatmul.mubr.bf16.gmra.mrb[0].mxu0 %v4548
    %v6226 = vpop.f32.mrb[0].mxu0
    %v6227 = vadd.f32 %v6186, %v6226
    %v6228 = vpop.f32.mrb[0].mxu0
    %v6229 = vadd.f32 %v6188, %v6228
    %v6230 = vpop.f32.mrb[0].mxu0
    %v6231 = vpop.f32.mrb[0].mxu0
    %6232 = vdwg.mxu0
    %6233 = vmatprep.subr.bf16.mxu0 %v5791
    %6234 = vmatpush1.bf16.msra.mxu0 %v5790
    %6235 = vmatprep.subr.bf16.mxu0 %v5795
    %6236 = vmatpush1.bf16.msra.mxu0 %v5794
    %6237 = vmatprep.subr.bf16.mxu0 %v5799
    %6238 = vmatpush1.bf16.msra.mxu0 %v5798
    %6239 = vmatprep.subr.bf16.mxu0 %v5803
    %6240 = vmatpush1.bf16.msra.mxu0 %v5802
    %6241 = vmatprep.subr.bf16.mxu0 %v5807
    %6242 = vmatpush1.bf16.msra.mxu0 %v5806
    %6243 = vmatprep.subr.bf16.mxu0 %v5811
    %6244 = vmatpush1.bf16.msra.mxu0 %v5810
    %6245 = vmatprep.subr.bf16.mxu0 %v5815
    %6246 = vmatpush1.bf16.msra.mxu0 %v5814
    %6247 = vmatprep.subr.bf16.mxu0 %v5819
    %6248 = vmatpush1.bf16.msra.mxu0 %v5818
    %6249 = vmatprep.subr.bf16.mxu0 %v5823
    %6250 = vmatpush1.bf16.msra.mxu0 %v5822
    %6251 = vmatprep.subr.bf16.mxu0 %v5827
    %6252 = vmatpush1.bf16.msra.mxu0 %v5826
    %6253 = vmatprep.subr.bf16.mxu0 %v5831
    %6254 = vmatpush1.bf16.msra.mxu0 %v5830
    %6255 = vmatprep.subr.bf16.mxu0 %v5835
    %6256 = vmatpush1.bf16.msra.mxu0 %v5834
    %6257 = vmatprep.subr.bf16.mxu0 %v5839
    %6258 = vmatpush1.bf16.msra.mxu0 %v5838
    %6259 = vmatprep.subr.bf16.mxu0 %v5843
    %6260 = vmatpush1.bf16.msra.mxu0 %v5842
    %6261 = vmatprep.subr.bf16.mxu0 %v5847
    %6262 = vmatpush1.bf16.msra.mxu0 %v5846
    %6263 = vmatprep.subr.bf16.mxu0 %v5851
    %6264 = vmatpush1.bf16.msra.mxu0 %v5850
    %6265 = vmatprep.mubr.bf16.mxu0 %v4551
    %6266 = vmatmul.mubr.bf16.gmra.mrb[0].mxu0 %v4550
    %v6267 = vpop.f32.mrb[0].mxu0
    %v6268 = vadd.f32 %v6227, %v6267
    %v6269 = vpop.f32.mrb[0].mxu0
    %v6270 = vadd.f32 %v6229, %v6269
    %v6271 = vpop.f32.mrb[0].mxu0
    %v6272 = vpop.f32.mrb[0].mxu0
    %6273 = vdwg.mxu0
    %6274 = vmatprep.subr.bf16.mxu0 %v5601
    %6275 = vmatpush1.bf16.msra.mxu0 %v5600
    %6276 = vmatprep.subr.bf16.mxu0 %v5605
    %6277 = vmatpush1.bf16.msra.mxu0 %v5604
    %6278 = vmatprep.subr.bf16.mxu0 %v5609
    %6279 = vmatpush1.bf16.msra.mxu0 %v5608
    %6280 = vmatprep.subr.bf16.mxu0 %v5613
    %6281 = vmatpush1.bf16.msra.mxu0 %v5612
    %6282 = vmatprep.subr.bf16.mxu0 %v5617
    %6283 = vmatpush1.bf16.msra.mxu0 %v5616
    %6284 = vmatprep.subr.bf16.mxu0 %v5621
    %6285 = vmatpush1.bf16.msra.mxu0 %v5620
    %6286 = vmatprep.subr.bf16.mxu0 %v5625
    %6287 = vmatpush1.bf16.msra.mxu0 %v5624
    %6288 = vmatprep.subr.bf16.mxu0 %v5629
    %6289 = vmatpush1.bf16.msra.mxu0 %v5628
    %6290 = vmatprep.subr.bf16.mxu0 %v5633
    %6291 = vmatpush1.bf16.msra.mxu0 %v5632
    %6292 = vmatprep.subr.bf16.mxu0 %v5637
    %6293 = vmatpush1.bf16.msra.mxu0 %v5636
    %6294 = vmatprep.subr.bf16.mxu0 %v5641
    %6295 = vmatpush1.bf16.msra.mxu0 %v5640
    %6296 = vmatprep.subr.bf16.mxu0 %v5645
    %6297 = vmatpush1.bf16.msra.mxu0 %v5644
    %6298 = vmatprep.subr.bf16.mxu0 %v5649
    %6299 = vmatpush1.bf16.msra.mxu0 %v5648
    %6300 = vmatprep.subr.bf16.mxu0 %v5653
    %6301 = vmatpush1.bf16.msra.mxu0 %v5652
    %6302 = vmatprep.subr.bf16.mxu0 %v5657
    %6303 = vmatpush1.bf16.msra.mxu0 %v5656
    %6304 = vmatprep.subr.bf16.mxu0 %v5661
    %6305 = vmatpush1.bf16.msra.mxu0 %v5660
    %6306 = vmatprep.mubr.bf16.mxu0 %v4545
    %6307 = vmatmul.mubr.bf16.gmra.mrb[0].mxu0 %v4544
    %v6308 = vpop.f32.mrb[0].mxu0
    %v6309 = vadd.f32 %v4821, %v6308
    %v6310 = vpop.f32.mrb[0].mxu0
    %v6311 = vadd.f32 %v4825, %v6310
    %v6312 = vpop.f32.mrb[0].mxu0
    %v6313 = vpop.f32.mrb[0].mxu0
    %6314 = vdwg.mxu0
    %6315 = vmatprep.subr.bf16.mxu0 %v5665
    %6316 = vmatpush1.bf16.msra.mxu0 %v5664
    %6317 = vmatprep.subr.bf16.mxu0 %v5669
    %6318 = vmatpush1.bf16.msra.mxu0 %v5668
    %6319 = vmatprep.subr.bf16.mxu0 %v5673
    %6320 = vmatpush1.bf16.msra.mxu0 %v5672
    %6321 = vmatprep.subr.bf16.mxu0 %v5677
    %6322 = vmatpush1.bf16.msra.mxu0 %v5676
    %6323 = vmatprep.subr.bf16.mxu0 %v5681
    %6324 = vmatpush1.bf16.msra.mxu0 %v5680
    %6325 = vmatprep.subr.bf16.mxu0 %v5685
    %6326 = vmatpush1.bf16.msra.mxu0 %v5684
    %6327 = vmatprep.subr.bf16.mxu0 %v5689
    %6328 = vmatpush1.bf16.msra.mxu0 %v5688
    %6329 = vmatprep.subr.bf16.mxu0 %v5693
    %6330 = vmatpush1.bf16.msra.mxu0 %v5692
    %6331 = vmatprep.subr.bf16.mxu0 %v5697
    %6332 = vmatpush1.bf16.msra.mxu0 %v5696
    %6333 = vmatprep.subr.bf16.mxu0 %v5701
    %6334 = vmatpush1.bf16.msra.mxu0 %v5700
    %6335 = vmatprep.subr.bf16.mxu0 %v5705
    %6336 = vmatpush1.bf16.msra.mxu0 %v5704
    %6337 = vmatprep.subr.bf16.mxu0 %v5709
    %6338 = vmatpush1.bf16.msra.mxu0 %v5708
    %6339 = vmatprep.subr.bf16.mxu0 %v5713
    %6340 = vmatpush1.bf16.msra.mxu0 %v5712
    %6341 = vmatprep.subr.bf16.mxu0 %v5717
    %6342 = vmatpush1.bf16.msra.mxu0 %v5716
    %6343 = vmatprep.subr.bf16.mxu0 %v5721
    %6344 = vmatpush1.bf16.msra.mxu0 %v5720
    %6345 = vmatprep.subr.bf16.mxu0 %v5725
    %6346 = vmatpush1.bf16.msra.mxu0 %v5724
    %6347 = vmatprep.mubr.bf16.mxu0 %v4547
    %6348 = vmatmul.mubr.bf16.gmra.mrb[0].mxu0 %v4546
    %v6349 = vpop.f32.mrb[0].mxu0
    %v6350 = vadd.f32 %v6309, %v6349
    %v6351 = vpop.f32.mrb[0].mxu0
    %v6352 = vadd.f32 %v6311, %v6351
    %v6353 = vpop.f32.mrb[0].mxu0
    %v6354 = vpop.f32.mrb[0].mxu0
    %6355 = vdwg.mxu0
    %6356 = vmatprep.subr.bf16.mxu0 %v5729
    %6357 = vmatpush1.bf16.msra.mxu0 %v5728
    %6358 = vmatprep.subr.bf16.mxu0 %v5733
    %6359 = vmatpush1.bf16.msra.mxu0 %v5732
    %6360 = vmatprep.subr.bf16.mxu0 %v5737
    %6361 = vmatpush1.bf16.msra.mxu0 %v5736
    %6362 = vmatprep.subr.bf16.mxu0 %v5741
    %6363 = vmatpush1.bf16.msra.mxu0 %v5740
    %6364 = vmatprep.subr.bf16.mxu0 %v5745
    %6365 = vmatpush1.bf16.msra.mxu0 %v5744
    %6366 = vmatprep.subr.bf16.mxu0 %v5749
    %6367 = vmatpush1.bf16.msra.mxu0 %v5748
    %6368 = vmatprep.subr.bf16.mxu0 %v5753
    %6369 = vmatpush1.bf16.msra.mxu0 %v5752
    %6370 = vmatprep.subr.bf16.mxu0 %v5757
    %6371 = vmatpush1.bf16.msra.mxu0 %v5756
    %6372 = vmatprep.subr.bf16.mxu0 %v5761
    %6373 = vmatpush1.bf16.msra.mxu0 %v5760
    %6374 = vmatprep.subr.bf16.mxu0 %v5765
    %6375 = vmatpush1.bf16.msra.mxu0 %v5764
    %6376 = vmatprep.subr.bf16.mxu0 %v5769
    %6377 = vmatpush1.bf16.msra.mxu0 %v5768
    %6378 = vmatprep.subr.bf16.mxu0 %v5773
    %6379 = vmatpush1.bf16.msra.mxu0 %v5772
    %6380 = vmatprep.subr.bf16.mxu0 %v5777
    %6381 = vmatpush1.bf16.msra.mxu0 %v5776
    %6382 = vmatprep.subr.bf16.mxu0 %v5781
    %6383 = vmatpush1.bf16.msra.mxu0 %v5780
    %6384 = vmatprep.subr.bf16.mxu0 %v5785
    %6385 = vmatpush1.bf16.msra.mxu0 %v5784
    %6386 = vmatprep.subr.bf16.mxu0 %v5789
    %6387 = vmatpush1.bf16.msra.mxu0 %v5788
    %6388 = vmatprep.mubr.bf16.mxu0 %v4549
    %6389 = vmatmul.mubr.bf16.gmra.mrb[0].mxu0 %v4548
    %v6390 = vpop.f32.mrb[0].mxu0
    %v6391 = vadd.f32 %v6350, %v6390
    %v6392 = vpop.f32.mrb[0].mxu0
    %v6393 = vadd.f32 %v6352, %v6392
    %v6394 = vpop.f32.mrb[0].mxu0
    %v6395 = vpop.f32.mrb[0].mxu0
    %6396 = vdwg.mxu0
    %6397 = vmatprep.subr.bf16.mxu0 %v5793
    %6398 = vmatpush1.bf16.msra.mxu0 %v5792
    %6399 = vmatprep.subr.bf16.mxu0 %v5797
    %6400 = vmatpush1.bf16.msra.mxu0 %v5796
    %6401 = vmatprep.subr.bf16.mxu0 %v5801
    %6402 = vmatpush1.bf16.msra.mxu0 %v5800
    %6403 = vmatprep.subr.bf16.mxu0 %v5805
    %6404 = vmatpush1.bf16.msra.mxu0 %v5804
    %6405 = vmatprep.subr.bf16.mxu0 %v5809
    %6406 = vmatpush1.bf16.msra.mxu0 %v5808
    %6407 = vmatprep.subr.bf16.mxu0 %v5813
    %6408 = vmatpush1.bf16.msra.mxu0 %v5812
    %6409 = vmatprep.subr.bf16.mxu0 %v5817
    %6410 = vmatpush1.bf16.msra.mxu0 %v5816
    %6411 = vmatprep.subr.bf16.mxu0 %v5821
    %6412 = vmatpush1.bf16.msra.mxu0 %v5820
    %6413 = vmatprep.subr.bf16.mxu0 %v5825
    %6414 = vmatpush1.bf16.msra.mxu0 %v5824
    %6415 = vmatprep.subr.bf16.mxu0 %v5829
    %6416 = vmatpush1.bf16.msra.mxu0 %v5828
    %6417 = vmatprep.subr.bf16.mxu0 %v5833
    %6418 = vmatpush1.bf16.msra.mxu0 %v5832
    %6419 = vmatprep.subr.bf16.mxu0 %v5837
    %6420 = vmatpush1.bf16.msra.mxu0 %v5836
    %6421 = vmatprep.subr.bf16.mxu0 %v5841
    %6422 = vmatpush1.bf16.msra.mxu0 %v5840
    %6423 = vmatprep.subr.bf16.mxu0 %v5845
    %6424 = vmatpush1.bf16.msra.mxu0 %v5844
    %6425 = vmatprep.subr.bf16.mxu0 %v5849
    %6426 = vmatpush1.bf16.msra.mxu0 %v5848
    %6427 = vmatprep.subr.bf16.mxu0 %v5853
    %6428 = vmatpush1.bf16.msra.mxu0 %v5852
    %6429 = vmatprep.mubr.bf16.mxu0 %v4551
    %6430 = vmatmul.mubr.bf16.gmra.mrb[0].mxu0 %v4550
    %v6431 = vpop.f32.mrb[0].mxu0
    %v6432 = vadd.f32 %v6391, %v6431
    %v6433 = vpop.f32.mrb[0].mxu0
    %v6434 = vadd.f32 %v6393, %v6433
    %v6435 = vpop.f32.mrb[0].mxu0
    %v6436 = vpop.f32.mrb[0].mxu0
    %6437 = vdwg.mxu0
    %v6438 = vmax.f32 %v6268, 0.0
    %v6439 = vmax.f32 %v6270, 0.0
    %v6440 = vmax.f32 %v6432, 0.0
    %v6441 = vmax.f32 %v6434, 0.0
    %v6442 = vpack.c.bf16 %v6438, %v6438
    %v6443 = vpack.c.bf16 %v6439, %v6439
    %v6444 = vpack.c.bf16 %v6440, %v6440
    %v6445 = vpack.c.bf16 %v6441, %v6441
    %v6446 = vld [vmem:[#allocation11] sm:$0xff]
    %v6447 = vld [vmem:[#allocation11 + $0x8] sm:$0xff]
    %v6448 = vld [vmem:[#allocation11 + $0x10] sm:$0xff]
    %v6449 = vld [vmem:[#allocation11 + $0x18] sm:$0xff]
    %v6450 = vld [vmem:[#allocation11 + $0x20] sm:$0xff]
    %v6451 = vld [vmem:[#allocation11 + $0x28] sm:$0xff]
    %v6452 = vld [vmem:[#allocation11 + $0x30] sm:$0xff]
    %v6453 = vld [vmem:[#allocation11 + $0x38] sm:$0xff]
    %v6454 = vld [vmem:[#allocation11 + $0x40] sm:$0xff]
    %v6455 = vld [vmem:[#allocation11 + $0x48] sm:$0xff]
    %v6456 = vld [vmem:[#allocation11 + $0x50] sm:$0xff]
    %v6457 = vld [vmem:[#allocation11 + $0x58] sm:$0xff]
    %v6458 = vld [vmem:[#allocation11 + $0x60] sm:$0xff]
    %v6459 = vld [vmem:[#allocation11 + $0x68] sm:$0xff]
    %v6460 = vld [vmem:[#allocation11 + $0x70] sm:$0xff]
    %v6461 = vld [vmem:[#allocation11 + $0x78] sm:$0xff]
    %v6462 = vld [vmem:[#allocation11 + $0x80] sm:$0xff]
    %v6463 = vld [vmem:[#allocation11 + $0x88] sm:$0xff]
    %v6464 = vld [vmem:[#allocation11 + $0x90] sm:$0xff]
    %v6465 = vld [vmem:[#allocation11 + $0x98] sm:$0xff]
    %v6466 = vld [vmem:[#allocation11 + $0xa0] sm:$0xff]
    %v6467 = vld [vmem:[#allocation11 + $0xa8] sm:$0xff]
    %v6468 = vld [vmem:[#allocation11 + $0xb0] sm:$0xff]
    %v6469 = vld [vmem:[#allocation11 + $0xb8] sm:$0xff]
    %v6470 = vld [vmem:[#allocation11 + $0xc0] sm:$0xff]
    %v6471 = vld [vmem:[#allocation11 + $0xc8] sm:$0xff]
    %v6472 = vld [vmem:[#allocation11 + $0xd0] sm:$0xff]
    %v6473 = vld [vmem:[#allocation11 + $0xd8] sm:$0xff]
    %v6474 = vld [vmem:[#allocation11 + $0xe0] sm:$0xff]
    %v6475 = vld [vmem:[#allocation11 + $0xe8] sm:$0xff]
    %v6476 = vld [vmem:[#allocation11 + $0xf0] sm:$0xff]
    %v6477 = vld [vmem:[#allocation11 + $0xf8] sm:$0xff]
    %v6478 = vld [vmem:[#allocation11 + $0x100] sm:$0xff]
    %v6479 = vld [vmem:[#allocation11 + $0x108] sm:$0xff]
    %v6480 = vld [vmem:[#allocation11 + $0x110] sm:$0xff]
    %v6481 = vld [vmem:[#allocation11 + $0x118] sm:$0xff]
    %v6482 = vld [vmem:[#allocation11 + $0x120] sm:$0xff]
    %v6483 = vld [vmem:[#allocation11 + $0x128] sm:$0xff]
    %v6484 = vld [vmem:[#allocation11 + $0x130] sm:$0xff]
    %v6485 = vld [vmem:[#allocation11 + $0x138] sm:$0xff]
    %v6486 = vld [vmem:[#allocation11 + $0x140] sm:$0xff]
    %v6487 = vld [vmem:[#allocation11 + $0x148] sm:$0xff]
    %v6488 = vld [vmem:[#allocation11 + $0x150] sm:$0xff]
    %v6489 = vld [vmem:[#allocation11 + $0x158] sm:$0xff]
    %v6490 = vld [vmem:[#allocation11 + $0x160] sm:$0xff]
    %v6491 = vld [vmem:[#allocation11 + $0x168] sm:$0xff]
    %v6492 = vld [vmem:[#allocation11 + $0x170] sm:$0xff]
    %v6493 = vld [vmem:[#allocation11 + $0x178] sm:$0xff]
    %v6494 = vld [vmem:[#allocation11 + $0x180] sm:$0xff]
    %v6495 = vld [vmem:[#allocation11 + $0x188] sm:$0xff]
    %v6496 = vld [vmem:[#allocation11 + $0x190] sm:$0xff]
    %v6497 = vld [vmem:[#allocation11 + $0x198] sm:$0xff]
    %v6498 = vld [vmem:[#allocation11 + $0x1a0] sm:$0xff]
    %v6499 = vld [vmem:[#allocation11 + $0x1a8] sm:$0xff]
    %v6500 = vld [vmem:[#allocation11 + $0x1b0] sm:$0xff]
    %v6501 = vld [vmem:[#allocation11 + $0x1b8] sm:$0xff]
    %v6502 = vld [vmem:[#allocation11 + $0x1c0] sm:$0xff]
    %v6503 = vld [vmem:[#allocation11 + $0x1c8] sm:$0xff]
    %v6504 = vld [vmem:[#allocation11 + $0x1d0] sm:$0xff]
    %v6505 = vld [vmem:[#allocation11 + $0x1d8] sm:$0xff]
    %v6506 = vld [vmem:[#allocation11 + $0x1e0] sm:$0xff]
    %v6507 = vld [vmem:[#allocation11 + $0x1e8] sm:$0xff]
    %v6508 = vld [vmem:[#allocation11 + $0x1f0] sm:$0xff]
    %v6509 = vld [vmem:[#allocation11 + $0x1f8] sm:$0xff]
    %v6510 = vld [vmem:[#allocation13] sm:$0x3]
    %v6512 = vlaneseq
    %v6513 = vshrl.u32 %v6512, 7
    %v6514 = vsub.s32 0, %v6513
    %v6515 = vrot.slane %v6510, %v6514
    %v6516 = vlaneseq
    %v6517 = vshrl.u32 %v6516, 7
    %v6518 = vsub.s32 1, %v6517
    %v6519 = vrot.slane %v6510, %v6518
    %v6586 = vunpack.c.l.b16 %v6446
    %v6587 = vunpack.c.h.b16 %v6446
    %v6588 = vunpack.c.l.b16 %v6447
    %v6589 = vunpack.c.h.b16 %v6447
    %v6590 = vunpack.c.l.b16 %v6448
    %v6591 = vunpack.c.h.b16 %v6448
    %v6592 = vunpack.c.l.b16 %v6449
    %v6593 = vunpack.c.h.b16 %v6449
    %v6594 = vunpack.c.l.b16 %v6450
    %v6595 = vunpack.c.h.b16 %v6450
    %v6596 = vunpack.c.l.b16 %v6451
    %v6597 = vunpack.c.h.b16 %v6451
    %v6598 = vunpack.c.l.b16 %v6452
    %v6599 = vunpack.c.h.b16 %v6452
    %v6600 = vunpack.c.l.b16 %v6453
    %v6601 = vunpack.c.h.b16 %v6453
    %v6602 = vunpack.c.l.b16 %v6454
    %v6603 = vunpack.c.h.b16 %v6454
    %v6604 = vunpack.c.l.b16 %v6455
    %v6605 = vunpack.c.h.b16 %v6455
    %v6606 = vunpack.c.l.b16 %v6456
    %v6607 = vunpack.c.h.b16 %v6456
    %v6608 = vunpack.c.l.b16 %v6457
    %v6609 = vunpack.c.h.b16 %v6457
    %v6610 = vunpack.c.l.b16 %v6458
    %v6611 = vunpack.c.h.b16 %v6458
    %v6612 = vunpack.c.l.b16 %v6459
    %v6613 = vunpack.c.h.b16 %v6459
    %v6614 = vunpack.c.l.b16 %v6460
    %v6615 = vunpack.c.h.b16 %v6460
    %v6616 = vunpack.c.l.b16 %v6461
    %v6617 = vunpack.c.h.b16 %v6461
    %v6618 = vunpack.c.l.b16 %v6462
    %v6619 = vunpack.c.h.b16 %v6462
    %v6620 = vunpack.c.l.b16 %v6463
    %v6621 = vunpack.c.h.b16 %v6463
    %v6622 = vunpack.c.l.b16 %v6464
    %v6623 = vunpack.c.h.b16 %v6464
    %v6624 = vunpack.c.l.b16 %v6465
    %v6625 = vunpack.c.h.b16 %v6465
    %v6626 = vunpack.c.l.b16 %v6466
    %v6627 = vunpack.c.h.b16 %v6466
    %v6628 = vunpack.c.l.b16 %v6467
    %v6629 = vunpack.c.h.b16 %v6467
    %v6630 = vunpack.c.l.b16 %v6468
    %v6631 = vunpack.c.h.b16 %v6468
    %v6632 = vunpack.c.l.b16 %v6469
    %v6633 = vunpack.c.h.b16 %v6469
    %v6634 = vunpack.c.l.b16 %v6470
    %v6635 = vunpack.c.h.b16 %v6470
    %v6636 = vunpack.c.l.b16 %v6471
    %v6637 = vunpack.c.h.b16 %v6471
    %v6638 = vunpack.c.l.b16 %v6472
    %v6639 = vunpack.c.h.b16 %v6472
    %v6640 = vunpack.c.l.b16 %v6473
    %v6641 = vunpack.c.h.b16 %v6473
    %v6642 = vunpack.c.l.b16 %v6474
    %v6643 = vunpack.c.h.b16 %v6474
    %v6644 = vunpack.c.l.b16 %v6475
    %v6645 = vunpack.c.h.b16 %v6475
    %v6646 = vunpack.c.l.b16 %v6476
    %v6647 = vunpack.c.h.b16 %v6476
    %v6648 = vunpack.c.l.b16 %v6477
    %v6649 = vunpack.c.h.b16 %v6477
    %v6650 = vunpack.c.l.b16 %v6478
    %v6651 = vunpack.c.h.b16 %v6478
    %v6652 = vunpack.c.l.b16 %v6479
    %v6653 = vunpack.c.h.b16 %v6479
    %v6654 = vunpack.c.l.b16 %v6480
    %v6655 = vunpack.c.h.b16 %v6480
    %v6656 = vunpack.c.l.b16 %v6481
    %v6657 = vunpack.c.h.b16 %v6481
    %v6658 = vunpack.c.l.b16 %v6482
    %v6659 = vunpack.c.h.b16 %v6482
    %v6660 = vunpack.c.l.b16 %v6483
    %v6661 = vunpack.c.h.b16 %v6483
    %v6662 = vunpack.c.l.b16 %v6484
    %v6663 = vunpack.c.h.b16 %v6484
    %v6664 = vunpack.c.l.b16 %v6485
    %v6665 = vunpack.c.h.b16 %v6485
    %v6666 = vunpack.c.l.b16 %v6486
    %v6667 = vunpack.c.h.b16 %v6486
    %v6668 = vunpack.c.l.b16 %v6487
    %v6669 = vunpack.c.h.b16 %v6487
    %v6670 = vunpack.c.l.b16 %v6488
    %v6671 = vunpack.c.h.b16 %v6488
    %v6672 = vunpack.c.l.b16 %v6489
    %v6673 = vunpack.c.h.b16 %v6489
    %v6674 = vunpack.c.l.b16 %v6490
    %v6675 = vunpack.c.h.b16 %v6490
    %v6676 = vunpack.c.l.b16 %v6491
    %v6677 = vunpack.c.h.b16 %v6491
    %v6678 = vunpack.c.l.b16 %v6492
    %v6679 = vunpack.c.h.b16 %v6492
    %v6680 = vunpack.c.l.b16 %v6493
    %v6681 = vunpack.c.h.b16 %v6493
    %v6682 = vunpack.c.l.b16 %v6494
    %v6683 = vunpack.c.h.b16 %v6494
    %v6684 = vunpack.c.l.b16 %v6495
    %v6685 = vunpack.c.h.b16 %v6495
    %v6686 = vunpack.c.l.b16 %v6496
    %v6687 = vunpack.c.h.b16 %v6496
    %v6688 = vunpack.c.l.b16 %v6497
    %v6689 = vunpack.c.h.b16 %v6497
    %v6690 = vunpack.c.l.b16 %v6498
    %v6691 = vunpack.c.h.b16 %v6498
    %v6692 = vunpack.c.l.b16 %v6499
    %v6693 = vunpack.c.h.b16 %v6499
    %v6694 = vunpack.c.l.b16 %v6500
    %v6695 = vunpack.c.h.b16 %v6500
    %v6696 = vunpack.c.l.b16 %v6501
    %v6697 = vunpack.c.h.b16 %v6501
    %v6698 = vunpack.c.l.b16 %v6502
    %v6699 = vunpack.c.h.b16 %v6502
    %v6700 = vunpack.c.l.b16 %v6503
    %v6701 = vunpack.c.h.b16 %v6503
    %v6702 = vunpack.c.l.b16 %v6504
    %v6703 = vunpack.c.h.b16 %v6504
    %v6704 = vunpack.c.l.b16 %v6505
    %v6705 = vunpack.c.h.b16 %v6505
    %v6706 = vunpack.c.l.b16 %v6506
    %v6707 = vunpack.c.h.b16 %v6506
    %v6708 = vunpack.c.l.b16 %v6507
    %v6709 = vunpack.c.h.b16 %v6507
    %v6710 = vunpack.c.l.b16 %v6508
    %v6711 = vunpack.c.h.b16 %v6508
    %v6712 = vunpack.c.l.b16 %v6509
    %v6713 = vunpack.c.h.b16 %v6509
    %v6714 = vpack.c.b16 %v6588, %v6586
    %v6715 = vpack.c.b16 %v6589, %v6587
    %v6716 = vpack.c.b16 %v6592, %v6590
    %v6717 = vpack.c.b16 %v6593, %v6591
    %v6718 = vpack.c.b16 %v6596, %v6594
    %v6719 = vpack.c.b16 %v6597, %v6595
    %v6720 = vpack.c.b16 %v6600, %v6598
    %v6721 = vpack.c.b16 %v6601, %v6599
    %v6722 = vpack.c.b16 %v6604, %v6602
    %v6723 = vpack.c.b16 %v6605, %v6603
    %v6724 = vpack.c.b16 %v6608, %v6606
    %v6725 = vpack.c.b16 %v6609, %v6607
    %v6726 = vpack.c.b16 %v6612, %v6610
    %v6727 = vpack.c.b16 %v6613, %v6611
    %v6728 = vpack.c.b16 %v6616, %v6614
    %v6729 = vpack.c.b16 %v6617, %v6615
    %v6730 = vpack.c.b16 %v6620, %v6618
    %v6731 = vpack.c.b16 %v6621, %v6619
    %v6732 = vpack.c.b16 %v6624, %v6622
    %v6733 = vpack.c.b16 %v6625, %v6623
    %v6734 = vpack.c.b16 %v6628, %v6626
    %v6735 = vpack.c.b16 %v6629, %v6627
    %v6736 = vpack.c.b16 %v6632, %v6630
    %v6737 = vpack.c.b16 %v6633, %v6631
    %v6738 = vpack.c.b16 %v6636, %v6634
    %v6739 = vpack.c.b16 %v6637, %v6635
    %v6740 = vpack.c.b16 %v6640, %v6638
    %v6741 = vpack.c.b16 %v6641, %v6639
    %v6742 = vpack.c.b16 %v6644, %v6642
    %v6743 = vpack.c.b16 %v6645, %v6643
    %v6744 = vpack.c.b16 %v6648, %v6646
    %v6745 = vpack.c.b16 %v6649, %v6647
    %v6746 = vpack.c.b16 %v6652, %v6650
    %v6747 = vpack.c.b16 %v6653, %v6651
    %v6748 = vpack.c.b16 %v6656, %v6654
    %v6749 = vpack.c.b16 %v6657, %v6655
    %v6750 = vpack.c.b16 %v6660, %v6658
    %v6751 = vpack.c.b16 %v6661, %v6659
    %v6752 = vpack.c.b16 %v6664, %v6662
    %v6753 = vpack.c.b16 %v6665, %v6663
    %v6754 = vpack.c.b16 %v6668, %v6666
    %v6755 = vpack.c.b16 %v6669, %v6667
    %v6756 = vpack.c.b16 %v6672, %v6670
    %v6757 = vpack.c.b16 %v6673, %v6671
    %v6758 = vpack.c.b16 %v6676, %v6674
    %v6759 = vpack.c.b16 %v6677, %v6675
    %v6760 = vpack.c.b16 %v6680, %v6678
    %v6761 = vpack.c.b16 %v6681, %v6679
    %v6762 = vpack.c.b16 %v6684, %v6682
    %v6763 = vpack.c.b16 %v6685, %v6683
    %v6764 = vpack.c.b16 %v6688, %v6686
    %v6765 = vpack.c.b16 %v6689, %v6687
    %v6766 = vpack.c.b16 %v6692, %v6690
    %v6767 = vpack.c.b16 %v6693, %v6691
    %v6768 = vpack.c.b16 %v6696, %v6694
    %v6769 = vpack.c.b16 %v6697, %v6695
    %v6770 = vpack.c.b16 %v6700, %v6698
    %v6771 = vpack.c.b16 %v6701, %v6699
    %v6772 = vpack.c.b16 %v6704, %v6702
    %v6773 = vpack.c.b16 %v6705, %v6703
    %v6774 = vpack.c.b16 %v6708, %v6706
    %v6775 = vpack.c.b16 %v6709, %v6707
    %v6776 = vpack.c.b16 %v6712, %v6710
    %v6777 = vpack.c.b16 %v6713, %v6711
    %6842 = vmatprep.subr.bf16.mxu0 %v6715
    %6843 = vmatpush1.bf16.msra.mxu0 %v6714
    %6844 = vmatprep.subr.bf16.mxu0 %v6717
    %6845 = vmatpush1.bf16.msra.mxu0 %v6716
    %6846 = vmatprep.subr.bf16.mxu0 %v6719
    %6847 = vmatpush1.bf16.msra.mxu0 %v6718
    %6848 = vmatprep.subr.bf16.mxu0 %v6721
    %6849 = vmatpush1.bf16.msra.mxu0 %v6720
    %6850 = vmatprep.subr.bf16.mxu0 %v6723
    %6851 = vmatpush1.bf16.msra.mxu0 %v6722
    %6852 = vmatprep.subr.bf16.mxu0 %v6725
    %6853 = vmatpush1.bf16.msra.mxu0 %v6724
    %6854 = vmatprep.subr.bf16.mxu0 %v6727
    %6855 = vmatpush1.bf16.msra.mxu0 %v6726
    %6856 = vmatprep.subr.bf16.mxu0 %v6729
    %6857 = vmatpush1.bf16.msra.mxu0 %v6728
    %6858 = vmatprep.subr.bf16.mxu0 %v6731
    %6859 = vmatpush1.bf16.msra.mxu0 %v6730
    %6860 = vmatprep.subr.bf16.mxu0 %v6733
    %6861 = vmatpush1.bf16.msra.mxu0 %v6732
    %6862 = vmatprep.subr.bf16.mxu0 %v6735
    %6863 = vmatpush1.bf16.msra.mxu0 %v6734
    %6864 = vmatprep.subr.bf16.mxu0 %v6737
    %6865 = vmatpush1.bf16.msra.mxu0 %v6736
    %6866 = vmatprep.subr.bf16.mxu0 %v6739
    %6867 = vmatpush1.bf16.msra.mxu0 %v6738
    %6868 = vmatprep.subr.bf16.mxu0 %v6741
    %6869 = vmatpush1.bf16.msra.mxu0 %v6740
    %6870 = vmatprep.subr.bf16.mxu0 %v6743
    %6871 = vmatpush1.bf16.msra.mxu0 %v6742
    %6872 = vmatprep.subr.bf16.mxu0 %v6745
    %6873 = vmatpush1.bf16.msra.mxu0 %v6744
    %6874 = vmatprep.mubr.bf16.mxu0 %v6443
    %6875 = vmatmul.mubr.bf16.gmra.mrb[0].mxu0 %v6442
    %v6876 = vpop.f32.mrb[0].mxu0
    %v6877 = vadd.f32 %v6515, %v6876
    %v6878 = vpop.f32.mrb[0].mxu0
    %v6879 = vadd.f32 %v6519, %v6878
    %v6880 = vpop.f32.mrb[0].mxu0
    %v6881 = vpop.f32.mrb[0].mxu0
    %6882 = vdwg.mxu0
    %6883 = vmatprep.subr.bf16.mxu0 %v6747
    %6884 = vmatpush1.bf16.msra.mxu0 %v6746
    %6885 = vmatprep.subr.bf16.mxu0 %v6749
    %6886 = vmatpush1.bf16.msra.mxu0 %v6748
    %6887 = vmatprep.subr.bf16.mxu0 %v6751
    %6888 = vmatpush1.bf16.msra.mxu0 %v6750
    %6889 = vmatprep.subr.bf16.mxu0 %v6753
    %6890 = vmatpush1.bf16.msra.mxu0 %v6752
    %6891 = vmatprep.subr.bf16.mxu0 %v6755
    %6892 = vmatpush1.bf16.msra.mxu0 %v6754
    %6893 = vmatprep.subr.bf16.mxu0 %v6757
    %6894 = vmatpush1.bf16.msra.mxu0 %v6756
    %6895 = vmatprep.subr.bf16.mxu0 %v6759
    %6896 = vmatpush1.bf16.msra.mxu0 %v6758
    %6897 = vmatprep.subr.bf16.mxu0 %v6761
    %6898 = vmatpush1.bf16.msra.mxu0 %v6760
    %6899 = vmatprep.subr.bf16.mxu0 %v6763
    %6900 = vmatpush1.bf16.msra.mxu0 %v6762
    %6901 = vmatprep.subr.bf16.mxu0 %v6765
    %6902 = vmatpush1.bf16.msra.mxu0 %v6764
    %6903 = vmatprep.subr.bf16.mxu0 %v6767
    %6904 = vmatpush1.bf16.msra.mxu0 %v6766
    %6905 = vmatprep.subr.bf16.mxu0 %v6769
    %6906 = vmatpush1.bf16.msra.mxu0 %v6768
    %6907 = vmatprep.subr.bf16.mxu0 %v6771
    %6908 = vmatpush1.bf16.msra.mxu0 %v6770
    %6909 = vmatprep.subr.bf16.mxu0 %v6773
    %6910 = vmatpush1.bf16.msra.mxu0 %v6772
    %6911 = vmatprep.subr.bf16.mxu0 %v6775
    %6912 = vmatpush1.bf16.msra.mxu0 %v6774
    %6913 = vmatprep.subr.bf16.mxu0 %v6777
    %6914 = vmatpush1.bf16.msra.mxu0 %v6776
    %6915 = vmatprep.mubr.bf16.mxu0 %v6445
    %6916 = vmatmul.mubr.bf16.gmra.mrb[0].mxu0 %v6444
    %v6917 = vpop.f32.mrb[0].mxu0
    %v6918 = vadd.f32 %v6877, %v6917
    %v6919 = vpop.f32.mrb[0].mxu0
    %v6920 = vadd.f32 %v6879, %v6919
    %v6921 = vpop.f32.mrb[0].mxu0
    %v6922 = vpop.f32.mrb[0].mxu0
    %6923 = vdwg.mxu0
    %v6924 = vmax.f32 %v6918, 0.0
    %v6925 = vmax.f32 %v6920, 0.0
    %v6926 = vpack.c.bf16 %v6924, %v6924
    %v6927 = vpack.c.bf16 %v6925, %v6925
    %v6928 = vld [vmem:[#allocation14] sm:$0xf]
    %v6929 = vld [vmem:[#allocation14 + $0x4] sm:$0xf]
    %v6930 = vld [vmem:[#allocation14 + $0x8] sm:$0xf]
    %v6931 = vld [vmem:[#allocation14 + $0xc] sm:$0xf]
    %v6932 = vld [vmem:[#allocation14 + $0x10] sm:$0xf]
    %v6933 = vld [vmem:[#allocation14 + $0x14] sm:$0xf]
    %v6934 = vld [vmem:[#allocation14 + $0x18] sm:$0xf]
    %v6935 = vld [vmem:[#allocation14 + $0x1c] sm:$0xf]
    %v6936 = vld [vmem:[#allocation14 + $0x20] sm:$0xf]
    %v6937 = vld [vmem:[#allocation14 + $0x24] sm:$0xf]
    %v6938 = vld [vmem:[#allocation14 + $0x28] sm:$0xf]
    %v6939 = vld [vmem:[#allocation14 + $0x2c] sm:$0xf]
    %v6940 = vld [vmem:[#allocation14 + $0x30] sm:$0xf]
    %v6941 = vld [vmem:[#allocation14 + $0x34] sm:$0xf]
    %v6942 = vld [vmem:[#allocation14 + $0x38] sm:$0xf]
    %v6943 = vld [vmem:[#allocation14 + $0x3c] sm:$0xf]
    %v6944 = vld [vmem:[#allocation14 + $0x40] sm:$0xf]
    %v6945 = vld [vmem:[#allocation14 + $0x44] sm:$0xf]
    %v6946 = vld [vmem:[#allocation14 + $0x48] sm:$0xf]
    %v6947 = vld [vmem:[#allocation14 + $0x4c] sm:$0xf]
    %v6948 = vld [vmem:[#allocation14 + $0x50] sm:$0xf]
    %v6949 = vld [vmem:[#allocation14 + $0x54] sm:$0xf]
    %v6950 = vld [vmem:[#allocation14 + $0x58] sm:$0xf]
    %v6951 = vld [vmem:[#allocation14 + $0x5c] sm:$0xf]
    %v6952 = vld [vmem:[#allocation14 + $0x60] sm:$0xf]
    %v6953 = vld [vmem:[#allocation14 + $0x64] sm:$0xf]
    %v6954 = vld [vmem:[#allocation14 + $0x68] sm:$0xf]
    %v6955 = vld [vmem:[#allocation14 + $0x6c] sm:$0xf]
    %v6956 = vld [vmem:[#allocation14 + $0x70] sm:$0xf]
    %v6957 = vld [vmem:[#allocation14 + $0x74] sm:$0xf]
    %v6958 = vld [vmem:[#allocation14 + $0x78] sm:$0xf]
    %v6959 = vld [vmem:[#allocation14 + $0x7c] sm:$0xf]
    %v6960 = vld [vmem:[#allocation16] sm:$0x1]
    %v6962 = vlaneseq
    %v6963 = vshrl.u32 %v6962, 7
    %v6964 = vsub.s32 0, %v6963
    %v6965 = vrot.slane %v6960, %v6964
    %v6999 = vunpack.c.l.b16 %v6928
    %v7000 = vunpack.c.l.b16 %v6929
    %v7001 = vunpack.c.l.b16 %v6930
    %v7002 = vunpack.c.l.b16 %v6931
    %v7003 = vunpack.c.l.b16 %v6932
    %v7004 = vunpack.c.l.b16 %v6933
    %v7005 = vunpack.c.l.b16 %v6934
    %v7006 = vunpack.c.l.b16 %v6935
    %v7007 = vunpack.c.l.b16 %v6936
    %v7008 = vunpack.c.l.b16 %v6937
    %v7009 = vunpack.c.l.b16 %v6938
    %v7010 = vunpack.c.l.b16 %v6939
    %v7011 = vunpack.c.l.b16 %v6940
    %v7012 = vunpack.c.l.b16 %v6941
    %v7013 = vunpack.c.l.b16 %v6942
    %v7014 = vunpack.c.l.b16 %v6943
    %v7015 = vunpack.c.l.b16 %v6944
    %v7016 = vunpack.c.l.b16 %v6945
    %v7017 = vunpack.c.l.b16 %v6946
    %v7018 = vunpack.c.l.b16 %v6947
    %v7019 = vunpack.c.l.b16 %v6948
    %v7020 = vunpack.c.l.b16 %v6949
    %v7021 = vunpack.c.l.b16 %v6950
    %v7022 = vunpack.c.l.b16 %v6951
    %v7023 = vunpack.c.l.b16 %v6952
    %v7024 = vunpack.c.l.b16 %v6953
    %v7025 = vunpack.c.l.b16 %v6954
    %v7026 = vunpack.c.l.b16 %v6955
    %v7027 = vunpack.c.l.b16 %v6956
    %v7028 = vunpack.c.l.b16 %v6957
    %v7029 = vunpack.c.l.b16 %v6958
    %v7030 = vunpack.c.l.b16 %v6959
    %v7031 = vpack.c.b16 %v7000, %v6999
    %v7032 = vpack.c.b16 %v7002, %v7001
    %v7033 = vpack.c.b16 %v7004, %v7003
    %v7034 = vpack.c.b16 %v7006, %v7005
    %v7035 = vpack.c.b16 %v7008, %v7007
    %v7036 = vpack.c.b16 %v7010, %v7009
    %v7037 = vpack.c.b16 %v7012, %v7011
    %v7038 = vpack.c.b16 %v7014, %v7013
    %v7039 = vpack.c.b16 %v7016, %v7015
    %v7040 = vpack.c.b16 %v7018, %v7017
    %v7041 = vpack.c.b16 %v7020, %v7019
    %v7042 = vpack.c.b16 %v7022, %v7021
    %v7043 = vpack.c.b16 %v7024, %v7023
    %v7044 = vpack.c.b16 %v7026, %v7025
    %v7045 = vpack.c.b16 %v7028, %v7027
    %v7046 = vpack.c.b16 %v7030, %v7029
    %7063 = vmatprep.subr.bf16.mxu0 0
    %7064 = vmatpush1.bf16.msra.mxu0 %v7031
    %7065 = vmatprep.subr.bf16.mxu0 0
    %7066 = vmatpush1.bf16.msra.mxu0 %v7032
    %7067 = vmatprep.subr.bf16.mxu0 0
    %7068 = vmatpush1.bf16.msra.mxu0 %v7033
    %7069 = vmatprep.subr.bf16.mxu0 0
    %7070 = vmatpush1.bf16.msra.mxu0 %v7034
    %7071 = vmatprep.subr.bf16.mxu0 0
    %7072 = vmatpush1.bf16.msra.mxu0 %v7035
    %7073 = vmatprep.subr.bf16.mxu0 0
    %7074 = vmatpush1.bf16.msra.mxu0 %v7036
    %7075 = vmatprep.subr.bf16.mxu0 0
    %7076 = vmatpush1.bf16.msra.mxu0 %v7037
    %7077 = vmatprep.subr.bf16.mxu0 0
    %7078 = vmatpush1.bf16.msra.mxu0 %v7038
    %7079 = vmatprep.subr.bf16.mxu0 0
    %7080 = vmatpush1.bf16.msra.mxu0 %v7039
    %7081 = vmatprep.subr.bf16.mxu0 0
    %7082 = vmatpush1.bf16.msra.mxu0 %v7040
    %7083 = vmatprep.subr.bf16.mxu0 0
    %7084 = vmatpush1.bf16.msra.mxu0 %v7041
    %7085 = vmatprep.subr.bf16.mxu0 0
    %7086 = vmatpush1.bf16.msra.mxu0 %v7042
    %7087 = vmatprep.subr.bf16.mxu0 0
    %7088 = vmatpush1.bf16.msra.mxu0 %v7043
    %7089 = vmatprep.subr.bf16.mxu0 0
    %7090 = vmatpush1.bf16.msra.mxu0 %v7044
    %7091 = vmatprep.subr.bf16.mxu0 0
    %7092 = vmatpush1.bf16.msra.mxu0 %v7045
    %7093 = vmatprep.subr.bf16.mxu0 0
    %7094 = vmatpush1.bf16.msra.mxu0 %v7046
    %7095 = vmatprep.mubr.bf16.mxu0 %v6927
    %7096 = vmatmul.mubr.bf16.gmra.mrb[0].mxu0 %v6926
    %v7097 = vpop.f32.mrb[0].mxu0
    %v7098 = vadd.f32 %v6965, %v7097
    %v7099 = vpop.f32.mrb[0].mxu0
    %v7100 = vpop.f32.mrb[0].mxu0
    %v7101 = vpop.f32.mrb[0].mxu0
    %7102 = vdwg.mxu0
    %v7103 = vmax.f32 %v7098, 0.0
    %v7104 = vpack.c.bf16 %v7103, %v7103
    %v7105 = vld [vmem:[%s11] sm:$0xf]
    %v7106 = vld [vmem:[%s11 + $0x4] sm:$0xf]
    %v7107 = vld [vmem:[%s11 + $0x8] sm:$0xf]
    %v7108 = vld [vmem:[%s11 + $0xc] sm:$0xf]
    %v7109 = vld [vmem:[%s11 + $0x10] sm:$0xf]
    %v7110 = vld [vmem:[%s11 + $0x14] sm:$0xf]
    %v7111 = vld [vmem:[%s11 + $0x18] sm:$0xf]
    %v7112 = vld [vmem:[%s11 + $0x1c] sm:$0xf]
    %v7113 = vld [vmem:[%s11 + $0x20] sm:$0xf]
    %v7114 = vld [vmem:[%s11 + $0x24] sm:$0xf]
    %v7115 = vld [vmem:[%s11 + $0x28] sm:$0xf]
    %v7116 = vld [vmem:[%s11 + $0x2c] sm:$0xf]
    %v7117 = vld [vmem:[%s11 + $0x30] sm:$0xf]
    %v7118 = vld [vmem:[%s11 + $0x34] sm:$0xf]
    %v7119 = vld [vmem:[%s11 + $0x38] sm:$0xf]
    %v7120 = vld [vmem:[%s11 + $0x3c] sm:$0xf]
    %v7121 = vld [vmem:[%s12] sm:$0x1]
    %v7123 = vlaneseq
    %v7124 = vshrl.u32 %v7123, 7
    %v7125 = vsub.s32 0, %v7124
    %v7126 = vrot.slane %v7121, %v7125
    %v7144 = vunpack.c.l.b16 %v7105
    %v7145 = vunpack.c.l.b16 %v7106
    %v7146 = vunpack.c.l.b16 %v7107
    %v7147 = vunpack.c.l.b16 %v7108
    %v7148 = vunpack.c.l.b16 %v7109
    %v7149 = vunpack.c.l.b16 %v7110
    %v7150 = vunpack.c.l.b16 %v7111
    %v7151 = vunpack.c.l.b16 %v7112
    %v7152 = vunpack.c.l.b16 %v7113
    %v7153 = vunpack.c.l.b16 %v7114
    %v7154 = vunpack.c.l.b16 %v7115
    %v7155 = vunpack.c.l.b16 %v7116
    %v7156 = vunpack.c.l.b16 %v7117
    %v7157 = vunpack.c.l.b16 %v7118
    %v7158 = vunpack.c.l.b16 %v7119
    %v7159 = vunpack.c.l.b16 %v7120
    %v7160 = vpack.c.b16 %v7145, %v7144
    %v7161 = vpack.c.b16 %v7147, %v7146
    %v7162 = vpack.c.b16 %v7149, %v7148
    %v7163 = vpack.c.b16 %v7151, %v7150
    %v7164 = vpack.c.b16 %v7153, %v7152
    %v7165 = vpack.c.b16 %v7155, %v7154
    %v7166 = vpack.c.b16 %v7157, %v7156
    %v7167 = vpack.c.b16 %v7159, %v7158
    %7176 = vmatprep.subr.bf16.mxu0 0
    %7177 = vmatpush1.bf16.msra.mxu0 %v7160
    %7178 = vmatprep.subr.bf16.mxu0 0
    %7179 = vmatpush1.bf16.msra.mxu0 %v7161
    %7180 = vmatprep.subr.bf16.mxu0 0
    %7181 = vmatpush1.bf16.msra.mxu0 %v7162
    %7182 = vmatprep.subr.bf16.mxu0 0
    %7183 = vmatpush1.bf16.msra.mxu0 %v7163
    %7184 = vmatprep.subr.bf16.mxu0 0
    %7185 = vmatpush1.bf16.msra.mxu0 %v7164
    %7186 = vmatprep.subr.bf16.mxu0 0
    %7187 = vmatpush1.bf16.msra.mxu0 %v7165
    %7188 = vmatprep.subr.bf16.mxu0 0
    %7189 = vmatpush1.bf16.msra.mxu0 %v7166
    %7190 = vmatprep.subr.bf16.mxu0 0
    %7191 = vmatpush1.bf16.msra.mxu0 %v7167
    %7192 = vmatprep.subr.bf16.mxu0 0
    %7193 = vmatpush1.bf16.msra.mxu0 0
    %7194 = vmatprep.subr.bf16.mxu0 0
    %7195 = vmatpush1.bf16.msra.mxu0 0
    %7196 = vmatprep.subr.bf16.mxu0 0
    %7197 = vmatpush1.bf16.msra.mxu0 0
    %7198 = vmatprep.subr.bf16.mxu0 0
    %7199 = vmatpush1.bf16.msra.mxu0 0
    %7200 = vmatprep.subr.bf16.mxu0 0
    %7201 = vmatpush1.bf16.msra.mxu0 0
    %7202 = vmatprep.subr.bf16.mxu0 0
    %7203 = vmatpush1.bf16.msra.mxu0 0
    %7204 = vmatprep.subr.bf16.mxu0 0
    %7205 = vmatpush1.bf16.msra.mxu0 0
    %7206 = vmatprep.subr.bf16.mxu0 0
    %7207 = vmatpush1.bf16.msra.mxu0 0
    %7208 = vmatprep.mubr.bf16.mxu0 0
    %7209 = vmatmul.mubr.bf16.gmra.mrb[0].mxu0 %v7104
    %v7210 = vpop.f32.mrb[0].mxu0
    %v7211 = vadd.f32 %v7126, %v7210
    %v7212 = vpop.f32.mrb[0].mxu0
    %v7213 = vpop.f32.mrb[0].mxu0
    %v7214 = vpop.f32.mrb[0].mxu0
    %7215 = vdwg.mxu0
    %v7216 = vmax.f32 %v7211, 0.0
    %7217 = vst [vmem:[#allocation17] sm:$0xff] %v7216
    // Predicated region
    $region90: #{_mlps_forward.1} parent=1 // pred_check
      _
    $region91: #{_mlps_forward.1} parent=1 // pred_check_branch
      %7219 = sbr.rel (0) target = $region93
    $region92: #{_mlps_forward.1} parent=1 // pred_region
      %s7221 = ssub.s32 128, 128
      %7222 = vsyncadd [#allocation4], %s7221
      %s7224 = sshll.u32 [#allocation17], 4
      %s7225 = int_to_ptr.vmem [resolvable:$true] %s7224
      %7227 = dma.vmem_to_hbm [thread:$0]  %s7225, 128, %s13, [#allocation4]
    $region93: #{_mlps_forward.1} parent=1 // pred_fallthru
      _
    // Predicated region
    $region94: #{_mlps_forward.1} parent=1 // pred_check
      _
    $region95: #{_mlps_forward.1} parent=1 // pred_check_branch
      %7229 = sbr.rel (0) target = $region97
    $region96: #{_mlps_forward.1} parent=1 // pred_region
      %7230 = dma.done [#allocation4], 128
    $region97: #{_mlps_forward.1} parent=1 // pred_fallthru
      _
    %7231 = vsyncpa [#allocation3], 1
    %7232 = vsyncpa [#allocation6], 1
    %7233 = vsyncpa [#allocation9], 1
    %7234 = vsyncpa [#allocation12], 1
    %7235 = vsyncpa [#allocation15], 1
    %7236 = vsyncpa [#allocation4], 1

// kernel: _mlps_forward.1
$region0: #{_mlps_forward.1}
  #allocation0 [shape = 'u32[]', space=smem, size = 0x4, offset = 0x4, fixed_abs, tag = 'smem constant byte address 0x4 - core index']
  #allocation1 [shape = 'u32[144,128]{1,0:T(1,128)}', space=vmem, size = 0x12000, scoped, tag = 'internal scratch']
  %s0 = inlined_call_operand.vmem [shape: f32[8,128], index: 0, kind: input, shape index: {}]
  %s1 = inlined_call_operand.vmem [shape: bf16[128,1024], index: 1, kind: input, shape index: {}]
  %s2 = inlined_call_operand.hbm [shape: f32[1,1024], index: 2, kind: input, shape index: {}]
  %s3 = inlined_call_operand.hbm [shape: bf16[1024,1024], index: 3, kind: input, shape index: {}]
  %s4 = inlined_call_operand.hbm [shape: f32[1,1024], index: 4, kind: input, shape index: {}]
  %s5 = inlined_call_operand.hbm [shape: bf16[1024,512], index: 5, kind: input, shape index: {}]
  %s6 = inlined_call_operand.hbm [shape: f32[1,512], index: 6, kind: input, shape index: {}]
  %s7 = inlined_call_operand.hbm [shape: bf16[512,256], index: 7, kind: input, shape index: {}]
  %s8 = inlined_call_operand.hbm [shape: f32[1,256], index: 8, kind: input, shape index: {}]
  %s9 = inlined_call_operand.hbm [shape: bf16[256,128], index: 9, kind: input, shape index: {}]
  %s10 = inlined_call_operand.hbm [shape: f32[1,128], index: 10, kind: input, shape index: {}]
  %s11 = inlined_call_operand.vmem [shape: bf16[128,128], index: 11, kind: input, shape index: {}]
  %s12 = inlined_call_operand.vmem [shape: f32[1,128], index: 12, kind: input, shape index: {}]
  %s13 = inlined_call_operand.hbm [shape: f32[8,128], index: 13, kind: output, shape index: {}]
  %s14 = sld [smem:[#allocation0]]
  $region98: #{_mlps_forward.1} parent=0
    _
  %s16 = ssub.s32 1, %s14
  %s17 = scalar_select 0, %s16, %s14
  $region1: #{_mlps_forward.1} parent=0
    #allocation2 [shape = 'u8[4096]{0}', space=vmem, size = 0x1000, scoped, tag = 'input window, operand 2, single buffered']
    #allocation3 [shape = 's32[1]{0}', space=sflag, size = 0x4, scoped, tag = 'scoped memory for _mlps_forward.1']
    #allocation4 [shape = 's32[1]{0}', space=sflag, size = 0x4, scoped, tag = 'scoped memory for _mlps_forward.1']
    #allocation5 [shape = 'u8[2097152]{0}', space=vmem, size = 0x200000, scoped, tag = 'input window, operand 3, single buffered']
    #allocation6 [shape = 's32[1]{0}', space=sflag, size = 0x4, scoped, tag = 'scoped memory for _mlps_forward.1']
    #allocation7 [shape = 'u8[4096]{0}', space=vmem, size = 0x1000, scoped, tag = 'input window, operand 4, single buffered']
    #allocation8 [shape = 'u8[1048576]{0}', space=vmem, size = 0x100000, scoped, tag = 'input window, operand 5, single buffered']
    #allocation9 [shape = 's32[1]{0}', space=sflag, size = 0x4, scoped, tag = 'scoped memory for _mlps_forward.1']
    #allocation10 [shape = 'u8[2048]{0}', space=vmem, size = 0x800, scoped, tag = 'input window, operand 6, single buffered']
    #allocation11 [shape = 'u8[262144]{0}', space=vmem, size = 0x40000, scoped, tag = 'input window, operand 7, single buffered']
    #allocation12 [shape = 's32[1]{0}', space=sflag, size = 0x4, scoped, tag = 'scoped memory for _mlps_forward.1']
    #allocation13 [shape = 'u8[1024]{0}', space=vmem, size = 0x400, scoped, tag = 'input window, operand 8, single buffered']
    #allocation14 [shape = 'u8[65536]{0}', space=vmem, size = 0x10000, scoped, tag = 'input window, operand 9, single buffered']
    #allocation15 [shape = 's32[1]{0}', space=sflag, size = 0x4, scoped, tag = 'scoped memory for _mlps_forward.1']
    #allocation16 [shape = 'u8[512]{0}', space=vmem, size = 0x400, scoped, tag = 'input window, operand 10, single buffered']
    #allocation17 [shape = 'u8[4096]{0}', space=vmem, size = 0x1000, scoped, tag = 'output window, operand 0, single buffered']
    %18 = vsyncpa [#allocation3], 0
    %19 = vsyncpa [#allocation6], 0
    %20 = vsyncpa [#allocation9], 0
    %21 = vsyncpa [#allocation12], 0
    %22 = vsyncpa [#allocation15], 0
    %23 = vsyncpa [#allocation4], 0
    // Predicated region
    $region2: #{_mlps_forward.1} parent=1 // pred_check
      _
    $region3: #{_mlps_forward.1} parent=1 // pred_check_branch
      %25 = sbr.rel (0) target = $region5
    $region4: #{_mlps_forward.1} parent=1 // pred_region
      _
    $region5: #{_mlps_forward.1} parent=1 // pred_fallthru
      _
    // Predicated region
    $region6: #{_mlps_forward.1} parent=1 // pred_check
      _
    $region7: #{_mlps_forward.1} parent=1 // pred_check_branch
      %27 = sbr.rel (0) target = $region9
    $region8: #{_mlps_forward.1} parent=1 // pred_region
      _
    $region9: #{_mlps_forward.1} parent=1 // pred_fallthru
      _
    // Predicated region
    $region10: #{_mlps_forward.1} parent=1 // pred_check
      _
    $region11: #{_mlps_forward.1} parent=1 // pred_check_branch
      %29 = sbr.rel (0) target = $region13
    $region12: #{_mlps_forward.1} parent=1 // pred_region
      %s31 = ssub.s32 128, 128
      %32 = vsyncadd [#allocation3], %s31
      %s34 = sshll.u32 [#allocation2], 4
      %s35 = int_to_ptr.vmem [resolvable:$true] %s34
      %37 = dma.hbm_to_vmem [thread:$0]  %s2, 128, %s35, [#allocation3]
    $region13: #{_mlps_forward.1} parent=1 // pred_fallthru
      _
    // Predicated region
    $region14: #{_mlps_forward.1} parent=1 // pred_check
      _
    $region15: #{_mlps_forward.1} parent=1 // pred_check_branch
      %39 = sbr.rel (0) target = $region17
    $region16: #{_mlps_forward.1} parent=1 // pred_region
      %s41 = ssub.s32 65536, 65536
      %42 = vsyncadd [#allocation6], %s41
      %s43 = sshll.u32 [#allocation5], 4
      %s44 = int_to_ptr.vmem [resolvable:$true] %s43
      %49 = dma.hbm_to_vmem [thread:$0]  %s3, 65536, %s44, [#allocation6], 512, 512, 32
    $region17: #{_mlps_forward.1} parent=1 // pred_fallthru
      _
    // Predicated region
    $region18: #{_mlps_forward.1} parent=1 // pred_check
      _
    $region19: #{_mlps_forward.1} parent=1 // pred_check_branch
      %51 = sbr.rel (0) target = $region21
    $region20: #{_mlps_forward.1} parent=1 // pred_region
      %s53 = ssub.s32 128, 128
      %54 = vsyncadd [#allocation6], %s53
      %s56 = sshll.u32 [#allocation7], 4
      %s57 = int_to_ptr.vmem [resolvable:$true] %s56
      %59 = dma.hbm_to_vmem [thread:$0]  %s4, 128, %s57, [#allocation6]
    $region21: #{_mlps_forward.1} parent=1 // pred_fallthru
      _
    // Predicated region
    $region22: #{_mlps_forward.1} parent=1 // pred_check
      _
    $region23: #{_mlps_forward.1} parent=1 // pred_check_branch
      %61 = sbr.rel (0) target = $region25
    $region24: #{_mlps_forward.1} parent=1 // pred_region
      %s63 = ssub.s32 32768, 32768
      %64 = vsyncadd [#allocation9], %s63
      %s65 = sshll.u32 [#allocation8], 4
      %s66 = int_to_ptr.vmem [resolvable:$true] %s65
      %71 = dma.hbm_to_vmem [thread:$0]  %s5, 32768, %s66, [#allocation9], 256, 256, 16
    $region25: #{_mlps_forward.1} parent=1 // pred_fallthru
      _
    // Predicated region
    $region26: #{_mlps_forward.1} parent=1 // pred_check
      _
    $region27: #{_mlps_forward.1} parent=1 // pred_check_branch
      %73 = sbr.rel (0) target = $region29
    $region28: #{_mlps_forward.1} parent=1 // pred_region
      %s75 = ssub.s32 64, 64
      %76 = vsyncadd [#allocation9], %s75
      %s78 = sshll.u32 [#allocation10], 4
      %s79 = int_to_ptr.vmem [resolvable:$true] %s78
      %81 = dma.hbm_to_vmem [thread:$0]  %s6, 64, %s79, [#allocation9]
    $region29: #{_mlps_forward.1} parent=1 // pred_fallthru
      _
    // Predicated region
    $region30: #{_mlps_forward.1} parent=1 // pred_check
      _
    $region31: #{_mlps_forward.1} parent=1 // pred_check_branch
      %83 = sbr.rel (0) target = $region33
    $region32: #{_mlps_forward.1} parent=1 // pred_region
      %s85 = ssub.s32 8192, 8192
      %86 = vsyncadd [#allocation12], %s85
      %s87 = sshll.u32 [#allocation11], 4
      %s88 = int_to_ptr.vmem [resolvable:$true] %s87
      %93 = dma.hbm_to_vmem [thread:$0]  %s7, 8192, %s88, [#allocation12], 128, 128, 8
    $region33: #{_mlps_forward.1} parent=1 // pred_fallthru
      _
    // Predicated region
    $region34: #{_mlps_forward.1} parent=1 // pred_check
      _
    $region35: #{_mlps_forward.1} parent=1 // pred_check_branch
      %95 = sbr.rel (0) target = $region37
    $region36: #{_mlps_forward.1} parent=1 // pred_region
      %s97 = ssub.s32 32, 32
      %98 = vsyncadd [#allocation12], %s97
      %s100 = sshll.u32 [#allocation13], 4
      %s101 = int_to_ptr.vmem [resolvable:$true] %s100
      %103 = dma.hbm_to_vmem [thread:$0]  %s8, 32, %s101, [#allocation12]
    $region37: #{_mlps_forward.1} parent=1 // pred_fallthru
      _
    // Predicated region
    $region38: #{_mlps_forward.1} parent=1 // pred_check
      _
    $region39: #{_mlps_forward.1} parent=1 // pred_check_branch
      %105 = sbr.rel (0) target = $region41
    $region40: #{_mlps_forward.1} parent=1 // pred_region
      %s107 = ssub.s32 2048, 2048
      %108 = vsyncadd [#allocation15], %s107
      %s109 = sshll.u32 [#allocation14], 4
      %s110 = int_to_ptr.vmem [resolvable:$true] %s109
      %115 = dma.hbm_to_vmem [thread:$0]  %s9, 2048, %s110, [#allocation15], 64, 64, 4
    $region41: #{_mlps_forward.1} parent=1 // pred_fallthru
      _
    // Predicated region
    $region42: #{_mlps_forward.1} parent=1 // pred_check
      _
    $region43: #{_mlps_forward.1} parent=1 // pred_check_branch
      %117 = sbr.rel (0) target = $region45
    $region44: #{_mlps_forward.1} parent=1 // pred_region
      %s119 = ssub.s32 16, 16
      %120 = vsyncadd [#allocation15], %s119
      %s122 = sshll.u32 [#allocation16], 4
      %s123 = int_to_ptr.vmem [resolvable:$true] %s122
      %125 = dma.hbm_to_vmem [thread:$0]  %s10, 16, %s123, [#allocation15]
    $region45: #{_mlps_forward.1} parent=1 // pred_fallthru
      _
    // Predicated region
    $region46: #{_mlps_forward.1} parent=1 // pred_check
      _
    $region47: #{_mlps_forward.1} parent=1 // pred_check_branch
      %127 = sbr.rel (0) target = $region49
    $region48: #{_mlps_forward.1} parent=1 // pred_region
      _
    $region49: #{_mlps_forward.1} parent=1 // pred_fallthru
      _
    // Predicated region
    $region50: #{_mlps_forward.1} parent=1 // pred_check
      _
    $region51: #{_mlps_forward.1} parent=1 // pred_check_branch
      %129 = sbr.rel (0) target = $region53
    $region52: #{_mlps_forward.1} parent=1 // pred_region
      _
    $region53: #{_mlps_forward.1} parent=1 // pred_fallthru
      _
    // Predicated region
    $region54: #{_mlps_forward.1} parent=1 // pred_check
      _
    $region55: #{_mlps_forward.1} parent=1 // pred_check_branch
      %131 = sbr.rel (0) target = $region57
    $region56: #{_mlps_forward.1} parent=1 // pred_region
      %132 = dma.done [#allocation3], 128
    $region57: #{_mlps_forward.1} parent=1 // pred_fallthru
      _
    // Predicated region
    $region58: #{_mlps_forward.1} parent=1 // pred_check
      _
    $region59: #{_mlps_forward.1} parent=1 // pred_check_branch
      %134 = sbr.rel (0) target = $region61
    $region60: #{_mlps_forward.1} parent=1 // pred_region
      %135 = dma.done [#allocation6], 65536
    $region61: #{_mlps_forward.1} parent=1 // pred_fallthru
      _
    // Predicated region
    $region62: #{_mlps_forward.1} parent=1 // pred_check
      _
    $region63: #{_mlps_forward.1} parent=1 // pred_check_branch
      %137 = sbr.rel (0) target = $region65
    $region64: #{_mlps_forward.1} parent=1 // pred_region
      %138 = dma.done [#allocation6], 128
    $region65: #{_mlps_forward.1} parent=1 // pred_fallthru
      _
    // Predicated region
    $region66: #{_mlps_forward.1} parent=1 // pred_check
      _
    $region67: #{_mlps_forward.1} parent=1 // pred_check_branch
      %140 = sbr.rel (0) target = $region69
    $region68: #{_mlps_forward.1} parent=1 // pred_region
      %141 = dma.done [#allocation9], 32768
    $region69: #{_mlps_forward.1} parent=1 // pred_fallthru
      _
    // Predicated region
    $region70: #{_mlps_forward.1} parent=1 // pred_check
      _
    $region71: #{_mlps_forward.1} parent=1 // pred_check_branch
      %143 = sbr.rel (0) target = $region73
    $region72: #{_mlps_forward.1} parent=1 // pred_region
      %144 = dma.done [#allocation9], 64
    $region73: #{_mlps_forward.1} parent=1 // pred_fallthru
      _
    // Predicated region
    $region74: #{_mlps_forward.1} parent=1 // pred_check
      _
    $region75: #{_mlps_forward.1} parent=1 // pred_check_branch
      %146 = sbr.rel (0) target = $region77
    $region76: #{_mlps_forward.1} parent=1 // pred_region
      %147 = dma.done [#allocation12], 8192
    $region77: #{_mlps_forward.1} parent=1 // pred_fallthru
      _
    // Predicated region
    $region78: #{_mlps_forward.1} parent=1 // pred_check
      _
    $region79: #{_mlps_forward.1} parent=1 // pred_check_branch
      %149 = sbr.rel (0) target = $region81
    $region80: #{_mlps_forward.1} parent=1 // pred_region
      %150 = dma.done [#allocation12], 32
    $region81: #{_mlps_forward.1} parent=1 // pred_fallthru
      _
    // Predicated region
    $region82: #{_mlps_forward.1} parent=1 // pred_check
      _
    $region83: #{_mlps_forward.1} parent=1 // pred_check_branch
      %152 = sbr.rel (0) target = $region85
    $region84: #{_mlps_forward.1} parent=1 // pred_region
      %153 = dma.done [#allocation15], 2048
    $region85: #{_mlps_forward.1} parent=1 // pred_fallthru
      _
    // Predicated region
    $region86: #{_mlps_forward.1} parent=1 // pred_check
      _
    $region87: #{_mlps_forward.1} parent=1 // pred_check_branch
      %155 = sbr.rel (0) target = $region89
    $region88: #{_mlps_forward.1} parent=1 // pred_region
      %156 = dma.done [#allocation15], 16
    $region89: #{_mlps_forward.1} parent=1 // pred_fallthru
      _
    %v158 = vld [vmem:[%s0] sm:$0xff]
    %v159 = vpack.c.bf16 %v158, %v158
    %v160 = vld [vmem:[%s1] sm:$0xff]
    %v161 = vld [vmem:[%s1 + $0x8] sm:$0xff]
    %v162 = vld [vmem:[%s1 + $0x10] sm:$0xff]
    %v163 = vld [vmem:[%s1 + $0x18] sm:$0xff]
    %v164 = vld [vmem:[%s1 + $0x20] sm:$0xff]
    %v165 = vld [vmem:[%s1 + $0x28] sm:$0xff]
    %v166 = vld [vmem:[%s1 + $0x30] sm:$0xff]
    %v167 = vld [vmem:[%s1 + $0x38] sm:$0xff]
    %v168 = vld [vmem:[%s1 + $0x40] sm:$0xff]
    %v169 = vld [vmem:[%s1 + $0x48] sm:$0xff]
    %v170 = vld [vmem:[%s1 + $0x50] sm:$0xff]
    %v171 = vld [vmem:[%s1 + $0x58] sm:$0xff]
    %v172 = vld [vmem:[%s1 + $0x60] sm:$0xff]
    %v173 = vld [vmem:[%s1 + $0x68] sm:$0xff]
    %v174 = vld [vmem:[%s1 + $0x70] sm:$0xff]
    %v175 = vld [vmem:[%s1 + $0x78] sm:$0xff]
    %v176 = vld [vmem:[%s1 + $0x80] sm:$0xff]
    %v177 = vld [vmem:[%s1 + $0x88] sm:$0xff]
    %v178 = vld [vmem:[%s1 + $0x90] sm:$0xff]
    %v179 = vld [vmem:[%s1 + $0x98] sm:$0xff]
    %v180 = vld [vmem:[%s1 + $0xa0] sm:$0xff]
    %v181 = vld [vmem:[%s1 + $0xa8] sm:$0xff]
    %v182 = vld [vmem:[%s1 + $0xb0] sm:$0xff]
    %v183 = vld [vmem:[%s1 + $0xb8] sm:$0xff]
    %v184 = vld [vmem:[%s1 + $0xc0] sm:$0xff]
    %v185 = vld [vmem:[%s1 + $0xc8] sm:$0xff]
    %v186 = vld [vmem:[%s1 + $0xd0] sm:$0xff]
    %v187 = vld [vmem:[%s1 + $0xd8] sm:$0xff]
    %v188 = vld [vmem:[%s1 + $0xe0] sm:$0xff]
    %v189 = vld [vmem:[%s1 + $0xe8] sm:$0xff]
    %v190 = vld [vmem:[%s1 + $0xf0] sm:$0xff]
    %v191 = vld [vmem:[%s1 + $0xf8] sm:$0xff]
    %v192 = vld [vmem:[%s1 + $0x100] sm:$0xff]
    %v193 = vld [vmem:[%s1 + $0x108] sm:$0xff]
    %v194 = vld [vmem:[%s1 + $0x110] sm:$0xff]
    %v195 = vld [vmem:[%s1 + $0x118] sm:$0xff]
    %v196 = vld [vmem:[%s1 + $0x120] sm:$0xff]
    %v197 = vld [vmem:[%s1 + $0x128] sm:$0xff]
    %v198 = vld [vmem:[%s1 + $0x130] sm:$0xff]
    %v199 = vld [vmem:[%s1 + $0x138] sm:$0xff]
    %v200 = vld [vmem:[%s1 + $0x140] sm:$0xff]
    %v201 = vld [vmem:[%s1 + $0x148] sm:$0xff]
    %v202 = vld [vmem:[%s1 + $0x150] sm:$0xff]
    %v203 = vld [vmem:[%s1 + $0x158] sm:$0xff]
    %v204 = vld [vmem:[%s1 + $0x160] sm:$0xff]
    %v205 = vld [vmem:[%s1 + $0x168] sm:$0xff]
    %v206 = vld [vmem:[%s1 + $0x170] sm:$0xff]
    %v207 = vld [vmem:[%s1 + $0x178] sm:$0xff]
    %v208 = vld [vmem:[%s1 + $0x180] sm:$0xff]
    %v209 = vld [vmem:[%s1 + $0x188] sm:$0xff]
    %v210 = vld [vmem:[%s1 + $0x190] sm:$0xff]
    %v211 = vld [vmem:[%s1 + $0x198] sm:$0xff]
    %v212 = vld [vmem:[%s1 + $0x1a0] sm:$0xff]
    %v213 = vld [vmem:[%s1 + $0x1a8] sm:$0xff]
    %v214 = vld [vmem:[%s1 + $0x1b0] sm:$0xff]
    %v215 = vld [vmem:[%s1 + $0x1b8] sm:$0xff]
    %v216 = vld [vmem:[%s1 + $0x1c0] sm:$0xff]
    %v217 = vld [vmem:[%s1 + $0x1c8] sm:$0xff]
    %v218 = vld [vmem:[%s1 + $0x1d0] sm:$0xff]
    %v219 = vld [vmem:[%s1 + $0x1d8] sm:$0xff]
    %v220 = vld [vmem:[%s1 + $0x1e0] sm:$0xff]
    %v221 = vld [vmem:[%s1 + $0x1e8] sm:$0xff]
    %v222 = vld [vmem:[%s1 + $0x1f0] sm:$0xff]
    %v223 = vld [vmem:[%s1 + $0x1f8] sm:$0xff]
    %v224 = vld [vmem:[#allocation2] sm:$0xff]
    %v226 = vlaneseq
    %v227 = vshrl.u32 %v226, 7
    %v228 = vsub.s32 0, %v227
    %v229 = vrot.slane %v224, %v228
    %v230 = vlaneseq
    %v231 = vshrl.u32 %v230, 7
    %v232 = vsub.s32 1, %v231
    %v233 = vrot.slane %v224, %v232
    %v234 = vlaneseq
    %v235 = vshrl.u32 %v234, 7
    %v236 = vsub.s32 2, %v235
    %v237 = vrot.slane %v224, %v236
    %v238 = vlaneseq
    %v239 = vshrl.u32 %v238, 7
    %v240 = vsub.s32 3, %v239
    %v241 = vrot.slane %v224, %v240
    %v242 = vlaneseq
    %v243 = vshrl.u32 %v242, 7
    %v244 = vsub.s32 4, %v243
    %v245 = vrot.slane %v224, %v244
    %v246 = vlaneseq
    %v247 = vshrl.u32 %v246, 7
    %v248 = vsub.s32 5, %v247
    %v249 = vrot.slane %v224, %v248
    %v250 = vlaneseq
    %v251 = vshrl.u32 %v250, 7
    %v252 = vsub.s32 6, %v251
    %v253 = vrot.slane %v224, %v252
    %v254 = vlaneseq
    %v255 = vshrl.u32 %v254, 7
    %v256 = vsub.s32 7, %v255
    %v257 = vrot.slane %v224, %v256
    %v330 = vunpack.c.l.b16 %v160
    %v331 = vunpack.c.h.b16 %v160
    %v332 = vunpack.c.l.b16 %v161
    %v333 = vunpack.c.h.b16 %v161
    %v334 = vunpack.c.l.b16 %v162
    %v335 = vunpack.c.h.b16 %v162
    %v336 = vunpack.c.l.b16 %v163
    %v337 = vunpack.c.h.b16 %v163
    %v338 = vunpack.c.l.b16 %v164
    %v339 = vunpack.c.h.b16 %v164
    %v340 = vunpack.c.l.b16 %v165
    %v341 = vunpack.c.h.b16 %v165
    %v342 = vunpack.c.l.b16 %v166
    %v343 = vunpack.c.h.b16 %v166
    %v344 = vunpack.c.l.b16 %v167
    %v345 = vunpack.c.h.b16 %v167
    %v346 = vunpack.c.l.b16 %v168
    %v347 = vunpack.c.h.b16 %v168
    %v348 = vunpack.c.l.b16 %v169
    %v349 = vunpack.c.h.b16 %v169
    %v350 = vunpack.c.l.b16 %v170
    %v351 = vunpack.c.h.b16 %v170
    %v352 = vunpack.c.l.b16 %v171
    %v353 = vunpack.c.h.b16 %v171
    %v354 = vunpack.c.l.b16 %v172
    %v355 = vunpack.c.h.b16 %v172
    %v356 = vunpack.c.l.b16 %v173
    %v357 = vunpack.c.h.b16 %v173
    %v358 = vunpack.c.l.b16 %v174
    %v359 = vunpack.c.h.b16 %v174
    %v360 = vunpack.c.l.b16 %v175
    %v361 = vunpack.c.h.b16 %v175
    %v362 = vunpack.c.l.b16 %v176
    %v363 = vunpack.c.h.b16 %v176
    %v364 = vunpack.c.l.b16 %v177
    %v365 = vunpack.c.h.b16 %v177
    %v366 = vunpack.c.l.b16 %v178
    %v367 = vunpack.c.h.b16 %v178
    %v368 = vunpack.c.l.b16 %v179
    %v369 = vunpack.c.h.b16 %v179
    %v370 = vunpack.c.l.b16 %v180
    %v371 = vunpack.c.h.b16 %v180
    %v372 = vunpack.c.l.b16 %v181
    %v373 = vunpack.c.h.b16 %v181
    %v374 = vunpack.c.l.b16 %v182
    %v375 = vunpack.c.h.b16 %v182
    %v376 = vunpack.c.l.b16 %v183
    %v377 = vunpack.c.h.b16 %v183
    %v378 = vunpack.c.l.b16 %v184
    %v379 = vunpack.c.h.b16 %v184
    %v380 = vunpack.c.l.b16 %v185
    %v381 = vunpack.c.h.b16 %v185
    %v382 = vunpack.c.l.b16 %v186
    %v383 = vunpack.c.h.b16 %v186
    %v384 = vunpack.c.l.b16 %v187
    %v385 = vunpack.c.h.b16 %v187
    %v386 = vunpack.c.l.b16 %v188
    %v387 = vunpack.c.h.b16 %v188
    %v388 = vunpack.c.l.b16 %v189
    %v389 = vunpack.c.h.b16 %v189
    %v390 = vunpack.c.l.b16 %v190
    %v391 = vunpack.c.h.b16 %v190
    %v392 = vunpack.c.l.b16 %v191
    %v393 = vunpack.c.h.b16 %v191
    %v394 = vunpack.c.l.b16 %v192
    %v395 = vunpack.c.h.b16 %v192
    %v396 = vunpack.c.l.b16 %v193
    %v397 = vunpack.c.h.b16 %v193
    %v398 = vunpack.c.l.b16 %v194
    %v399 = vunpack.c.h.b16 %v194
    %v400 = vunpack.c.l.b16 %v195
    %v401 = vunpack.c.h.b16 %v195
    %v402 = vunpack.c.l.b16 %v196
    %v403 = vunpack.c.h.b16 %v196
    %v404 = vunpack.c.l.b16 %v197
    %v405 = vunpack.c.h.b16 %v197
    %v406 = vunpack.c.l.b16 %v198
    %v407 = vunpack.c.h.b16 %v198
    %v408 = vunpack.c.l.b16 %v199
    %v409 = vunpack.c.h.b16 %v199
    %v410 = vunpack.c.l.b16 %v200
    %v411 = vunpack.c.h.b16 %v200
    %v412 = vunpack.c.l.b16 %v201
    %v413 = vunpack.c.h.b16 %v201
    %v414 = vunpack.c.l.b16 %v202
    %v415 = vunpack.c.h.b16 %v202
    %v416 = vunpack.c.l.b16 %v203
    %v417 = vunpack.c.h.b16 %v203
    %v418 = vunpack.c.l.b16 %v204
    %v419 = vunpack.c.h.b16 %v204
    %v420 = vunpack.c.l.b16 %v205
    %v421 = vunpack.c.h.b16 %v205
    %v422 = vunpack.c.l.b16 %v206
    %v423 = vunpack.c.h.b16 %v206
    %v424 = vunpack.c.l.b16 %v207
    %v425 = vunpack.c.h.b16 %v207
    %v426 = vunpack.c.l.b16 %v208
    %v427 = vunpack.c.h.b16 %v208
    %v428 = vunpack.c.l.b16 %v209
    %v429 = vunpack.c.h.b16 %v209
    %v430 = vunpack.c.l.b16 %v210
    %v431 = vunpack.c.h.b16 %v210
    %v432 = vunpack.c.l.b16 %v211
    %v433 = vunpack.c.h.b16 %v211
    %v434 = vunpack.c.l.b16 %v212
    %v435 = vunpack.c.h.b16 %v212
    %v436 = vunpack.c.l.b16 %v213
    %v437 = vunpack.c.h.b16 %v213
    %v438 = vunpack.c.l.b16 %v214
    %v439 = vunpack.c.h.b16 %v214
    %v440 = vunpack.c.l.b16 %v215
    %v441 = vunpack.c.h.b16 %v215
    %v442 = vunpack.c.l.b16 %v216
    %v443 = vunpack.c.h.b16 %v216
    %v444 = vunpack.c.l.b16 %v217
    %v445 = vunpack.c.h.b16 %v217
    %v446 = vunpack.c.l.b16 %v218
    %v447 = vunpack.c.h.b16 %v218
    %v448 = vunpack.c.l.b16 %v219
    %v449 = vunpack.c.h.b16 %v219
    %v450 = vunpack.c.l.b16 %v220
    %v451 = vunpack.c.h.b16 %v220
    %v452 = vunpack.c.l.b16 %v221
    %v453 = vunpack.c.h.b16 %v221
    %v454 = vunpack.c.l.b16 %v222
    %v455 = vunpack.c.h.b16 %v222
    %v456 = vunpack.c.l.b16 %v223
    %v457 = vunpack.c.h.b16 %v223
    %v458 = vpack.c.b16 %v338, %v330
    %v459 = vpack.c.b16 %v339, %v331
    %v460 = vpack.c.b16 %v340, %v332
    %v461 = vpack.c.b16 %v341, %v333
    %v462 = vpack.c.b16 %v342, %v334
    %v463 = vpack.c.b16 %v343, %v335
    %v464 = vpack.c.b16 %v344, %v336
    %v465 = vpack.c.b16 %v345, %v337
    %v466 = vpack.c.b16 %v354, %v346
    %v467 = vpack.c.b16 %v355, %v347
    %v468 = vpack.c.b16 %v356, %v348
    %v469 = vpack.c.b16 %v357, %v349
    %v470 = vpack.c.b16 %v358, %v350
    %v471 = vpack.c.b16 %v359, %v351
    %v472 = vpack.c.b16 %v360, %v352
    %v473 = vpack.c.b16 %v361, %v353
    %v474 = vpack.c.b16 %v370, %v362
    %v475 = vpack.c.b16 %v371, %v363
    %v476 = vpack.c.b16 %v372, %v364
    %v477 = vpack.c.b16 %v373, %v365
    %v478 = vpack.c.b16 %v374, %v366
    %v479 = vpack.c.b16 %v375, %v367
    %v480 = vpack.c.b16 %v376, %v368
    %v481 = vpack.c.b16 %v377, %v369
    %v482 = vpack.c.b16 %v386, %v378
    %v483 = vpack.c.b16 %v387, %v379
    %v484 = vpack.c.b16 %v388, %v380
    %v485 = vpack.c.b16 %v389, %v381
    %v486 = vpack.c.b16 %v390, %v382
    %v487 = vpack.c.b16 %v391, %v383
    %v488 = vpack.c.b16 %v392, %v384
    %v489 = vpack.c.b16 %v393, %v385
    %v490 = vpack.c.b16 %v402, %v394
    %v491 = vpack.c.b16 %v403, %v395
    %v492 = vpack.c.b16 %v404, %v396
    %v493 = vpack.c.b16 %v405, %v397
    %v494 = vpack.c.b16 %v406, %v398
    %v495 = vpack.c.b16 %v407, %v399
    %v496 = vpack.c.b16 %v408, %v400
    %v497 = vpack.c.b16 %v409, %v401
    %v498 = vpack.c.b16 %v418, %v410
    %v499 = vpack.c.b16 %v419, %v411
    %v500 = vpack.c.b16 %v420, %v412
    %v501 = vpack.c.b16 %v421, %v413
    %v502 = vpack.c.b16 %v422, %v414
    %v503 = vpack.c.b16 %v423, %v415
    %v504 = vpack.c.b16 %v424, %v416
    %v505 = vpack.c.b16 %v425, %v417
    %v506 = vpack.c.b16 %v434, %v426
    %v507 = vpack.c.b16 %v435, %v427
    %v508 = vpack.c.b16 %v436, %v428
    %v509 = vpack.c.b16 %v437, %v429
    %v510 = vpack.c.b16 %v438, %v430
    %v511 = vpack.c.b16 %v439, %v431
    %v512 = vpack.c.b16 %v440, %v432
    %v513 = vpack.c.b16 %v441, %v433
    %v514 = vpack.c.b16 %v450, %v442
    %v515 = vpack.c.b16 %v451, %v443
    %v516 = vpack.c.b16 %v452, %v444
    %v517 = vpack.c.b16 %v453, %v445
    %v518 = vpack.c.b16 %v454, %v446
    %v519 = vpack.c.b16 %v455, %v447
    %v520 = vpack.c.b16 %v456, %v448
    %v521 = vpack.c.b16 %v457, %v449
    %586 = vmatprep.subr.bf16.mxu0 %v459
    %587 = vmatpush1.bf16.msra.mxu0 %v458
    %588 = vmatprep.subr.bf16.mxu0 %v467
    %589 = vmatpush1.bf16.msra.mxu0 %v466
    %590 = vmatprep.subr.bf16.mxu0 %v475
    %591 = vmatpush1.bf16.msra.mxu0 %v474
    %592 = vmatprep.subr.bf16.mxu0 %v483
    %593 = vmatpush1.bf16.msra.mxu0 %v482
    %594 = vmatprep.subr.bf16.mxu0 %v491
    %595 = vmatpush1.bf16.msra.mxu0 %v490
    %596 = vmatprep.subr.bf16.mxu0 %v499
    %597 = vmatpush1.bf16.msra.mxu0 %v498
    %598 = vmatprep.subr.bf16.mxu0 %v507
    %599 = vmatpush1.bf16.msra.mxu0 %v506
    %600 = vmatprep.subr.bf16.mxu0 %v515
    %601 = vmatpush1.bf16.msra.mxu0 %v514
    %602 = vmatprep.subr.bf16.mxu0 0
    %603 = vmatpush1.bf16.msra.mxu0 0
    %604 = vmatprep.subr.bf16.mxu0 0
    %605 = vmatpush1.bf16.msra.mxu0 0
    %606 = vmatprep.subr.bf16.mxu0 0
    %607 = vmatpush1.bf16.msra.mxu0 0
    %608 = vmatprep.subr.bf16.mxu0 0
    %609 = vmatpush1.bf16.msra.mxu0 0
    %610 = vmatprep.subr.bf16.mxu0 0
    %611 = vmatpush1.bf16.msra.mxu0 0
    %612 = vmatprep.subr.bf16.mxu0 0
    %613 = vmatpush1.bf16.msra.mxu0 0
    %614 = vmatprep.subr.bf16.mxu0 0
    %615 = vmatpush1.bf16.msra.mxu0 0
    %616 = vmatprep.subr.bf16.mxu0 0
    %617 = vmatpush1.bf16.msra.mxu0 0
    %618 = vmatprep.mubr.bf16.mxu0 0
    %619 = vmatmul.mubr.bf16.gmra.mrb[0].mxu0 %v159
    %v620 = vpop.f32.mrb[0].mxu0
    %v621 = vadd.f32 %v229, %v620
    %v622 = vpop.f32.mrb[0].mxu0
    %v623 = vadd.f32 %v233, %v622
    %v624 = vpop.f32.mrb[0].mxu0
    %v625 = vpop.f32.mrb[0].mxu0
    %626 = vdwg.mxu0
    %627 = vmatprep.subr.bf16.mxu0 %v461
    %628 = vmatpush1.bf16.msra.mxu0 %v460
    %629 = vmatprep.subr.bf16.mxu0 %v469
    %630 = vmatpush1.bf16.msra.mxu0 %v468
    %631 = vmatprep.subr.bf16.mxu0 %v477
    %632 = vmatpush1.bf16.msra.mxu0 %v476
    %633 = vmatprep.subr.bf16.mxu0 %v485
    %634 = vmatpush1.bf16.msra.mxu0 %v484
    %635 = vmatprep.subr.bf16.mxu0 %v493
    %636 = vmatpush1.bf16.msra.mxu0 %v492
    %637 = vmatprep.subr.bf16.mxu0 %v501
    %638 = vmatpush1.bf16.msra.mxu0 %v500
    %639 = vmatprep.subr.bf16.mxu0 %v509
    %640 = vmatpush1.bf16.msra.mxu0 %v508
    %641 = vmatprep.subr.bf16.mxu0 %v517
    %642 = vmatpush1.bf16.msra.mxu0 %v516
    %643 = vmatprep.subr.bf16.mxu0 0
    %644 = vmatpush1.bf16.msra.mxu0 0
    %645 = vmatprep.subr.bf16.mxu0 0
    %646 = vmatpush1.bf16.msra.mxu0 0
    %647 = vmatprep.subr.bf16.mxu0 0
    %648 = vmatpush1.bf16.msra.mxu0 0
    %649 = vmatprep.subr.bf16.mxu0 0
    %650 = vmatpush1.bf16.msra.mxu0 0
    %651 = vmatprep.subr.bf16.mxu0 0
    %652 = vmatpush1.bf16.msra.mxu0 0
    %653 = vmatprep.subr.bf16.mxu0 0
    %654 = vmatpush1.bf16.msra.mxu0 0
    %655 = vmatprep.subr.bf16.mxu0 0
    %656 = vmatpush1.bf16.msra.mxu0 0
    %657 = vmatprep.subr.bf16.mxu0 0
    %658 = vmatpush1.bf16.msra.mxu0 0
    %659 = vmatprep.mubr.bf16.mxu0 0
    %660 = vmatmul.mubr.bf16.gmra.mrb[0].mxu0 %v159
    %v661 = vpop.f32.mrb[0].mxu0
    %v662 = vadd.f32 %v237, %v661
    %v663 = vpop.f32.mrb[0].mxu0
    %v664 = vadd.f32 %v241, %v663
    %v665 = vpop.f32.mrb[0].mxu0
    %v666 = vpop.f32.mrb[0].mxu0
    %667 = vdwg.mxu0
    %668 = vmatprep.subr.bf16.mxu0 %v463
    %669 = vmatpush1.bf16.msra.mxu0 %v462
    %670 = vmatprep.subr.bf16.mxu0 %v471
    %671 = vmatpush1.bf16.msra.mxu0 %v470
    %672 = vmatprep.subr.bf16.mxu0 %v479
    %673 = vmatpush1.bf16.msra.mxu0 %v478
    %674 = vmatprep.subr.bf16.mxu0 %v487
    %675 = vmatpush1.bf16.msra.mxu0 %v486
    %676 = vmatprep.subr.bf16.mxu0 %v495
    %677 = vmatpush1.bf16.msra.mxu0 %v494
    %678 = vmatprep.subr.bf16.mxu0 %v503
    %679 = vmatpush1.bf16.msra.mxu0 %v502
    %680 = vmatprep.subr.bf16.mxu0 %v511
    %681 = vmatpush1.bf16.msra.mxu0 %v510
    %682 = vmatprep.subr.bf16.mxu0 %v519
    %683 = vmatpush1.bf16.msra.mxu0 %v518
    %684 = vmatprep.subr.bf16.mxu0 0
    %685 = vmatpush1.bf16.msra.mxu0 0
    %686 = vmatprep.subr.bf16.mxu0 0
    %687 = vmatpush1.bf16.msra.mxu0 0
    %688 = vmatprep.subr.bf16.mxu0 0
    %689 = vmatpush1.bf16.msra.mxu0 0
    %690 = vmatprep.subr.bf16.mxu0 0
    %691 = vmatpush1.bf16.msra.mxu0 0
    %692 = vmatprep.subr.bf16.mxu0 0
    %693 = vmatpush1.bf16.msra.mxu0 0
    %694 = vmatprep.subr.bf16.mxu0 0
    %695 = vmatpush1.bf16.msra.mxu0 0
    %696 = vmatprep.subr.bf16.mxu0 0
    %697 = vmatpush1.bf16.msra.mxu0 0
    %698 = vmatprep.subr.bf16.mxu0 0
    %699 = vmatpush1.bf16.msra.mxu0 0
    %700 = vmatprep.mubr.bf16.mxu0 0
    %701 = vmatmul.mubr.bf16.gmra.mrb[0].mxu0 %v159
    %v702 = vpop.f32.mrb[0].mxu0
    %v703 = vadd.f32 %v245, %v702
    %v704 = vpop.f32.mrb[0].mxu0
    %v705 = vadd.f32 %v249, %v704
    %v706 = vpop.f32.mrb[0].mxu0
    %v707 = vpop.f32.mrb[0].mxu0
    %708 = vdwg.mxu0
    %709 = vmatprep.subr.bf16.mxu0 %v465
    %710 = vmatpush1.bf16.msra.mxu0 %v464
    %711 = vmatprep.subr.bf16.mxu0 %v473
    %712 = vmatpush1.bf16.msra.mxu0 %v472
    %713 = vmatprep.subr.bf16.mxu0 %v481
    %714 = vmatpush1.bf16.msra.mxu0 %v480
    %715 = vmatprep.subr.bf16.mxu0 %v489
    %716 = vmatpush1.bf16.msra.mxu0 %v488
    %717 = vmatprep.subr.bf16.mxu0 %v497
    %718 = vmatpush1.bf16.msra.mxu0 %v496
    %719 = vmatprep.subr.bf16.mxu0 %v505
    %720 = vmatpush1.bf16.msra.mxu0 %v504
    %721 = vmatprep.subr.bf16.mxu0 %v513
    %722 = vmatpush1.bf16.msra.mxu0 %v512
    %723 = vmatprep.subr.bf16.mxu0 %v521
    %724 = vmatpush1.bf16.msra.mxu0 %v520
    %725 = vmatprep.subr.bf16.mxu0 0
    %726 = vmatpush1.bf16.msra.mxu0 0
    %727 = vmatprep.subr.bf16.mxu0 0
    %728 = vmatpush1.bf16.msra.mxu0 0
    %729 = vmatprep.subr.bf16.mxu0 0
    %730 = vmatpush1.bf16.msra.mxu0 0
    %731 = vmatprep.subr.bf16.mxu0 0
    %732 = vmatpush1.bf16.msra.mxu0 0
    %733 = vmatprep.subr.bf16.mxu0 0
    %734 = vmatpush1.bf16.msra.mxu0 0
    %735 = vmatprep.subr.bf16.mxu0 0
    %736 = vmatpush1.bf16.msra.mxu0 0
    %737 = vmatprep.subr.bf16.mxu0 0
    %738 = vmatpush1.bf16.msra.mxu0 0
    %739 = vmatprep.subr.bf16.mxu0 0
    %740 = vmatpush1.bf16.msra.mxu0 0
    %741 = vmatprep.mubr.bf16.mxu0 0
    %742 = vmatmul.mubr.bf16.gmra.mrb[0].mxu0 %v159
    %v743 = vpop.f32.mrb[0].mxu0
    %v744 = vadd.f32 %v253, %v743
    %v745 = vpop.f32.mrb[0].mxu0
    %v746 = vadd.f32 %v257, %v745
    %v747 = vpop.f32.mrb[0].mxu0
    %v748 = vpop.f32.mrb[0].mxu0
    %749 = vdwg.mxu0
    %v750 = vmax.f32 %v621, 0.0
    %v751 = vmax.f32 %v623, 0.0
    %v752 = vmax.f32 %v662, 0.0
    %v753 = vmax.f32 %v664, 0.0
    %v754 = vmax.f32 %v703, 0.0
    %v755 = vmax.f32 %v705, 0.0
    %v756 = vmax.f32 %v744, 0.0
    %v757 = vmax.f32 %v746, 0.0
    %v758 = vpack.c.bf16 %v750, %v750
    %v759 = vpack.c.bf16 %v751, %v751
    %v760 = vpack.c.bf16 %v752, %v752
    %v761 = vpack.c.bf16 %v753, %v753
    %v762 = vpack.c.bf16 %v754, %v754
    %v763 = vpack.c.bf16 %v755, %v755
    %v764 = vpack.c.bf16 %v756, %v756
    %v765 = vpack.c.bf16 %v757, %v757
    %v766 = vld [vmem:[#allocation5] sm:$0xff]
    %v767 = vld [vmem:[#allocation5 + $0x8] sm:$0xff]
    %v768 = vld [vmem:[#allocation5 + $0x10] sm:$0xff]
    %v769 = vld [vmem:[#allocation5 + $0x18] sm:$0xff]
    %v770 = vld [vmem:[#allocation5 + $0x20] sm:$0xff]
    %v771 = vld [vmem:[#allocation5 + $0x28] sm:$0xff]
    %v772 = vld [vmem:[#allocation5 + $0x30] sm:$0xff]
    %v773 = vld [vmem:[#allocation5 + $0x38] sm:$0xff]
    %v774 = vld [vmem:[#allocation5 + $0x40] sm:$0xff]
    %v775 = vld [vmem:[#allocation5 + $0x48] sm:$0xff]
    %v776 = vld [vmem:[#allocation5 + $0x50] sm:$0xff]
    %v777 = vld [vmem:[#allocation5 + $0x58] sm:$0xff]
    %v778 = vld [vmem:[#allocation5 + $0x60] sm:$0xff]
    %v779 = vld [vmem:[#allocation5 + $0x68] sm:$0xff]
    %v780 = vld [vmem:[#allocation5 + $0x70] sm:$0xff]
    %v781 = vld [vmem:[#allocation5 + $0x78] sm:$0xff]
    %v782 = vld [vmem:[#allocation5 + $0x80] sm:$0xff]
    %v783 = vld [vmem:[#allocation5 + $0x88] sm:$0xff]
    %v784 = vld [vmem:[#allocation5 + $0x90] sm:$0xff]
    %v785 = vld [vmem:[#allocation5 + $0x98] sm:$0xff]
    %v786 = vld [vmem:[#allocation5 + $0xa0] sm:$0xff]
    %v787 = vld [vmem:[#allocation5 + $0xa8] sm:$0xff]
    %v788 = vld [vmem:[#allocation5 + $0xb0] sm:$0xff]
    %v789 = vld [vmem:[#allocation5 + $0xb8] sm:$0xff]
    %v790 = vld [vmem:[#allocation5 + $0xc0] sm:$0xff]
    %v791 = vld [vmem:[#allocation5 + $0xc8] sm:$0xff]
    %v792 = vld [vmem:[#allocation5 + $0xd0] sm:$0xff]
    %v793 = vld [vmem:[#allocation5 + $0xd8] sm:$0xff]
    %v794 = vld [vmem:[#allocation5 + $0xe0] sm:$0xff]
    %v795 = vld [vmem:[#allocation5 + $0xe8] sm:$0xff]
    %v796 = vld [vmem:[#allocation5 + $0xf0] sm:$0xff]
    %v797 = vld [vmem:[#allocation5 + $0xf8] sm:$0xff]
    %v798 = vld [vmem:[#allocation5 + $0x100] sm:$0xff]
    %v799 = vld [vmem:[#allocation5 + $0x108] sm:$0xff]
    %v800 = vld [vmem:[#allocation5 + $0x110] sm:$0xff]
    %v801 = vld [vmem:[#allocation5 + $0x118] sm:$0xff]
    %v802 = vld [vmem:[#allocation5 + $0x120] sm:$0xff]
    %v803 = vld [vmem:[#allocation5 + $0x128] sm:$0xff]
    %v804 = vld [vmem:[#allocation5 + $0x130] sm:$0xff]
    %v805 = vld [vmem:[#allocation5 + $0x138] sm:$0xff]
    %v806 = vld [vmem:[#allocation5 + $0x140] sm:$0xff]
    %v807 = vld [vmem:[#allocation5 + $0x148] sm:$0xff]
    %v808 = vld [vmem:[#allocation5 + $0x150] sm:$0xff]
    %v809 = vld [vmem:[#allocation5 + $0x158] sm:$0xff]
    %v810 = vld [vmem:[#allocation5 + $0x160] sm:$0xff]
    %v811 = vld [vmem:[#allocation5 + $0x168] sm:$0xff]
    %v812 = vld [vmem:[#allocation5 + $0x170] sm:$0xff]
    %v813 = vld [vmem:[#allocation5 + $0x178] sm:$0xff]
    %v814 = vld [vmem:[#allocation5 + $0x180] sm:$0xff]
    %v815 = vld [vmem:[#allocation5 + $0x188] sm:$0xff]
    %v816 = vld [vmem:[#allocation5 + $0x190] sm:$0xff]
    %v817 = vld [vmem:[#allocation5 + $0x198] sm:$0xff]
    %v818 = vld [vmem:[#allocation5 + $0x1a0] sm:$0xff]
    %v819 = vld [vmem:[#allocation5 + $0x1a8] sm:$0xff]
    %v820 = vld [vmem:[#allocation5 + $0x1b0] sm:$0xff]
    %v821 = vld [vmem:[#allocation5 + $0x1b8] sm:$0xff]
    %v822 = vld [vmem:[#allocation5 + $0x1c0] sm:$0xff]
    %v823 = vld [vmem:[#allocation5 + $0x1c8] sm:$0xff]
    %v824 = vld [vmem:[#allocation5 + $0x1d0] sm:$0xff]
    %v825 = vld [vmem:[#allocation5 + $0x1d8] sm:$0xff]
    %v826 = vld [vmem:[#allocation5 + $0x1e0] sm:$0xff]
    %v827 = vld [vmem:[#allocation5 + $0x1e8] sm:$0xff]
    %v828 = vld [vmem:[#allocation5 + $0x1f0] sm:$0xff]
    %v829 = vld [vmem:[#allocation5 + $0x1f8] sm:$0xff]
    %v830 = vld [vmem:[#allocation5 + $0x200] sm:$0xff]
    %v831 = vld [vmem:[#allocation5 + $0x208] sm:$0xff]
    %v832 = vld [vmem:[#allocation5 + $0x210] sm:$0xff]
    %v833 = vld [vmem:[#allocation5 + $0x218] sm:$0xff]
    %v834 = vld [vmem:[#allocation5 + $0x220] sm:$0xff]
    %v835 = vld [vmem:[#allocation5 + $0x228] sm:$0xff]
    %v836 = vld [vmem:[#allocation5 + $0x230] sm:$0xff]
    %v837 = vld [vmem:[#allocation5 + $0x238] sm:$0xff]
    %v838 = vld [vmem:[#allocation5 + $0x240] sm:$0xff]
    %v839 = vld [vmem:[#allocation5 + $0x248] sm:$0xff]
    %v840 = vld [vmem:[#allocation5 + $0x250] sm:$0xff]
    %v841 = vld [vmem:[#allocation5 + $0x258] sm:$0xff]
    %v842 = vld [vmem:[#allocation5 + $0x260] sm:$0xff]
    %v843 = vld [vmem:[#allocation5 + $0x268] sm:$0xff]
    %v844 = vld [vmem:[#allocation5 + $0x270] sm:$0xff]
    %v845 = vld [vmem:[#allocation5 + $0x278] sm:$0xff]
    %v846 = vld [vmem:[#allocation5 + $0x280] sm:$0xff]
    %v847 = vld [vmem:[#allocation5 + $0x288] sm:$0xff]
    %v848 = vld [vmem:[#allocation5 + $0x290] sm:$0xff]
    %v849 = vld [vmem:[#allocation5 + $0x298] sm:$0xff]
    %v850 = vld [vmem:[#allocation5 + $0x2a0] sm:$0xff]
    %v851 = vld [vmem:[#allocation5 + $0x2a8] sm:$0xff]
    %v852 = vld [vmem:[#allocation5 + $0x2b0] sm:$0xff]
    %v853 = vld [vmem:[#allocation5 + $0x2b8] sm:$0xff]
    %v854 = vld [vmem:[#allocation5 + $0x2c0] sm:$0xff]
    %v855 = vld [vmem:[#allocation5 + $0x2c8] sm:$0xff]
    %v856 = vld [vmem:[#allocation5 + $0x2d0] sm:$0xff]
    %v857 = vld [vmem:[#allocation5 + $0x2d8] sm:$0xff]
    %v858 = vld [vmem:[#allocation5 + $0x2e0] sm:$0xff]
    %v859 = vld [vmem:[#allocation5 + $0x2e8] sm:$0xff]
    %v860 = vld [vmem:[#allocation5 + $0x2f0] sm:$0xff]
    %v861 = vld [vmem:[#allocation5 + $0x2f8] sm:$0xff]
    %v862 = vld [vmem:[#allocation5 + $0x300] sm:$0xff]
    %v863 = vld [vmem:[#allocation5 + $0x308] sm:$0xff]
    %v864 = vld [vmem:[#allocation5 + $0x310] sm:$0xff]
    %v865 = vld [vmem:[#allocation5 + $0x318] sm:$0xff]
    %v866 = vld [vmem:[#allocation5 + $0x320] sm:$0xff]
    %v867 = vld [vmem:[#allocation5 + $0x328] sm:$0xff]
    %v868 = vld [vmem:[#allocation5 + $0x330] sm:$0xff]
    %v869 = vld [vmem:[#allocation5 + $0x338] sm:$0xff]
    %v870 = vld [vmem:[#allocation5 + $0x340] sm:$0xff]
    %v871 = vld [vmem:[#allocation5 + $0x348] sm:$0xff]
    %v872 = vld [vmem:[#allocation5 + $0x350] sm:$0xff]
    %v873 = vld [vmem:[#allocation5 + $0x358] sm:$0xff]
    %v874 = vld [vmem:[#allocation5 + $0x360] sm:$0xff]
    %v875 = vld [vmem:[#allocation5 + $0x368] sm:$0xff]
    %v876 = vld [vmem:[#allocation5 + $0x370] sm:$0xff]
    %v877 = vld [vmem:[#allocation5 + $0x378] sm:$0xff]
    %v878 = vld [vmem:[#allocation5 + $0x380] sm:$0xff]
    %v879 = vld [vmem:[#allocation5 + $0x388] sm:$0xff]
    %v880 = vld [vmem:[#allocation5 + $0x390] sm:$0xff]
    %v881 = vld [vmem:[#allocation5 + $0x398] sm:$0xff]
    %v882 = vld [vmem:[#allocation5 + $0x3a0] sm:$0xff]
    %v883 = vld [vmem:[#allocation5 + $0x3a8] sm:$0xff]
    %v884 = vld [vmem:[#allocation5 + $0x3b0] sm:$0xff]
    %v885 = vld [vmem:[#allocation5 + $0x3b8] sm:$0xff]
    %v886 = vld [vmem:[#allocation5 + $0x3c0] sm:$0xff]
    %v887 = vld [vmem:[#allocation5 + $0x3c8] sm:$0xff]
    %v888 = vld [vmem:[#allocation5 + $0x3d0] sm:$0xff]
    %v889 = vld [vmem:[#allocation5 + $0x3d8] sm:$0xff]
    %v890 = vld [vmem:[#allocation5 + $0x3e0] sm:$0xff]
    %v891 = vld [vmem:[#allocation5 + $0x3e8] sm:$0xff]
    %v892 = vld [vmem:[#allocation5 + $0x3f0] sm:$0xff]
    %v893 = vld [vmem:[#allocation5 + $0x3f8] sm:$0xff]
    %v894 = vld [vmem:[#allocation5 + $0x400] sm:$0xff]
    %v895 = vld [vmem:[#allocation5 + $0x408] sm:$0xff]
    %v896 = vld [vmem:[#allocation5 + $0x410] sm:$0xff]
    %v897 = vld [vmem:[#allocation5 + $0x418] sm:$0xff]
    %v898 = vld [vmem:[#allocation5 + $0x420] sm:$0xff]
    %v899 = vld [vmem:[#allocation5 + $0x428] sm:$0xff]
    %v900 = vld [vmem:[#allocation5 + $0x430] sm:$0xff]
    %v901 = vld [vmem:[#allocation5 + $0x438] sm:$0xff]
    %v902 = vld [vmem:[#allocation5 + $0x440] sm:$0xff]
    %v903 = vld [vmem:[#allocation5 + $0x448] sm:$0xff]
    %v904 = vld [vmem:[#allocation5 + $0x450] sm:$0xff]
    %v905 = vld [vmem:[#allocation5 + $0x458] sm:$0xff]
    %v906 = vld [vmem:[#allocation5 + $0x460] sm:$0xff]
    %v907 = vld [vmem:[#allocation5 + $0x468] sm:$0xff]
    %v908 = vld [vmem:[#allocation5 + $0x470] sm:$0xff]
    %v909 = vld [vmem:[#allocation5 + $0x478] sm:$0xff]
    %v910 = vld [vmem:[#allocation5 + $0x480] sm:$0xff]
    %v911 = vld [vmem:[#allocation5 + $0x488] sm:$0xff]
    %v912 = vld [vmem:[#allocation5 + $0x490] sm:$0xff]
    %v913 = vld [vmem:[#allocation5 + $0x498] sm:$0xff]
    %v914 = vld [vmem:[#allocation5 + $0x4a0] sm:$0xff]
    %v915 = vld [vmem:[#allocation5 + $0x4a8] sm:$0xff]
    %v916 = vld [vmem:[#allocation5 + $0x4b0] sm:$0xff]
    %v917 = vld [vmem:[#allocation5 + $0x4b8] sm:$0xff]
    %v918 = vld [vmem:[#allocation5 + $0x4c0] sm:$0xff]
    %v919 = vld [vmem:[#allocation5 + $0x4c8] sm:$0xff]
    %v920 = vld [vmem:[#allocation5 + $0x4d0] sm:$0xff]
    %v921 = vld [vmem:[#allocation5 + $0x4d8] sm:$0xff]
    %v922 = vld [vmem:[#allocation5 + $0x4e0] sm:$0xff]
    %v923 = vld [vmem:[#allocation5 + $0x4e8] sm:$0xff]
    %v924 = vld [vmem:[#allocation5 + $0x4f0] sm:$0xff]
    %v925 = vld [vmem:[#allocation5 + $0x4f8] sm:$0xff]
    %v926 = vld [vmem:[#allocation5 + $0x500] sm:$0xff]
    %v927 = vld [vmem:[#allocation5 + $0x508] sm:$0xff]
    %v928 = vld [vmem:[#allocation5 + $0x510] sm:$0xff]
    %v929 = vld [vmem:[#allocation5 + $0x518] sm:$0xff]
    %v930 = vld [vmem:[#allocation5 + $0x520] sm:$0xff]
    %v931 = vld [vmem:[#allocation5 + $0x528] sm:$0xff]
    %v932 = vld [vmem:[#allocation5 + $0x530] sm:$0xff]
    %v933 = vld [vmem:[#allocation5 + $0x538] sm:$0xff]
    %v934 = vld [vmem:[#allocation5 + $0x540] sm:$0xff]
    %v935 = vld [vmem:[#allocation5 + $0x548] sm:$0xff]
    %v936 = vld [vmem:[#allocation5 + $0x550] sm:$0xff]
    %v937 = vld [vmem:[#allocation5 + $0x558] sm:$0xff]
    %v938 = vld [vmem:[#allocation5 + $0x560] sm:$0xff]
    %v939 = vld [vmem:[#allocation5 + $0x568] sm:$0xff]
    %v940 = vld [vmem:[#allocation5 + $0x570] sm:$0xff]
    %v941 = vld [vmem:[#allocation5 + $0x578] sm:$0xff]
    %v942 = vld [vmem:[#allocation5 + $0x580] sm:$0xff]
    %v943 = vld [vmem:[#allocation5 + $0x588] sm:$0xff]
    %v944 = vld [vmem:[#allocation5 + $0x590] sm:$0xff]
    %v945 = vld [vmem:[#allocation5 + $0x598] sm:$0xff]
    %v946 = vld [vmem:[#allocation5 + $0x5a0] sm:$0xff]
    %v947 = vld [vmem:[#allocation5 + $0x5a8] sm:$0xff]
    %v948 = vld [vmem:[#allocation5 + $0x5b0] sm:$0xff]
    %v949 = vld [vmem:[#allocation5 + $0x5b8] sm:$0xff]
    %v950 = vld [vmem:[#allocation5 + $0x5c0] sm:$0xff]
    %v951 = vld [vmem:[#allocation5 + $0x5c8] sm:$0xff]
    %v952 = vld [vmem:[#allocation5 + $0x5d0] sm:$0xff]
    %v953 = vld [vmem:[#allocation5 + $0x5d8] sm:$0xff]
    %v954 = vld [vmem:[#allocation5 + $0x5e0] sm:$0xff]
    %v955 = vld [vmem:[#allocation5 + $0x5e8] sm:$0xff]
    %v956 = vld [vmem:[#allocation5 + $0x5f0] sm:$0xff]
    %v957 = vld [vmem:[#allocation5 + $0x5f8] sm:$0xff]
    %v958 = vld [vmem:[#allocation5 + $0x600] sm:$0xff]
    %v959 = vld [vmem:[#allocation5 + $0x608] sm:$0xff]
    %v960 = vld [vmem:[#allocation5 + $0x610] sm:$0xff]
    %v961 = vld [vmem:[#allocation5 + $0x618] sm:$0xff]
    %v962 = vld [vmem:[#allocation5 + $0x620] sm:$0xff]
    %v963 = vld [vmem:[#allocation5 + $0x628] sm:$0xff]
    %v964 = vld [vmem:[#allocation5 + $0x630] sm:$0xff]
    %v965 = vld [vmem:[#allocation5 + $0x638] sm:$0xff]
    %v966 = vld [vmem:[#allocation5 + $0x640] sm:$0xff]
    %v967 = vld [vmem:[#allocation5 + $0x648] sm:$0xff]
    %v968 = vld [vmem:[#allocation5 + $0x650] sm:$0xff]
    %v969 = vld [vmem:[#allocation5 + $0x658] sm:$0xff]
    %v970 = vld [vmem:[#allocation5 + $0x660] sm:$0xff]
    %v971 = vld [vmem:[#allocation5 + $0x668] sm:$0xff]
    %v972 = vld [vmem:[#allocation5 + $0x670] sm:$0xff]
    %v973 = vld [vmem:[#allocation5 + $0x678] sm:$0xff]
    %v974 = vld [vmem:[#allocation5 + $0x680] sm:$0xff]
    %v975 = vld [vmem:[#allocation5 + $0x688] sm:$0xff]
    %v976 = vld [vmem:[#allocation5 + $0x690] sm:$0xff]
    %v977 = vld [vmem:[#allocation5 + $0x698] sm:$0xff]
    %v978 = vld [vmem:[#allocation5 + $0x6a0] sm:$0xff]
    %v979 = vld [vmem:[#allocation5 + $0x6a8] sm:$0xff]
    %v980 = vld [vmem:[#allocation5 + $0x6b0] sm:$0xff]
    %v981 = vld [vmem:[#allocation5 + $0x6b8] sm:$0xff]
    %v982 = vld [vmem:[#allocation5 + $0x6c0] sm:$0xff]
    %v983 = vld [vmem:[#allocation5 + $0x6c8] sm:$0xff]
    %v984 = vld [vmem:[#allocation5 + $0x6d0] sm:$0xff]
    %v985 = vld [vmem:[#allocation5 + $0x6d8] sm:$0xff]
    %v986 = vld [vmem:[#allocation5 + $0x6e0] sm:$0xff]
    %v987 = vld [vmem:[#allocation5 + $0x6e8] sm:$0xff]
    %v988 = vld [vmem:[#allocation5 + $0x6f0] sm:$0xff]
    %v989 = vld [vmem:[#allocation5 + $0x6f8] sm:$0xff]
    %v990 = vld [vmem:[#allocation5 + $0x700] sm:$0xff]
    %v991 = vld [vmem:[#allocation5 + $0x708] sm:$0xff]
    %v992 = vld [vmem:[#allocation5 + $0x710] sm:$0xff]
    %v993 = vld [vmem:[#allocation5 + $0x718] sm:$0xff]
    %v994 = vld [vmem:[#allocation5 + $0x720] sm:$0xff]
    %v995 = vld [vmem:[#allocation5 + $0x728] sm:$0xff]
    %v996 = vld [vmem:[#allocation5 + $0x730] sm:$0xff]
    %v997 = vld [vmem:[#allocation5 + $0x738] sm:$0xff]
    %v998 = vld [vmem:[#allocation5 + $0x740] sm:$0xff]
    %v999 = vld [vmem:[#allocation5 + $0x748] sm:$0xff]
    %v1000 = vld [vmem:[#allocation5 + $0x750] sm:$0xff]
    %v1001 = vld [vmem:[#allocation5 + $0x758] sm:$0xff]
    %v1002 = vld [vmem:[#allocation5 + $0x760] sm:$0xff]
    %v1003 = vld [vmem:[#allocation5 + $0x768] sm:$0xff]
    %v1004 = vld [vmem:[#allocation5 + $0x770] sm:$0xff]
    %v1005 = vld [vmem:[#allocation5 + $0x778] sm:$0xff]
    %v1006 = vld [vmem:[#allocation5 + $0x780] sm:$0xff]
    %v1007 = vld [vmem:[#allocation5 + $0x788] sm:$0xff]
    %v1008 = vld [vmem:[#allocation5 + $0x790] sm:$0xff]
    %v1009 = vld [vmem:[#allocation5 + $0x798] sm:$0xff]
    %v1010 = vld [vmem:[#allocation5 + $0x7a0] sm:$0xff]
    %v1011 = vld [vmem:[#allocation5 + $0x7a8] sm:$0xff]
    %v1012 = vld [vmem:[#allocation5 + $0x7b0] sm:$0xff]
    %v1013 = vld [vmem:[#allocation5 + $0x7b8] sm:$0xff]
    %v1014 = vld [vmem:[#allocation5 + $0x7c0] sm:$0xff]
    %v1015 = vld [vmem:[#allocation5 + $0x7c8] sm:$0xff]
    %v1016 = vld [vmem:[#allocation5 + $0x7d0] sm:$0xff]
    %v1017 = vld [vmem:[#allocation5 + $0x7d8] sm:$0xff]
    %v1018 = vld [vmem:[#allocation5 + $0x7e0] sm:$0xff]
    %v1019 = vld [vmem:[#allocation5 + $0x7e8] sm:$0xff]
    %v1020 = vld [vmem:[#allocation5 + $0x7f0] sm:$0xff]
    %v1021 = vld [vmem:[#allocation5 + $0x7f8] sm:$0xff]
    %v1022 = vld [vmem:[#allocation5 + $0x800] sm:$0xff]
    %v1023 = vld [vmem:[#allocation5 + $0x808] sm:$0xff]
    %v1024 = vld [vmem:[#allocation5 + $0x810] sm:$0xff]
    %v1025 = vld [vmem:[#allocation5 + $0x818] sm:$0xff]
    %v1026 = vld [vmem:[#allocation5 + $0x820] sm:$0xff]
    %v1027 = vld [vmem:[#allocation5 + $0x828] sm:$0xff]
    %v1028 = vld [vmem:[#allocation5 + $0x830] sm:$0xff]
    %v1029 = vld [vmem:[#allocation5 + $0x838] sm:$0xff]
    %v1030 = vld [vmem:[#allocation5 + $0x840] sm:$0xff]
    %v1031 = vld [vmem:[#allocation5 + $0x848] sm:$0xff]
    %v1032 = vld [vmem:[#allocation5 + $0x850] sm:$0xff]
    %v1033 = vld [vmem:[#allocation5 + $0x858] sm:$0xff]
    %v1034 = vld [vmem:[#allocation5 + $0x860] sm:$0xff]
    %v1035 = vld [vmem:[#allocation5 + $0x868] sm:$0xff]
    %v1036 = vld [vmem:[#allocation5 + $0x870] sm:$0xff]
    %v1037 = vld [vmem:[#allocation5 + $0x878] sm:$0xff]
    %v1038 = vld [vmem:[#allocation5 + $0x880] sm:$0xff]
    %v1039 = vld [vmem:[#allocation5 + $0x888] sm:$0xff]
    %v1040 = vld [vmem:[#allocation5 + $0x890] sm:$0xff]
    %v1041 = vld [vmem:[#allocation5 + $0x898] sm:$0xff]
    %v1042 = vld [vmem:[#allocation5 + $0x8a0] sm:$0xff]
    %v1043 = vld [vmem:[#allocation5 + $0x8a8] sm:$0xff]
    %v1044 = vld [vmem:[#allocation5 + $0x8b0] sm:$0xff]
    %v1045 = vld [vmem:[#allocation5 + $0x8b8] sm:$0xff]
    %v1046 = vld [vmem:[#allocation5 + $0x8c0] sm:$0xff]
    %v1047 = vld [vmem:[#allocation5 + $0x8c8] sm:$0xff]
    %v1048 = vld [vmem:[#allocation5 + $0x8d0] sm:$0xff]
    %v1049 = vld [vmem:[#allocation5 + $0x8d8] sm:$0xff]
    %v1050 = vld [vmem:[#allocation5 + $0x8e0] sm:$0xff]
    %v1051 = vld [vmem:[#allocation5 + $0x8e8] sm:$0xff]
    %v1052 = vld [vmem:[#allocation5 + $0x8f0] sm:$0xff]
    %v1053 = vld [vmem:[#allocation5 + $0x8f8] sm:$0xff]
    %v1054 = vld [vmem:[#allocation5 + $0x900] sm:$0xff]
    %v1055 = vld [vmem:[#allocation5 + $0x908] sm:$0xff]
    %v1056 = vld [vmem:[#allocation5 + $0x910] sm:$0xff]
    %v1057 = vld [vmem:[#allocation5 + $0x918] sm:$0xff]
    %v1058 = vld [vmem:[#allocation5 + $0x920] sm:$0xff]
    %v1059 = vld [vmem:[#allocation5 + $0x928] sm:$0xff]
    %v1060 = vld [vmem:[#allocation5 + $0x930] sm:$0xff]
    %v1061 = vld [vmem:[#allocation5 + $0x938] sm:$0xff]
    %v1062 = vld [vmem:[#allocation5 + $0x940] sm:$0xff]
    %v1063 = vld [vmem:[#allocation5 + $0x948] sm:$0xff]
    %v1064 = vld [vmem:[#allocation5 + $0x950] sm:$0xff]
    %v1065 = vld [vmem:[#allocation5 + $0x958] sm:$0xff]
    %v1066 = vld [vmem:[#allocation5 + $0x960] sm:$0xff]
    %v1067 = vld [vmem:[#allocation5 + $0x968] sm:$0xff]
    %v1068 = vld [vmem:[#allocation5 + $0x970] sm:$0xff]
    %v1069 = vld [vmem:[#allocation5 + $0x978] sm:$0xff]
    %v1070 = vld [vmem:[#allocation5 + $0x980] sm:$0xff]
    %v1071 = vld [vmem:[#allocation5 + $0x988] sm:$0xff]
    %v1072 = vld [vmem:[#allocation5 + $0x990] sm:$0xff]
    %v1073 = vld [vmem:[#allocation5 + $0x998] sm:$0xff]
    %v1074 = vld [vmem:[#allocation5 + $0x9a0] sm:$0xff]
    %v1075 = vld [vmem:[#allocation5 + $0x9a8] sm:$0xff]
    %v1076 = vld [vmem:[#allocation5 + $0x9b0] sm:$0xff]
    %v1077 = vld [vmem:[#allocation5 + $0x9b8] sm:$0xff]
    %v1078 = vld [vmem:[#allocation5 + $0x9c0] sm:$0xff]
    %v1079 = vld [vmem:[#allocation5 + $0x9c8] sm:$0xff]
    %v1080 = vld [vmem:[#allocation5 + $0x9d0] sm:$0xff]
    %v1081 = vld [vmem:[#allocation5 + $0x9d8] sm:$0xff]
    %v1082 = vld [vmem:[#allocation5 + $0x9e0] sm:$0xff]
    %v1083 = vld [vmem:[#allocation5 + $0x9e8] sm:$0xff]
    %v1084 = vld [vmem:[#allocation5 + $0x9f0] sm:$0xff]
    %v1085 = vld [vmem:[#allocation5 + $0x9f8] sm:$0xff]
    %v1086 = vld [vmem:[#allocation5 + $0xa00] sm:$0xff]
    %v1087 = vld [vmem:[#allocation5 + $0xa08] sm:$0xff]
    %v1088 = vld [vmem:[#allocation5 + $0xa10] sm:$0xff]
    %v1089 = vld [vmem:[#allocation5 + $0xa18] sm:$0xff]
    %v1090 = vld [vmem:[#allocation5 + $0xa20] sm:$0xff]
    %v1091 = vld [vmem:[#allocation5 + $0xa28] sm:$0xff]
    %v1092 = vld [vmem:[#allocation5 + $0xa30] sm:$0xff]
    %v1093 = vld [vmem:[#allocation5 + $0xa38] sm:$0xff]
    %v1094 = vld [vmem:[#allocation5 + $0xa40] sm:$0xff]
    %v1095 = vld [vmem:[#allocation5 + $0xa48] sm:$0xff]
    %v1096 = vld [vmem:[#allocation5 + $0xa50] sm:$0xff]
    %v1097 = vld [vmem:[#allocation5 + $0xa58] sm:$0xff]
    %v1098 = vld [vmem:[#allocation5 + $0xa60] sm:$0xff]
    %v1099 = vld [vmem:[#allocation5 + $0xa68] sm:$0xff]
    %v1100 = vld [vmem:[#allocation5 + $0xa70] sm:$0xff]
    %v1101 = vld [vmem:[#allocation5 + $0xa78] sm:$0xff]
    %v1102 = vld [vmem:[#allocation5 + $0xa80] sm:$0xff]
    %v1103 = vld [vmem:[#allocation5 + $0xa88] sm:$0xff]
    %v1104 = vld [vmem:[#allocation5 + $0xa90] sm:$0xff]
    %v1105 = vld [vmem:[#allocation5 + $0xa98] sm:$0xff]
    %v1106 = vld [vmem:[#allocation5 + $0xaa0] sm:$0xff]
    %v1107 = vld [vmem:[#allocation5 + $0xaa8] sm:$0xff]
    %v1108 = vld [vmem:[#allocation5 + $0xab0] sm:$0xff]
    %v1109 = vld [vmem:[#allocation5 + $0xab8] sm:$0xff]
    %v1110 = vld [vmem:[#allocation5 + $0xac0] sm:$0xff]
    %v1111 = vld [vmem:[#allocation5 + $0xac8] sm:$0xff]
    %v1112 = vld [vmem:[#allocation5 + $0xad0] sm:$0xff]
    %v1113 = vld [vmem:[#allocation5 + $0xad8] sm:$0xff]
    %v1114 = vld [vmem:[#allocation5 + $0xae0] sm:$0xff]
    %v1115 = vld [vmem:[#allocation5 + $0xae8] sm:$0xff]
    %v1116 = vld [vmem:[#allocation5 + $0xaf0] sm:$0xff]
    %v1117 = vld [vmem:[#allocation5 + $0xaf8] sm:$0xff]
    %v1118 = vld [vmem:[#allocation5 + $0xb00] sm:$0xff]
    %v1119 = vld [vmem:[#allocation5 + $0xb08] sm:$0xff]
    %v1120 = vld [vmem:[#allocation5 + $0xb10] sm:$0xff]
    %v1121 = vld [vmem:[#allocation5 + $0xb18] sm:$0xff]
    %v1122 = vld [vmem:[#allocation5 + $0xb20] sm:$0xff]
    %v1123 = vld [vmem:[#allocation5 + $0xb28] sm:$0xff]
    %v1124 = vld [vmem:[#allocation5 + $0xb30] sm:$0xff]
    %v1125 = vld [vmem:[#allocation5 + $0xb38] sm:$0xff]
    %v1126 = vld [vmem:[#allocation5 + $0xb40] sm:$0xff]
    %v1127 = vld [vmem:[#allocation5 + $0xb48] sm:$0xff]
    %v1128 = vld [vmem:[#allocation5 + $0xb50] sm:$0xff]
    %v1129 = vld [vmem:[#allocation5 + $0xb58] sm:$0xff]
    %v1130 = vld [vmem:[#allocation5 + $0xb60] sm:$0xff]
    %v1131 = vld [vmem:[#allocation5 + $0xb68] sm:$0xff]
    %v1132 = vld [vmem:[#allocation5 + $0xb70] sm:$0xff]
    %v1133 = vld [vmem:[#allocation5 + $0xb78] sm:$0xff]
    %v1134 = vld [vmem:[#allocation5 + $0xb80] sm:$0xff]
    %v1135 = vld [vmem:[#allocation5 + $0xb88] sm:$0xff]
    %v1136 = vld [vmem:[#allocation5 + $0xb90] sm:$0xff]
    %v1137 = vld [vmem:[#allocation5 + $0xb98] sm:$0xff]
    %v1138 = vld [vmem:[#allocation5 + $0xba0] sm:$0xff]
    %v1139 = vld [vmem:[#allocation5 + $0xba8] sm:$0xff]
    %v1140 = vld [vmem:[#allocation5 + $0xbb0] sm:$0xff]
    %v1141 = vld [vmem:[#allocation5 + $0xbb8] sm:$0xff]
    %v1142 = vld [vmem:[#allocation5 + $0xbc0] sm:$0xff]
    %v1143 = vld [vmem:[#allocation5 + $0xbc8] sm:$0xff]
    %v1144 = vld [vmem:[#allocation5 + $0xbd0] sm:$0xff]
    %v1145 = vld [vmem:[#allocation5 + $0xbd8] sm:$0xff]
    %v1146 = vld [vmem:[#allocation5 + $0xbe0] sm:$0xff]
    %v1147 = vld [vmem:[#allocation5 + $0xbe8] sm:$0xff]
    %v1148 = vld [vmem:[#allocation5 + $0xbf0] sm:$0xff]
    %v1149 = vld [vmem:[#allocation5 + $0xbf8] sm:$0xff]
    %v1150 = vld [vmem:[#allocation5 + $0xc00] sm:$0xff]
    %v1151 = vld [vmem:[#allocation5 + $0xc08] sm:$0xff]
    %v1152 = vld [vmem:[#allocation5 + $0xc10] sm:$0xff]
    %v1153 = vld [vmem:[#allocation5 + $0xc18] sm:$0xff]
    %v1154 = vld [vmem:[#allocation5 + $0xc20] sm:$0xff]
    %v1155 = vld [vmem:[#allocation5 + $0xc28] sm:$0xff]
    %v1156 = vld [vmem:[#allocation5 + $0xc30] sm:$0xff]
    %v1157 = vld [vmem:[#allocation5 + $0xc38] sm:$0xff]
    %v1158 = vld [vmem:[#allocation5 + $0xc40] sm:$0xff]
    %v1159 = vld [vmem:[#allocation5 + $0xc48] sm:$0xff]
    %v1160 = vld [vmem:[#allocation5 + $0xc50] sm:$0xff]
    %v1161 = vld [vmem:[#allocation5 + $0xc58] sm:$0xff]
    %v1162 = vld [vmem:[#allocation5 + $0xc60] sm:$0xff]
    %v1163 = vld [vmem:[#allocation5 + $0xc68] sm:$0xff]
    %v1164 = vld [vmem:[#allocation5 + $0xc70] sm:$0xff]
    %v1165 = vld [vmem:[#allocation5 + $0xc78] sm:$0xff]
    %v1166 = vld [vmem:[#allocation5 + $0xc80] sm:$0xff]
    %v1167 = vld [vmem:[#allocation5 + $0xc88] sm:$0xff]
    %v1168 = vld [vmem:[#allocation5 + $0xc90] sm:$0xff]
    %v1169 = vld [vmem:[#allocation5 + $0xc98] sm:$0xff]
    %v1170 = vld [vmem:[#allocation5 + $0xca0] sm:$0xff]
    %v1171 = vld [vmem:[#allocation5 + $0xca8] sm:$0xff]
    %v1172 = vld [vmem:[#allocation5 + $0xcb0] sm:$0xff]
    %v1173 = vld [vmem:[#allocation5 + $0xcb8] sm:$0xff]
    %v1174 = vld [vmem:[#allocation5 + $0xcc0] sm:$0xff]
    %v1175 = vld [vmem:[#allocation5 + $0xcc8] sm:$0xff]
    %v1176 = vld [vmem:[#allocation5 + $0xcd0] sm:$0xff]
    %v1177 = vld [vmem:[#allocation5 + $0xcd8] sm:$0xff]
    %v1178 = vld [vmem:[#allocation5 + $0xce0] sm:$0xff]
    %v1179 = vld [vmem:[#allocation5 + $0xce8] sm:$0xff]
    %v1180 = vld [vmem:[#allocation5 + $0xcf0] sm:$0xff]
    %v1181 = vld [vmem:[#allocation5 + $0xcf8] sm:$0xff]
    %v1182 = vld [vmem:[#allocation5 + $0xd00] sm:$0xff]
    %v1183 = vld [vmem:[#allocation5 + $0xd08] sm:$0xff]
    %v1184 = vld [vmem:[#allocation5 + $0xd10] sm:$0xff]
    %v1185 = vld [vmem:[#allocation5 + $0xd18] sm:$0xff]
    %v1186 = vld [vmem:[#allocation5 + $0xd20] sm:$0xff]
    %v1187 = vld [vmem:[#allocation5 + $0xd28] sm:$0xff]
    %v1188 = vld [vmem:[#allocation5 + $0xd30] sm:$0xff]
    %v1189 = vld [vmem:[#allocation5 + $0xd38] sm:$0xff]
    %v1190 = vld [vmem:[#allocation5 + $0xd40] sm:$0xff]
    %v1191 = vld [vmem:[#allocation5 + $0xd48] sm:$0xff]
    %v1192 = vld [vmem:[#allocation5 + $0xd50] sm:$0xff]
    %v1193 = vld [vmem:[#allocation5 + $0xd58] sm:$0xff]
    %v1194 = vld [vmem:[#allocation5 + $0xd60] sm:$0xff]
    %v1195 = vld [vmem:[#allocation5 + $0xd68] sm:$0xff]
    %v1196 = vld [vmem:[#allocation5 + $0xd70] sm:$0xff]
    %v1197 = vld [vmem:[#allocation5 + $0xd78] sm:$0xff]
    %v1198 = vld [vmem:[#allocation5 + $0xd80] sm:$0xff]
    %v1199 = vld [vmem:[#allocation5 + $0xd88] sm:$0xff]
    %v1200 = vld [vmem:[#allocation5 + $0xd90] sm:$0xff]
    %v1201 = vld [vmem:[#allocation5 + $0xd98] sm:$0xff]
    %v1202 = vld [vmem:[#allocation5 + $0xda0] sm:$0xff]
    %v1203 = vld [vmem:[#allocation5 + $0xda8] sm:$0xff]
    %v1204 = vld [vmem:[#allocation5 + $0xdb0] sm:$0xff]
    %v1205 = vld [vmem:[#allocation5 + $0xdb8] sm:$0xff]
    %v1206 = vld [vmem:[#allocation5 + $0xdc0] sm:$0xff]
    %v1207 = vld [vmem:[#allocation5 + $0xdc8] sm:$0xff]
    %v1208 = vld [vmem:[#allocation5 + $0xdd0] sm:$0xff]
    %v1209 = vld [vmem:[#allocation5 + $0xdd8] sm:$0xff]
    %v1210 = vld [vmem:[#allocation5 + $0xde0] sm:$0xff]
    %v1211 = vld [vmem:[#allocation5 + $0xde8] sm:$0xff]
    %v1212 = vld [vmem:[#allocation5 + $0xdf0] sm:$0xff]
    %v1213 = vld [vmem:[#allocation5 + $0xdf8] sm:$0xff]
    %v1214 = vld [vmem:[#allocation5 + $0xe00] sm:$0xff]
    %v1215 = vld [vmem:[#allocation5 + $0xe08] sm:$0xff]
    %v1216 = vld [vmem:[#allocation5 + $0xe10] sm:$0xff]
    %v1217 = vld [vmem:[#allocation5 + $0xe18] sm:$0xff]
    %v1218 = vld [vmem:[#allocation5 + $0xe20] sm:$0xff]
    %v1219 = vld [vmem:[#allocation5 + $0xe28] sm:$0xff]
    %v1220 = vld [vmem:[#allocation5 + $0xe30] sm:$0xff]
    %v1221 = vld [vmem:[#allocation5 + $0xe38] sm:$0xff]
    %v1222 = vld [vmem:[#allocation5 + $0xe40] sm:$0xff]
    %v1223 = vld [vmem:[#allocation5 + $0xe48] sm:$0xff]
    %v1224 = vld [vmem:[#allocation5 + $0xe50] sm:$0xff]
    %v1225 = vld [vmem:[#allocation5 + $0xe58] sm:$0xff]
    %v1226 = vld [vmem:[#allocation5 + $0xe60] sm:$0xff]
    %v1227 = vld [vmem:[#allocation5 + $0xe68] sm:$0xff]
    %v1228 = vld [vmem:[#allocation5 + $0xe70] sm:$0xff]
    %v1229 = vld [vmem:[#allocation5 + $0xe78] sm:$0xff]
    %v1230 = vld [vmem:[#allocation5 + $0xe80] sm:$0xff]
    %v1231 = vld [vmem:[#allocation5 + $0xe88] sm:$0xff]
    %v1232 = vld [vmem:[#allocation5 + $0xe90] sm:$0xff]
    %v1233 = vld [vmem:[#allocation5 + $0xe98] sm:$0xff]
    %v1234 = vld [vmem:[#allocation5 + $0xea0] sm:$0xff]
    %v1235 = vld [vmem:[#allocation5 + $0xea8] sm:$0xff]
    %v1236 = vld [vmem:[#allocation5 + $0xeb0] sm:$0xff]
    %v1237 = vld [vmem:[#allocation5 + $0xeb8] sm:$0xff]
    %v1238 = vld [vmem:[#allocation5 + $0xec0] sm:$0xff]
    %v1239 = vld [vmem:[#allocation5 + $0xec8] sm:$0xff]
    %v1240 = vld [vmem:[#allocation5 + $0xed0] sm:$0xff]
    %v1241 = vld [vmem:[#allocation5 + $0xed8] sm:$0xff]
    %v1242 = vld [vmem:[#allocation5 + $0xee0] sm:$0xff]
    %v1243 = vld [vmem:[#allocation5 + $0xee8] sm:$0xff]
    %v1244 = vld [vmem:[#allocation5 + $0xef0] sm:$0xff]
    %v1245 = vld [vmem:[#allocation5 + $0xef8] sm:$0xff]
    %v1246 = vld [vmem:[#allocation5 + $0xf00] sm:$0xff]
    %v1247 = vld [vmem:[#allocation5 + $0xf08] sm:$0xff]
    %v1248 = vld [vmem:[#allocation5 + $0xf10] sm:$0xff]
    %v1249 = vld [vmem:[#allocation5 + $0xf18] sm:$0xff]
    %v1250 = vld [vmem:[#allocation5 + $0xf20] sm:$0xff]
    %v1251 = vld [vmem:[#allocation5 + $0xf28] sm:$0xff]
    %v1252 = vld [vmem:[#allocation5 + $0xf30] sm:$0xff]
    %v1253 = vld [vmem:[#allocation5 + $0xf38] sm:$0xff]
    %v1254 = vld [vmem:[#allocation5 + $0xf40] sm:$0xff]
    %v1255 = vld [vmem:[#allocation5 + $0xf48] sm:$0xff]
    %v1256 = vld [vmem:[#allocation5 + $0xf50] sm:$0xff]
    %v1257 = vld [vmem:[#allocation5 + $0xf58] sm:$0xff]
    %v1258 = vld [vmem:[#allocation5 + $0xf60] sm:$0xff]
    %v1259 = vld [vmem:[#allocation5 + $0xf68] sm:$0xff]
    %v1260 = vld [vmem:[#allocation5 + $0xf70] sm:$0xff]
    %v1261 = vld [vmem:[#allocation5 + $0xf78] sm:$0xff]
    %v1262 = vld [vmem:[#allocation5 + $0xf80] sm:$0xff]
    %v1263 = vld [vmem:[#allocation5 + $0xf88] sm:$0xff]
    %v1264 = vld [vmem:[#allocation5 + $0xf90] sm:$0xff]
    %v1265 = vld [vmem:[#allocation5 + $0xf98] sm:$0xff]
    %v1266 = vld [vmem:[#allocation5 + $0xfa0] sm:$0xff]
    %v1267 = vld [vmem:[#allocation5 + $0xfa8] sm:$0xff]
    %v1268 = vld [vmem:[#allocation5 + $0xfb0] sm:$0xff]
    %v1269 = vld [vmem:[#allocation5 + $0xfb8] sm:$0xff]
    %v1270 = vld [vmem:[#allocation5 + $0xfc0] sm:$0xff]
    %v1271 = vld [vmem:[#allocation5 + $0xfc8] sm:$0xff]
    %v1272 = vld [vmem:[#allocation5 + $0xfd0] sm:$0xff]
    %v1273 = vld [vmem:[#allocation5 + $0xfd8] sm:$0xff]
    %v1274 = vld [vmem:[#allocation5 + $0xfe0] sm:$0xff]
    %v1275 = vld [vmem:[#allocation5 + $0xfe8] sm:$0xff]
    %v1276 = vld [vmem:[#allocation5 + $0xff0] sm:$0xff]
    %v1277 = vld [vmem:[#allocation5 + $0xff8] sm:$0xff]
    %v1278 = vld [vmem:[#allocation7] sm:$0xff]
    %v1280 = vlaneseq
    %v1281 = vshrl.u32 %v1280, 7
    %v1282 = vsub.s32 0, %v1281
    %v1283 = vrot.slane %v1278, %v1282
    %v1284 = vlaneseq
    %v1285 = vshrl.u32 %v1284, 7
    %v1286 = vsub.s32 1, %v1285
    %v1287 = vrot.slane %v1278, %v1286
    %v1288 = vlaneseq
    %v1289 = vshrl.u32 %v1288, 7
    %v1290 = vsub.s32 2, %v1289
    %v1291 = vrot.slane %v1278, %v1290
    %v1292 = vlaneseq
    %v1293 = vshrl.u32 %v1292, 7
    %v1294 = vsub.s32 3, %v1293
    %v1295 = vrot.slane %v1278, %v1294
    %v1296 = vlaneseq
    %v1297 = vshrl.u32 %v1296, 7
    %v1298 = vsub.s32 4, %v1297
    %v1299 = vrot.slane %v1278, %v1298
    %v1300 = vlaneseq
    %v1301 = vshrl.u32 %v1300, 7
    %v1302 = vsub.s32 5, %v1301
    %v1303 = vrot.slane %v1278, %v1302
    %v1304 = vlaneseq
    %v1305 = vshrl.u32 %v1304, 7
    %v1306 = vsub.s32 6, %v1305
    %v1307 = vrot.slane %v1278, %v1306
    %v1308 = vlaneseq
    %v1309 = vshrl.u32 %v1308, 7
    %v1310 = vsub.s32 7, %v1309
    %v1311 = vrot.slane %v1278, %v1310
    %v1832 = vunpack.c.l.b16 %v766
    %v1833 = vunpack.c.h.b16 %v766
    %v1834 = vunpack.c.l.b16 %v767
    %v1835 = vunpack.c.h.b16 %v767
    %v1836 = vunpack.c.l.b16 %v768
    %v1837 = vunpack.c.h.b16 %v768
    %v1838 = vunpack.c.l.b16 %v769
    %v1839 = vunpack.c.h.b16 %v769
    %v1840 = vunpack.c.l.b16 %v770
    %v1841 = vunpack.c.h.b16 %v770
    %v1842 = vunpack.c.l.b16 %v771
    %v1843 = vunpack.c.h.b16 %v771
    %v1844 = vunpack.c.l.b16 %v772
    %v1845 = vunpack.c.h.b16 %v772
    %v1846 = vunpack.c.l.b16 %v773
    %v1847 = vunpack.c.h.b16 %v773
    %v1848 = vunpack.c.l.b16 %v774
    %v1849 = vunpack.c.h.b16 %v774
    %v1850 = vunpack.c.l.b16 %v775
    %v1851 = vunpack.c.h.b16 %v775
    %v1852 = vunpack.c.l.b16 %v776
    %v1853 = vunpack.c.h.b16 %v776
    %v1854 = vunpack.c.l.b16 %v777
    %v1855 = vunpack.c.h.b16 %v777
    %v1856 = vunpack.c.l.b16 %v778
    %v1857 = vunpack.c.h.b16 %v778
    %v1858 = vunpack.c.l.b16 %v779
    %v1859 = vunpack.c.h.b16 %v779
    %v1860 = vunpack.c.l.b16 %v780
    %v1861 = vunpack.c.h.b16 %v780
    %v1862 = vunpack.c.l.b16 %v781
    %v1863 = vunpack.c.h.b16 %v781
    %v1864 = vunpack.c.l.b16 %v782
    %v1865 = vunpack.c.h.b16 %v782
    %v1866 = vunpack.c.l.b16 %v783
    %v1867 = vunpack.c.h.b16 %v783
    %v1868 = vunpack.c.l.b16 %v784
    %v1869 = vunpack.c.h.b16 %v784
    %v1870 = vunpack.c.l.b16 %v785
    %v1871 = vunpack.c.h.b16 %v785
    %v1872 = vunpack.c.l.b16 %v786
    %v1873 = vunpack.c.h.b16 %v786
    %v1874 = vunpack.c.l.b16 %v787
    %v1875 = vunpack.c.h.b16 %v787
    %v1876 = vunpack.c.l.b16 %v788
    %v1877 = vunpack.c.h.b16 %v788
    %v1878 = vunpack.c.l.b16 %v789
    %v1879 = vunpack.c.h.b16 %v789
    %v1880 = vunpack.c.l.b16 %v790
    %v1881 = vunpack.c.h.b16 %v790
    %v1882 = vunpack.c.l.b16 %v791
    %v1883 = vunpack.c.h.b16 %v791
    %v1884 = vunpack.c.l.b16 %v792
    %v1885 = vunpack.c.h.b16 %v792
    %v1886 = vunpack.c.l.b16 %v793
    %v1887 = vunpack.c.h.b16 %v793
    %v1888 = vunpack.c.l.b16 %v794
    %v1889 = vunpack.c.h.b16 %v794
    %v1890 = vunpack.c.l.b16 %v795
    %v1891 = vunpack.c.h.b16 %v795
    %v1892 = vunpack.c.l.b16 %v796
    %v1893 = vunpack.c.h.b16 %v796
    %v1894 = vunpack.c.l.b16 %v797
    %v1895 = vunpack.c.h.b16 %v797
    %v1896 = vunpack.c.l.b16 %v798
    %v1897 = vunpack.c.h.b16 %v798
    %v1898 = vunpack.c.l.b16 %v799
    %v1899 = vunpack.c.h.b16 %v799
    %v1900 = vunpack.c.l.b16 %v800
    %v1901 = vunpack.c.h.b16 %v800
    %v1902 = vunpack.c.l.b16 %v801
    %v1903 = vunpack.c.h.b16 %v801
    %v1904 = vunpack.c.l.b16 %v802
    %v1905 = vunpack.c.h.b16 %v802
    %v1906 = vunpack.c.l.b16 %v803
    %v1907 = vunpack.c.h.b16 %v803
    %v1908 = vunpack.c.l.b16 %v804
    %v1909 = vunpack.c.h.b16 %v804
    %v1910 = vunpack.c.l.b16 %v805
    %v1911 = vunpack.c.h.b16 %v805
    %v1912 = vunpack.c.l.b16 %v806
    %v1913 = vunpack.c.h.b16 %v806
    %v1914 = vunpack.c.l.b16 %v807
    %v1915 = vunpack.c.h.b16 %v807
    %v1916 = vunpack.c.l.b16 %v808
    %v1917 = vunpack.c.h.b16 %v808
    %v1918 = vunpack.c.l.b16 %v809
    %v1919 = vunpack.c.h.b16 %v809
    %v1920 = vunpack.c.l.b16 %v810
    %v1921 = vunpack.c.h.b16 %v810
    %v1922 = vunpack.c.l.b16 %v811
    %v1923 = vunpack.c.h.b16 %v811
    %v1924 = vunpack.c.l.b16 %v812
    %v1925 = vunpack.c.h.b16 %v812
    %v1926 = vunpack.c.l.b16 %v813
    %v1927 = vunpack.c.h.b16 %v813
    %v1928 = vunpack.c.l.b16 %v814
    %v1929 = vunpack.c.h.b16 %v814
    %v1930 = vunpack.c.l.b16 %v815
    %v1931 = vunpack.c.h.b16 %v815
    %v1932 = vunpack.c.l.b16 %v816
    %v1933 = vunpack.c.h.b16 %v816
    %v1934 = vunpack.c.l.b16 %v817
    %v1935 = vunpack.c.h.b16 %v817
    %v1936 = vunpack.c.l.b16 %v818
    %v1937 = vunpack.c.h.b16 %v818
    %v1938 = vunpack.c.l.b16 %v819
    %v1939 = vunpack.c.h.b16 %v819
    %v1940 = vunpack.c.l.b16 %v820
    %v1941 = vunpack.c.h.b16 %v820
    %v1942 = vunpack.c.l.b16 %v821
    %v1943 = vunpack.c.h.b16 %v821
    %v1944 = vunpack.c.l.b16 %v822
    %v1945 = vunpack.c.h.b16 %v822
    %v1946 = vunpack.c.l.b16 %v823
    %v1947 = vunpack.c.h.b16 %v823
    %v1948 = vunpack.c.l.b16 %v824
    %v1949 = vunpack.c.h.b16 %v824
    %v1950 = vunpack.c.l.b16 %v825
    %v1951 = vunpack.c.h.b16 %v825
    %v1952 = vunpack.c.l.b16 %v826
    %v1953 = vunpack.c.h.b16 %v826
    %v1954 = vunpack.c.l.b16 %v827
    %v1955 = vunpack.c.h.b16 %v827
    %v1956 = vunpack.c.l.b16 %v828
    %v1957 = vunpack.c.h.b16 %v828
    %v1958 = vunpack.c.l.b16 %v829
    %v1959 = vunpack.c.h.b16 %v829
    %v1960 = vunpack.c.l.b16 %v830
    %v1961 = vunpack.c.h.b16 %v830
    %v1962 = vunpack.c.l.b16 %v831
    %v1963 = vunpack.c.h.b16 %v831
    %v1964 = vunpack.c.l.b16 %v832
    %v1965 = vunpack.c.h.b16 %v832
    %v1966 = vunpack.c.l.b16 %v833
    %v1967 = vunpack.c.h.b16 %v833
    %v1968 = vunpack.c.l.b16 %v834
    %v1969 = vunpack.c.h.b16 %v834
    %v1970 = vunpack.c.l.b16 %v835
    %v1971 = vunpack.c.h.b16 %v835
    %v1972 = vunpack.c.l.b16 %v836
    %v1973 = vunpack.c.h.b16 %v836
    %v1974 = vunpack.c.l.b16 %v837
    %v1975 = vunpack.c.h.b16 %v837
    %v1976 = vunpack.c.l.b16 %v838
    %v1977 = vunpack.c.h.b16 %v838
    %v1978 = vunpack.c.l.b16 %v839
    %v1979 = vunpack.c.h.b16 %v839
    %v1980 = vunpack.c.l.b16 %v840
    %v1981 = vunpack.c.h.b16 %v840
    %v1982 = vunpack.c.l.b16 %v841
    %v1983 = vunpack.c.h.b16 %v841
    %v1984 = vunpack.c.l.b16 %v842
    %v1985 = vunpack.c.h.b16 %v842
    %v1986 = vunpack.c.l.b16 %v843
    %v1987 = vunpack.c.h.b16 %v843
    %v1988 = vunpack.c.l.b16 %v844
    %v1989 = vunpack.c.h.b16 %v844
    %v1990 = vunpack.c.l.b16 %v845
    %v1991 = vunpack.c.h.b16 %v845
    %v1992 = vunpack.c.l.b16 %v846
    %v1993 = vunpack.c.h.b16 %v846
    %v1994 = vunpack.c.l.b16 %v847
    %v1995 = vunpack.c.h.b16 %v847
    %v1996 = vunpack.c.l.b16 %v848
    %v1997 = vunpack.c.h.b16 %v848
    %v1998 = vunpack.c.l.b16 %v849
    %v1999 = vunpack.c.h.b16 %v849
    %v2000 = vunpack.c.l.b16 %v850
    %v2001 = vunpack.c.h.b16 %v850
    %v2002 = vunpack.c.l.b16 %v851
    %v2003 = vunpack.c.h.b16 %v851
    %v2004 = vunpack.c.l.b16 %v852
    %v2005 = vunpack.c.h.b16 %v852
    %v2006 = vunpack.c.l.b16 %v853
    %v2007 = vunpack.c.h.b16 %v853
    %v2008 = vunpack.c.l.b16 %v854
    %v2009 = vunpack.c.h.b16 %v854
    %v2010 = vunpack.c.l.b16 %v855
    %v2011 = vunpack.c.h.b16 %v855
    %v2012 = vunpack.c.l.b16 %v856
    %v2013 = vunpack.c.h.b16 %v856
    %v2014 = vunpack.c.l.b16 %v857
    %v2015 = vunpack.c.h.b16 %v857
    %v2016 = vunpack.c.l.b16 %v858
    %v2017 = vunpack.c.h.b16 %v858
    %v2018 = vunpack.c.l.b16 %v859
    %v2019 = vunpack.c.h.b16 %v859
    %v2020 = vunpack.c.l.b16 %v860
    %v2021 = vunpack.c.h.b16 %v860
    %v2022 = vunpack.c.l.b16 %v861
    %v2023 = vunpack.c.h.b16 %v861
    %v2024 = vunpack.c.l.b16 %v862
    %v2025 = vunpack.c.h.b16 %v862
    %v2026 = vunpack.c.l.b16 %v863
    %v2027 = vunpack.c.h.b16 %v863
    %v2028 = vunpack.c.l.b16 %v864
    %v2029 = vunpack.c.h.b16 %v864
    %v2030 = vunpack.c.l.b16 %v865
    %v2031 = vunpack.c.h.b16 %v865
    %v2032 = vunpack.c.l.b16 %v866
    %v2033 = vunpack.c.h.b16 %v866
    %v2034 = vunpack.c.l.b16 %v867
    %v2035 = vunpack.c.h.b16 %v867
    %v2036 = vunpack.c.l.b16 %v868
    %v2037 = vunpack.c.h.b16 %v868
    %v2038 = vunpack.c.l.b16 %v869
    %v2039 = vunpack.c.h.b16 %v869
    %v2040 = vunpack.c.l.b16 %v870
    %v2041 = vunpack.c.h.b16 %v870
    %v2042 = vunpack.c.l.b16 %v871
    %v2043 = vunpack.c.h.b16 %v871
    %v2044 = vunpack.c.l.b16 %v872
    %v2045 = vunpack.c.h.b16 %v872
    %v2046 = vunpack.c.l.b16 %v873
    %v2047 = vunpack.c.h.b16 %v873
    %v2048 = vunpack.c.l.b16 %v874
    %v2049 = vunpack.c.h.b16 %v874
    %v2050 = vunpack.c.l.b16 %v875
    %v2051 = vunpack.c.h.b16 %v875
    %v2052 = vunpack.c.l.b16 %v876
    %v2053 = vunpack.c.h.b16 %v876
    %v2054 = vunpack.c.l.b16 %v877
    %v2055 = vunpack.c.h.b16 %v877
    %v2056 = vunpack.c.l.b16 %v878
    %v2057 = vunpack.c.h.b16 %v878
    %v2058 = vunpack.c.l.b16 %v879
    %v2059 = vunpack.c.h.b16 %v879
    %v2060 = vunpack.c.l.b16 %v880
    %v2061 = vunpack.c.h.b16 %v880
    %v2062 = vunpack.c.l.b16 %v881
    %v2063 = vunpack.c.h.b16 %v881
    %v2064 = vunpack.c.l.b16 %v882
    %v2065 = vunpack.c.h.b16 %v882
    %v2066 = vunpack.c.l.b16 %v883
    %v2067 = vunpack.c.h.b16 %v883
    %v2068 = vunpack.c.l.b16 %v884
    %v2069 = vunpack.c.h.b16 %v884
    %v2070 = vunpack.c.l.b16 %v885
    %v2071 = vunpack.c.h.b16 %v885
    %v2072 = vunpack.c.l.b16 %v886
    %v2073 = vunpack.c.h.b16 %v886
    %v2074 = vunpack.c.l.b16 %v887
    %v2075 = vunpack.c.h.b16 %v887
    %v2076 = vunpack.c.l.b16 %v888
    %v2077 = vunpack.c.h.b16 %v888
    %v2078 = vunpack.c.l.b16 %v889
    %v2079 = vunpack.c.h.b16 %v889
    %v2080 = vunpack.c.l.b16 %v890
    %v2081 = vunpack.c.h.b16 %v890
    %v2082 = vunpack.c.l.b16 %v891
    %v2083 = vunpack.c.h.b16 %v891
    %v2084 = vunpack.c.l.b16 %v892
    %v2085 = vunpack.c.h.b16 %v892
    %v2086 = vunpack.c.l.b16 %v893
    %v2087 = vunpack.c.h.b16 %v893
    %v2088 = vunpack.c.l.b16 %v894
    %v2089 = vunpack.c.h.b16 %v894
    %v2090 = vunpack.c.l.b16 %v895
    %v2091 = vunpack.c.h.b16 %v895
    %v2092 = vunpack.c.l.b16 %v896
    %v2093 = vunpack.c.h.b16 %v896
    %v2094 = vunpack.c.l.b16 %v897
    %v2095 = vunpack.c.h.b16 %v897
    %v2096 = vunpack.c.l.b16 %v898
    %v2097 = vunpack.c.h.b16 %v898
    %v2098 = vunpack.c.l.b16 %v899
    %v2099 = vunpack.c.h.b16 %v899
    %v2100 = vunpack.c.l.b16 %v900
    %v2101 = vunpack.c.h.b16 %v900
    %v2102 = vunpack.c.l.b16 %v901
    %v2103 = vunpack.c.h.b16 %v901
    %v2104 = vunpack.c.l.b16 %v902
    %v2105 = vunpack.c.h.b16 %v902
    %v2106 = vunpack.c.l.b16 %v903
    %v2107 = vunpack.c.h.b16 %v903
    %v2108 = vunpack.c.l.b16 %v904
    %v2109 = vunpack.c.h.b16 %v904
    %v2110 = vunpack.c.l.b16 %v905
    %v2111 = vunpack.c.h.b16 %v905
    %v2112 = vunpack.c.l.b16 %v906
    %v2113 = vunpack.c.h.b16 %v906
    %v2114 = vunpack.c.l.b16 %v907
    %v2115 = vunpack.c.h.b16 %v907
    %v2116 = vunpack.c.l.b16 %v908
    %v2117 = vunpack.c.h.b16 %v908
    %v2118 = vunpack.c.l.b16 %v909
    %v2119 = vunpack.c.h.b16 %v909
    %v2120 = vunpack.c.l.b16 %v910
    %v2121 = vunpack.c.h.b16 %v910
    %v2122 = vunpack.c.l.b16 %v911
    %v2123 = vunpack.c.h.b16 %v911
    %v2124 = vunpack.c.l.b16 %v912
    %v2125 = vunpack.c.h.b16 %v912
    %v2126 = vunpack.c.l.b16 %v913
    %v2127 = vunpack.c.h.b16 %v913
    %v2128 = vunpack.c.l.b16 %v914
    %v2129 = vunpack.c.h.b16 %v914
    %v2130 = vunpack.c.l.b16 %v915
    %v2131 = vunpack.c.h.b16 %v915
    %v2132 = vunpack.c.l.b16 %v916
    %v2133 = vunpack.c.h.b16 %v916
    %v2134 = vunpack.c.l.b16 %v917
    %v2135 = vunpack.c.h.b16 %v917
    %v2136 = vunpack.c.l.b16 %v918
    %v2137 = vunpack.c.h.b16 %v918
    %v2138 = vunpack.c.l.b16 %v919
    %v2139 = vunpack.c.h.b16 %v919
    %v2140 = vunpack.c.l.b16 %v920
    %v2141 = vunpack.c.h.b16 %v920
    %v2142 = vunpack.c.l.b16 %v921
    %v2143 = vunpack.c.h.b16 %v921
    %v2144 = vunpack.c.l.b16 %v922
    %v2145 = vunpack.c.h.b16 %v922
    %v2146 = vunpack.c.l.b16 %v923
    %v2147 = vunpack.c.h.b16 %v923
    %v2148 = vunpack.c.l.b16 %v924
    %v2149 = vunpack.c.h.b16 %v924
    %v2150 = vunpack.c.l.b16 %v925
    %v2151 = vunpack.c.h.b16 %v925
    %v2152 = vunpack.c.l.b16 %v926
    %v2153 = vunpack.c.h.b16 %v926
    %v2154 = vunpack.c.l.b16 %v927
    %v2155 = vunpack.c.h.b16 %v927
    %v2156 = vunpack.c.l.b16 %v928
    %v2157 = vunpack.c.h.b16 %v928
    %v2158 = vunpack.c.l.b16 %v929
    %v2159 = vunpack.c.h.b16 %v929
    %v2160 = vunpack.c.l.b16 %v930
    %v2161 = vunpack.c.h.b16 %v930
    %v2162 = vunpack.c.l.b16 %v931
    %v2163 = vunpack.c.h.b16 %v931
    %v2164 = vunpack.c.l.b16 %v932
    %v2165 = vunpack.c.h.b16 %v932
    %v2166 = vunpack.c.l.b16 %v933
    %v2167 = vunpack.c.h.b16 %v933
    %v2168 = vunpack.c.l.b16 %v934
    %v2169 = vunpack.c.h.b16 %v934
    %v2170 = vunpack.c.l.b16 %v935
    %v2171 = vunpack.c.h.b16 %v935
    %v2172 = vunpack.c.l.b16 %v936
    %v2173 = vunpack.c.h.b16 %v936
    %v2174 = vunpack.c.l.b16 %v937
    %v2175 = vunpack.c.h.b16 %v937
    %v2176 = vunpack.c.l.b16 %v938
    %v2177 = vunpack.c.h.b16 %v938
    %v2178 = vunpack.c.l.b16 %v939
    %v2179 = vunpack.c.h.b16 %v939
    %v2180 = vunpack.c.l.b16 %v940
    %v2181 = vunpack.c.h.b16 %v940
    %v2182 = vunpack.c.l.b16 %v941
    %v2183 = vunpack.c.h.b16 %v941
    %v2184 = vunpack.c.l.b16 %v942
    %v2185 = vunpack.c.h.b16 %v942
    %v2186 = vunpack.c.l.b16 %v943
    %v2187 = vunpack.c.h.b16 %v943
    %v2188 = vunpack.c.l.b16 %v944
    %v2189 = vunpack.c.h.b16 %v944
    %v2190 = vunpack.c.l.b16 %v945
    %v2191 = vunpack.c.h.b16 %v945
    %v2192 = vunpack.c.l.b16 %v946
    %v2193 = vunpack.c.h.b16 %v946
    %v2194 = vunpack.c.l.b16 %v947
    %v2195 = vunpack.c.h.b16 %v947
    %v2196 = vunpack.c.l.b16 %v948
    %v2197 = vunpack.c.h.b16 %v948
    %v2198 = vunpack.c.l.b16 %v949
    %v2199 = vunpack.c.h.b16 %v949
    %v2200 = vunpack.c.l.b16 %v950
    %v2201 = vunpack.c.h.b16 %v950
    %v2202 = vunpack.c.l.b16 %v951
    %v2203 = vunpack.c.h.b16 %v951
    %v2204 = vunpack.c.l.b16 %v952
    %v2205 = vunpack.c.h.b16 %v952
    %v2206 = vunpack.c.l.b16 %v953
    %v2207 = vunpack.c.h.b16 %v953
    %v2208 = vunpack.c.l.b16 %v954
    %v2209 = vunpack.c.h.b16 %v954
    %v2210 = vunpack.c.l.b16 %v955
    %v2211 = vunpack.c.h.b16 %v955
    %v2212 = vunpack.c.l.b16 %v956
    %v2213 = vunpack.c.h.b16 %v956
    %v2214 = vunpack.c.l.b16 %v957
    %v2215 = vunpack.c.h.b16 %v957
    %v2216 = vunpack.c.l.b16 %v958
    %v2217 = vunpack.c.h.b16 %v958
    %v2218 = vunpack.c.l.b16 %v959
    %v2219 = vunpack.c.h.b16 %v959
    %v2220 = vunpack.c.l.b16 %v960
    %v2221 = vunpack.c.h.b16 %v960
    %v2222 = vunpack.c.l.b16 %v961
    %v2223 = vunpack.c.h.b16 %v961
    %v2224 = vunpack.c.l.b16 %v962
    %v2225 = vunpack.c.h.b16 %v962
    %v2226 = vunpack.c.l.b16 %v963
    %v2227 = vunpack.c.h.b16 %v963
    %v2228 = vunpack.c.l.b16 %v964
    %v2229 = vunpack.c.h.b16 %v964
    %v2230 = vunpack.c.l.b16 %v965
    %v2231 = vunpack.c.h.b16 %v965
    %v2232 = vunpack.c.l.b16 %v966
    %v2233 = vunpack.c.h.b16 %v966
    %v2234 = vunpack.c.l.b16 %v967
    %v2235 = vunpack.c.h.b16 %v967
    %v2236 = vunpack.c.l.b16 %v968
    %v2237 = vunpack.c.h.b16 %v968
    %v2238 = vunpack.c.l.b16 %v969
    %v2239 = vunpack.c.h.b16 %v969
    %v2240 = vunpack.c.l.b16 %v970
    %v2241 = vunpack.c.h.b16 %v970
    %v2242 = vunpack.c.l.b16 %v971
    %v2243 = vunpack.c.h.b16 %v971
    %v2244 = vunpack.c.l.b16 %v972
    %v2245 = vunpack.c.h.b16 %v972
    %v2246 = vunpack.c.l.b16 %v973
    %v2247 = vunpack.c.h.b16 %v973
    %v2248 = vunpack.c.l.b16 %v974
    %v2249 = vunpack.c.h.b16 %v974
    %v2250 = vunpack.c.l.b16 %v975
    %v2251 = vunpack.c.h.b16 %v975
    %v2252 = vunpack.c.l.b16 %v976
    %v2253 = vunpack.c.h.b16 %v976
    %v2254 = vunpack.c.l.b16 %v977
    %v2255 = vunpack.c.h.b16 %v977
    %v2256 = vunpack.c.l.b16 %v978
    %v2257 = vunpack.c.h.b16 %v978
    %v2258 = vunpack.c.l.b16 %v979
    %v2259 = vunpack.c.h.b16 %v979
    %v2260 = vunpack.c.l.b16 %v980
    %v2261 = vunpack.c.h.b16 %v980
    %v2262 = vunpack.c.l.b16 %v981
    %v2263 = vunpack.c.h.b16 %v981
    %v2264 = vunpack.c.l.b16 %v982
    %v2265 = vunpack.c.h.b16 %v982
    %v2266 = vunpack.c.l.b16 %v983
    %v2267 = vunpack.c.h.b16 %v983
    %v2268 = vunpack.c.l.b16 %v984
    %v2269 = vunpack.c.h.b16 %v984
    %v2270 = vunpack.c.l.b16 %v985
    %v2271 = vunpack.c.h.b16 %v985
    %v2272 = vunpack.c.l.b16 %v986
    %v2273 = vunpack.c.h.b16 %v986
    %v2274 = vunpack.c.l.b16 %v987
    %v2275 = vunpack.c.h.b16 %v987
    %v2276 = vunpack.c.l.b16 %v988
    %v2277 = vunpack.c.h.b16 %v988
    %v2278 = vunpack.c.l.b16 %v989
    %v2279 = vunpack.c.h.b16 %v989
    %v2280 = vunpack.c.l.b16 %v990
    %v2281 = vunpack.c.h.b16 %v990
    %v2282 = vunpack.c.l.b16 %v991
    %v2283 = vunpack.c.h.b16 %v991
    %v2284 = vunpack.c.l.b16 %v992
    %v2285 = vunpack.c.h.b16 %v992
    %v2286 = vunpack.c.l.b16 %v993
    %v2287 = vunpack.c.h.b16 %v993
    %v2288 = vunpack.c.l.b16 %v994
    %v2289 = vunpack.c.h.b16 %v994
    %v2290 = vunpack.c.l.b16 %v995
    %v2291 = vunpack.c.h.b16 %v995
    %v2292 = vunpack.c.l.b16 %v996
    %v2293 = vunpack.c.h.b16 %v996
    %v2294 = vunpack.c.l.b16 %v997
    %v2295 = vunpack.c.h.b16 %v997
    %v2296 = vunpack.c.l.b16 %v998
    %v2297 = vunpack.c.h.b16 %v998
    %v2298 = vunpack.c.l.b16 %v999
    %v2299 = vunpack.c.h.b16 %v999
    %v2300 = vunpack.c.l.b16 %v1000
    %v2301 = vunpack.c.h.b16 %v1000
    %v2302 = vunpack.c.l.b16 %v1001
    %v2303 = vunpack.c.h.b16 %v1001
    %v2304 = vunpack.c.l.b16 %v1002
    %v2305 = vunpack.c.h.b16 %v1002
    %v2306 = vunpack.c.l.b16 %v1003
    %v2307 = vunpack.c.h.b16 %v1003
    %v2308 = vunpack.c.l.b16 %v1004
    %v2309 = vunpack.c.h.b16 %v1004
    %v2310 = vunpack.c.l.b16 %v1005
    %v2311 = vunpack.c.h.b16 %v1005
    %v2312 = vunpack.c.l.b16 %v1006
    %v2313 = vunpack.c.h.b16 %v1006
    %v2314 = vunpack.c.l.b16 %v1007
    %v2315 = vunpack.c.h.b16 %v1007
    %v2316 = vunpack.c.l.b16 %v1008
    %v2317 = vunpack.c.h.b16 %v1008
    %v2318 = vunpack.c.l.b16 %v1009
    %v2319 = vunpack.c.h.b16 %v1009
    %v2320 = vunpack.c.l.b16 %v1010
    %v2321 = vunpack.c.h.b16 %v1010
    %v2322 = vunpack.c.l.b16 %v1011
    %v2323 = vunpack.c.h.b16 %v1011
    %v2324 = vunpack.c.l.b16 %v1012
    %v2325 = vunpack.c.h.b16 %v1012
    %v2326 = vunpack.c.l.b16 %v1013
    %v2327 = vunpack.c.h.b16 %v1013
    %v2328 = vunpack.c.l.b16 %v1014
    %v2329 = vunpack.c.h.b16 %v1014
    %v2330 = vunpack.c.l.b16 %v1015
    %v2331 = vunpack.c.h.b16 %v1015
    %v2332 = vunpack.c.l.b16 %v1016
    %v2333 = vunpack.c.h.b16 %v1016
    %v2334 = vunpack.c.l.b16 %v1017
    %v2335 = vunpack.c.h.b16 %v1017
    %v2336 = vunpack.c.l.b16 %v1018
    %v2337 = vunpack.c.h.b16 %v1018
    %v2338 = vunpack.c.l.b16 %v1019
    %v2339 = vunpack.c.h.b16 %v1019
    %v2340 = vunpack.c.l.b16 %v1020
    %v2341 = vunpack.c.h.b16 %v1020
    %v2342 = vunpack.c.l.b16 %v1021
    %v2343 = vunpack.c.h.b16 %v1021
    %v2344 = vunpack.c.l.b16 %v1022
    %v2345 = vunpack.c.h.b16 %v1022
    %v2346 = vunpack.c.l.b16 %v1023
    %v2347 = vunpack.c.h.b16 %v1023
    %v2348 = vunpack.c.l.b16 %v1024
    %v2349 = vunpack.c.h.b16 %v1024
    %v2350 = vunpack.c.l.b16 %v1025
    %v2351 = vunpack.c.h.b16 %v1025
    %v2352 = vunpack.c.l.b16 %v1026
    %v2353 = vunpack.c.h.b16 %v1026
    %v2354 = vunpack.c.l.b16 %v1027
    %v2355 = vunpack.c.h.b16 %v1027
    %v2356 = vunpack.c.l.b16 %v1028
    %v2357 = vunpack.c.h.b16 %v1028
    %v2358 = vunpack.c.l.b16 %v1029
    %v2359 = vunpack.c.h.b16 %v1029
    %v2360 = vunpack.c.l.b16 %v1030
    %v2361 = vunpack.c.h.b16 %v1030
    %v2362 = vunpack.c.l.b16 %v1031
    %v2363 = vunpack.c.h.b16 %v1031
    %v2364 = vunpack.c.l.b16 %v1032
    %v2365 = vunpack.c.h.b16 %v1032
    %v2366 = vunpack.c.l.b16 %v1033
    %v2367 = vunpack.c.h.b16 %v1033
    %v2368 = vunpack.c.l.b16 %v1034
    %v2369 = vunpack.c.h.b16 %v1034
    %v2370 = vunpack.c.l.b16 %v1035
    %v2371 = vunpack.c.h.b16 %v1035
    %v2372 = vunpack.c.l.b16 %v1036
    %v2373 = vunpack.c.h.b16 %v1036
    %v2374 = vunpack.c.l.b16 %v1037
    %v2375 = vunpack.c.h.b16 %v1037
    %v2376 = vunpack.c.l.b16 %v1038
    %v2377 = vunpack.c.h.b16 %v1038
    %v2378 = vunpack.c.l.b16 %v1039
    %v2379 = vunpack.c.h.b16 %v1039
    %v2380 = vunpack.c.l.b16 %v1040
    %v2381 = vunpack.c.h.b16 %v1040
    %v2382 = vunpack.c.l.b16 %v1041
    %v2383 = vunpack.c.h.b16 %v1041
    %v2384 = vunpack.c.l.b16 %v1042
    %v2385 = vunpack.c.h.b16 %v1042
    %v2386 = vunpack.c.l.b16 %v1043
    %v2387 = vunpack.c.h.b16 %v1043
    %v2388 = vunpack.c.l.b16 %v1044
    %v2389 = vunpack.c.h.b16 %v1044
    %v2390 = vunpack.c.l.b16 %v1045
    %v2391 = vunpack.c.h.b16 %v1045
    %v2392 = vunpack.c.l.b16 %v1046
    %v2393 = vunpack.c.h.b16 %v1046
    %v2394 = vunpack.c.l.b16 %v1047
    %v2395 = vunpack.c.h.b16 %v1047
    %v2396 = vunpack.c.l.b16 %v1048
    %v2397 = vunpack.c.h.b16 %v1048
    %v2398 = vunpack.c.l.b16 %v1049
    %v2399 = vunpack.c.h.b16 %v1049
    %v2400 = vunpack.c.l.b16 %v1050
    %v2401 = vunpack.c.h.b16 %v1050
    %v2402 = vunpack.c.l.b16 %v1051
    %v2403 = vunpack.c.h.b16 %v1051
    %v2404 = vunpack.c.l.b16 %v1052
    %v2405 = vunpack.c.h.b16 %v1052
    %v2406 = vunpack.c.l.b16 %v1053
    %v2407 = vunpack.c.h.b16 %v1053
    %v2408 = vunpack.c.l.b16 %v1054
    %v2409 = vunpack.c.h.b16 %v1054
    %v2410 = vunpack.c.l.b16 %v1055
    %v2411 = vunpack.c.h.b16 %v1055
    %v2412 = vunpack.c.l.b16 %v1056
    %v2413 = vunpack.c.h.b16 %v1056
    %v2414 = vunpack.c.l.b16 %v1057
    %v2415 = vunpack.c.h.b16 %v1057
    %v2416 = vunpack.c.l.b16 %v1058
    %v2417 = vunpack.c.h.b16 %v1058
    %v2418 = vunpack.c.l.b16 %v1059
    %v2419 = vunpack.c.h.b16 %v1059
    %v2420 = vunpack.c.l.b16 %v1060
    %v2421 = vunpack.c.h.b16 %v1060
    %v2422 = vunpack.c.l.b16 %v1061
    %v2423 = vunpack.c.h.b16 %v1061
    %v2424 = vunpack.c.l.b16 %v1062
    %v2425 = vunpack.c.h.b16 %v1062
    %v2426 = vunpack.c.l.b16 %v1063
    %v2427 = vunpack.c.h.b16 %v1063
    %v2428 = vunpack.c.l.b16 %v1064
    %v2429 = vunpack.c.h.b16 %v1064
    %v2430 = vunpack.c.l.b16 %v1065
    %v2431 = vunpack.c.h.b16 %v1065
    %v2432 = vunpack.c.l.b16 %v1066
    %v2433 = vunpack.c.h.b16 %v1066
    %v2434 = vunpack.c.l.b16 %v1067
    %v2435 = vunpack.c.h.b16 %v1067
    %v2436 = vunpack.c.l.b16 %v1068
    %v2437 = vunpack.c.h.b16 %v1068
    %v2438 = vunpack.c.l.b16 %v1069
    %v2439 = vunpack.c.h.b16 %v1069
    %v2440 = vunpack.c.l.b16 %v1070
    %v2441 = vunpack.c.h.b16 %v1070
    %v2442 = vunpack.c.l.b16 %v1071
    %v2443 = vunpack.c.h.b16 %v1071
    %v2444 = vunpack.c.l.b16 %v1072
    %v2445 = vunpack.c.h.b16 %v1072
    %v2446 = vunpack.c.l.b16 %v1073
    %v2447 = vunpack.c.h.b16 %v1073
    %v2448 = vunpack.c.l.b16 %v1074
    %v2449 = vunpack.c.h.b16 %v1074
    %v2450 = vunpack.c.l.b16 %v1075
    %v2451 = vunpack.c.h.b16 %v1075
    %v2452 = vunpack.c.l.b16 %v1076
    %v2453 = vunpack.c.h.b16 %v1076
    %v2454 = vunpack.c.l.b16 %v1077
    %v2455 = vunpack.c.h.b16 %v1077
    %v2456 = vunpack.c.l.b16 %v1078
    %v2457 = vunpack.c.h.b16 %v1078
    %v2458 = vunpack.c.l.b16 %v1079
    %v2459 = vunpack.c.h.b16 %v1079
    %v2460 = vunpack.c.l.b16 %v1080
    %v2461 = vunpack.c.h.b16 %v1080
    %v2462 = vunpack.c.l.b16 %v1081
    %v2463 = vunpack.c.h.b16 %v1081
    %v2464 = vunpack.c.l.b16 %v1082
    %v2465 = vunpack.c.h.b16 %v1082
    %v2466 = vunpack.c.l.b16 %v1083
    %v2467 = vunpack.c.h.b16 %v1083
    %v2468 = vunpack.c.l.b16 %v1084
    %v2469 = vunpack.c.h.b16 %v1084
    %v2470 = vunpack.c.l.b16 %v1085
    %v2471 = vunpack.c.h.b16 %v1085
    %v2472 = vunpack.c.l.b16 %v1086
    %v2473 = vunpack.c.h.b16 %v1086
    %v2474 = vunpack.c.l.b16 %v1087
    %v2475 = vunpack.c.h.b16 %v1087
    %v2476 = vunpack.c.l.b16 %v1088
    %v2477 = vunpack.c.h.b16 %v1088
    %v2478 = vunpack.c.l.b16 %v1089
    %v2479 = vunpack.c.h.b16 %v1089
    %v2480 = vunpack.c.l.b16 %v1090
    %v2481 = vunpack.c.h.b16 %v1090
    %v2482 = vunpack.c.l.b16 %v1091
    %v2483 = vunpack.c.h.b16 %v1091
    %v2484 = vunpack.c.l.b16 %v1092
    %v2485 = vunpack.c.h.b16 %v1092
    %v2486 = vunpack.c.l.b16 %v1093
    %v2487 = vunpack.c.h.b16 %v1093
    %v2488 = vunpack.c.l.b16 %v1094
    %v2489 = vunpack.c.h.b16 %v1094
    %v2490 = vunpack.c.l.b16 %v1095
    %v2491 = vunpack.c.h.b16 %v1095
    %v2492 = vunpack.c.l.b16 %v1096
    %v2493 = vunpack.c.h.b16 %v1096
    %v2494 = vunpack.c.l.b16 %v1097
    %v2495 = vunpack.c.h.b16 %v1097
    %v2496 = vunpack.c.l.b16 %v1098
    %v2497 = vunpack.c.h.b16 %v1098
    %v2498 = vunpack.c.l.b16 %v1099
    %v2499 = vunpack.c.h.b16 %v1099
    %v2500 = vunpack.c.l.b16 %v1100
    %v2501 = vunpack.c.h.b16 %v1100
    %v2502 = vunpack.c.l.b16 %v1101
    %v2503 = vunpack.c.h.b16 %v1101
    %v2504 = vunpack.c.l.b16 %v1102
    %v2505 = vunpack.c.h.b16 %v1102
    %v2506 = vunpack.c.l.b16 %v1103
    %v2507 = vunpack.c.h.b16 %v1103
    %v2508 = vunpack.c.l.b16 %v1104
    %v2509 = vunpack.c.h.b16 %v1104
    %v2510 = vunpack.c.l.b16 %v1105
    %v2511 = vunpack.c.h.b16 %v1105
    %v2512 = vunpack.c.l.b16 %v1106
    %v2513 = vunpack.c.h.b16 %v1106
    %v2514 = vunpack.c.l.b16 %v1107
    %v2515 = vunpack.c.h.b16 %v1107
    %v2516 = vunpack.c.l.b16 %v1108
    %v2517 = vunpack.c.h.b16 %v1108
    %v2518 = vunpack.c.l.b16 %v1109
    %v2519 = vunpack.c.h.b16 %v1109
    %v2520 = vunpack.c.l.b16 %v1110
    %v2521 = vunpack.c.h.b16 %v1110
    %v2522 = vunpack.c.l.b16 %v1111
    %v2523 = vunpack.c.h.b16 %v1111
    %v2524 = vunpack.c.l.b16 %v1112
    %v2525 = vunpack.c.h.b16 %v1112
    %v2526 = vunpack.c.l.b16 %v1113
    %v2527 = vunpack.c.h.b16 %v1113
    %v2528 = vunpack.c.l.b16 %v1114
    %v2529 = vunpack.c.h.b16 %v1114
    %v2530 = vunpack.c.l.b16 %v1115
    %v2531 = vunpack.c.h.b16 %v1115
    %v2532 = vunpack.c.l.b16 %v1116
    %v2533 = vunpack.c.h.b16 %v1116
    %v2534 = vunpack.c.l.b16 %v1117
    %v2535 = vunpack.c.h.b16 %v1117
    %v2536 = vunpack.c.l.b16 %v1118
    %v2537 = vunpack.c.h.b16 %v1118
    %v2538 = vunpack.c.l.b16 %v1119
    %v2539 = vunpack.c.h.b16 %v1119
    %v2540 = vunpack.c.l.b16 %v1120
    %v2541 = vunpack.c.h.b16 %v1120
    %v2542 = vunpack.c.l.b16 %v1121
    %v2543 = vunpack.c.h.b16 %v1121
    %v2544 = vunpack.c.l.b16 %v1122
    %v2545 = vunpack.c.h.b16 %v1122
    %v2546 = vunpack.c.l.b16 %v1123
    %v2547 = vunpack.c.h.b16 %v1123
    %v2548 = vunpack.c.l.b16 %v1124
    %v2549 = vunpack.c.h.b16 %v1124
    %v2550 = vunpack.c.l.b16 %v1125
    %v2551 = vunpack.c.h.b16 %v1125
    %v2552 = vunpack.c.l.b16 %v1126
    %v2553 = vunpack.c.h.b16 %v1126
    %v2554 = vunpack.c.l.b16 %v1127
    %v2555 = vunpack.c.h.b16 %v1127
    %v2556 = vunpack.c.l.b16 %v1128
    %v2557 = vunpack.c.h.b16 %v1128
    %v2558 = vunpack.c.l.b16 %v1129
    %v2559 = vunpack.c.h.b16 %v1129
    %v2560 = vunpack.c.l.b16 %v1130
    %v2561 = vunpack.c.h.b16 %v1130
    %v2562 = vunpack.c.l.b16 %v1131
    %v2563 = vunpack.c.h.b16 %v1131
    %v2564 = vunpack.c.l.b16 %v1132
    %v2565 = vunpack.c.h.b16 %v1132
    %v2566 = vunpack.c.l.b16 %v1133
    %v2567 = vunpack.c.h.b16 %v1133
    %v2568 = vunpack.c.l.b16 %v1134
    %v2569 = vunpack.c.h.b16 %v1134
    %v2570 = vunpack.c.l.b16 %v1135
    %v2571 = vunpack.c.h.b16 %v1135
    %v2572 = vunpack.c.l.b16 %v1136
    %v2573 = vunpack.c.h.b16 %v1136
    %v2574 = vunpack.c.l.b16 %v1137
    %v2575 = vunpack.c.h.b16 %v1137
    %v2576 = vunpack.c.l.b16 %v1138
    %v2577 = vunpack.c.h.b16 %v1138
    %v2578 = vunpack.c.l.b16 %v1139
    %v2579 = vunpack.c.h.b16 %v1139
    %v2580 = vunpack.c.l.b16 %v1140
    %v2581 = vunpack.c.h.b16 %v1140
    %v2582 = vunpack.c.l.b16 %v1141
    %v2583 = vunpack.c.h.b16 %v1141
    %v2584 = vunpack.c.l.b16 %v1142
    %v2585 = vunpack.c.h.b16 %v1142
    %v2586 = vunpack.c.l.b16 %v1143
    %v2587 = vunpack.c.h.b16 %v1143
    %v2588 = vunpack.c.l.b16 %v1144
    %v2589 = vunpack.c.h.b16 %v1144
    %v2590 = vunpack.c.l.b16 %v1145
    %v2591 = vunpack.c.h.b16 %v1145
    %v2592 = vunpack.c.l.b16 %v1146
    %v2593 = vunpack.c.h.b16 %v1146
    %v2594 = vunpack.c.l.b16 %v1147
    %v2595 = vunpack.c.h.b16 %v1147
    %v2596 = vunpack.c.l.b16 %v1148
    %v2597 = vunpack.c.h.b16 %v1148
    %v2598 = vunpack.c.l.b16 %v1149
    %v2599 = vunpack.c.h.b16 %v1149
    %v2600 = vunpack.c.l.b16 %v1150
    %v2601 = vunpack.c.h.b16 %v1150
    %v2602 = vunpack.c.l.b16 %v1151
    %v2603 = vunpack.c.h.b16 %v1151
    %v2604 = vunpack.c.l.b16 %v1152
    %v2605 = vunpack.c.h.b16 %v1152
    %v2606 = vunpack.c.l.b16 %v1153
    %v2607 = vunpack.c.h.b16 %v1153
    %v2608 = vunpack.c.l.b16 %v1154
    %v2609 = vunpack.c.h.b16 %v1154
    %v2610 = vunpack.c.l.b16 %v1155
    %v2611 = vunpack.c.h.b16 %v1155
    %v2612 = vunpack.c.l.b16 %v1156
    %v2613 = vunpack.c.h.b16 %v1156
    %v2614 = vunpack.c.l.b16 %v1157
    %v2615 = vunpack.c.h.b16 %v1157
    %v2616 = vunpack.c.l.b16 %v1158
    %v2617 = vunpack.c.h.b16 %v1158
    %v2618 = vunpack.c.l.b16 %v1159
    %v2619 = vunpack.c.h.b16 %v1159
    %v2620 = vunpack.c.l.b16 %v1160
    %v2621 = vunpack.c.h.b16 %v1160
    %v2622 = vunpack.c.l.b16 %v1161
    %v2623 = vunpack.c.h.b16 %v1161
    %v2624 = vunpack.c.l.b16 %v1162
    %v2625 = vunpack.c.h.b16 %v1162
    %v2626 = vunpack.c.l.b16 %v1163
    %v2627 = vunpack.c.h.b16 %v1163
    %v2628 = vunpack.c.l.b16 %v1164
    %v2629 = vunpack.c.h.b16 %v1164
    %v2630 = vunpack.c.l.b16 %v1165
    %v2631 = vunpack.c.h.b16 %v1165
    %v2632 = vunpack.c.l.b16 %v1166
    %v2633 = vunpack.c.h.b16 %v1166
    %v2634 = vunpack.c.l.b16 %v1167
    %v2635 = vunpack.c.h.b16 %v1167
    %v2636 = vunpack.c.l.b16 %v1168
    %v2637 = vunpack.c.h.b16 %v1168
    %v2638 = vunpack.c.l.b16 %v1169
    %v2639 = vunpack.c.h.b16 %v1169
    %v2640 = vunpack.c.l.b16 %v1170
    %v2641 = vunpack.c.h.b16 %v1170
    %v2642 = vunpack.c.l.b16 %v1171
    %v2643 = vunpack.c.h.b16 %v1171
    %v2644 = vunpack.c.l.b16 %v1172
    %v2645 = vunpack.c.h.b16 %v1172
    %v2646 = vunpack.c.l.b16 %v1173
    %v2647 = vunpack.c.h.b16 %v1173
    %v2648 = vunpack.c.l.b16 %v1174
    %v2649 = vunpack.c.h.b16 %v1174
    %v2650 = vunpack.c.l.b16 %v1175
    %v2651 = vunpack.c.h.b16 %v1175
    %v2652 = vunpack.c.l.b16 %v1176
    %v2653 = vunpack.c.h.b16 %v1176
    %v2654 = vunpack.c.l.b16 %v1177
    %v2655 = vunpack.c.h.b16 %v1177
    %v2656 = vunpack.c.l.b16 %v1178
    %v2657 = vunpack.c.h.b16 %v1178
    %v2658 = vunpack.c.l.b16 %v1179
    %v2659 = vunpack.c.h.b16 %v1179
    %v2660 = vunpack.c.l.b16 %v1180
    %v2661 = vunpack.c.h.b16 %v1180
    %v2662 = vunpack.c.l.b16 %v1181
    %v2663 = vunpack.c.h.b16 %v1181
    %v2664 = vunpack.c.l.b16 %v1182
    %v2665 = vunpack.c.h.b16 %v1182
    %v2666 = vunpack.c.l.b16 %v1183
    %v2667 = vunpack.c.h.b16 %v1183
    %v2668 = vunpack.c.l.b16 %v1184
    %v2669 = vunpack.c.h.b16 %v1184
    %v2670 = vunpack.c.l.b16 %v1185
    %v2671 = vunpack.c.h.b16 %v1185
    %v2672 = vunpack.c.l.b16 %v1186
    %v2673 = vunpack.c.h.b16 %v1186
    %v2674 = vunpack.c.l.b16 %v1187
    %v2675 = vunpack.c.h.b16 %v1187
    %v2676 = vunpack.c.l.b16 %v1188
    %v2677 = vunpack.c.h.b16 %v1188
    %v2678 = vunpack.c.l.b16 %v1189
    %v2679 = vunpack.c.h.b16 %v1189
    %v2680 = vunpack.c.l.b16 %v1190
    %v2681 = vunpack.c.h.b16 %v1190
    %v2682 = vunpack.c.l.b16 %v1191
    %v2683 = vunpack.c.h.b16 %v1191
    %v2684 = vunpack.c.l.b16 %v1192
    %v2685 = vunpack.c.h.b16 %v1192
    %v2686 = vunpack.c.l.b16 %v1193
    %v2687 = vunpack.c.h.b16 %v1193
    %v2688 = vunpack.c.l.b16 %v1194
    %v2689 = vunpack.c.h.b16 %v1194
    %v2690 = vunpack.c.l.b16 %v1195
    %v2691 = vunpack.c.h.b16 %v1195
    %v2692 = vunpack.c.l.b16 %v1196
    %v2693 = vunpack.c.h.b16 %v1196
    %v2694 = vunpack.c.l.b16 %v1197
    %v2695 = vunpack.c.h.b16 %v1197
    %v2696 = vunpack.c.l.b16 %v1198
    %v2697 = vunpack.c.h.b16 %v1198
    %v2698 = vunpack.c.l.b16 %v1199
    %v2699 = vunpack.c.h.b16 %v1199
    %v2700 = vunpack.c.l.b16 %v1200
    %v2701 = vunpack.c.h.b16 %v1200
    %v2702 = vunpack.c.l.b16 %v1201
    %v2703 = vunpack.c.h.b16 %v1201
    %v2704 = vunpack.c.l.b16 %v1202
    %v2705 = vunpack.c.h.b16 %v1202
    %v2706 = vunpack.c.l.b16 %v1203
    %v2707 = vunpack.c.h.b16 %v1203
    %v2708 = vunpack.c.l.b16 %v1204
    %v2709 = vunpack.c.h.b16 %v1204
    %v2710 = vunpack.c.l.b16 %v1205
    %v2711 = vunpack.c.h.b16 %v1205
    %v2712 = vunpack.c.l.b16 %v1206
    %v2713 = vunpack.c.h.b16 %v1206
    %v2714 = vunpack.c.l.b16 %v1207
    %v2715 = vunpack.c.h.b16 %v1207
    %v2716 = vunpack.c.l.b16 %v1208
    %v2717 = vunpack.c.h.b16 %v1208
    %v2718 = vunpack.c.l.b16 %v1209
    %v2719 = vunpack.c.h.b16 %v1209
    %v2720 = vunpack.c.l.b16 %v1210
    %v2721 = vunpack.c.h.b16 %v1210
    %v2722 = vunpack.c.l.b16 %v1211
    %v2723 = vunpack.c.h.b16 %v1211
    %v2724 = vunpack.c.l.b16 %v1212
    %v2725 = vunpack.c.h.b16 %v1212
    %v2726 = vunpack.c.l.b16 %v1213
    %v2727 = vunpack.c.h.b16 %v1213
    %v2728 = vunpack.c.l.b16 %v1214
    %v2729 = vunpack.c.h.b16 %v1214
    %v2730 = vunpack.c.l.b16 %v1215
    %v2731 = vunpack.c.h.b16 %v1215
    %v2732 = vunpack.c.l.b16 %v1216
    %v2733 = vunpack.c.h.b16 %v1216
    %v2734 = vunpack.c.l.b16 %v1217
    %v2735 = vunpack.c.h.b16 %v1217
    %v2736 = vunpack.c.l.b16 %v1218
    %v2737 = vunpack.c.h.b16 %v1218
    %v2738 = vunpack.c.l.b16 %v1219
    %v2739 = vunpack.c.h.b16 %v1219
    %v2740 = vunpack.c.l.b16 %v1220
    %v2741 = vunpack.c.h.b16 %v1220
    %v2742 = vunpack.c.l.b16 %v1221
    %v2743 = vunpack.c.h.b16 %v1221
    %v2744 = vunpack.c.l.b16 %v1222
    %v2745 = vunpack.c.h.b16 %v1222
    %v2746 = vunpack.c.l.b16 %v1223
    %v2747 = vunpack.c.h.b16 %v1223
    %v2748 = vunpack.c.l.b16 %v1224
    %v2749 = vunpack.c.h.b16 %v1224
    %v2750 = vunpack.c.l.b16 %v1225
    %v2751 = vunpack.c.h.b16 %v1225
    %v2752 = vunpack.c.l.b16 %v1226
    %v2753 = vunpack.c.h.b16 %v1226
    %v2754 = vunpack.c.l.b16 %v1227
    %v2755 = vunpack.c.h.b16 %v1227
    %v2756 = vunpack.c.l.b16 %v1228
    %v2757 = vunpack.c.h.b16 %v1228
    %v2758 = vunpack.c.l.b16 %v1229
    %v2759 = vunpack.c.h.b16 %v1229
    %v2760 = vunpack.c.l.b16 %v1230
    %v2761 = vunpack.c.h.b16 %v1230
    %v2762 = vunpack.c.l.b16 %v1231
    %v2763 = vunpack.c.h.b16 %v1231
    %v2764 = vunpack.c.l.b16 %v1232
    %v2765 = vunpack.c.h.b16 %v1232
    %v2766 = vunpack.c.l.b16 %v1233
    %v2767 = vunpack.c.h.b16 %v1233
    %v2768 = vunpack.c.l.b16 %v1234
    %v2769 = vunpack.c.h.b16 %v1234
    %v2770 = vunpack.c.l.b16 %v1235
    %v2771 = vunpack.c.h.b16 %v1235
    %v2772 = vunpack.c.l.b16 %v1236
    %v2773 = vunpack.c.h.b16 %v1236
    %v2774 = vunpack.c.l.b16 %v1237
    %v2775 = vunpack.c.h.b16 %v1237
    %v2776 = vunpack.c.l.b16 %v1238
    %v2777 = vunpack.c.h.b16 %v1238
    %v2778 = vunpack.c.l.b16 %v1239
    %v2779 = vunpack.c.h.b16 %v1239
    %v2780 = vunpack.c.l.b16 %v1240
    %v2781 = vunpack.c.h.b16 %v1240
    %v2782 = vunpack.c.l.b16 %v1241
    %v2783 = vunpack.c.h.b16 %v1241
    %v2784 = vunpack.c.l.b16 %v1242
    %v2785 = vunpack.c.h.b16 %v1242
    %v2786 = vunpack.c.l.b16 %v1243
    %v2787 = vunpack.c.h.b16 %v1243
    %v2788 = vunpack.c.l.b16 %v1244
    %v2789 = vunpack.c.h.b16 %v1244
    %v2790 = vunpack.c.l.b16 %v1245
    %v2791 = vunpack.c.h.b16 %v1245
    %v2792 = vunpack.c.l.b16 %v1246
    %v2793 = vunpack.c.h.b16 %v1246
    %v2794 = vunpack.c.l.b16 %v1247
    %v2795 = vunpack.c.h.b16 %v1247
    %v2796 = vunpack.c.l.b16 %v1248
    %v2797 = vunpack.c.h.b16 %v1248
    %v2798 = vunpack.c.l.b16 %v1249
    %v2799 = vunpack.c.h.b16 %v1249
    %v2800 = vunpack.c.l.b16 %v1250
    %v2801 = vunpack.c.h.b16 %v1250
    %v2802 = vunpack.c.l.b16 %v1251
    %v2803 = vunpack.c.h.b16 %v1251
    %v2804 = vunpack.c.l.b16 %v1252
    %v2805 = vunpack.c.h.b16 %v1252
    %v2806 = vunpack.c.l.b16 %v1253
    %v2807 = vunpack.c.h.b16 %v1253
    %v2808 = vunpack.c.l.b16 %v1254
    %v2809 = vunpack.c.h.b16 %v1254
    %v2810 = vunpack.c.l.b16 %v1255
    %v2811 = vunpack.c.h.b16 %v1255
    %v2812 = vunpack.c.l.b16 %v1256
    %v2813 = vunpack.c.h.b16 %v1256
    %v2814 = vunpack.c.l.b16 %v1257
    %v2815 = vunpack.c.h.b16 %v1257
    %v2816 = vunpack.c.l.b16 %v1258
    %v2817 = vunpack.c.h.b16 %v1258
    %v2818 = vunpack.c.l.b16 %v1259
    %v2819 = vunpack.c.h.b16 %v1259
    %v2820 = vunpack.c.l.b16 %v1260
    %v2821 = vunpack.c.h.b16 %v1260
    %v2822 = vunpack.c.l.b16 %v1261
    %v2823 = vunpack.c.h.b16 %v1261
    %v2824 = vunpack.c.l.b16 %v1262
    %v2825 = vunpack.c.h.b16 %v1262
    %v2826 = vunpack.c.l.b16 %v1263
    %v2827 = vunpack.c.h.b16 %v1263
    %v2828 = vunpack.c.l.b16 %v1264
    %v2829 = vunpack.c.h.b16 %v1264
    %v2830 = vunpack.c.l.b16 %v1265
    %v2831 = vunpack.c.h.b16 %v1265
    %v2832 = vunpack.c.l.b16 %v1266
    %v2833 = vunpack.c.h.b16 %v1266
    %v2834 = vunpack.c.l.b16 %v1267
    %v2835 = vunpack.c.h.b16 %v1267
    %v2836 = vunpack.c.l.b16 %v1268
    %v2837 = vunpack.c.h.b16 %v1268
    %v2838 = vunpack.c.l.b16 %v1269
    %v2839 = vunpack.c.h.b16 %v1269
    %v2840 = vunpack.c.l.b16 %v1270
    %v2841 = vunpack.c.h.b16 %v1270
    %v2842 = vunpack.c.l.b16 %v1271
    %v2843 = vunpack.c.h.b16 %v1271
    %v2844 = vunpack.c.l.b16 %v1272
    %v2845 = vunpack.c.h.b16 %v1272
    %v2846 = vunpack.c.l.b16 %v1273
    %v2847 = vunpack.c.h.b16 %v1273
    %v2848 = vunpack.c.l.b16 %v1274
    %v2849 = vunpack.c.h.b16 %v1274
    %v2850 = vunpack.c.l.b16 %v1275
    %v2851 = vunpack.c.h.b16 %v1275
    %v2852 = vunpack.c.l.b16 %v1276
    %v2853 = vunpack.c.h.b16 %v1276
    %v2854 = vunpack.c.l.b16 %v1277
    %v2855 = vunpack.c.h.b16 %v1277
    %v2856 = vpack.c.b16 %v1840, %v1832
    %v2857 = vpack.c.b16 %v1841, %v1833
    %v2858 = vpack.c.b16 %v1842, %v1834
    %v2859 = vpack.c.b16 %v1843, %v1835
    %v2860 = vpack.c.b16 %v1844, %v1836
    %v2861 = vpack.c.b16 %v1845, %v1837
    %v2862 = vpack.c.b16 %v1846, %v1838
    %v2863 = vpack.c.b16 %v1847, %v1839
    %v2864 = vpack.c.b16 %v1856, %v1848
    %v2865 = vpack.c.b16 %v1857, %v1849
    %v2866 = vpack.c.b16 %v1858, %v1850
    %v2867 = vpack.c.b16 %v1859, %v1851
    %v2868 = vpack.c.b16 %v1860, %v1852
    %v2869 = vpack.c.b16 %v1861, %v1853
    %v2870 = vpack.c.b16 %v1862, %v1854
    %v2871 = vpack.c.b16 %v1863, %v1855
    %v2872 = vpack.c.b16 %v1872, %v1864
    %v2873 = vpack.c.b16 %v1873, %v1865
    %v2874 = vpack.c.b16 %v1874, %v1866
    %v2875 = vpack.c.b16 %v1875, %v1867
    %v2876 = vpack.c.b16 %v1876, %v1868
    %v2877 = vpack.c.b16 %v1877, %v1869
    %v2878 = vpack.c.b16 %v1878, %v1870
    %v2879 = vpack.c.b16 %v1879, %v1871
    %v2880 = vpack.c.b16 %v1888, %v1880
    %v2881 = vpack.c.b16 %v1889, %v1881
    %v2882 = vpack.c.b16 %v1890, %v1882
    %v2883 = vpack.c.b16 %v1891, %v1883
    %v2884 = vpack.c.b16 %v1892, %v1884
    %v2885 = vpack.c.b16 %v1893, %v1885
    %v2886 = vpack.c.b16 %v1894, %v1886
    %v2887 = vpack.c.b16 %v1895, %v1887
    %v2888 = vpack.c.b16 %v1904, %v1896
    %v2889 = vpack.c.b16 %v1905, %v1897
    %v2890 = vpack.c.b16 %v1906, %v1898
    %v2891 = vpack.c.b16 %v1907, %v1899
    %v2892 = vpack.c.b16 %v1908, %v1900
    %v2893 = vpack.c.b16 %v1909, %v1901
    %v2894 = vpack.c.b16 %v1910, %v1902
    %v2895 = vpack.c.b16 %v1911, %v1903
    %v2896 = vpack.c.b16 %v1920, %v1912
    %v2897 = vpack.c.b16 %v1921, %v1913
    %v2898 = vpack.c.b16 %v1922, %v1914
    %v2899 = vpack.c.b16 %v1923, %v1915
    %v2900 = vpack.c.b16 %v1924, %v1916
    %v2901 = vpack.c.b16 %v1925, %v1917
    %v2902 = vpack.c.b16 %v1926, %v1918
    %v2903 = vpack.c.b16 %v1927, %v1919
    %v2904 = vpack.c.b16 %v1936, %v1928
    %v2905 = vpack.c.b16 %v1937, %v1929
    %v2906 = vpack.c.b16 %v1938, %v1930
    %v2907 = vpack.c.b16 %v1939, %v1931
    %v2908 = vpack.c.b16 %v1940, %v1932
    %v2909 = vpack.c.b16 %v1941, %v1933
    %v2910 = vpack.c.b16 %v1942, %v1934
    %v2911 = vpack.c.b16 %v1943, %v1935
    %v2912 = vpack.c.b16 %v1952, %v1944
    %v2913 = vpack.c.b16 %v1953, %v1945
    %v2914 = vpack.c.b16 %v1954, %v1946
    %v2915 = vpack.c.b16 %v1955, %v1947
    %v2916 = vpack.c.b16 %v1956, %v1948
    %v2917 = vpack.c.b16 %v1957, %v1949
    %v2918 = vpack.c.b16 %v1958, %v1950
    %v2919 = vpack.c.b16 %v1959, %v1951
    %v2920 = vpack.c.b16 %v1968, %v1960
    %v2921 = vpack.c.b16 %v1969, %v1961
    %v2922 = vpack.c.b16 %v1970, %v1962
    %v2923 = vpack.c.b16 %v1971, %v1963
    %v2924 = vpack.c.b16 %v1972, %v1964
    %v2925 = vpack.c.b16 %v1973, %v1965
    %v2926 = vpack.c.b16 %v1974, %v1966
    %v2927 = vpack.c.b16 %v1975, %v1967
    %v2928 = vpack.c.b16 %v1984, %v1976
    %v2929 = vpack.c.b16 %v1985, %v1977
    %v2930 = vpack.c.b16 %v1986, %v1978
    %v2931 = vpack.c.b16 %v1987, %v1979
    %v2932 = vpack.c.b16 %v1988, %v1980
    %v2933 = vpack.c.b16 %v1989, %v1981
    %v2934 = vpack.c.b16 %v1990, %v1982
    %v2935 = vpack.c.b16 %v1991, %v1983
    %v2936 = vpack.c.b16 %v2000, %v1992
    %v2937 = vpack.c.b16 %v2001, %v1993
    %v2938 = vpack.c.b16 %v2002, %v1994
    %v2939 = vpack.c.b16 %v2003, %v1995
    %v2940 = vpack.c.b16 %v2004, %v1996
    %v2941 = vpack.c.b16 %v2005, %v1997
    %v2942 = vpack.c.b16 %v2006, %v1998
    %v2943 = vpack.c.b16 %v2007, %v1999
    %v2944 = vpack.c.b16 %v2016, %v2008
    %v2945 = vpack.c.b16 %v2017, %v2009
    %v2946 = vpack.c.b16 %v2018, %v2010
    %v2947 = vpack.c.b16 %v2019, %v2011
    %v2948 = vpack.c.b16 %v2020, %v2012
    %v2949 = vpack.c.b16 %v2021, %v2013
    %v2950 = vpack.c.b16 %v2022, %v2014
    %v2951 = vpack.c.b16 %v2023, %v2015
    %v2952 = vpack.c.b16 %v2032, %v2024
    %v2953 = vpack.c.b16 %v2033, %v2025
    %v2954 = vpack.c.b16 %v2034, %v2026
    %v2955 = vpack.c.b16 %v2035, %v2027
    %v2956 = vpack.c.b16 %v2036, %v2028
    %v2957 = vpack.c.b16 %v2037, %v2029
    %v2958 = vpack.c.b16 %v2038, %v2030
    %v2959 = vpack.c.b16 %v2039, %v2031
    %v2960 = vpack.c.b16 %v2048, %v2040
    %v2961 = vpack.c.b16 %v2049, %v2041
    %v2962 = vpack.c.b16 %v2050, %v2042
    %v2963 = vpack.c.b16 %v2051, %v2043
    %v2964 = vpack.c.b16 %v2052, %v2044
    %v2965 = vpack.c.b16 %v2053, %v2045
    %v2966 = vpack.c.b16 %v2054, %v2046
    %v2967 = vpack.c.b16 %v2055, %v2047
    %v2968 = vpack.c.b16 %v2064, %v2056
    %v2969 = vpack.c.b16 %v2065, %v2057
    %v2970 = vpack.c.b16 %v2066, %v2058
    %v2971 = vpack.c.b16 %v2067, %v2059
    %v2972 = vpack.c.b16 %v2068, %v2060
    %v2973 = vpack.c.b16 %v2069, %v2061
    %v2974 = vpack.c.b16 %v2070, %v2062
    %v2975 = vpack.c.b16 %v2071, %v2063
    %v2976 = vpack.c.b16 %v2080, %v2072
    %v2977 = vpack.c.b16 %v2081, %v2073
    %v2978 = vpack.c.b16 %v2082, %v2074
    %v2979 = vpack.c.b16 %v2083, %v2075
    %v2980 = vpack.c.b16 %v2084, %v2076
    %v2981 = vpack.c.b16 %v2085, %v2077
    %v2982 = vpack.c.b16 %v2086, %v2078
    %v2983 = vpack.c.b16 %v2087, %v2079
    %v2984 = vpack.c.b16 %v2096, %v2088
    %v2985 = vpack.c.b16 %v2097, %v2089
    %v2986 = vpack.c.b16 %v2098, %v2090
    %v2987 = vpack.c.b16 %v2099, %v2091
    %v2988 = vpack.c.b16 %v2100, %v2092
    %v2989 = vpack.c.b16 %v2101, %v2093
    %v2990 = vpack.c.b16 %v2102, %v2094
    %v2991 = vpack.c.b16 %v2103, %v2095
    %v2992 = vpack.c.b16 %v2112, %v2104
    %v2993 = vpack.c.b16 %v2113, %v2105
    %v2994 = vpack.c.b16 %v2114, %v2106
    %v2995 = vpack.c.b16 %v2115, %v2107
    %v2996 = vpack.c.b16 %v2116, %v2108
    %v2997 = vpack.c.b16 %v2117, %v2109
    %v2998 = vpack.c.b16 %v2118, %v2110
    %v2999 = vpack.c.b16 %v2119, %v2111
    %v3000 = vpack.c.b16 %v2128, %v2120
    %v3001 = vpack.c.b16 %v2129, %v2121
    %v3002 = vpack.c.b16 %v2130, %v2122
    %v3003 = vpack.c.b16 %v2131, %v2123
    %v3004 = vpack.c.b16 %v2132, %v2124
    %v3005 = vpack.c.b16 %v2133, %v2125
    %v3006 = vpack.c.b16 %v2134, %v2126
    %v3007 = vpack.c.b16 %v2135, %v2127
    %v3008 = vpack.c.b16 %v2144, %v2136
    %v3009 = vpack.c.b16 %v2145, %v2137
    %v3010 = vpack.c.b16 %v2146, %v2138
    %v3011 = vpack.c.b16 %v2147, %v2139
    %v3012 = vpack.c.b16 %v2148, %v2140
    %v3013 = vpack.c.b16 %v2149, %v2141
    %v3014 = vpack.c.b16 %v2150, %v2142
    %v3015 = vpack.c.b16 %v2151, %v2143
    %v3016 = vpack.c.b16 %v2160, %v2152
    %v3017 = vpack.c.b16 %v2161, %v2153
    %v3018 = vpack.c.b16 %v2162, %v2154
    %v3019 = vpack.c.b16 %v2163, %v2155
    %v3020 = vpack.c.b16 %v2164, %v2156
    %v3021 = vpack.c.b16 %v2165, %v2157
    %v3022 = vpack.c.b16 %v2166, %v2158
    %v3023 = vpack.c.b16 %v2167, %v2159
    %v3024 = vpack.c.b16 %v2176, %v2168
    %v3025 = vpack.c.b16 %v2177, %v2169
    %v3026 = vpack.c.b16 %v2178, %v2170
    %v3027 = vpack.c.b16 %v2179, %v2171
    %v3028 = vpack.c.b16 %v2180, %v2172
    %v3029 = vpack.c.b16 %v2181, %v2173
    %v3030 = vpack.c.b16 %v2182, %v2174
    %v3031 = vpack.c.b16 %v2183, %v2175
    %v3032 = vpack.c.b16 %v2192, %v2184
    %v3033 = vpack.c.b16 %v2193, %v2185
    %v3034 = vpack.c.b16 %v2194, %v2186
    %v3035 = vpack.c.b16 %v2195, %v2187
    %v3036 = vpack.c.b16 %v2196, %v2188
    %v3037 = vpack.c.b16 %v2197, %v2189
    %v3038 = vpack.c.b16 %v2198, %v2190
    %v3039 = vpack.c.b16 %v2199, %v2191
    %v3040 = vpack.c.b16 %v2208, %v2200
    %v3041 = vpack.c.b16 %v2209, %v2201
    %v3042 = vpack.c.b16 %v2210, %v2202
    %v3043 = vpack.c.b16 %v2211, %v2203
    %v3044 = vpack.c.b16 %v2212, %v2204
    %v3045 = vpack.c.b16 %v2213, %v2205
    %v3046 = vpack.c.b16 %v2214, %v2206
    %v3047 = vpack.c.b16 %v2215, %v2207
    %v3048 = vpack.c.b16 %v2224, %v2216
    %v3049 = vpack.c.b16 %v2225, %v2217
    %v3050 = vpack.c.b16 %v2226, %v2218
    %v3051 = vpack.c.b16 %v2227, %v2219
    %v3052 = vpack.c.b16 %v2228, %v2220
    %v3053 = vpack.c.b16 %v2229, %v2221
    %v3054 = vpack.c.b16 %v2230, %v2222
    %v3055 = vpack.c.b16 %v2231, %v2223
    %v3056 = vpack.c.b16 %v2240, %v2232
    %v3057 = vpack.c.b16 %v2241, %v2233
    %v3058 = vpack.c.b16 %v2242, %v2234
    %v3059 = vpack.c.b16 %v2243, %v2235
    %v3060 = vpack.c.b16 %v2244, %v2236
    %v3061 = vpack.c.b16 %v2245, %v2237
    %v3062 = vpack.c.b16 %v2246, %v2238
    %v3063 = vpack.c.b16 %v2247, %v2239
    %v3064 = vpack.c.b16 %v2256, %v2248
    %v3065 = vpack.c.b16 %v2257, %v2249
    %v3066 = vpack.c.b16 %v2258, %v2250
    %v3067 = vpack.c.b16 %v2259, %v2251
    %v3068 = vpack.c.b16 %v2260, %v2252
    %v3069 = vpack.c.b16 %v2261, %v2253
    %v3070 = vpack.c.b16 %v2262, %v2254
    %v3071 = vpack.c.b16 %v2263, %v2255
    %v3072 = vpack.c.b16 %v2272, %v2264
    %v3073 = vpack.c.b16 %v2273, %v2265
    %v3074 = vpack.c.b16 %v2274, %v2266
    %v3075 = vpack.c.b16 %v2275, %v2267
    %v3076 = vpack.c.b16 %v2276, %v2268
    %v3077 = vpack.c.b16 %v2277, %v2269
    %v3078 = vpack.c.b16 %v2278, %v2270
    %v3079 = vpack.c.b16 %v2279, %v2271
    %v3080 = vpack.c.b16 %v2288, %v2280
    %v3081 = vpack.c.b16 %v2289, %v2281
    %v3082 = vpack.c.b16 %v2290, %v2282
    %v3083 = vpack.c.b16 %v2291, %v2283
    %v3084 = vpack.c.b16 %v2292, %v2284
    %v3085 = vpack.c.b16 %v2293, %v2285
    %v3086 = vpack.c.b16 %v2294, %v2286
    %v3087 = vpack.c.b16 %v2295, %v2287
    %v3088 = vpack.c.b16 %v2304, %v2296
    %v3089 = vpack.c.b16 %v2305, %v2297
    %v3090 = vpack.c.b16 %v2306, %v2298
    %v3091 = vpack.c.b16 %v2307, %v2299
    %v3092 = vpack.c.b16 %v2308, %v2300
    %v3093 = vpack.c.b16 %v2309, %v2301
    %v3094 = vpack.c.b16 %v2310, %v2302
    %v3095 = vpack.c.b16 %v2311, %v2303
    %v3096 = vpack.c.b16 %v2320, %v2312
    %v3097 = vpack.c.b16 %v2321, %v2313
    %v3098 = vpack.c.b16 %v2322, %v2314
    %v3099 = vpack.c.b16 %v2323, %v2315
    %v3100 = vpack.c.b16 %v2324, %v2316
    %v3101 = vpack.c.b16 %v2325, %v2317
    %v3102 = vpack.c.b16 %v2326, %v2318
    %v3103 = vpack.c.b16 %v2327, %v2319
    %v3104 = vpack.c.b16 %v2336, %v2328
    %v3105 = vpack.c.b16 %v2337, %v2329
    %v3106 = vpack.c.b16 %v2338, %v2330
    %v3107 = vpack.c.b16 %v2339, %v2331
    %v3108 = vpack.c.b16 %v2340, %v2332
    %v3109 = vpack.c.b16 %v2341, %v2333
    %v3110 = vpack.c.b16 %v2342, %v2334
    %v3111 = vpack.c.b16 %v2343, %v2335
    %v3112 = vpack.c.b16 %v2352, %v2344
    %v3113 = vpack.c.b16 %v2353, %v2345
    %v3114 = vpack.c.b16 %v2354, %v2346
    %v3115 = vpack.c.b16 %v2355, %v2347
    %v3116 = vpack.c.b16 %v2356, %v2348
    %v3117 = vpack.c.b16 %v2357, %v2349
    %v3118 = vpack.c.b16 %v2358, %v2350
    %v3119 = vpack.c.b16 %v2359, %v2351
    %v3120 = vpack.c.b16 %v2368, %v2360
    %v3121 = vpack.c.b16 %v2369, %v2361
    %v3122 = vpack.c.b16 %v2370, %v2362
    %v3123 = vpack.c.b16 %v2371, %v2363
    %v3124 = vpack.c.b16 %v2372, %v2364
    %v3125 = vpack.c.b16 %v2373, %v2365
    %v3126 = vpack.c.b16 %v2374, %v2366
    %v3127 = vpack.c.b16 %v2375, %v2367
    %v3128 = vpack.c.b16 %v2384, %v2376
    %v3129 = vpack.c.b16 %v2385, %v2377
    %v3130 = vpack.c.b16 %v2386, %v2378
    %v3131 = vpack.c.b16 %v2387, %v2379
    %v3132 = vpack.c.b16 %v2388, %v2380
    %v3133 = vpack.c.b16 %v2389, %v2381
    %v3134 = vpack.c.b16 %v2390, %v2382
    %v3135 = vpack.c.b16 %v2391, %v2383
    %v3136 = vpack.c.b16 %v2400, %v2392
    %v3137 = vpack.c.b16 %v2401, %v2393
    %v3138 = vpack.c.b16 %v2402, %v2394
    %v3139 = vpack.c.b16 %v2403, %v2395
    %v3140 = vpack.c.b16 %v2404, %v2396
    %v3141 = vpack.c.b16 %v2405, %v2397
    %v3142 = vpack.c.b16 %v2406, %v2398
    %v3143 = vpack.c.b16 %v2407, %v2399
    %v3144 = vpack.c.b16 %v2416, %v2408
    %v3145 = vpack.c.b16 %v2417, %v2409
    %v3146 = vpack.c.b16 %v2418, %v2410
    %v3147 = vpack.c.b16 %v2419, %v2411
    %v3148 = vpack.c.b16 %v2420, %v2412
    %v3149 = vpack.c.b16 %v2421, %v2413
    %v3150 = vpack.c.b16 %v2422, %v2414
    %v3151 = vpack.c.b16 %v2423, %v2415
    %v3152 = vpack.c.b16 %v2432, %v2424
    %v3153 = vpack.c.b16 %v2433, %v2425
    %v3154 = vpack.c.b16 %v2434, %v2426
    %v3155 = vpack.c.b16 %v2435, %v2427
    %v3156 = vpack.c.b16 %v2436, %v2428
    %v3157 = vpack.c.b16 %v2437, %v2429
    %v3158 = vpack.c.b16 %v2438, %v2430
    %v3159 = vpack.c.b16 %v2439, %v2431
    %v3160 = vpack.c.b16 %v2448, %v2440
    %v3161 = vpack.c.b16 %v2449, %v2441
    %v3162 = vpack.c.b16 %v2450, %v2442
    %v3163 = vpack.c.b16 %v2451, %v2443
    %v3164 = vpack.c.b16 %v2452, %v2444
    %v3165 = vpack.c.b16 %v2453, %v2445
    %v3166 = vpack.c.b16 %v2454, %v2446
    %v3167 = vpack.c.b16 %v2455, %v2447
    %v3168 = vpack.c.b16 %v2464, %v2456
    %v3169 = vpack.c.b16 %v2465, %v2457
    %v3170 = vpack.c.b16 %v2466, %v2458
    %v3171 = vpack.c.b16 %v2467, %v2459
    %v3172 = vpack.c.b16 %v2468, %v2460
    %v3173 = vpack.c.b16 %v2469, %v2461
    %v3174 = vpack.c.b16 %v2470, %v2462
    %v3175 = vpack.c.b16 %v2471, %v2463
    %v3176 = vpack.c.b16 %v2480, %v2472
    %v3177 = vpack.c.b16 %v2481, %v2473
    %v3178 = vpack.c.b16 %v2482, %v2474
    %v3179 = vpack.c.b16 %v2483, %v2475
    %v3180 = vpack.c.b16 %v2484, %v2476
    %v3181 = vpack.c.b16 %v2485, %v2477
    %v3182 = vpack.c.b16 %v2486, %v2478
    %v3183 = vpack.c.b16 %v2487, %v2479
    %v3184 = vpack.c.b16 %v2496, %v2488
    %v3185 = vpack.c.b16 %v2497, %v2489
    %v3186 = vpack.c.b16 %v2498, %v2490
    %v3187 = vpack.c.b16 %v2499, %v2491
    %v3188 = vpack.c.b16 %v2500, %v2492
    %v3189 = vpack.c.b16 %v2501, %v2493
    %v3190 = vpack.c.b16 %v2502, %v2494
    %v3191 = vpack.c.b16 %v2503, %v2495
    %v3192 = vpack.c.b16 %v2512, %v2504
    %v3193 = vpack.c.b16 %v2513, %v2505
    %v3194 = vpack.c.b16 %v2514, %v2506
    %v3195 = vpack.c.b16 %v2515, %v2507
    %v3196 = vpack.c.b16 %v2516, %v2508
    %v3197 = vpack.c.b16 %v2517, %v2509
    %v3198 = vpack.c.b16 %v2518, %v2510
    %v3199 = vpack.c.b16 %v2519, %v2511
    %v3200 = vpack.c.b16 %v2528, %v2520
    %v3201 = vpack.c.b16 %v2529, %v2521
    %v3202 = vpack.c.b16 %v2530, %v2522
    %v3203 = vpack.c.b16 %v2531, %v2523
    %v3204 = vpack.c.b16 %v2532, %v2524
    %v3205 = vpack.c.b16 %v2533, %v2525
    %v3206 = vpack.c.b16 %v2534, %v2526
    %v3207 = vpack.c.b16 %v2535, %v2527
    %v3208 = vpack.c.b16 %v2544, %v2536
    %v3209 = vpack.c.b16 %v2545, %v2537
    %v3210 = vpack.c.b16 %v2546, %v2538
    %v3211 = vpack.c.b16 %v2547, %v2539
    %v3212 = vpack.c.b16 %v2548, %v2540
    %v3213 = vpack.c.b16 %v2549, %v2541
    %v3214 = vpack.c.b16 %v2550, %v2542
    %v3215 = vpack.c.b16 %v2551, %v2543
    %v3216 = vpack.c.b16 %v2560, %v2552
    %v3217 = vpack.c.b16 %v2561, %v2553
    %v3218 = vpack.c.b16 %v2562, %v2554
    %v3219 = vpack.c.b16 %v2563, %v2555
    %v3220 = vpack.c.b16 %v2564, %v2556
    %v3221 = vpack.c.b16 %v2565, %v2557
    %v3222 = vpack.c.b16 %v2566, %v2558
    %v3223 = vpack.c.b16 %v2567, %v2559
    %v3224 = vpack.c.b16 %v2576, %v2568
    %v3225 = vpack.c.b16 %v2577, %v2569
    %v3226 = vpack.c.b16 %v2578, %v2570
    %v3227 = vpack.c.b16 %v2579, %v2571
    %v3228 = vpack.c.b16 %v2580, %v2572
    %v3229 = vpack.c.b16 %v2581, %v2573
    %v3230 = vpack.c.b16 %v2582, %v2574
    %v3231 = vpack.c.b16 %v2583, %v2575
    %v3232 = vpack.c.b16 %v2592, %v2584
    %v3233 = vpack.c.b16 %v2593, %v2585
    %v3234 = vpack.c.b16 %v2594, %v2586
    %v3235 = vpack.c.b16 %v2595, %v2587
    %v3236 = vpack.c.b16 %v2596, %v2588
    %v3237 = vpack.c.b16 %v2597, %v2589
    %v3238 = vpack.c.b16 %v2598, %v2590
    %v3239 = vpack.c.b16 %v2599, %v2591
    %v3240 = vpack.c.b16 %v2608, %v2600
    %v3241 = vpack.c.b16 %v2609, %v2601
    %v3242 = vpack.c.b16 %v2610, %v2602
    %v3243 = vpack.c.b16 %v2611, %v2603
    %v3244 = vpack.c.b16 %v2612, %v2604
    %v3245 = vpack.c.b16 %v2613, %v2605
    %v3246 = vpack.c.b16 %v2614, %v2606
    %v3247 = vpack.c.b16 %v2615, %v2607
    %v3248 = vpack.c.b16 %v2624, %v2616
    %v3249 = vpack.c.b16 %v2625, %v2617
    %v3250 = vpack.c.b16 %v2626, %v2618
    %v3251 = vpack.c.b16 %v2627, %v2619
    %v3252 = vpack.c.b16 %v2628, %v2620
    %v3253 = vpack.c.b16 %v2629, %v2621
    %v3254 = vpack.c.b16 %v2630, %v2622
    %v3255 = vpack.c.b16 %v2631, %v2623
    %v3256 = vpack.c.b16 %v2640, %v2632
    %v3257 = vpack.c.b16 %v2641, %v2633
    %v3258 = vpack.c.b16 %v2642, %v2634
    %v3259 = vpack.c.b16 %v2643, %v2635
    %v3260 = vpack.c.b16 %v2644, %v2636
    %v3261 = vpack.c.b16 %v2645, %v2637
    %v3262 = vpack.c.b16 %v2646, %v2638
    %v3263 = vpack.c.b16 %v2647, %v2639
    %v3264 = vpack.c.b16 %v2656, %v2648
    %v3265 = vpack.c.b16 %v2657, %v2649
    %v3266 = vpack.c.b16 %v2658, %v2650
    %v3267 = vpack.c.b16 %v2659, %v2651
    %v3268 = vpack.c.b16 %v2660, %v2652
    %v3269 = vpack.c.b16 %v2661, %v2653
    %v3270 = vpack.c.b16 %v2662, %v2654
    %v3271 = vpack.c.b16 %v2663, %v2655
    %v3272 = vpack.c.b16 %v2672, %v2664
    %v3273 = vpack.c.b16 %v2673, %v2665
    %v3274 = vpack.c.b16 %v2674, %v2666
    %v3275 = vpack.c.b16 %v2675, %v2667
    %v3276 = vpack.c.b16 %v2676, %v2668
    %v3277 = vpack.c.b16 %v2677, %v2669
    %v3278 = vpack.c.b16 %v2678, %v2670
    %v3279 = vpack.c.b16 %v2679, %v2671
    %v3280 = vpack.c.b16 %v2688, %v2680
    %v3281 = vpack.c.b16 %v2689, %v2681
    %v3282 = vpack.c.b16 %v2690, %v2682
    %v3283 = vpack.c.b16 %v2691, %v2683
    %v3284 = vpack.c.b16 %v2692, %v2684
    %v3285 = vpack.c.b16 %v2693, %v2685
    %v3286 = vpack.c.b16 %v2694, %v2686
    %v3287 = vpack.c.b16 %v2695, %v2687
    %v3288 = vpack.c.b16 %v2704, %v2696
    %v3289 = vpack.c.b16 %v2705, %v2697
    %v3290 = vpack.c.b16 %v2706, %v2698
    %v3291 = vpack.c.b16 %v2707, %v2699
    %v3292 = vpack.c.b16 %v2708, %v2700
    %v3293 = vpack.c.b16 %v2709, %v2701
    %v3294 = vpack.c.b16 %v2710, %v2702
    %v3295 = vpack.c.b16 %v2711, %v2703
    %v3296 = vpack.c.b16 %v2720, %v2712
    %v3297 = vpack.c.b16 %v2721, %v2713
    %v3298 = vpack.c.b16 %v2722, %v2714
    %v3299 = vpack.c.b16 %v2723, %v2715
    %v3300 = vpack.c.b16 %v2724, %v2716
    %v3301 = vpack.c.b16 %v2725, %v2717
    %v3302 = vpack.c.b16 %v2726, %v2718
    %v3303 = vpack.c.b16 %v2727, %v2719
    %v3304 = vpack.c.b16 %v2736, %v2728
    %v3305 = vpack.c.b16 %v2737, %v2729
    %v3306 = vpack.c.b16 %v2738, %v2730
    %v3307 = vpack.c.b16 %v2739, %v2731
    %v3308 = vpack.c.b16 %v2740, %v2732
    %v3309 = vpack.c.b16 %v2741, %v2733
    %v3310 = vpack.c.b16 %v2742, %v2734
    %v3311 = vpack.c.b16 %v2743, %v2735
    %v3312 = vpack.c.b16 %v2752, %v2744
    %v3313 = vpack.c.b16 %v2753, %v2745
    %v3314 = vpack.c.b16 %v2754, %v2746
    %v3315 = vpack.c.b16 %v2755, %v2747
    %v3316 = vpack.c.b16 %v2756, %v2748
    %v3317 = vpack.c.b16 %v2757, %v2749
    %v3318 = vpack.c.b16 %v2758, %v2750
    %v3319 = vpack.c.b16 %v2759, %v2751
    %v3320 = vpack.c.b16 %v2768, %v2760
    %v3321 = vpack.c.b16 %v2769, %v2761
    %v3322 = vpack.c.b16 %v2770, %v2762
    %v3323 = vpack.c.b16 %v2771, %v2763
    %v3324 = vpack.c.b16 %v2772, %v2764
    %v3325 = vpack.c.b16 %v2773, %v2765
    %v3326 = vpack.c.b16 %v2774, %v2766
    %v3327 = vpack.c.b16 %v2775, %v2767
    %v3328 = vpack.c.b16 %v2784, %v2776
    %v3329 = vpack.c.b16 %v2785, %v2777
    %v3330 = vpack.c.b16 %v2786, %v2778
    %v3331 = vpack.c.b16 %v2787, %v2779
    %v3332 = vpack.c.b16 %v2788, %v2780
    %v3333 = vpack.c.b16 %v2789, %v2781
    %v3334 = vpack.c.b16 %v2790, %v2782
    %v3335 = vpack.c.b16 %v2791, %v2783
    %v3336 = vpack.c.b16 %v2800, %v2792
    %v3337 = vpack.c.b16 %v2801, %v2793
    %v3338 = vpack.c.b16 %v2802, %v2794
    %v3339 = vpack.c.b16 %v2803, %v2795
    %v3340 = vpack.c.b16 %v2804, %v2796
    %v3341 = vpack.c.b16 %v2805, %v2797
    %v3342 = vpack.c.b16 %v2806, %v2798
    %v3343 = vpack.c.b16 %v2807, %v2799
    %v3344 = vpack.c.b16 %v2816, %v2808
    %v3345 = vpack.c.b16 %v2817, %v2809
    %v3346 = vpack.c.b16 %v2818, %v2810
    %v3347 = vpack.c.b16 %v2819, %v2811
    %v3348 = vpack.c.b16 %v2820, %v2812
    %v3349 = vpack.c.b16 %v2821, %v2813
    %v3350 = vpack.c.b16 %v2822, %v2814
    %v3351 = vpack.c.b16 %v2823, %v2815
    %v3352 = vpack.c.b16 %v2832, %v2824
    %v3353 = vpack.c.b16 %v2833, %v2825
    %v3354 = vpack.c.b16 %v2834, %v2826
    %v3355 = vpack.c.b16 %v2835, %v2827
    %v3356 = vpack.c.b16 %v2836, %v2828
    %v3357 = vpack.c.b16 %v2837, %v2829
    %v3358 = vpack.c.b16 %v2838, %v2830
    %v3359 = vpack.c.b16 %v2839, %v2831
    %v3360 = vpack.c.b16 %v2848, %v2840
    %v3361 = vpack.c.b16 %v2849, %v2841
    %v3362 = vpack.c.b16 %v2850, %v2842
    %v3363 = vpack.c.b16 %v2851, %v2843
    %v3364 = vpack.c.b16 %v2852, %v2844
    %v3365 = vpack.c.b16 %v2853, %v2845
    %v3366 = vpack.c.b16 %v2854, %v2846
    %v3367 = vpack.c.b16 %v2855, %v2847
    %3880 = vmatprep.subr.bf16.mxu0 %v2857
    %3881 = vmatpush1.bf16.msra.mxu0 %v2856
    %3882 = vmatprep.subr.bf16.mxu0 %v2865
    %3883 = vmatpush1.bf16.msra.mxu0 %v2864
    %3884 = vmatprep.subr.bf16.mxu0 %v2873
    %3885 = vmatpush1.bf16.msra.mxu0 %v2872
    %3886 = vmatprep.subr.bf16.mxu0 %v2881
    %3887 = vmatpush1.bf16.msra.mxu0 %v2880
    %3888 = vmatprep.subr.bf16.mxu0 %v2889
    %3889 = vmatpush1.bf16.msra.mxu0 %v2888
    %3890 = vmatprep.subr.bf16.mxu0 %v2897
    %3891 = vmatpush1.bf16.msra.mxu0 %v2896
    %3892 = vmatprep.subr.bf16.mxu0 %v2905
    %3893 = vmatpush1.bf16.msra.mxu0 %v2904
    %3894 = vmatprep.subr.bf16.mxu0 %v2913
    %3895 = vmatpush1.bf16.msra.mxu0 %v2912
    %3896 = vmatprep.subr.bf16.mxu0 %v2921
    %3897 = vmatpush1.bf16.msra.mxu0 %v2920
    %3898 = vmatprep.subr.bf16.mxu0 %v2929
    %3899 = vmatpush1.bf16.msra.mxu0 %v2928
    %3900 = vmatprep.subr.bf16.mxu0 %v2937
    %3901 = vmatpush1.bf16.msra.mxu0 %v2936
    %3902 = vmatprep.subr.bf16.mxu0 %v2945
    %3903 = vmatpush1.bf16.msra.mxu0 %v2944
    %3904 = vmatprep.subr.bf16.mxu0 %v2953
    %3905 = vmatpush1.bf16.msra.mxu0 %v2952
    %3906 = vmatprep.subr.bf16.mxu0 %v2961
    %3907 = vmatpush1.bf16.msra.mxu0 %v2960
    %3908 = vmatprep.subr.bf16.mxu0 %v2969
    %3909 = vmatpush1.bf16.msra.mxu0 %v2968
    %3910 = vmatprep.subr.bf16.mxu0 %v2977
    %3911 = vmatpush1.bf16.msra.mxu0 %v2976
    %3912 = vmatprep.mubr.bf16.mxu0 %v759
    %3913 = vmatmul.mubr.bf16.gmra.mrb[0].mxu0 %v758
    %v3914 = vpop.f32.mrb[0].mxu0
    %v3915 = vadd.f32 %v1283, %v3914
    %v3916 = vpop.f32.mrb[0].mxu0
    %v3917 = vadd.f32 %v1287, %v3916
    %v3918 = vpop.f32.mrb[0].mxu0
    %v3919 = vpop.f32.mrb[0].mxu0
    %3920 = vdwg.mxu0
    %3921 = vmatprep.subr.bf16.mxu0 %v2985
    %3922 = vmatpush1.bf16.msra.mxu0 %v2984
    %3923 = vmatprep.subr.bf16.mxu0 %v2993
    %3924 = vmatpush1.bf16.msra.mxu0 %v2992
    %3925 = vmatprep.subr.bf16.mxu0 %v3001
    %3926 = vmatpush1.bf16.msra.mxu0 %v3000
    %3927 = vmatprep.subr.bf16.mxu0 %v3009
    %3928 = vmatpush1.bf16.msra.mxu0 %v3008
    %3929 = vmatprep.subr.bf16.mxu0 %v3017
    %3930 = vmatpush1.bf16.msra.mxu0 %v3016
    %3931 = vmatprep.subr.bf16.mxu0 %v3025
    %3932 = vmatpush1.bf16.msra.mxu0 %v3024
    %3933 = vmatprep.subr.bf16.mxu0 %v3033
    %3934 = vmatpush1.bf16.msra.mxu0 %v3032
    %3935 = vmatprep.subr.bf16.mxu0 %v3041
    %3936 = vmatpush1.bf16.msra.mxu0 %v3040
    %3937 = vmatprep.subr.bf16.mxu0 %v3049
    %3938 = vmatpush1.bf16.msra.mxu0 %v3048
    %3939 = vmatprep.subr.bf16.mxu0 %v3057
    %3940 = vmatpush1.bf16.msra.mxu0 %v3056
    %3941 = vmatprep.subr.bf16.mxu0 %v3065
    %3942 = vmatpush1.bf16.msra.mxu0 %v3064
    %3943 = vmatprep.subr.bf16.mxu0 %v3073
    %3944 = vmatpush1.bf16.msra.mxu0 %v3072
    %3945 = vmatprep.subr.bf16.mxu0 %v3081
    %3946 = vmatpush1.bf16.msra.mxu0 %v3080
    %3947 = vmatprep.subr.bf16.mxu0 %v3089
    %3948 = vmatpush1.bf16.msra.mxu0 %v3088
    %3949 = vmatprep.subr.bf16.mxu0 %v3097
    %3950 = vmatpush1.bf16.msra.mxu0 %v3096
    %3951 = vmatprep.subr.bf16.mxu0 %v3105
    %3952 = vmatpush1.bf16.msra.mxu0 %v3104
    %3953 = vmatprep.mubr.bf16.mxu0 %v761
    %3954 = vmatmul.mubr.bf16.gmra.mrb[0].mxu0 %v760
    %v3955 = vpop.f32.mrb[0].mxu0
    %v3956 = vadd.f32 %v3915, %v3955
    %v3957 = vpop.f32.mrb[0].mxu0
    %v3958 = vadd.f32 %v3917, %v3957
    %v3959 = vpop.f32.mrb[0].mxu0
    %v3960 = vpop.f32.mrb[0].mxu0
    %3961 = vdwg.mxu0
    %3962 = vmatprep.subr.bf16.mxu0 %v3113
    %3963 = vmatpush1.bf16.msra.mxu0 %v3112
    %3964 = vmatprep.subr.bf16.mxu0 %v3121
    %3965 = vmatpush1.bf16.msra.mxu0 %v3120
    %3966 = vmatprep.subr.bf16.mxu0 %v3129
    %3967 = vmatpush1.bf16.msra.mxu0 %v3128
    %3968 = vmatprep.subr.bf16.mxu0 %v3137
    %3969 = vmatpush1.bf16.msra.mxu0 %v3136
    %3970 = vmatprep.subr.bf16.mxu0 %v3145
    %3971 = vmatpush1.bf16.msra.mxu0 %v3144
    %3972 = vmatprep.subr.bf16.mxu0 %v3153
    %3973 = vmatpush1.bf16.msra.mxu0 %v3152
    %3974 = vmatprep.subr.bf16.mxu0 %v3161
    %3975 = vmatpush1.bf16.msra.mxu0 %v3160
    %3976 = vmatprep.subr.bf16.mxu0 %v3169
    %3977 = vmatpush1.bf16.msra.mxu0 %v3168
    %3978 = vmatprep.subr.bf16.mxu0 %v3177
    %3979 = vmatpush1.bf16.msra.mxu0 %v3176
    %3980 = vmatprep.subr.bf16.mxu0 %v3185
    %3981 = vmatpush1.bf16.msra.mxu0 %v3184
    %3982 = vmatprep.subr.bf16.mxu0 %v3193
    %3983 = vmatpush1.bf16.msra.mxu0 %v3192
    %3984 = vmatprep.subr.bf16.mxu0 %v3201
    %3985 = vmatpush1.bf16.msra.mxu0 %v3200
    %3986 = vmatprep.subr.bf16.mxu0 %v3209
    %3987 = vmatpush1.bf16.msra.mxu0 %v3208
    %3988 = vmatprep.subr.bf16.mxu0 %v3217
    %3989 = vmatpush1.bf16.msra.mxu0 %v3216
    %3990 = vmatprep.subr.bf16.mxu0 %v3225
    %3991 = vmatpush1.bf16.msra.mxu0 %v3224
    %3992 = vmatprep.subr.bf16.mxu0 %v3233
    %3993 = vmatpush1.bf16.msra.mxu0 %v3232
    %3994 = vmatprep.mubr.bf16.mxu0 %v763
    %3995 = vmatmul.mubr.bf16.gmra.mrb[0].mxu0 %v762
    %v3996 = vpop.f32.mrb[0].mxu0
    %v3997 = vadd.f32 %v3956, %v3996
    %v3998 = vpop.f32.mrb[0].mxu0
    %v3999 = vadd.f32 %v3958, %v3998
    %v4000 = vpop.f32.mrb[0].mxu0
    %v4001 = vpop.f32.mrb[0].mxu0
    %4002 = vdwg.mxu0
    %4003 = vmatprep.subr.bf16.mxu0 %v3241
    %4004 = vmatpush1.bf16.msra.mxu0 %v3240
    %4005 = vmatprep.subr.bf16.mxu0 %v3249
    %4006 = vmatpush1.bf16.msra.mxu0 %v3248
    %4007 = vmatprep.subr.bf16.mxu0 %v3257
    %4008 = vmatpush1.bf16.msra.mxu0 %v3256
    %4009 = vmatprep.subr.bf16.mxu0 %v3265
    %4010 = vmatpush1.bf16.msra.mxu0 %v3264
    %4011 = vmatprep.subr.bf16.mxu0 %v3273
    %4012 = vmatpush1.bf16.msra.mxu0 %v3272
    %4013 = vmatprep.subr.bf16.mxu0 %v3281
    %4014 = vmatpush1.bf16.msra.mxu0 %v3280
    %4015 = vmatprep.subr.bf16.mxu0 %v3289
    %4016 = vmatpush1.bf16.msra.mxu0 %v3288
    %4017 = vmatprep.subr.bf16.mxu0 %v3297
    %4018 = vmatpush1.bf16.msra.mxu0 %v3296
    %4019 = vmatprep.subr.bf16.mxu0 %v3305
    %4020 = vmatpush1.bf16.msra.mxu0 %v3304
    %4021 = vmatprep.subr.bf16.mxu0 %v3313
    %4022 = vmatpush1.bf16.msra.mxu0 %v3312
    %4023 = vmatprep.subr.bf16.mxu0 %v3321
    %4024 = vmatpush1.bf16.msra.mxu0 %v3320
    %4025 = vmatprep.subr.bf16.mxu0 %v3329
    %4026 = vmatpush1.bf16.msra.mxu0 %v3328
    %4027 = vmatprep.subr.bf16.mxu0 %v3337
    %4028 = vmatpush1.bf16.msra.mxu0 %v3336
    %4029 = vmatprep.subr.bf16.mxu0 %v3345
    %4030 = vmatpush1.bf16.msra.mxu0 %v3344
    %4031 = vmatprep.subr.bf16.mxu0 %v3353
    %4032 = vmatpush1.bf16.msra.mxu0 %v3352
    %4033 = vmatprep.subr.bf16.mxu0 %v3361
    %4034 = vmatpush1.bf16.msra.mxu0 %v3360
    %4035 = vmatprep.mubr.bf16.mxu0 %v765
    %4036 = vmatmul.mubr.bf16.gmra.mrb[0].mxu0 %v764
    %v4037 = vpop.f32.mrb[0].mxu0
    %v4038 = vadd.f32 %v3997, %v4037
    %v4039 = vpop.f32.mrb[0].mxu0
    %v4040 = vadd.f32 %v3999, %v4039
    %v4041 = vpop.f32.mrb[0].mxu0
    %v4042 = vpop.f32.mrb[0].mxu0
    %4043 = vdwg.mxu0
    %4044 = vmatprep.subr.bf16.mxu0 %v2859
    %4045 = vmatpush1.bf16.msra.mxu0 %v2858
    %4046 = vmatprep.subr.bf16.mxu0 %v2867
    %4047 = vmatpush1.bf16.msra.mxu0 %v2866
    %4048 = vmatprep.subr.bf16.mxu0 %v2875
    %4049 = vmatpush1.bf16.msra.mxu0 %v2874
    %4050 = vmatprep.subr.bf16.mxu0 %v2883
    %4051 = vmatpush1.bf16.msra.mxu0 %v2882
    %4052 = vmatprep.subr.bf16.mxu0 %v2891
    %4053 = vmatpush1.bf16.msra.mxu0 %v2890
    %4054 = vmatprep.subr.bf16.mxu0 %v2899
    %4055 = vmatpush1.bf16.msra.mxu0 %v2898
    %4056 = vmatprep.subr.bf16.mxu0 %v2907
    %4057 = vmatpush1.bf16.msra.mxu0 %v2906
    %4058 = vmatprep.subr.bf16.mxu0 %v2915
    %4059 = vmatpush1.bf16.msra.mxu0 %v2914
    %4060 = vmatprep.subr.bf16.mxu0 %v2923
    %4061 = vmatpush1.bf16.msra.mxu0 %v2922
    %4062 = vmatprep.subr.bf16.mxu0 %v2931
    %4063 = vmatpush1.bf16.msra.mxu0 %v2930
    %4064 = vmatprep.subr.bf16.mxu0 %v2939
    %4065 = vmatpush1.bf16.msra.mxu0 %v2938
    %4066 = vmatprep.subr.bf16.mxu0 %v2947
    %4067 = vmatpush1.bf16.msra.mxu0 %v2946
    %4068 = vmatprep.subr.bf16.mxu0 %v2955
    %4069 = vmatpush1.bf16.msra.mxu0 %v2954
    %4070 = vmatprep.subr.bf16.mxu0 %v2963
    %4071 = vmatpush1.bf16.msra.mxu0 %v2962
    %4072 = vmatprep.subr.bf16.mxu0 %v2971
    %4073 = vmatpush1.bf16.msra.mxu0 %v2970
    %4074 = vmatprep.subr.bf16.mxu0 %v2979
    %4075 = vmatpush1.bf16.msra.mxu0 %v2978
    %4076 = vmatprep.mubr.bf16.mxu0 %v759
    %4077 = vmatmul.mubr.bf16.gmra.mrb[0].mxu0 %v758
    %v4078 = vpop.f32.mrb[0].mxu0
    %v4079 = vadd.f32 %v1291, %v4078
    %v4080 = vpop.f32.mrb[0].mxu0
    %v4081 = vadd.f32 %v1295, %v4080
    %v4082 = vpop.f32.mrb[0].mxu0
    %v4083 = vpop.f32.mrb[0].mxu0
    %4084 = vdwg.mxu0
    %4085 = vmatprep.subr.bf16.mxu0 %v2987
    %4086 = vmatpush1.bf16.msra.mxu0 %v2986
    %4087 = vmatprep.subr.bf16.mxu0 %v2995
    %4088 = vmatpush1.bf16.msra.mxu0 %v2994
    %4089 = vmatprep.subr.bf16.mxu0 %v3003
    %4090 = vmatpush1.bf16.msra.mxu0 %v3002
    %4091 = vmatprep.subr.bf16.mxu0 %v3011
    %4092 = vmatpush1.bf16.msra.mxu0 %v3010
    %4093 = vmatprep.subr.bf16.mxu0 %v3019
    %4094 = vmatpush1.bf16.msra.mxu0 %v3018
    %4095 = vmatprep.subr.bf16.mxu0 %v3027
    %4096 = vmatpush1.bf16.msra.mxu0 %v3026
    %4097 = vmatprep.subr.bf16.mxu0 %v3035
    %4098 = vmatpush1.bf16.msra.mxu0 %v3034
    %4099 = vmatprep.subr.bf16.mxu0 %v3043
    %4100 = vmatpush1.bf16.msra.mxu0 %v3042
    %4101 = vmatprep.subr.bf16.mxu0 %v3051
    %4102 = vmatpush1.bf16.msra.mxu0 %v3050
    %4103 = vmatprep.subr.bf16.mxu0 %v3059
    %4104 = vmatpush1.bf16.msra.mxu0 %v3058
    %4105 = vmatprep.subr.bf16.mxu0 %v3067
    %4106 = vmatpush1.bf16.msra.mxu0 %v3066
    %4107 = vmatprep.subr.bf16.mxu0 %v3075
    %4108 = vmatpush1.bf16.msra.mxu0 %v3074
    %4109 = vmatprep.subr.bf16.mxu0 %v3083
    %4110 = vmatpush1.bf16.msra.mxu0 %v3082
    %4111 = vmatprep.subr.bf16.mxu0 %v3091
    %4112 = vmatpush1.bf16.msra.mxu0 %v3090
    %4113 = vmatprep.subr.bf16.mxu0 %v3099
    %4114 = vmatpush1.bf16.msra.mxu0 %v3098
    %4115 = vmatprep.subr.bf16.mxu0 %v3107
    %4116 = vmatpush1.bf16.msra.mxu0 %v3106
    %4117 = vmatprep.mubr.bf16.mxu0 %v761
    %4118 = vmatmul.mubr.bf16.gmra.mrb[0].mxu0 %v760
    %v4119 = vpop.f32.mrb[0].mxu0
    %v4120 = vadd.f32 %v4079, %v4119
    %v4121 = vpop.f32.mrb[0].mxu0
    %v4122 = vadd.f32 %v4081, %v4121
    %v4123 = vpop.f32.mrb[0].mxu0
    %v4124 = vpop.f32.mrb[0].mxu0
    %4125 = vdwg.mxu0
    %4126 = vmatprep.subr.bf16.mxu0 %v3115
    %4127 = vmatpush1.bf16.msra.mxu0 %v3114
    %4128 = vmatprep.subr.bf16.mxu0 %v3123
    %4129 = vmatpush1.bf16.msra.mxu0 %v3122
    %4130 = vmatprep.subr.bf16.mxu0 %v3131
    %4131 = vmatpush1.bf16.msra.mxu0 %v3130
    %4132 = vmatprep.subr.bf16.mxu0 %v3139
    %4133 = vmatpush1.bf16.msra.mxu0 %v3138
    %4134 = vmatprep.subr.bf16.mxu0 %v3147
    %4135 = vmatpush1.bf16.msra.mxu0 %v3146
    %4136 = vmatprep.subr.bf16.mxu0 %v3155
    %4137 = vmatpush1.bf16.msra.mxu0 %v3154
    %4138 = vmatprep.subr.bf16.mxu0 %v3163
    %4139 = vmatpush1.bf16.msra.mxu0 %v3162
    %4140 = vmatprep.subr.bf16.mxu0 %v3171
    %4141 = vmatpush1.bf16.msra.mxu0 %v3170
    %4142 = vmatprep.subr.bf16.mxu0 %v3179
    %4143 = vmatpush1.bf16.msra.mxu0 %v3178
    %4144 = vmatprep.subr.bf16.mxu0 %v3187
    %4145 = vmatpush1.bf16.msra.mxu0 %v3186
    %4146 = vmatprep.subr.bf16.mxu0 %v3195
    %4147 = vmatpush1.bf16.msra.mxu0 %v3194
    %4148 = vmatprep.subr.bf16.mxu0 %v3203
    %4149 = vmatpush1.bf16.msra.mxu0 %v3202
    %4150 = vmatprep.subr.bf16.mxu0 %v3211
    %4151 = vmatpush1.bf16.msra.mxu0 %v3210
    %4152 = vmatprep.subr.bf16.mxu0 %v3219
    %4153 = vmatpush1.bf16.msra.mxu0 %v3218
    %4154 = vmatprep.subr.bf16.mxu0 %v3227
    %4155 = vmatpush1.bf16.msra.mxu0 %v3226
    %4156 = vmatprep.subr.bf16.mxu0 %v3235
    %4157 = vmatpush1.bf16.msra.mxu0 %v3234
    %4158 = vmatprep.mubr.bf16.mxu0 %v763
    %4159 = vmatmul.mubr.bf16.gmra.mrb[0].mxu0 %v762
    %v4160 = vpop.f32.mrb[0].mxu0
    %v4161 = vadd.f32 %v4120, %v4160
    %v4162 = vpop.f32.mrb[0].mxu0
    %v4163 = vadd.f32 %v4122, %v4162
    %v4164 = vpop.f32.mrb[0].mxu0
    %v4165 = vpop.f32.mrb[0].mxu0
    %4166 = vdwg.mxu0
    %4167 = vmatprep.subr.bf16.mxu0 %v3243
    %4168 = vmatpush1.bf16.msra.mxu0 %v3242
    %4169 = vmatprep.subr.bf16.mxu0 %v3251
    %4170 = vmatpush1.bf16.msra.mxu0 %v3250
    %4171 = vmatprep.subr.bf16.mxu0 %v3259
    %4172 = vmatpush1.bf16.msra.mxu0 %v3258
    %4173 = vmatprep.subr.bf16.mxu0 %v3267
    %4174 = vmatpush1.bf16.msra.mxu0 %v3266
    %4175 = vmatprep.subr.bf16.mxu0 %v3275
    %4176 = vmatpush1.bf16.msra.mxu0 %v3274
    %4177 = vmatprep.subr.bf16.mxu0 %v3283
    %4178 = vmatpush1.bf16.msra.mxu0 %v3282
    %4179 = vmatprep.subr.bf16.mxu0 %v3291
    %4180 = vmatpush1.bf16.msra.mxu0 %v3290
    %4181 = vmatprep.subr.bf16.mxu0 %v3299
    %4182 = vmatpush1.bf16.msra.mxu0 %v3298
    %4183 = vmatprep.subr.bf16.mxu0 %v3307
    %4184 = vmatpush1.bf16.msra.mxu0 %v3306
    %4185 = vmatprep.subr.bf16.mxu0 %v3315
    %4186 = vmatpush1.bf16.msra.mxu0 %v3314
    %4187 = vmatprep.subr.bf16.mxu0 %v3323
    %4188 = vmatpush1.bf16.msra.mxu0 %v3322
    %4189 = vmatprep.subr.bf16.mxu0 %v3331
    %4190 = vmatpush1.bf16.msra.mxu0 %v3330
    %4191 = vmatprep.subr.bf16.mxu0 %v3339
    %4192 = vmatpush1.bf16.msra.mxu0 %v3338
    %4193 = vmatprep.subr.bf16.mxu0 %v3347
    %4194 = vmatpush1.bf16.msra.mxu0 %v3346
    %4195 = vmatprep.subr.bf16.mxu0 %v3355
    %4196 = vmatpush1.bf16.msra.mxu0 %v3354
    %4197 = vmatprep.subr.bf16.mxu0 %v3363
    %4198 = vmatpush1.bf16.msra.mxu0 %v3362
    %4199 = vmatprep.mubr.bf16.mxu0 %v765
    %4200 = vmatmul.mubr.bf16.gmra.mrb[0].mxu0 %v764
    %v4201 = vpop.f32.mrb[0].mxu0
    %v4202 = vadd.f32 %v4161, %v4201
    %v4203 = vpop.f32.mrb[0].mxu0
    %v4204 = vadd.f32 %v4163, %v4203
    %v4205 = vpop.f32.mrb[0].mxu0
    %v4206 = vpop.f32.mrb[0].mxu0
    %4207 = vdwg.mxu0
    %4208 = vmatprep.subr.bf16.mxu0 %v2861
    %4209 = vmatpush1.bf16.msra.mxu0 %v2860
    %4210 = vmatprep.subr.bf16.mxu0 %v2869
    %4211 = vmatpush1.bf16.msra.mxu0 %v2868
    %4212 = vmatprep.subr.bf16.mxu0 %v2877
    %4213 = vmatpush1.bf16.msra.mxu0 %v2876
    %4214 = vmatprep.subr.bf16.mxu0 %v2885
    %4215 = vmatpush1.bf16.msra.mxu0 %v2884
    %4216 = vmatprep.subr.bf16.mxu0 %v2893
    %4217 = vmatpush1.bf16.msra.mxu0 %v2892
    %4218 = vmatprep.subr.bf16.mxu0 %v2901
    %4219 = vmatpush1.bf16.msra.mxu0 %v2900
    %4220 = vmatprep.subr.bf16.mxu0 %v2909
    %4221 = vmatpush1.bf16.msra.mxu0 %v2908
    %4222 = vmatprep.subr.bf16.mxu0 %v2917
    %4223 = vmatpush1.bf16.msra.mxu0 %v2916
    %4224 = vmatprep.subr.bf16.mxu0 %v2925
    %4225 = vmatpush1.bf16.msra.mxu0 %v2924
    %4226 = vmatprep.subr.bf16.mxu0 %v2933
    %4227 = vmatpush1.bf16.msra.mxu0 %v2932
    %4228 = vmatprep.subr.bf16.mxu0 %v2941
    %4229 = vmatpush1.bf16.msra.mxu0 %v2940
    %4230 = vmatprep.subr.bf16.mxu0 %v2949
    %4231 = vmatpush1.bf16.msra.mxu0 %v2948
    %4232 = vmatprep.subr.bf16.mxu0 %v2957
    %4233 = vmatpush1.bf16.msra.mxu0 %v2956
    %4234 = vmatprep.subr.bf16.mxu0 %v2965
    %4235 = vmatpush1.bf16.msra.mxu0 %v2964
    %4236 = vmatprep.subr.bf16.mxu0 %v2973
    %4237 = vmatpush1.bf16.msra.mxu0 %v2972
    %4238 = vmatprep.subr.bf16.mxu0 %v2981
    %4239 = vmatpush1.bf16.msra.mxu0 %v2980
    %4240 = vmatprep.mubr.bf16.mxu0 %v759
    %4241 = vmatmul.mubr.bf16.gmra.mrb[0].mxu0 %v758
    %v4242 = vpop.f32.mrb[0].mxu0
    %v4243 = vadd.f32 %v1299, %v4242
    %v4244 = vpop.f32.mrb[0].mxu0
    %v4245 = vadd.f32 %v1303, %v4244
    %v4246 = vpop.f32.mrb[0].mxu0
    %v4247 = vpop.f32.mrb[0].mxu0
    %4248 = vdwg.mxu0
    %4249 = vmatprep.subr.bf16.mxu0 %v2989
    %4250 = vmatpush1.bf16.msra.mxu0 %v2988
    %4251 = vmatprep.subr.bf16.mxu0 %v2997
    %4252 = vmatpush1.bf16.msra.mxu0 %v2996
    %4253 = vmatprep.subr.bf16.mxu0 %v3005
    %4254 = vmatpush1.bf16.msra.mxu0 %v3004
    %4255 = vmatprep.subr.bf16.mxu0 %v3013
    %4256 = vmatpush1.bf16.msra.mxu0 %v3012
    %4257 = vmatprep.subr.bf16.mxu0 %v3021
    %4258 = vmatpush1.bf16.msra.mxu0 %v3020
    %4259 = vmatprep.subr.bf16.mxu0 %v3029
    %4260 = vmatpush1.bf16.msra.mxu0 %v3028
    %4261 = vmatprep.subr.bf16.mxu0 %v3037
    %4262 = vmatpush1.bf16.msra.mxu0 %v3036
    %4263 = vmatprep.subr.bf16.mxu0 %v3045
    %4264 = vmatpush1.bf16.msra.mxu0 %v3044
    %4265 = vmatprep.subr.bf16.mxu0 %v3053
    %4266 = vmatpush1.bf16.msra.mxu0 %v3052
    %4267 = vmatprep.subr.bf16.mxu0 %v3061
    %4268 = vmatpush1.bf16.msra.mxu0 %v3060
    %4269 = vmatprep.subr.bf16.mxu0 %v3069
    %4270 = vmatpush1.bf16.msra.mxu0 %v3068
    %4271 = vmatprep.subr.bf16.mxu0 %v3077
    %4272 = vmatpush1.bf16.msra.mxu0 %v3076
    %4273 = vmatprep.subr.bf16.mxu0 %v3085
    %4274 = vmatpush1.bf16.msra.mxu0 %v3084
    %4275 = vmatprep.subr.bf16.mxu0 %v3093
    %4276 = vmatpush1.bf16.msra.mxu0 %v3092
    %4277 = vmatprep.subr.bf16.mxu0 %v3101
    %4278 = vmatpush1.bf16.msra.mxu0 %v3100
    %4279 = vmatprep.subr.bf16.mxu0 %v3109
    %4280 = vmatpush1.bf16.msra.mxu0 %v3108
    %4281 = vmatprep.mubr.bf16.mxu0 %v761
    %4282 = vmatmul.mubr.bf16.gmra.mrb[0].mxu0 %v760
    %v4283 = vpop.f32.mrb[0].mxu0
    %v4284 = vadd.f32 %v4243, %v4283
    %v4285 = vpop.f32.mrb[0].mxu0
    %v4286 = vadd.f32 %v4245, %v4285
    %v4287 = vpop.f32.mrb[0].mxu0
    %v4288 = vpop.f32.mrb[0].mxu0
    %4289 = vdwg.mxu0
    %4290 = vmatprep.subr.bf16.mxu0 %v3117
    %4291 = vmatpush1.bf16.msra.mxu0 %v3116
    %4292 = vmatprep.subr.bf16.mxu0 %v3125
    %4293 = vmatpush1.bf16.msra.mxu0 %v3124
    %4294 = vmatprep.subr.bf16.mxu0 %v3133
    %4295 = vmatpush1.bf16.msra.mxu0 %v3132
    %4296 = vmatprep.subr.bf16.mxu0 %v3141
    %4297 = vmatpush1.bf16.msra.mxu0 %v3140
    %4298 = vmatprep.subr.bf16.mxu0 %v3149
    %4299 = vmatpush1.bf16.msra.mxu0 %v3148
    %4300 = vmatprep.subr.bf16.mxu0 %v3157
    %4301 = vmatpush1.bf16.msra.mxu0 %v3156
    %4302 = vmatprep.subr.bf16.mxu0 %v3165
    %4303 = vmatpush1.bf16.msra.mxu0 %v3164
    %4304 = vmatprep.subr.bf16.mxu0 %v3173
    %4305 = vmatpush1.bf16.msra.mxu0 %v3172
    %4306 = vmatprep.subr.bf16.mxu0 %v3181
    %4307 = vmatpush1.bf16.msra.mxu0 %v3180
    %4308 = vmatprep.subr.bf16.mxu0 %v3189
    %4309 = vmatpush1.bf16.msra.mxu0 %v3188
    %4310 = vmatprep.subr.bf16.mxu0 %v3197
    %4311 = vmatpush1.bf16.msra.mxu0 %v3196
    %4312 = vmatprep.subr.bf16.mxu0 %v3205
    %4313 = vmatpush1.bf16.msra.mxu0 %v3204
    %4314 = vmatprep.subr.bf16.mxu0 %v3213
    %4315 = vmatpush1.bf16.msra.mxu0 %v3212
    %4316 = vmatprep.subr.bf16.mxu0 %v3221
    %4317 = vmatpush1.bf16.msra.mxu0 %v3220
    %4318 = vmatprep.subr.bf16.mxu0 %v3229
    %4319 = vmatpush1.bf16.msra.mxu0 %v3228
    %4320 = vmatprep.subr.bf16.mxu0 %v3237
    %4321 = vmatpush1.bf16.msra.mxu0 %v3236
    %4322 = vmatprep.mubr.bf16.mxu0 %v763
    %4323 = vmatmul.mubr.bf16.gmra.mrb[0].mxu0 %v762
    %v4324 = vpop.f32.mrb[0].mxu0
    %v4325 = vadd.f32 %v4284, %v4324
    %v4326 = vpop.f32.mrb[0].mxu0
    %v4327 = vadd.f32 %v4286, %v4326
    %v4328 = vpop.f32.mrb[0].mxu0
    %v4329 = vpop.f32.mrb[0].mxu0
    %4330 = vdwg.mxu0
    %4331 = vmatprep.subr.bf16.mxu0 %v3245
    %4332 = vmatpush1.bf16.msra.mxu0 %v3244
    %4333 = vmatprep.subr.bf16.mxu0 %v3253
    %4334 = vmatpush1.bf16.msra.mxu0 %v3252
    %4335 = vmatprep.subr.bf16.mxu0 %v3261
    %4336 = vmatpush1.bf16.msra.mxu0 %v3260
    %4337 = vmatprep.subr.bf16.mxu0 %v3269
    %4338 = vmatpush1.bf16.msra.mxu0 %v3268
    %4339 = vmatprep.subr.bf16.mxu0 %v3277
    %4340 = vmatpush1.bf16.msra.mxu0 %v3276
    %4341 = vmatprep.subr.bf16.mxu0 %v3285
    %4342 = vmatpush1.bf16.msra.mxu0 %v3284
    %4343 = vmatprep.subr.bf16.mxu0 %v3293
    %4344 = vmatpush1.bf16.msra.mxu0 %v3292
    %4345 = vmatprep.subr.bf16.mxu0 %v3301
    %4346 = vmatpush1.bf16.msra.mxu0 %v3300
    %4347 = vmatprep.subr.bf16.mxu0 %v3309
    %4348 = vmatpush1.bf16.msra.mxu0 %v3308
    %4349 = vmatprep.subr.bf16.mxu0 %v3317
    %4350 = vmatpush1.bf16.msra.mxu0 %v3316
    %4351 = vmatprep.subr.bf16.mxu0 %v3325
    %4352 = vmatpush1.bf16.msra.mxu0 %v3324
    %4353 = vmatprep.subr.bf16.mxu0 %v3333
    %4354 = vmatpush1.bf16.msra.mxu0 %v3332
    %4355 = vmatprep.subr.bf16.mxu0 %v3341
    %4356 = vmatpush1.bf16.msra.mxu0 %v3340
    %4357 = vmatprep.subr.bf16.mxu0 %v3349
    %4358 = vmatpush1.bf16.msra.mxu0 %v3348
    %4359 = vmatprep.subr.bf16.mxu0 %v3357
    %4360 = vmatpush1.bf16.msra.mxu0 %v3356
    %4361 = vmatprep.subr.bf16.mxu0 %v3365
    %4362 = vmatpush1.bf16.msra.mxu0 %v3364
    %4363 = vmatprep.mubr.bf16.mxu0 %v765
    %4364 = vmatmul.mubr.bf16.gmra.mrb[0].mxu0 %v764
    %v4365 = vpop.f32.mrb[0].mxu0
    %v4366 = vadd.f32 %v4325, %v4365
    %v4367 = vpop.f32.mrb[0].mxu0
    %v4368 = vadd.f32 %v4327, %v4367
    %v4369 = vpop.f32.mrb[0].mxu0
    %v4370 = vpop.f32.mrb[0].mxu0
    %4371 = vdwg.mxu0
    %4372 = vmatprep.subr.bf16.mxu0 %v2863
    %4373 = vmatpush1.bf16.msra.mxu0 %v2862
    %4374 = vmatprep.subr.bf16.mxu0 %v2871
    %4375 = vmatpush1.bf16.msra.mxu0 %v2870
    %4376 = vmatprep.subr.bf16.mxu0 %v2879
    %4377 = vmatpush1.bf16.msra.mxu0 %v2878
    %4378 = vmatprep.subr.bf16.mxu0 %v2887
    %4379 = vmatpush1.bf16.msra.mxu0 %v2886
    %4380 = vmatprep.subr.bf16.mxu0 %v2895
    %4381 = vmatpush1.bf16.msra.mxu0 %v2894
    %4382 = vmatprep.subr.bf16.mxu0 %v2903
    %4383 = vmatpush1.bf16.msra.mxu0 %v2902
    %4384 = vmatprep.subr.bf16.mxu0 %v2911
    %4385 = vmatpush1.bf16.msra.mxu0 %v2910
    %4386 = vmatprep.subr.bf16.mxu0 %v2919
    %4387 = vmatpush1.bf16.msra.mxu0 %v2918
    %4388 = vmatprep.subr.bf16.mxu0 %v2927
    %4389 = vmatpush1.bf16.msra.mxu0 %v2926
    %4390 = vmatprep.subr.bf16.mxu0 %v2935
    %4391 = vmatpush1.bf16.msra.mxu0 %v2934
    %4392 = vmatprep.subr.bf16.mxu0 %v2943
    %4393 = vmatpush1.bf16.msra.mxu0 %v2942
    %4394 = vmatprep.subr.bf16.mxu0 %v2951
    %4395 = vmatpush1.bf16.msra.mxu0 %v2950
    %4396 = vmatprep.subr.bf16.mxu0 %v2959
    %4397 = vmatpush1.bf16.msra.mxu0 %v2958
    %4398 = vmatprep.subr.bf16.mxu0 %v2967
    %4399 = vmatpush1.bf16.msra.mxu0 %v2966
    %4400 = vmatprep.subr.bf16.mxu0 %v2975
    %4401 = vmatpush1.bf16.msra.mxu0 %v2974
    %4402 = vmatprep.subr.bf16.mxu0 %v2983
    %4403 = vmatpush1.bf16.msra.mxu0 %v2982
    %4404 = vmatprep.mubr.bf16.mxu0 %v759
    %4405 = vmatmul.mubr.bf16.gmra.mrb[0].mxu0 %v758
    %v4406 = vpop.f32.mrb[0].mxu0
    %v4407 = vadd.f32 %v1307, %v4406
    %v4408 = vpop.f32.mrb[0].mxu0
    %v4409 = vadd.f32 %v1311, %v4408
    %v4410 = vpop.f32.mrb[0].mxu0
    %v4411 = vpop.f32.mrb[0].mxu0
    %4412 = vdwg.mxu0
    %4413 = vmatprep.subr.bf16.mxu0 %v2991
    %4414 = vmatpush1.bf16.msra.mxu0 %v2990
    %4415 = vmatprep.subr.bf16.mxu0 %v2999
    %4416 = vmatpush1.bf16.msra.mxu0 %v2998
    %4417 = vmatprep.subr.bf16.mxu0 %v3007
    %4418 = vmatpush1.bf16.msra.mxu0 %v3006
    %4419 = vmatprep.subr.bf16.mxu0 %v3015
    %4420 = vmatpush1.bf16.msra.mxu0 %v3014
    %4421 = vmatprep.subr.bf16.mxu0 %v3023
    %4422 = vmatpush1.bf16.msra.mxu0 %v3022
    %4423 = vmatprep.subr.bf16.mxu0 %v3031
    %4424 = vmatpush1.bf16.msra.mxu0 %v3030
    %4425 = vmatprep.subr.bf16.mxu0 %v3039
    %4426 = vmatpush1.bf16.msra.mxu0 %v3038
    %4427 = vmatprep.subr.bf16.mxu0 %v3047
    %4428 = vmatpush1.bf16.msra.mxu0 %v3046
    %4429 = vmatprep.subr.bf16.mxu0 %v3055
    %4430 = vmatpush1.bf16.msra.mxu0 %v3054
    %4431 = vmatprep.subr.bf16.mxu0 %v3063
    %4432 = vmatpush1.bf16.msra.mxu0 %v3062
    %4433 = vmatprep.subr.bf16.mxu0 %v3071
    %4434 = vmatpush1.bf16.msra.mxu0 %v3070
    %4435 = vmatprep.subr.bf16.mxu0 %v3079
    %4436 = vmatpush1.bf16.msra.mxu0 %v3078
    %4437 = vmatprep.subr.bf16.mxu0 %v3087
    %4438 = vmatpush1.bf16.msra.mxu0 %v3086
    %4439 = vmatprep.subr.bf16.mxu0 %v3095
    %4440 = vmatpush1.bf16.msra.mxu0 %v3094
    %4441 = vmatprep.subr.bf16.mxu0 %v3103
    %4442 = vmatpush1.bf16.msra.mxu0 %v3102
    %4443 = vmatprep.subr.bf16.mxu0 %v3111
    %4444 = vmatpush1.bf16.msra.mxu0 %v3110
    %4445 = vmatprep.mubr.bf16.mxu0 %v761
    %4446 = vmatmul.mubr.bf16.gmra.mrb[0].mxu0 %v760
    %v4447 = vpop.f32.mrb[0].mxu0
    %v4448 = vadd.f32 %v4407, %v4447
    %v4449 = vpop.f32.mrb[0].mxu0
    %v4450 = vadd.f32 %v4409, %v4449
    %v4451 = vpop.f32.mrb[0].mxu0
    %v4452 = vpop.f32.mrb[0].mxu0
    %4453 = vdwg.mxu0
    %4454 = vmatprep.subr.bf16.mxu0 %v3119
    %4455 = vmatpush1.bf16.msra.mxu0 %v3118
    %4456 = vmatprep.subr.bf16.mxu0 %v3127
    %4457 = vmatpush1.bf16.msra.mxu0 %v3126
    %4458 = vmatprep.subr.bf16.mxu0 %v3135
    %4459 = vmatpush1.bf16.msra.mxu0 %v3134
    %4460 = vmatprep.subr.bf16.mxu0 %v3143
    %4461 = vmatpush1.bf16.msra.mxu0 %v3142
    %4462 = vmatprep.subr.bf16.mxu0 %v3151
    %4463 = vmatpush1.bf16.msra.mxu0 %v3150
    %4464 = vmatprep.subr.bf16.mxu0 %v3159
    %4465 = vmatpush1.bf16.msra.mxu0 %v3158
    %4466 = vmatprep.subr.bf16.mxu0 %v3167
    %4467 = vmatpush1.bf16.msra.mxu0 %v3166
    %4468 = vmatprep.subr.bf16.mxu0 %v3175
    %4469 = vmatpush1.bf16.msra.mxu0 %v3174
    %4470 = vmatprep.subr.bf16.mxu0 %v3183
    %4471 = vmatpush1.bf16.msra.mxu0 %v3182
    %4472 = vmatprep.subr.bf16.mxu0 %v3191
    %4473 = vmatpush1.bf16.msra.mxu0 %v3190
    %4474 = vmatprep.subr.bf16.mxu0 %v3199
    %4475 = vmatpush1.bf16.msra.mxu0 %v3198
    %4476 = vmatprep.subr.bf16.mxu0 %v3207
    %4477 = vmatpush1.bf16.msra.mxu0 %v3206
    %4478 = vmatprep.subr.bf16.mxu0 %v3215
    %4479 = vmatpush1.bf16.msra.mxu0 %v3214
    %4480 = vmatprep.subr.bf16.mxu0 %v3223
    %4481 = vmatpush1.bf16.msra.mxu0 %v3222
    %4482 = vmatprep.subr.bf16.mxu0 %v3231
    %4483 = vmatpush1.bf16.msra.mxu0 %v3230
    %4484 = vmatprep.subr.bf16.mxu0 %v3239
    %4485 = vmatpush1.bf16.msra.mxu0 %v3238
    %4486 = vmatprep.mubr.bf16.mxu0 %v763
    %4487 = vmatmul.mubr.bf16.gmra.mrb[0].mxu0 %v762
    %v4488 = vpop.f32.mrb[0].mxu0
    %v4489 = vadd.f32 %v4448, %v4488
    %v4490 = vpop.f32.mrb[0].mxu0
    %v4491 = vadd.f32 %v4450, %v4490
    %v4492 = vpop.f32.mrb[0].mxu0
    %v4493 = vpop.f32.mrb[0].mxu0
    %4494 = vdwg.mxu0
    %4495 = vmatprep.subr.bf16.mxu0 %v3247
    %4496 = vmatpush1.bf16.msra.mxu0 %v3246
    %4497 = vmatprep.subr.bf16.mxu0 %v3255
    %4498 = vmatpush1.bf16.msra.mxu0 %v3254
    %4499 = vmatprep.subr.bf16.mxu0 %v3263
    %4500 = vmatpush1.bf16.msra.mxu0 %v3262
    %4501 = vmatprep.subr.bf16.mxu0 %v3271
    %4502 = vmatpush1.bf16.msra.mxu0 %v3270
    %4503 = vmatprep.subr.bf16.mxu0 %v3279
    %4504 = vmatpush1.bf16.msra.mxu0 %v3278
    %4505 = vmatprep.subr.bf16.mxu0 %v3287
    %4506 = vmatpush1.bf16.msra.mxu0 %v3286
    %4507 = vmatprep.subr.bf16.mxu0 %v3295
    %4508 = vmatpush1.bf16.msra.mxu0 %v3294
    %4509 = vmatprep.subr.bf16.mxu0 %v3303
    %4510 = vmatpush1.bf16.msra.mxu0 %v3302
    %4511 = vmatprep.subr.bf16.mxu0 %v3311
    %4512 = vmatpush1.bf16.msra.mxu0 %v3310
    %4513 = vmatprep.subr.bf16.mxu0 %v3319
    %4514 = vmatpush1.bf16.msra.mxu0 %v3318
    %4515 = vmatprep.subr.bf16.mxu0 %v3327
    %4516 = vmatpush1.bf16.msra.mxu0 %v3326
    %4517 = vmatprep.subr.bf16.mxu0 %v3335
    %4518 = vmatpush1.bf16.msra.mxu0 %v3334
    %4519 = vmatprep.subr.bf16.mxu0 %v3343
    %4520 = vmatpush1.bf16.msra.mxu0 %v3342
    %4521 = vmatprep.subr.bf16.mxu0 %v3351
    %4522 = vmatpush1.bf16.msra.mxu0 %v3350
    %4523 = vmatprep.subr.bf16.mxu0 %v3359
    %4524 = vmatpush1.bf16.msra.mxu0 %v3358
    %4525 = vmatprep.subr.bf16.mxu0 %v3367
    %4526 = vmatpush1.bf16.msra.mxu0 %v3366
    %4527 = vmatprep.mubr.bf16.mxu0 %v765
    %4528 = vmatmul.mubr.bf16.gmra.mrb[0].mxu0 %v764
    %v4529 = vpop.f32.mrb[0].mxu0
    %v4530 = vadd.f32 %v4489, %v4529
    %v4531 = vpop.f32.mrb[0].mxu0
    %v4532 = vadd.f32 %v4491, %v4531
    %v4533 = vpop.f32.mrb[0].mxu0
    %v4534 = vpop.f32.mrb[0].mxu0
    %4535 = vdwg.mxu0
    %v4536 = vmax.f32 %v4038, 0.0
    %v4537 = vmax.f32 %v4040, 0.0
    %v4538 = vmax.f32 %v4202, 0.0
    %v4539 = vmax.f32 %v4204, 0.0
    %v4540 = vmax.f32 %v4366, 0.0
    %v4541 = vmax.f32 %v4368, 0.0
    %v4542 = vmax.f32 %v4530, 0.0
    %v4543 = vmax.f32 %v4532, 0.0
    %v4544 = vpack.c.bf16 %v4536, %v4536
    %v4545 = vpack.c.bf16 %v4537, %v4537
    %v4546 = vpack.c.bf16 %v4538, %v4538
    %v4547 = vpack.c.bf16 %v4539, %v4539
    %v4548 = vpack.c.bf16 %v4540, %v4540
    %v4549 = vpack.c.bf16 %v4541, %v4541
    %v4550 = vpack.c.bf16 %v4542, %v4542
    %v4551 = vpack.c.bf16 %v4543, %v4543
    %v4552 = vld [vmem:[#allocation8] sm:$0xff]
    %v4553 = vld [vmem:[#allocation8 + $0x8] sm:$0xff]
    %v4554 = vld [vmem:[#allocation8 + $0x10] sm:$0xff]
    %v4555 = vld [vmem:[#allocation8 + $0x18] sm:$0xff]
    %v4556 = vld [vmem:[#allocation8 + $0x20] sm:$0xff]
    %v4557 = vld [vmem:[#allocation8 + $0x28] sm:$0xff]
    %v4558 = vld [vmem:[#allocation8 + $0x30] sm:$0xff]
    %v4559 = vld [vmem:[#allocation8 + $0x38] sm:$0xff]
    %v4560 = vld [vmem:[#allocation8 + $0x40] sm:$0xff]
    %v4561 = vld [vmem:[#allocation8 + $0x48] sm:$0xff]
    %v4562 = vld [vmem:[#allocation8 + $0x50] sm:$0xff]
    %v4563 = vld [vmem:[#allocation8 + $0x58] sm:$0xff]
    %v4564 = vld [vmem:[#allocation8 + $0x60] sm:$0xff]
    %v4565 = vld [vmem:[#allocation8 + $0x68] sm:$0xff]
    %v4566 = vld [vmem:[#allocation8 + $0x70] sm:$0xff]
    %v4567 = vld [vmem:[#allocation8 + $0x78] sm:$0xff]
    %v4568 = vld [vmem:[#allocation8 + $0x80] sm:$0xff]
    %v4569 = vld [vmem:[#allocation8 + $0x88] sm:$0xff]
    %v4570 = vld [vmem:[#allocation8 + $0x90] sm:$0xff]
    %v4571 = vld [vmem:[#allocation8 + $0x98] sm:$0xff]
    %v4572 = vld [vmem:[#allocation8 + $0xa0] sm:$0xff]
    %v4573 = vld [vmem:[#allocation8 + $0xa8] sm:$0xff]
    %v4574 = vld [vmem:[#allocation8 + $0xb0] sm:$0xff]
    %v4575 = vld [vmem:[#allocation8 + $0xb8] sm:$0xff]
    %v4576 = vld [vmem:[#allocation8 + $0xc0] sm:$0xff]
    %v4577 = vld [vmem:[#allocation8 + $0xc8] sm:$0xff]
    %v4578 = vld [vmem:[#allocation8 + $0xd0] sm:$0xff]
    %v4579 = vld [vmem:[#allocation8 + $0xd8] sm:$0xff]
    %v4580 = vld [vmem:[#allocation8 + $0xe0] sm:$0xff]
    %v4581 = vld [vmem:[#allocation8 + $0xe8] sm:$0xff]
    %v4582 = vld [vmem:[#allocation8 + $0xf0] sm:$0xff]
    %v4583 = vld [vmem:[#allocation8 + $0xf8] sm:$0xff]
    %v4584 = vld [vmem:[#allocation8 + $0x100] sm:$0xff]
    %v4585 = vld [vmem:[#allocation8 + $0x108] sm:$0xff]
    %v4586 = vld [vmem:[#allocation8 + $0x110] sm:$0xff]
    %v4587 = vld [vmem:[#allocation8 + $0x118] sm:$0xff]
    %v4588 = vld [vmem:[#allocation8 + $0x120] sm:$0xff]
    %v4589 = vld [vmem:[#allocation8 + $0x128] sm:$0xff]
    %v4590 = vld [vmem:[#allocation8 + $0x130] sm:$0xff]
    %v4591 = vld [vmem:[#allocation8 + $0x138] sm:$0xff]
    %v4592 = vld [vmem:[#allocation8 + $0x140] sm:$0xff]
    %v4593 = vld [vmem:[#allocation8 + $0x148] sm:$0xff]
    %v4594 = vld [vmem:[#allocation8 + $0x150] sm:$0xff]
    %v4595 = vld [vmem:[#allocation8 + $0x158] sm:$0xff]
    %v4596 = vld [vmem:[#allocation8 + $0x160] sm:$0xff]
    %v4597 = vld [vmem:[#allocation8 + $0x168] sm:$0xff]
    %v4598 = vld [vmem:[#allocation8 + $0x170] sm:$0xff]
    %v4599 = vld [vmem:[#allocation8 + $0x178] sm:$0xff]
    %v4600 = vld [vmem:[#allocation8 + $0x180] sm:$0xff]
    %v4601 = vld [vmem:[#allocation8 + $0x188] sm:$0xff]
    %v4602 = vld [vmem:[#allocation8 + $0x190] sm:$0xff]
    %v4603 = vld [vmem:[#allocation8 + $0x198] sm:$0xff]
    %v4604 = vld [vmem:[#allocation8 + $0x1a0] sm:$0xff]
    %v4605 = vld [vmem:[#allocation8 + $0x1a8] sm:$0xff]
    %v4606 = vld [vmem:[#allocation8 + $0x1b0] sm:$0xff]
    %v4607 = vld [vmem:[#allocation8 + $0x1b8] sm:$0xff]
    %v4608 = vld [vmem:[#allocation8 + $0x1c0] sm:$0xff]
    %v4609 = vld [vmem:[#allocation8 + $0x1c8] sm:$0xff]
    %v4610 = vld [vmem:[#allocation8 + $0x1d0] sm:$0xff]
    %v4611 = vld [vmem:[#allocation8 + $0x1d8] sm:$0xff]
    %v4612 = vld [vmem:[#allocation8 + $0x1e0] sm:$0xff]
    %v4613 = vld [vmem:[#allocation8 + $0x1e8] sm:$0xff]
    %v4614 = vld [vmem:[#allocation8 + $0x1f0] sm:$0xff]
    %v4615 = vld [vmem:[#allocation8 + $0x1f8] sm:$0xff]
    %v4616 = vld [vmem:[#allocation8 + $0x200] sm:$0xff]
    %v4617 = vld [vmem:[#allocation8 + $0x208] sm:$0xff]
    %v4618 = vld [vmem:[#allocation8 + $0x210] sm:$0xff]
    %v4619 = vld [vmem:[#allocation8 + $0x218] sm:$0xff]
    %v4620 = vld [vmem:[#allocation8 + $0x220] sm:$0xff]
    %v4621 = vld [vmem:[#allocation8 + $0x228] sm:$0xff]
    %v4622 = vld [vmem:[#allocation8 + $0x230] sm:$0xff]
    %v4623 = vld [vmem:[#allocation8 + $0x238] sm:$0xff]
    %v4624 = vld [vmem:[#allocation8 + $0x240] sm:$0xff]
    %v4625 = vld [vmem:[#allocation8 + $0x248] sm:$0xff]
    %v4626 = vld [vmem:[#allocation8 + $0x250] sm:$0xff]
    %v4627 = vld [vmem:[#allocation8 + $0x258] sm:$0xff]
    %v4628 = vld [vmem:[#allocation8 + $0x260] sm:$0xff]
    %v4629 = vld [vmem:[#allocation8 + $0x268] sm:$0xff]
    %v4630 = vld [vmem:[#allocation8 + $0x270] sm:$0xff]
    %v4631 = vld [vmem:[#allocation8 + $0x278] sm:$0xff]
    %v4632 = vld [vmem:[#allocation8 + $0x280] sm:$0xff]
    %v4633 = vld [vmem:[#allocation8 + $0x288] sm:$0xff]
    %v4634 = vld [vmem:[#allocation8 + $0x290] sm:$0xff]
    %v4635 = vld [vmem:[#allocation8 + $0x298] sm:$0xff]
    %v4636 = vld [vmem:[#allocation8 + $0x2a0] sm:$0xff]
    %v4637 = vld [vmem:[#allocation8 + $0x2a8] sm:$0xff]
    %v4638 = vld [vmem:[#allocation8 + $0x2b0] sm:$0xff]
    %v4639 = vld [vmem:[#allocation8 + $0x2b8] sm:$0xff]
    %v4640 = vld [vmem:[#allocation8 + $0x2c0] sm:$0xff]
    %v4641 = vld [vmem:[#allocation8 + $0x2c8] sm:$0xff]
    %v4642 = vld [vmem:[#allocation8 + $0x2d0] sm:$0xff]
    %v4643 = vld [vmem:[#allocation8 + $0x2d8] sm:$0xff]
    %v4644 = vld [vmem:[#allocation8 + $0x2e0] sm:$0xff]
    %v4645 = vld [vmem:[#allocation8 + $0x2e8] sm:$0xff]
    %v4646 = vld [vmem:[#allocation8 + $0x2f0] sm:$0xff]
    %v4647 = vld [vmem:[#allocation8 + $0x2f8] sm:$0xff]
    %v4648 = vld [vmem:[#allocation8 + $0x300] sm:$0xff]
    %v4649 = vld [vmem:[#allocation8 + $0x308] sm:$0xff]
    %v4650 = vld [vmem:[#allocation8 + $0x310] sm:$0xff]
    %v4651 = vld [vmem:[#allocation8 + $0x318] sm:$0xff]
    %v4652 = vld [vmem:[#allocation8 + $0x320] sm:$0xff]
    %v4653 = vld [vmem:[#allocation8 + $0x328] sm:$0xff]
    %v4654 = vld [vmem:[#allocation8 + $0x330] sm:$0xff]
    %v4655 = vld [vmem:[#allocation8 + $0x338] sm:$0xff]
    %v4656 = vld [vmem:[#allocation8 + $0x340] sm:$0xff]
    %v4657 = vld [vmem:[#allocation8 + $0x348] sm:$0xff]
    %v4658 = vld [vmem:[#allocation8 + $0x350] sm:$0xff]
    %v4659 = vld [vmem:[#allocation8 + $0x358] sm:$0xff]
    %v4660 = vld [vmem:[#allocation8 + $0x360] sm:$0xff]
    %v4661 = vld [vmem:[#allocation8 + $0x368] sm:$0xff]
    %v4662 = vld [vmem:[#allocation8 + $0x370] sm:$0xff]
    %v4663 = vld [vmem:[#allocation8 + $0x378] sm:$0xff]
    %v4664 = vld [vmem:[#allocation8 + $0x380] sm:$0xff]
    %v4665 = vld [vmem:[#allocation8 + $0x388] sm:$0xff]
    %v4666 = vld [vmem:[#allocation8 + $0x390] sm:$0xff]
    %v4667 = vld [vmem:[#allocation8 + $0x398] sm:$0xff]
    %v4668 = vld [vmem:[#allocation8 + $0x3a0] sm:$0xff]
    %v4669 = vld [vmem:[#allocation8 + $0x3a8] sm:$0xff]
    %v4670 = vld [vmem:[#allocation8 + $0x3b0] sm:$0xff]
    %v4671 = vld [vmem:[#allocation8 + $0x3b8] sm:$0xff]
    %v4672 = vld [vmem:[#allocation8 + $0x3c0] sm:$0xff]
    %v4673 = vld [vmem:[#allocation8 + $0x3c8] sm:$0xff]
    %v4674 = vld [vmem:[#allocation8 + $0x3d0] sm:$0xff]
    %v4675 = vld [vmem:[#allocation8 + $0x3d8] sm:$0xff]
    %v4676 = vld [vmem:[#allocation8 + $0x3e0] sm:$0xff]
    %v4677 = vld [vmem:[#allocation8 + $0x3e8] sm:$0xff]
    %v4678 = vld [vmem:[#allocation8 + $0x3f0] sm:$0xff]
    %v4679 = vld [vmem:[#allocation8 + $0x3f8] sm:$0xff]
    %v4680 = vld [vmem:[#allocation8 + $0x400] sm:$0xff]
    %v4681 = vld [vmem:[#allocation8 + $0x408] sm:$0xff]
    %v4682 = vld [vmem:[#allocation8 + $0x410] sm:$0xff]
    %v4683 = vld [vmem:[#allocation8 + $0x418] sm:$0xff]
    %v4684 = vld [vmem:[#allocation8 + $0x420] sm:$0xff]
    %v4685 = vld [vmem:[#allocation8 + $0x428] sm:$0xff]
    %v4686 = vld [vmem:[#allocation8 + $0x430] sm:$0xff]
    %v4687 = vld [vmem:[#allocation8 + $0x438] sm:$0xff]
    %v4688 = vld [vmem:[#allocation8 + $0x440] sm:$0xff]
    %v4689 = vld [vmem:[#allocation8 + $0x448] sm:$0xff]
    %v4690 = vld [vmem:[#allocation8 + $0x450] sm:$0xff]
    %v4691 = vld [vmem:[#allocation8 + $0x458] sm:$0xff]
    %v4692 = vld [vmem:[#allocation8 + $0x460] sm:$0xff]
    %v4693 = vld [vmem:[#allocation8 + $0x468] sm:$0xff]
    %v4694 = vld [vmem:[#allocation8 + $0x470] sm:$0xff]
    %v4695 = vld [vmem:[#allocation8 + $0x478] sm:$0xff]
    %v4696 = vld [vmem:[#allocation8 + $0x480] sm:$0xff]
    %v4697 = vld [vmem:[#allocation8 + $0x488] sm:$0xff]
    %v4698 = vld [vmem:[#allocation8 + $0x490] sm:$0xff]
    %v4699 = vld [vmem:[#allocation8 + $0x498] sm:$0xff]
    %v4700 = vld [vmem:[#allocation8 + $0x4a0] sm:$0xff]
    %v4701 = vld [vmem:[#allocation8 + $0x4a8] sm:$0xff]
    %v4702 = vld [vmem:[#allocation8 + $0x4b0] sm:$0xff]
    %v4703 = vld [vmem:[#allocation8 + $0x4b8] sm:$0xff]
    %v4704 = vld [vmem:[#allocation8 + $0x4c0] sm:$0xff]
    %v4705 = vld [vmem:[#allocation8 + $0x4c8] sm:$0xff]
    %v4706 = vld [vmem:[#allocation8 + $0x4d0] sm:$0xff]
    %v4707 = vld [vmem:[#allocation8 + $0x4d8] sm:$0xff]
    %v4708 = vld [vmem:[#allocation8 + $0x4e0] sm:$0xff]
    %v4709 = vld [vmem:[#allocation8 + $0x4e8] sm:$0xff]
    %v4710 = vld [vmem:[#allocation8 + $0x4f0] sm:$0xff]
    %v4711 = vld [vmem:[#allocation8 + $0x4f8] sm:$0xff]
    %v4712 = vld [vmem:[#allocation8 + $0x500] sm:$0xff]
    %v4713 = vld [vmem:[#allocation8 + $0x508] sm:$0xff]
    %v4714 = vld [vmem:[#allocation8 + $0x510] sm:$0xff]
    %v4715 = vld [vmem:[#allocation8 + $0x518] sm:$0xff]
    %v4716 = vld [vmem:[#allocation8 + $0x520] sm:$0xff]
    %v4717 = vld [vmem:[#allocation8 + $0x528] sm:$0xff]
    %v4718 = vld [vmem:[#allocation8 + $0x530] sm:$0xff]
    %v4719 = vld [vmem:[#allocation8 + $0x538] sm:$0xff]
    %v4720 = vld [vmem:[#allocation8 + $0x540] sm:$0xff]
    %v4721 = vld [vmem:[#allocation8 + $0x548] sm:$0xff]
    %v4722 = vld [vmem:[#allocation8 + $0x550] sm:$0xff]
    %v4723 = vld [vmem:[#allocation8 + $0x558] sm:$0xff]
    %v4724 = vld [vmem:[#allocation8 + $0x560] sm:$0xff]
    %v4725 = vld [vmem:[#allocation8 + $0x568] sm:$0xff]
    %v4726 = vld [vmem:[#allocation8 + $0x570] sm:$0xff]
    %v4727 = vld [vmem:[#allocation8 + $0x578] sm:$0xff]
    %v4728 = vld [vmem:[#allocation8 + $0x580] sm:$0xff]
    %v4729 = vld [vmem:[#allocation8 + $0x588] sm:$0xff]
    %v4730 = vld [vmem:[#allocation8 + $0x590] sm:$0xff]
    %v4731 = vld [vmem:[#allocation8 + $0x598] sm:$0xff]
    %v4732 = vld [vmem:[#allocation8 + $0x5a0] sm:$0xff]
    %v4733 = vld [vmem:[#allocation8 + $0x5a8] sm:$0xff]
    %v4734 = vld [vmem:[#allocation8 + $0x5b0] sm:$0xff]
    %v4735 = vld [vmem:[#allocation8 + $0x5b8] sm:$0xff]
    %v4736 = vld [vmem:[#allocation8 + $0x5c0] sm:$0xff]
    %v4737 = vld [vmem:[#allocation8 + $0x5c8] sm:$0xff]
    %v4738 = vld [vmem:[#allocation8 + $0x5d0] sm:$0xff]
    %v4739 = vld [vmem:[#allocation8 + $0x5d8] sm:$0xff]
    %v4740 = vld [vmem:[#allocation8 + $0x5e0] sm:$0xff]
    %v4741 = vld [vmem:[#allocation8 + $0x5e8] sm:$0xff]
    %v4742 = vld [vmem:[#allocation8 + $0x5f0] sm:$0xff]
    %v4743 = vld [vmem:[#allocation8 + $0x5f8] sm:$0xff]
    %v4744 = vld [vmem:[#allocation8 + $0x600] sm:$0xff]
    %v4745 = vld [vmem:[#allocation8 + $0x608] sm:$0xff]
    %v4746 = vld [vmem:[#allocation8 + $0x610] sm:$0xff]
    %v4747 = vld [vmem:[#allocation8 + $0x618] sm:$0xff]
    %v4748 = vld [vmem:[#allocation8 + $0x620] sm:$0xff]
    %v4749 = vld [vmem:[#allocation8 + $0x628] sm:$0xff]
    %v4750 = vld [vmem:[#allocation8 + $0x630] sm:$0xff]
    %v4751 = vld [vmem:[#allocation8 + $0x638] sm:$0xff]
    %v4752 = vld [vmem:[#allocation8 + $0x640] sm:$0xff]
    %v4753 = vld [vmem:[#allocation8 + $0x648] sm:$0xff]
    %v4754 = vld [vmem:[#allocation8 + $0x650] sm:$0xff]
    %v4755 = vld [vmem:[#allocation8 + $0x658] sm:$0xff]
    %v4756 = vld [vmem:[#allocation8 + $0x660] sm:$0xff]
    %v4757 = vld [vmem:[#allocation8 + $0x668] sm:$0xff]
    %v4758 = vld [vmem:[#allocation8 + $0x670] sm:$0xff]
    %v4759 = vld [vmem:[#allocation8 + $0x678] sm:$0xff]
    %v4760 = vld [vmem:[#allocation8 + $0x680] sm:$0xff]
    %v4761 = vld [vmem:[#allocation8 + $0x688] sm:$0xff]
    %v4762 = vld [vmem:[#allocation8 + $0x690] sm:$0xff]
    %v4763 = vld [vmem:[#allocation8 + $0x698] sm:$0xff]
    %v4764 = vld [vmem:[#allocation8 + $0x6a0] sm:$0xff]
    %v4765 = vld [vmem:[#allocation8 + $0x6a8] sm:$0xff]
    %v4766 = vld [vmem:[#allocation8 + $0x6b0] sm:$0xff]
    %v4767 = vld [vmem:[#allocation8 + $0x6b8] sm:$0xff]
    %v4768 = vld [vmem:[#allocation8 + $0x6c0] sm:$0xff]
    %v4769 = vld [vmem:[#allocation8 + $0x6c8] sm:$0xff]
    %v4770 = vld [vmem:[#allocation8 + $0x6d0] sm:$0xff]
    %v4771 = vld [vmem:[#allocation8 + $0x6d8] sm:$0xff]
    %v4772 = vld [vmem:[#allocation8 + $0x6e0] sm:$0xff]
    %v4773 = vld [vmem:[#allocation8 + $0x6e8] sm:$0xff]
    %v4774 = vld [vmem:[#allocation8 + $0x6f0] sm:$0xff]
    %v4775 = vld [vmem:[#allocation8 + $0x6f8] sm:$0xff]
    %v4776 = vld [vmem:[#allocation8 + $0x700] sm:$0xff]
    %v4777 = vld [vmem:[#allocation8 + $0x708] sm:$0xff]
    %v4778 = vld [vmem:[#allocation8 + $0x710] sm:$0xff]
    %v4779 = vld [vmem:[#allocation8 + $0x718] sm:$0xff]
    %v4780 = vld [vmem:[#allocation8 + $0x720] sm:$0xff]
    %v4781 = vld [vmem:[#allocation8 + $0x728] sm:$0xff]
    %v4782 = vld [vmem:[#allocation8 + $0x730] sm:$0xff]
    %v4783 = vld [vmem:[#allocation8 + $0x738] sm:$0xff]
    %v4784 = vld [vmem:[#allocation8 + $0x740] sm:$0xff]
    %v4785 = vld [vmem:[#allocation8 + $0x748] sm:$0xff]
    %v4786 = vld [vmem:[#allocation8 + $0x750] sm:$0xff]
    %v4787 = vld [vmem:[#allocation8 + $0x758] sm:$0xff]
    %v4788 = vld [vmem:[#allocation8 + $0x760] sm:$0xff]
    %v4789 = vld [vmem:[#allocation8 + $0x768] sm:$0xff]
    %v4790 = vld [vmem:[#allocation8 + $0x770] sm:$0xff]
    %v4791 = vld [vmem:[#allocation8 + $0x778] sm:$0xff]
    %v4792 = vld [vmem:[#allocation8 + $0x780] sm:$0xff]
    %v4793 = vld [vmem:[#allocation8 + $0x788] sm:$0xff]
    %v4794 = vld [vmem:[#allocation8 + $0x790] sm:$0xff]
    %v4795 = vld [vmem:[#allocation8 + $0x798] sm:$0xff]
    %v4796 = vld [vmem:[#allocation8 + $0x7a0] sm:$0xff]
    %v4797 = vld [vmem:[#allocation8 + $0x7a8] sm:$0xff]
    %v4798 = vld [vmem:[#allocation8 + $0x7b0] sm:$0xff]
    %v4799 = vld [vmem:[#allocation8 + $0x7b8] sm:$0xff]
    %v4800 = vld [vmem:[#allocation8 + $0x7c0] sm:$0xff]
    %v4801 = vld [vmem:[#allocation8 + $0x7c8] sm:$0xff]
    %v4802 = vld [vmem:[#allocation8 + $0x7d0] sm:$0xff]
    %v4803 = vld [vmem:[#allocation8 + $0x7d8] sm:$0xff]
    %v4804 = vld [vmem:[#allocation8 + $0x7e0] sm:$0xff]
    %v4805 = vld [vmem:[#allocation8 + $0x7e8] sm:$0xff]
    %v4806 = vld [vmem:[#allocation8 + $0x7f0] sm:$0xff]
    %v4807 = vld [vmem:[#allocation8 + $0x7f8] sm:$0xff]
    %v4808 = vld [vmem:[#allocation10] sm:$0xf]
    %v4810 = vlaneseq
    %v4811 = vshrl.u32 %v4810, 7
    %v4812 = vsub.s32 0, %v4811
    %v4813 = vrot.slane %v4808, %v4812
    %v4814 = vlaneseq
    %v4815 = vshrl.u32 %v4814, 7
    %v4816 = vsub.s32 1, %v4815
    %v4817 = vrot.slane %v4808, %v4816
    %v4818 = vlaneseq
    %v4819 = vshrl.u32 %v4818, 7
    %v4820 = vsub.s32 2, %v4819
    %v4821 = vrot.slane %v4808, %v4820
    %v4822 = vlaneseq
    %v4823 = vshrl.u32 %v4822, 7
    %v4824 = vsub.s32 3, %v4823
    %v4825 = vrot.slane %v4808, %v4824
    %v5086 = vunpack.c.l.b16 %v4552
    %v5087 = vunpack.c.h.b16 %v4552
    %v5088 = vunpack.c.l.b16 %v4553
    %v5089 = vunpack.c.h.b16 %v4553
    %v5090 = vunpack.c.l.b16 %v4554
    %v5091 = vunpack.c.h.b16 %v4554
    %v5092 = vunpack.c.l.b16 %v4555
    %v5093 = vunpack.c.h.b16 %v4555
    %v5094 = vunpack.c.l.b16 %v4556
    %v5095 = vunpack.c.h.b16 %v4556
    %v5096 = vunpack.c.l.b16 %v4557
    %v5097 = vunpack.c.h.b16 %v4557
    %v5098 = vunpack.c.l.b16 %v4558
    %v5099 = vunpack.c.h.b16 %v4558
    %v5100 = vunpack.c.l.b16 %v4559
    %v5101 = vunpack.c.h.b16 %v4559
    %v5102 = vunpack.c.l.b16 %v4560
    %v5103 = vunpack.c.h.b16 %v4560
    %v5104 = vunpack.c.l.b16 %v4561
    %v5105 = vunpack.c.h.b16 %v4561
    %v5106 = vunpack.c.l.b16 %v4562
    %v5107 = vunpack.c.h.b16 %v4562
    %v5108 = vunpack.c.l.b16 %v4563
    %v5109 = vunpack.c.h.b16 %v4563
    %v5110 = vunpack.c.l.b16 %v4564
    %v5111 = vunpack.c.h.b16 %v4564
    %v5112 = vunpack.c.l.b16 %v4565
    %v5113 = vunpack.c.h.b16 %v4565
    %v5114 = vunpack.c.l.b16 %v4566
    %v5115 = vunpack.c.h.b16 %v4566
    %v5116 = vunpack.c.l.b16 %v4567
    %v5117 = vunpack.c.h.b16 %v4567
    %v5118 = vunpack.c.l.b16 %v4568
    %v5119 = vunpack.c.h.b16 %v4568
    %v5120 = vunpack.c.l.b16 %v4569
    %v5121 = vunpack.c.h.b16 %v4569
    %v5122 = vunpack.c.l.b16 %v4570
    %v5123 = vunpack.c.h.b16 %v4570
    %v5124 = vunpack.c.l.b16 %v4571
    %v5125 = vunpack.c.h.b16 %v4571
    %v5126 = vunpack.c.l.b16 %v4572
    %v5127 = vunpack.c.h.b16 %v4572
    %v5128 = vunpack.c.l.b16 %v4573
    %v5129 = vunpack.c.h.b16 %v4573
    %v5130 = vunpack.c.l.b16 %v4574
    %v5131 = vunpack.c.h.b16 %v4574
    %v5132 = vunpack.c.l.b16 %v4575
    %v5133 = vunpack.c.h.b16 %v4575
    %v5134 = vunpack.c.l.b16 %v4576
    %v5135 = vunpack.c.h.b16 %v4576
    %v5136 = vunpack.c.l.b16 %v4577
    %v5137 = vunpack.c.h.b16 %v4577
    %v5138 = vunpack.c.l.b16 %v4578
    %v5139 = vunpack.c.h.b16 %v4578
    %v5140 = vunpack.c.l.b16 %v4579
    %v5141 = vunpack.c.h.b16 %v4579
    %v5142 = vunpack.c.l.b16 %v4580
    %v5143 = vunpack.c.h.b16 %v4580
    %v5144 = vunpack.c.l.b16 %v4581
    %v5145 = vunpack.c.h.b16 %v4581
    %v5146 = vunpack.c.l.b16 %v4582
    %v5147 = vunpack.c.h.b16 %v4582
    %v5148 = vunpack.c.l.b16 %v4583
    %v5149 = vunpack.c.h.b16 %v4583
    %v5150 = vunpack.c.l.b16 %v4584
    %v5151 = vunpack.c.h.b16 %v4584
    %v5152 = vunpack.c.l.b16 %v4585
    %v5153 = vunpack.c.h.b16 %v4585
    %v5154 = vunpack.c.l.b16 %v4586
    %v5155 = vunpack.c.h.b16 %v4586
    %v5156 = vunpack.c.l.b16 %v4587
    %v5157 = vunpack.c.h.b16 %v4587
    %v5158 = vunpack.c.l.b16 %v4588
    %v5159 = vunpack.c.h.b16 %v4588
    %v5160 = vunpack.c.l.b16 %v4589
    %v5161 = vunpack.c.h.b16 %v4589
    %v5162 = vunpack.c.l.b16 %v4590
    %v5163 = vunpack.c.h.b16 %v4590
    %v5164 = vunpack.c.l.b16 %v4591
    %v5165 = vunpack.c.h.b16 %v4591
    %v5166 = vunpack.c.l.b16 %v4592
    %v5167 = vunpack.c.h.b16 %v4592
    %v5168 = vunpack.c.l.b16 %v4593
    %v5169 = vunpack.c.h.b16 %v4593
    %v5170 = vunpack.c.l.b16 %v4594
    %v5171 = vunpack.c.h.b16 %v4594
    %v5172 = vunpack.c.l.b16 %v4595
    %v5173 = vunpack.c.h.b16 %v4595
    %v5174 = vunpack.c.l.b16 %v4596
    %v5175 = vunpack.c.h.b16 %v4596
    %v5176 = vunpack.c.l.b16 %v4597
    %v5177 = vunpack.c.h.b16 %v4597
    %v5178 = vunpack.c.l.b16 %v4598
    %v5179 = vunpack.c.h.b16 %v4598
    %v5180 = vunpack.c.l.b16 %v4599
    %v5181 = vunpack.c.h.b16 %v4599
    %v5182 = vunpack.c.l.b16 %v4600
    %v5183 = vunpack.c.h.b16 %v4600
    %v5184 = vunpack.c.l.b16 %v4601
    %v5185 = vunpack.c.h.b16 %v4601
    %v5186 = vunpack.c.l.b16 %v4602
    %v5187 = vunpack.c.h.b16 %v4602
    %v5188 = vunpack.c.l.b16 %v4603
    %v5189 = vunpack.c.h.b16 %v4603
    %v5190 = vunpack.c.l.b16 %v4604
    %v5191 = vunpack.c.h.b16 %v4604
    %v5192 = vunpack.c.l.b16 %v4605
    %v5193 = vunpack.c.h.b16 %v4605
    %v5194 = vunpack.c.l.b16 %v4606
    %v5195 = vunpack.c.h.b16 %v4606
    %v5196 = vunpack.c.l.b16 %v4607
    %v5197 = vunpack.c.h.b16 %v4607
    %v5198 = vunpack.c.l.b16 %v4608
    %v5199 = vunpack.c.h.b16 %v4608
    %v5200 = vunpack.c.l.b16 %v4609
    %v5201 = vunpack.c.h.b16 %v4609
    %v5202 = vunpack.c.l.b16 %v4610
    %v5203 = vunpack.c.h.b16 %v4610
    %v5204 = vunpack.c.l.b16 %v4611
    %v5205 = vunpack.c.h.b16 %v4611
    %v5206 = vunpack.c.l.b16 %v4612
    %v5207 = vunpack.c.h.b16 %v4612
    %v5208 = vunpack.c.l.b16 %v4613
    %v5209 = vunpack.c.h.b16 %v4613
    %v5210 = vunpack.c.l.b16 %v4614
    %v5211 = vunpack.c.h.b16 %v4614
    %v5212 = vunpack.c.l.b16 %v4615
    %v5213 = vunpack.c.h.b16 %v4615
    %v5214 = vunpack.c.l.b16 %v4616
    %v5215 = vunpack.c.h.b16 %v4616
    %v5216 = vunpack.c.l.b16 %v4617
    %v5217 = vunpack.c.h.b16 %v4617
    %v5218 = vunpack.c.l.b16 %v4618
    %v5219 = vunpack.c.h.b16 %v4618
    %v5220 = vunpack.c.l.b16 %v4619
    %v5221 = vunpack.c.h.b16 %v4619
    %v5222 = vunpack.c.l.b16 %v4620
    %v5223 = vunpack.c.h.b16 %v4620
    %v5224 = vunpack.c.l.b16 %v4621
    %v5225 = vunpack.c.h.b16 %v4621
    %v5226 = vunpack.c.l.b16 %v4622
    %v5227 = vunpack.c.h.b16 %v4622
    %v5228 = vunpack.c.l.b16 %v4623
    %v5229 = vunpack.c.h.b16 %v4623
    %v5230 = vunpack.c.l.b16 %v4624
    %v5231 = vunpack.c.h.b16 %v4624
    %v5232 = vunpack.c.l.b16 %v4625
    %v5233 = vunpack.c.h.b16 %v4625
    %v5234 = vunpack.c.l.b16 %v4626
    %v5235 = vunpack.c.h.b16 %v4626
    %v5236 = vunpack.c.l.b16 %v4627
    %v5237 = vunpack.c.h.b16 %v4627
    %v5238 = vunpack.c.l.b16 %v4628
    %v5239 = vunpack.c.h.b16 %v4628
    %v5240 = vunpack.c.l.b16 %v4629
    %v5241 = vunpack.c.h.b16 %v4629
    %v5242 = vunpack.c.l.b16 %v4630
    %v5243 = vunpack.c.h.b16 %v4630
    %v5244 = vunpack.c.l.b16 %v4631
    %v5245 = vunpack.c.h.b16 %v4631
    %v5246 = vunpack.c.l.b16 %v4632
    %v5247 = vunpack.c.h.b16 %v4632
    %v5248 = vunpack.c.l.b16 %v4633
    %v5249 = vunpack.c.h.b16 %v4633
    %v5250 = vunpack.c.l.b16 %v4634
    %v5251 = vunpack.c.h.b16 %v4634
    %v5252 = vunpack.c.l.b16 %v4635
    %v5253 = vunpack.c.h.b16 %v4635
    %v5254 = vunpack.c.l.b16 %v4636
    %v5255 = vunpack.c.h.b16 %v4636
    %v5256 = vunpack.c.l.b16 %v4637
    %v5257 = vunpack.c.h.b16 %v4637
    %v5258 = vunpack.c.l.b16 %v4638
    %v5259 = vunpack.c.h.b16 %v4638
    %v5260 = vunpack.c.l.b16 %v4639
    %v5261 = vunpack.c.h.b16 %v4639
    %v5262 = vunpack.c.l.b16 %v4640
    %v5263 = vunpack.c.h.b16 %v4640
    %v5264 = vunpack.c.l.b16 %v4641
    %v5265 = vunpack.c.h.b16 %v4641
    %v5266 = vunpack.c.l.b16 %v4642
    %v5267 = vunpack.c.h.b16 %v4642
    %v5268 = vunpack.c.l.b16 %v4643
    %v5269 = vunpack.c.h.b16 %v4643
    %v5270 = vunpack.c.l.b16 %v4644
    %v5271 = vunpack.c.h.b16 %v4644
    %v5272 = vunpack.c.l.b16 %v4645
    %v5273 = vunpack.c.h.b16 %v4645
    %v5274 = vunpack.c.l.b16 %v4646
    %v5275 = vunpack.c.h.b16 %v4646
    %v5276 = vunpack.c.l.b16 %v4647
    %v5277 = vunpack.c.h.b16 %v4647
    %v5278 = vunpack.c.l.b16 %v4648
    %v5279 = vunpack.c.h.b16 %v4648
    %v5280 = vunpack.c.l.b16 %v4649
    %v5281 = vunpack.c.h.b16 %v4649
    %v5282 = vunpack.c.l.b16 %v4650
    %v5283 = vunpack.c.h.b16 %v4650
    %v5284 = vunpack.c.l.b16 %v4651
    %v5285 = vunpack.c.h.b16 %v4651
    %v5286 = vunpack.c.l.b16 %v4652
    %v5287 = vunpack.c.h.b16 %v4652
    %v5288 = vunpack.c.l.b16 %v4653
    %v5289 = vunpack.c.h.b16 %v4653
    %v5290 = vunpack.c.l.b16 %v4654
    %v5291 = vunpack.c.h.b16 %v4654
    %v5292 = vunpack.c.l.b16 %v4655
    %v5293 = vunpack.c.h.b16 %v4655
    %v5294 = vunpack.c.l.b16 %v4656
    %v5295 = vunpack.c.h.b16 %v4656
    %v5296 = vunpack.c.l.b16 %v4657
    %v5297 = vunpack.c.h.b16 %v4657
    %v5298 = vunpack.c.l.b16 %v4658
    %v5299 = vunpack.c.h.b16 %v4658
    %v5300 = vunpack.c.l.b16 %v4659
    %v5301 = vunpack.c.h.b16 %v4659
    %v5302 = vunpack.c.l.b16 %v4660
    %v5303 = vunpack.c.h.b16 %v4660
    %v5304 = vunpack.c.l.b16 %v4661
    %v5305 = vunpack.c.h.b16 %v4661
    %v5306 = vunpack.c.l.b16 %v4662
    %v5307 = vunpack.c.h.b16 %v4662
    %v5308 = vunpack.c.l.b16 %v4663
    %v5309 = vunpack.c.h.b16 %v4663
    %v5310 = vunpack.c.l.b16 %v4664
    %v5311 = vunpack.c.h.b16 %v4664
    %v5312 = vunpack.c.l.b16 %v4665
    %v5313 = vunpack.c.h.b16 %v4665
    %v5314 = vunpack.c.l.b16 %v4666
    %v5315 = vunpack.c.h.b16 %v4666
    %v5316 = vunpack.c.l.b16 %v4667
    %v5317 = vunpack.c.h.b16 %v4667
    %v5318 = vunpack.c.l.b16 %v4668
    %v5319 = vunpack.c.h.b16 %v4668
    %v5320 = vunpack.c.l.b16 %v4669
    %v5321 = vunpack.c.h.b16 %v4669
    %v5322 = vunpack.c.l.b16 %v4670
    %v5323 = vunpack.c.h.b16 %v4670
    %v5324 = vunpack.c.l.b16 %v4671
    %v5325 = vunpack.c.h.b16 %v4671
    %v5326 = vunpack.c.l.b16 %v4672
    %v5327 = vunpack.c.h.b16 %v4672
    %v5328 = vunpack.c.l.b16 %v4673
    %v5329 = vunpack.c.h.b16 %v4673
    %v5330 = vunpack.c.l.b16 %v4674
    %v5331 = vunpack.c.h.b16 %v4674
    %v5332 = vunpack.c.l.b16 %v4675
    %v5333 = vunpack.c.h.b16 %v4675
    %v5334 = vunpack.c.l.b16 %v4676
    %v5335 = vunpack.c.h.b16 %v4676
    %v5336 = vunpack.c.l.b16 %v4677
    %v5337 = vunpack.c.h.b16 %v4677
    %v5338 = vunpack.c.l.b16 %v4678
    %v5339 = vunpack.c.h.b16 %v4678
    %v5340 = vunpack.c.l.b16 %v4679
    %v5341 = vunpack.c.h.b16 %v4679
    %v5342 = vunpack.c.l.b16 %v4680
    %v5343 = vunpack.c.h.b16 %v4680
    %v5344 = vunpack.c.l.b16 %v4681
    %v5345 = vunpack.c.h.b16 %v4681
    %v5346 = vunpack.c.l.b16 %v4682
    %v5347 = vunpack.c.h.b16 %v4682
    %v5348 = vunpack.c.l.b16 %v4683
    %v5349 = vunpack.c.h.b16 %v4683
    %v5350 = vunpack.c.l.b16 %v4684
    %v5351 = vunpack.c.h.b16 %v4684
    %v5352 = vunpack.c.l.b16 %v4685
    %v5353 = vunpack.c.h.b16 %v4685
    %v5354 = vunpack.c.l.b16 %v4686
    %v5355 = vunpack.c.h.b16 %v4686
    %v5356 = vunpack.c.l.b16 %v4687
    %v5357 = vunpack.c.h.b16 %v4687
    %v5358 = vunpack.c.l.b16 %v4688
    %v5359 = vunpack.c.h.b16 %v4688
    %v5360 = vunpack.c.l.b16 %v4689
    %v5361 = vunpack.c.h.b16 %v4689
    %v5362 = vunpack.c.l.b16 %v4690
    %v5363 = vunpack.c.h.b16 %v4690
    %v5364 = vunpack.c.l.b16 %v4691
    %v5365 = vunpack.c.h.b16 %v4691
    %v5366 = vunpack.c.l.b16 %v4692
    %v5367 = vunpack.c.h.b16 %v4692
    %v5368 = vunpack.c.l.b16 %v4693
    %v5369 = vunpack.c.h.b16 %v4693
    %v5370 = vunpack.c.l.b16 %v4694
    %v5371 = vunpack.c.h.b16 %v4694
    %v5372 = vunpack.c.l.b16 %v4695
    %v5373 = vunpack.c.h.b16 %v4695
    %v5374 = vunpack.c.l.b16 %v4696
    %v5375 = vunpack.c.h.b16 %v4696
    %v5376 = vunpack.c.l.b16 %v4697
    %v5377 = vunpack.c.h.b16 %v4697
    %v5378 = vunpack.c.l.b16 %v4698
    %v5379 = vunpack.c.h.b16 %v4698
    %v5380 = vunpack.c.l.b16 %v4699
    %v5381 = vunpack.c.h.b16 %v4699
    %v5382 = vunpack.c.l.b16 %v4700
    %v5383 = vunpack.c.h.b16 %v4700
    %v5384 = vunpack.c.l.b16 %v4701
    %v5385 = vunpack.c.h.b16 %v4701
    %v5386 = vunpack.c.l.b16 %v4702
    %v5387 = vunpack.c.h.b16 %v4702
    %v5388 = vunpack.c.l.b16 %v4703
    %v5389 = vunpack.c.h.b16 %v4703
    %v5390 = vunpack.c.l.b16 %v4704
    %v5391 = vunpack.c.h.b16 %v4704
    %v5392 = vunpack.c.l.b16 %v4705
    %v5393 = vunpack.c.h.b16 %v4705
    %v5394 = vunpack.c.l.b16 %v4706
    %v5395 = vunpack.c.h.b16 %v4706
    %v5396 = vunpack.c.l.b16 %v4707
    %v5397 = vunpack.c.h.b16 %v4707
    %v5398 = vunpack.c.l.b16 %v4708
    %v5399 = vunpack.c.h.b16 %v4708
    %v5400 = vunpack.c.l.b16 %v4709
    %v5401 = vunpack.c.h.b16 %v4709
    %v5402 = vunpack.c.l.b16 %v4710
    %v5403 = vunpack.c.h.b16 %v4710
    %v5404 = vunpack.c.l.b16 %v4711
    %v5405 = vunpack.c.h.b16 %v4711
    %v5406 = vunpack.c.l.b16 %v4712
    %v5407 = vunpack.c.h.b16 %v4712
    %v5408 = vunpack.c.l.b16 %v4713
    %v5409 = vunpack.c.h.b16 %v4713
    %v5410 = vunpack.c.l.b16 %v4714
    %v5411 = vunpack.c.h.b16 %v4714
    %v5412 = vunpack.c.l.b16 %v4715
    %v5413 = vunpack.c.h.b16 %v4715
    %v5414 = vunpack.c.l.b16 %v4716
    %v5415 = vunpack.c.h.b16 %v4716
    %v5416 = vunpack.c.l.b16 %v4717
    %v5417 = vunpack.c.h.b16 %v4717
    %v5418 = vunpack.c.l.b16 %v4718
    %v5419 = vunpack.c.h.b16 %v4718
    %v5420 = vunpack.c.l.b16 %v4719
    %v5421 = vunpack.c.h.b16 %v4719
    %v5422 = vunpack.c.l.b16 %v4720
    %v5423 = vunpack.c.h.b16 %v4720
    %v5424 = vunpack.c.l.b16 %v4721
    %v5425 = vunpack.c.h.b16 %v4721
    %v5426 = vunpack.c.l.b16 %v4722
    %v5427 = vunpack.c.h.b16 %v4722
    %v5428 = vunpack.c.l.b16 %v4723
    %v5429 = vunpack.c.h.b16 %v4723
    %v5430 = vunpack.c.l.b16 %v4724
    %v5431 = vunpack.c.h.b16 %v4724
    %v5432 = vunpack.c.l.b16 %v4725
    %v5433 = vunpack.c.h.b16 %v4725
    %v5434 = vunpack.c.l.b16 %v4726
    %v5435 = vunpack.c.h.b16 %v4726
    %v5436 = vunpack.c.l.b16 %v4727
    %v5437 = vunpack.c.h.b16 %v4727
    %v5438 = vunpack.c.l.b16 %v4728
    %v5439 = vunpack.c.h.b16 %v4728
    %v5440 = vunpack.c.l.b16 %v4729
    %v5441 = vunpack.c.h.b16 %v4729
    %v5442 = vunpack.c.l.b16 %v4730
    %v5443 = vunpack.c.h.b16 %v4730
    %v5444 = vunpack.c.l.b16 %v4731
    %v5445 = vunpack.c.h.b16 %v4731
    %v5446 = vunpack.c.l.b16 %v4732
    %v5447 = vunpack.c.h.b16 %v4732
    %v5448 = vunpack.c.l.b16 %v4733
    %v5449 = vunpack.c.h.b16 %v4733
    %v5450 = vunpack.c.l.b16 %v4734
    %v5451 = vunpack.c.h.b16 %v4734
    %v5452 = vunpack.c.l.b16 %v4735
    %v5453 = vunpack.c.h.b16 %v4735
    %v5454 = vunpack.c.l.b16 %v4736
    %v5455 = vunpack.c.h.b16 %v4736
    %v5456 = vunpack.c.l.b16 %v4737
    %v5457 = vunpack.c.h.b16 %v4737
    %v5458 = vunpack.c.l.b16 %v4738
    %v5459 = vunpack.c.h.b16 %v4738
    %v5460 = vunpack.c.l.b16 %v4739
    %v5461 = vunpack.c.h.b16 %v4739
    %v5462 = vunpack.c.l.b16 %v4740
    %v5463 = vunpack.c.h.b16 %v4740
    %v5464 = vunpack.c.l.b16 %v4741
    %v5465 = vunpack.c.h.b16 %v4741
    %v5466 = vunpack.c.l.b16 %v4742
    %v5467 = vunpack.c.h.b16 %v4742
    %v5468 = vunpack.c.l.b16 %v4743
    %v5469 = vunpack.c.h.b16 %v4743
    %v5470 = vunpack.c.l.b16 %v4744
    %v5471 = vunpack.c.h.b16 %v4744
    %v5472 = vunpack.c.l.b16 %v4745
    %v5473 = vunpack.c.h.b16 %v4745
    %v5474 = vunpack.c.l.b16 %v4746
    %v5475 = vunpack.c.h.b16 %v4746
    %v5476 = vunpack.c.l.b16 %v4747
    %v5477 = vunpack.c.h.b16 %v4747
    %v5478 = vunpack.c.l.b16 %v4748
    %v5479 = vunpack.c.h.b16 %v4748
    %v5480 = vunpack.c.l.b16 %v4749
    %v5481 = vunpack.c.h.b16 %v4749
    %v5482 = vunpack.c.l.b16 %v4750
    %v5483 = vunpack.c.h.b16 %v4750
    %v5484 = vunpack.c.l.b16 %v4751
    %v5485 = vunpack.c.h.b16 %v4751
    %v5486 = vunpack.c.l.b16 %v4752
    %v5487 = vunpack.c.h.b16 %v4752
    %v5488 = vunpack.c.l.b16 %v4753
    %v5489 = vunpack.c.h.b16 %v4753
    %v5490 = vunpack.c.l.b16 %v4754
    %v5491 = vunpack.c.h.b16 %v4754
    %v5492 = vunpack.c.l.b16 %v4755
    %v5493 = vunpack.c.h.b16 %v4755
    %v5494 = vunpack.c.l.b16 %v4756
    %v5495 = vunpack.c.h.b16 %v4756
    %v5496 = vunpack.c.l.b16 %v4757
    %v5497 = vunpack.c.h.b16 %v4757
    %v5498 = vunpack.c.l.b16 %v4758
    %v5499 = vunpack.c.h.b16 %v4758
    %v5500 = vunpack.c.l.b16 %v4759
    %v5501 = vunpack.c.h.b16 %v4759
    %v5502 = vunpack.c.l.b16 %v4760
    %v5503 = vunpack.c.h.b16 %v4760
    %v5504 = vunpack.c.l.b16 %v4761
    %v5505 = vunpack.c.h.b16 %v4761
    %v5506 = vunpack.c.l.b16 %v4762
    %v5507 = vunpack.c.h.b16 %v4762
    %v5508 = vunpack.c.l.b16 %v4763
    %v5509 = vunpack.c.h.b16 %v4763
    %v5510 = vunpack.c.l.b16 %v4764
    %v5511 = vunpack.c.h.b16 %v4764
    %v5512 = vunpack.c.l.b16 %v4765
    %v5513 = vunpack.c.h.b16 %v4765
    %v5514 = vunpack.c.l.b16 %v4766
    %v5515 = vunpack.c.h.b16 %v4766
    %v5516 = vunpack.c.l.b16 %v4767
    %v5517 = vunpack.c.h.b16 %v4767
    %v5518 = vunpack.c.l.b16 %v4768
    %v5519 = vunpack.c.h.b16 %v4768
    %v5520 = vunpack.c.l.b16 %v4769
    %v5521 = vunpack.c.h.b16 %v4769
    %v5522 = vunpack.c.l.b16 %v4770
    %v5523 = vunpack.c.h.b16 %v4770
    %v5524 = vunpack.c.l.b16 %v4771
    %v5525 = vunpack.c.h.b16 %v4771
    %v5526 = vunpack.c.l.b16 %v4772
    %v5527 = vunpack.c.h.b16 %v4772
    %v5528 = vunpack.c.l.b16 %v4773
    %v5529 = vunpack.c.h.b16 %v4773
    %v5530 = vunpack.c.l.b16 %v4774
    %v5531 = vunpack.c.h.b16 %v4774
    %v5532 = vunpack.c.l.b16 %v4775
    %v5533 = vunpack.c.h.b16 %v4775
    %v5534 = vunpack.c.l.b16 %v4776
    %v5535 = vunpack.c.h.b16 %v4776
    %v5536 = vunpack.c.l.b16 %v4777
    %v5537 = vunpack.c.h.b16 %v4777
    %v5538 = vunpack.c.l.b16 %v4778
    %v5539 = vunpack.c.h.b16 %v4778
    %v5540 = vunpack.c.l.b16 %v4779
    %v5541 = vunpack.c.h.b16 %v4779
    %v5542 = vunpack.c.l.b16 %v4780
    %v5543 = vunpack.c.h.b16 %v4780
    %v5544 = vunpack.c.l.b16 %v4781
    %v5545 = vunpack.c.h.b16 %v4781
    %v5546 = vunpack.c.l.b16 %v4782
    %v5547 = vunpack.c.h.b16 %v4782
    %v5548 = vunpack.c.l.b16 %v4783
    %v5549 = vunpack.c.h.b16 %v4783
    %v5550 = vunpack.c.l.b16 %v4784
    %v5551 = vunpack.c.h.b16 %v4784
    %v5552 = vunpack.c.l.b16 %v4785
    %v5553 = vunpack.c.h.b16 %v4785
    %v5554 = vunpack.c.l.b16 %v4786
    %v5555 = vunpack.c.h.b16 %v4786
    %v5556 = vunpack.c.l.b16 %v4787
    %v5557 = vunpack.c.h.b16 %v4787
    %v5558 = vunpack.c.l.b16 %v4788
    %v5559 = vunpack.c.h.b16 %v4788
    %v5560 = vunpack.c.l.b16 %v4789
    %v5561 = vunpack.c.h.b16 %v4789
    %v5562 = vunpack.c.l.b16 %v4790
    %v5563 = vunpack.c.h.b16 %v4790
    %v5564 = vunpack.c.l.b16 %v4791
    %v5565 = vunpack.c.h.b16 %v4791
    %v5566 = vunpack.c.l.b16 %v4792
    %v5567 = vunpack.c.h.b16 %v4792
    %v5568 = vunpack.c.l.b16 %v4793
    %v5569 = vunpack.c.h.b16 %v4793
    %v5570 = vunpack.c.l.b16 %v4794
    %v5571 = vunpack.c.h.b16 %v4794
    %v5572 = vunpack.c.l.b16 %v4795
    %v5573 = vunpack.c.h.b16 %v4795
    %v5574 = vunpack.c.l.b16 %v4796
    %v5575 = vunpack.c.h.b16 %v4796
    %v5576 = vunpack.c.l.b16 %v4797
    %v5577 = vunpack.c.h.b16 %v4797
    %v5578 = vunpack.c.l.b16 %v4798
    %v5579 = vunpack.c.h.b16 %v4798
    %v5580 = vunpack.c.l.b16 %v4799
    %v5581 = vunpack.c.h.b16 %v4799
    %v5582 = vunpack.c.l.b16 %v4800
    %v5583 = vunpack.c.h.b16 %v4800
    %v5584 = vunpack.c.l.b16 %v4801
    %v5585 = vunpack.c.h.b16 %v4801
    %v5586 = vunpack.c.l.b16 %v4802
    %v5587 = vunpack.c.h.b16 %v4802
    %v5588 = vunpack.c.l.b16 %v4803
    %v5589 = vunpack.c.h.b16 %v4803
    %v5590 = vunpack.c.l.b16 %v4804
    %v5591 = vunpack.c.h.b16 %v4804
    %v5592 = vunpack.c.l.b16 %v4805
    %v5593 = vunpack.c.h.b16 %v4805
    %v5594 = vunpack.c.l.b16 %v4806
    %v5595 = vunpack.c.h.b16 %v4806
    %v5596 = vunpack.c.l.b16 %v4807
    %v5597 = vunpack.c.h.b16 %v4807
    %v5598 = vpack.c.b16 %v5090, %v5086
    %v5599 = vpack.c.b16 %v5091, %v5087
    %v5600 = vpack.c.b16 %v5092, %v5088
    %v5601 = vpack.c.b16 %v5093, %v5089
    %v5602 = vpack.c.b16 %v5098, %v5094
    %v5603 = vpack.c.b16 %v5099, %v5095
    %v5604 = vpack.c.b16 %v5100, %v5096
    %v5605 = vpack.c.b16 %v5101, %v5097
    %v5606 = vpack.c.b16 %v5106, %v5102
    %v5607 = vpack.c.b16 %v5107, %v5103
    %v5608 = vpack.c.b16 %v5108, %v5104
    %v5609 = vpack.c.b16 %v5109, %v5105
    %v5610 = vpack.c.b16 %v5114, %v5110
    %v5611 = vpack.c.b16 %v5115, %v5111
    %v5612 = vpack.c.b16 %v5116, %v5112
    %v5613 = vpack.c.b16 %v5117, %v5113
    %v5614 = vpack.c.b16 %v5122, %v5118
    %v5615 = vpack.c.b16 %v5123, %v5119
    %v5616 = vpack.c.b16 %v5124, %v5120
    %v5617 = vpack.c.b16 %v5125, %v5121
    %v5618 = vpack.c.b16 %v5130, %v5126
    %v5619 = vpack.c.b16 %v5131, %v5127
    %v5620 = vpack.c.b16 %v5132, %v5128
    %v5621 = vpack.c.b16 %v5133, %v5129
    %v5622 = vpack.c.b16 %v5138, %v5134
    %v5623 = vpack.c.b16 %v5139, %v5135
    %v5624 = vpack.c.b16 %v5140, %v5136
    %v5625 = vpack.c.b16 %v5141, %v5137
    %v5626 = vpack.c.b16 %v5146, %v5142
    %v5627 = vpack.c.b16 %v5147, %v5143
    %v5628 = vpack.c.b16 %v5148, %v5144
    %v5629 = vpack.c.b16 %v5149, %v5145
    %v5630 = vpack.c.b16 %v5154, %v5150
    %v5631 = vpack.c.b16 %v5155, %v5151
    %v5632 = vpack.c.b16 %v5156, %v5152
    %v5633 = vpack.c.b16 %v5157, %v5153
    %v5634 = vpack.c.b16 %v5162, %v5158
    %v5635 = vpack.c.b16 %v5163, %v5159
    %v5636 = vpack.c.b16 %v5164, %v5160
    %v5637 = vpack.c.b16 %v5165, %v5161
    %v5638 = vpack.c.b16 %v5170, %v5166
    %v5639 = vpack.c.b16 %v5171, %v5167
    %v5640 = vpack.c.b16 %v5172, %v5168
    %v5641 = vpack.c.b16 %v5173, %v5169
    %v5642 = vpack.c.b16 %v5178, %v5174
    %v5643 = vpack.c.b16 %v5179, %v5175
    %v5644 = vpack.c.b16 %v5180, %v5176
    %v5645 = vpack.c.b16 %v5181, %v5177
    %v5646 = vpack.c.b16 %v5186, %v5182
    %v5647 = vpack.c.b16 %v5187, %v5183
    %v5648 = vpack.c.b16 %v5188, %v5184
    %v5649 = vpack.c.b16 %v5189, %v5185
    %v5650 = vpack.c.b16 %v5194, %v5190
    %v5651 = vpack.c.b16 %v5195, %v5191
    %v5652 = vpack.c.b16 %v5196, %v5192
    %v5653 = vpack.c.b16 %v5197, %v5193
    %v5654 = vpack.c.b16 %v5202, %v5198
    %v5655 = vpack.c.b16 %v5203, %v5199
    %v5656 = vpack.c.b16 %v5204, %v5200
    %v5657 = vpack.c.b16 %v5205, %v5201
    %v5658 = vpack.c.b16 %v5210, %v5206
    %v5659 = vpack.c.b16 %v5211, %v5207
    %v5660 = vpack.c.b16 %v5212, %v5208
    %v5661 = vpack.c.b16 %v5213, %v5209
    %v5662 = vpack.c.b16 %v5218, %v5214
    %v5663 = vpack.c.b16 %v5219, %v5215
    %v5664 = vpack.c.b16 %v5220, %v5216
    %v5665 = vpack.c.b16 %v5221, %v5217
    %v5666 = vpack.c.b16 %v5226, %v5222
    %v5667 = vpack.c.b16 %v5227, %v5223
    %v5668 = vpack.c.b16 %v5228, %v5224
    %v5669 = vpack.c.b16 %v5229, %v5225
    %v5670 = vpack.c.b16 %v5234, %v5230
    %v5671 = vpack.c.b16 %v5235, %v5231
    %v5672 = vpack.c.b16 %v5236, %v5232
    %v5673 = vpack.c.b16 %v5237, %v5233
    %v5674 = vpack.c.b16 %v5242, %v5238
    %v5675 = vpack.c.b16 %v5243, %v5239
    %v5676 = vpack.c.b16 %v5244, %v5240
    %v5677 = vpack.c.b16 %v5245, %v5241
    %v5678 = vpack.c.b16 %v5250, %v5246
    %v5679 = vpack.c.b16 %v5251, %v5247
    %v5680 = vpack.c.b16 %v5252, %v5248
    %v5681 = vpack.c.b16 %v5253, %v5249
    %v5682 = vpack.c.b16 %v5258, %v5254
    %v5683 = vpack.c.b16 %v5259, %v5255
    %v5684 = vpack.c.b16 %v5260, %v5256
    %v5685 = vpack.c.b16 %v5261, %v5257
    %v5686 = vpack.c.b16 %v5266, %v5262
    %v5687 = vpack.c.b16 %v5267, %v5263
    %v5688 = vpack.c.b16 %v5268, %v5264
    %v5689 = vpack.c.b16 %v5269, %v5265
    %v5690 = vpack.c.b16 %v5274, %v5270
    %v5691 = vpack.c.b16 %v5275, %v5271
    %v5692 = vpack.c.b16 %v5276, %v5272
    %v5693 = vpack.c.b16 %v5277, %v5273
    %v5694 = vpack.c.b16 %v5282, %v5278
    %v5695 = vpack.c.b16 %v5283, %v5279
    %v5696 = vpack.c.b16 %v5284, %v5280
    %v5697 = vpack.c.b16 %v5285, %v5281
    %v5698 = vpack.c.b16 %v5290, %v5286
    %v5699 = vpack.c.b16 %v5291, %v5287
    %v5700 = vpack.c.b16 %v5292, %v5288
    %v5701 = vpack.c.b16 %v5293, %v5289
    %v5702 = vpack.c.b16 %v5298, %v5294
    %v5703 = vpack.c.b16 %v5299, %v5295
    %v5704 = vpack.c.b16 %v5300, %v5296
    %v5705 = vpack.c.b16 %v5301, %v5297
    %v5706 = vpack.c.b16 %v5306, %v5302
    %v5707 = vpack.c.b16 %v5307, %v5303
    %v5708 = vpack.c.b16 %v5308, %v5304
    %v5709 = vpack.c.b16 %v5309, %v5305
    %v5710 = vpack.c.b16 %v5314, %v5310
    %v5711 = vpack.c.b16 %v5315, %v5311
    %v5712 = vpack.c.b16 %v5316, %v5312
    %v5713 = vpack.c.b16 %v5317, %v5313
    %v5714 = vpack.c.b16 %v5322, %v5318
    %v5715 = vpack.c.b16 %v5323, %v5319
    %v5716 = vpack.c.b16 %v5324, %v5320
    %v5717 = vpack.c.b16 %v5325, %v5321
    %v5718 = vpack.c.b16 %v5330, %v5326
    %v5719 = vpack.c.b16 %v5331, %v5327
    %v5720 = vpack.c.b16 %v5332, %v5328
    %v5721 = vpack.c.b16 %v5333, %v5329
    %v5722 = vpack.c.b16 %v5338, %v5334
    %v5723 = vpack.c.b16 %v5339, %v5335
    %v5724 = vpack.c.b16 %v5340, %v5336
    %v5725 = vpack.c.b16 %v5341, %v5337
    %v5726 = vpack.c.b16 %v5346, %v5342
    %v5727 = vpack.c.b16 %v5347, %v5343
    %v5728 = vpack.c.b16 %v5348, %v5344
    %v5729 = vpack.c.b16 %v5349, %v5345
    %v5730 = vpack.c.b16 %v5354, %v5350
    %v5731 = vpack.c.b16 %v5355, %v5351
    %v5732 = vpack.c.b16 %v5356, %v5352
    %v5733 = vpack.c.b16 %v5357, %v5353
    %v5734 = vpack.c.b16 %v5362, %v5358
    %v5735 = vpack.c.b16 %v5363, %v5359
    %v5736 = vpack.c.b16 %v5364, %v5360
    %v5737 = vpack.c.b16 %v5365, %v5361
    %v5738 = vpack.c.b16 %v5370, %v5366
    %v5739 = vpack.c.b16 %v5371, %v5367
    %v5740 = vpack.c.b16 %v5372, %v5368
    %v5741 = vpack.c.b16 %v5373, %v5369
    %v5742 = vpack.c.b16 %v5378, %v5374
    %v5743 = vpack.c.b16 %v5379, %v5375
    %v5744 = vpack.c.b16 %v5380, %v5376
    %v5745 = vpack.c.b16 %v5381, %v5377
    %v5746 = vpack.c.b16 %v5386, %v5382
    %v5747 = vpack.c.b16 %v5387, %v5383
    %v5748 = vpack.c.b16 %v5388, %v5384
    %v5749 = vpack.c.b16 %v5389, %v5385
    %v5750 = vpack.c.b16 %v5394, %v5390
    %v5751 = vpack.c.b16 %v5395, %v5391
    %v5752 = vpack.c.b16 %v5396, %v5392
    %v5753 = vpack.c.b16 %v5397, %v5393
    %v5754 = vpack.c.b16 %v5402, %v5398
    %v5755 = vpack.c.b16 %v5403, %v5399
    %v5756 = vpack.c.b16 %v5404, %v5400
    %v5757 = vpack.c.b16 %v5405, %v5401
    %v5758 = vpack.c.b16 %v5410, %v5406
    %v5759 = vpack.c.b16 %v5411, %v5407
    %v5760 = vpack.c.b16 %v5412, %v5408
    %v5761 = vpack.c.b16 %v5413, %v5409
    %v5762 = vpack.c.b16 %v5418, %v5414
    %v5763 = vpack.c.b16 %v5419, %v5415
    %v5764 = vpack.c.b16 %v5420, %v5416
    %v5765 = vpack.c.b16 %v5421, %v5417
    %v5766 = vpack.c.b16 %v5426, %v5422
    %v5767 = vpack.c.b16 %v5427, %v5423
    %v5768 = vpack.c.b16 %v5428, %v5424
    %v5769 = vpack.c.b16 %v5429, %v5425
    %v5770 = vpack.c.b16 %v5434, %v5430
    %v5771 = vpack.c.b16 %v5435, %v5431
    %v5772 = vpack.c.b16 %v5436, %v5432
    %v5773 = vpack.c.b16 %v5437, %v5433
    %v5774 = vpack.c.b16 %v5442, %v5438
    %v5775 = vpack.c.b16 %v5443, %v5439
    %v5776 = vpack.c.b16 %v5444, %v5440
    %v5777 = vpack.c.b16 %v5445, %v5441
    %v5778 = vpack.c.b16 %v5450, %v5446
    %v5779 = vpack.c.b16 %v5451, %v5447
    %v5780 = vpack.c.b16 %v5452, %v5448
    %v5781 = vpack.c.b16 %v5453, %v5449
    %v5782 = vpack.c.b16 %v5458, %v5454
    %v5783 = vpack.c.b16 %v5459, %v5455
    %v5784 = vpack.c.b16 %v5460, %v5456
    %v5785 = vpack.c.b16 %v5461, %v5457
    %v5786 = vpack.c.b16 %v5466, %v5462
    %v5787 = vpack.c.b16 %v5467, %v5463
    %v5788 = vpack.c.b16 %v5468, %v5464
    %v5789 = vpack.c.b16 %v5469, %v5465
    %v5790 = vpack.c.b16 %v5474, %v5470
    %v5791 = vpack.c.b16 %v5475, %v5471
    %v5792 = vpack.c.b16 %v5476, %v5472
    %v5793 = vpack.c.b16 %v5477, %v5473
    %v5794 = vpack.c.b16 %v5482, %v5478
    %v5795 = vpack.c.b16 %v5483, %v5479
    %v5796 = vpack.c.b16 %v5484, %v5480
    %v5797 = vpack.c.b16 %v5485, %v5481
    %v5798 = vpack.c.b16 %v5490, %v5486
    %v5799 = vpack.c.b16 %v5491, %v5487
    %v5800 = vpack.c.b16 %v5492, %v5488
    %v5801 = vpack.c.b16 %v5493, %v5489
    %v5802 = vpack.c.b16 %v5498, %v5494
    %v5803 = vpack.c.b16 %v5499, %v5495
    %v5804 = vpack.c.b16 %v5500, %v5496
    %v5805 = vpack.c.b16 %v5501, %v5497
    %v5806 = vpack.c.b16 %v5506, %v5502
    %v5807 = vpack.c.b16 %v5507, %v5503
    %v5808 = vpack.c.b16 %v5508, %v5504
    %v5809 = vpack.c.b16 %v5509, %v5505
    %v5810 = vpack.c.b16 %v5514, %v5510
    %v5811 = vpack.c.b16 %v5515, %v5511
    %v5812 = vpack.c.b16 %v5516, %v5512
    %v5813 = vpack.c.b16 %v5517, %v5513
    %v5814 = vpack.c.b16 %v5522, %v5518
    %v5815 = vpack.c.b16 %v5523, %v5519
    %v5816 = vpack.c.b16 %v5524, %v5520
    %v5817 = vpack.c.b16 %v5525, %v5521
    %v5818 = vpack.c.b16 %v5530, %v5526
    %v5819 = vpack.c.b16 %v5531, %v5527
    %v5820 = vpack.c.b16 %v5532, %v5528
    %v5821 = vpack.c.b16 %v5533, %v5529
    %v5822 = vpack.c.b16 %v5538, %v5534
    %v5823 = vpack.c.b16 %v5539, %v5535
    %v5824 = vpack.c.b16 %v5540, %v5536
    %v5825 = vpack.c.b16 %v5541, %v5537
    %v5826 = vpack.c.b16 %v5546, %v5542
    %v5827 = vpack.c.b16 %v5547, %v5543
    %v5828 = vpack.c.b16 %v5548, %v5544
    %v5829 = vpack.c.b16 %v5549, %v5545
    %v5830 = vpack.c.b16 %v5554, %v5550
    %v5831 = vpack.c.b16 %v5555, %v5551
    %v5832 = vpack.c.b16 %v5556, %v5552
    %v5833 = vpack.c.b16 %v5557, %v5553
    %v5834 = vpack.c.b16 %v5562, %v5558
    %v5835 = vpack.c.b16 %v5563, %v5559
    %v5836 = vpack.c.b16 %v5564, %v5560
    %v5837 = vpack.c.b16 %v5565, %v5561
    %v5838 = vpack.c.b16 %v5570, %v5566
    %v5839 = vpack.c.b16 %v5571, %v5567
    %v5840 = vpack.c.b16 %v5572, %v5568
    %v5841 = vpack.c.b16 %v5573, %v5569
    %v5842 = vpack.c.b16 %v5578, %v5574
    %v5843 = vpack.c.b16 %v5579, %v5575
    %v5844 = vpack.c.b16 %v5580, %v5576
    %v5845 = vpack.c.b16 %v5581, %v5577
    %v5846 = vpack.c.b16 %v5586, %v5582
    %v5847 = vpack.c.b16 %v5587, %v5583
    %v5848 = vpack.c.b16 %v5588, %v5584
    %v5849 = vpack.c.b16 %v5589, %v5585
    %v5850 = vpack.c.b16 %v5594, %v5590
    %v5851 = vpack.c.b16 %v5595, %v5591
    %v5852 = vpack.c.b16 %v5596, %v5592
    %v5853 = vpack.c.b16 %v5597, %v5593
    %6110 = vmatprep.subr.bf16.mxu0 %v5599
    %6111 = vmatpush1.bf16.msra.mxu0 %v5598
    %6112 = vmatprep.subr.bf16.mxu0 %v5603
    %6113 = vmatpush1.bf16.msra.mxu0 %v5602
    %6114 = vmatprep.subr.bf16.mxu0 %v5607
    %6115 = vmatpush1.bf16.msra.mxu0 %v5606
    %6116 = vmatprep.subr.bf16.mxu0 %v5611
    %6117 = vmatpush1.bf16.msra.mxu0 %v5610
    %6118 = vmatprep.subr.bf16.mxu0 %v5615
    %6119 = vmatpush1.bf16.msra.mxu0 %v5614
    %6120 = vmatprep.subr.bf16.mxu0 %v5619
    %6121 = vmatpush1.bf16.msra.mxu0 %v5618
    %6122 = vmatprep.subr.bf16.mxu0 %v5623
    %6123 = vmatpush1.bf16.msra.mxu0 %v5622
    %6124 = vmatprep.subr.bf16.mxu0 %v5627
    %6125 = vmatpush1.bf16.msra.mxu0 %v5626
    %6126 = vmatprep.subr.bf16.mxu0 %v5631
    %6127 = vmatpush1.bf16.msra.mxu0 %v5630
    %6128 = vmatprep.subr.bf16.mxu0 %v5635
    %6129 = vmatpush1.bf16.msra.mxu0 %v5634
    %6130 = vmatprep.subr.bf16.mxu0 %v5639
    %6131 = vmatpush1.bf16.msra.mxu0 %v5638
    %6132 = vmatprep.subr.bf16.mxu0 %v5643
    %6133 = vmatpush1.bf16.msra.mxu0 %v5642
    %6134 = vmatprep.subr.bf16.mxu0 %v5647
    %6135 = vmatpush1.bf16.msra.mxu0 %v5646
    %6136 = vmatprep.subr.bf16.mxu0 %v5651
    %6137 = vmatpush1.bf16.msra.mxu0 %v5650
    %6138 = vmatprep.subr.bf16.mxu0 %v5655
    %6139 = vmatpush1.bf16.msra.mxu0 %v5654
    %6140 = vmatprep.subr.bf16.mxu0 %v5659
    %6141 = vmatpush1.bf16.msra.mxu0 %v5658
    %6142 = vmatprep.mubr.bf16.mxu0 %v4545
    %6143 = vmatmul.mubr.bf16.gmra.mrb[0].mxu0 %v4544
    %v6144 = vpop.f32.mrb[0].mxu0
    %v6145 = vadd.f32 %v4813, %v6144
    %v6146 = vpop.f32.mrb[0].mxu0
    %v6147 = vadd.f32 %v4817, %v6146
    %v6148 = vpop.f32.mrb[0].mxu0
    %v6149 = vpop.f32.mrb[0].mxu0
    %6150 = vdwg.mxu0
    %6151 = vmatprep.subr.bf16.mxu0 %v5663
    %6152 = vmatpush1.bf16.msra.mxu0 %v5662
    %6153 = vmatprep.subr.bf16.mxu0 %v5667
    %6154 = vmatpush1.bf16.msra.mxu0 %v5666
    %6155 = vmatprep.subr.bf16.mxu0 %v5671
    %6156 = vmatpush1.bf16.msra.mxu0 %v5670
    %6157 = vmatprep.subr.bf16.mxu0 %v5675
    %6158 = vmatpush1.bf16.msra.mxu0 %v5674
    %6159 = vmatprep.subr.bf16.mxu0 %v5679
    %6160 = vmatpush1.bf16.msra.mxu0 %v5678
    %6161 = vmatprep.subr.bf16.mxu0 %v5683
    %6162 = vmatpush1.bf16.msra.mxu0 %v5682
    %6163 = vmatprep.subr.bf16.mxu0 %v5687
    %6164 = vmatpush1.bf16.msra.mxu0 %v5686
    %6165 = vmatprep.subr.bf16.mxu0 %v5691
    %6166 = vmatpush1.bf16.msra.mxu0 %v5690
    %6167 = vmatprep.subr.bf16.mxu0 %v5695
    %6168 = vmatpush1.bf16.msra.mxu0 %v5694
    %6169 = vmatprep.subr.bf16.mxu0 %v5699
    %6170 = vmatpush1.bf16.msra.mxu0 %v5698
    %6171 = vmatprep.subr.bf16.mxu0 %v5703
    %6172 = vmatpush1.bf16.msra.mxu0 %v5702
    %6173 = vmatprep.subr.bf16.mxu0 %v5707
    %6174 = vmatpush1.bf16.msra.mxu0 %v5706
    %6175 = vmatprep.subr.bf16.mxu0 %v5711
    %6176 = vmatpush1.bf16.msra.mxu0 %v5710
    %6177 = vmatprep.subr.bf16.mxu0 %v5715
    %6178 = vmatpush1.bf16.msra.mxu0 %v5714
    %6179 = vmatprep.subr.bf16.mxu0 %v5719
    %6180 = vmatpush1.bf16.msra.mxu0 %v5718
    %6181 = vmatprep.subr.bf16.mxu0 %v5723
    %6182 = vmatpush1.bf16.msra.mxu0 %v5722
    %6183 = vmatprep.mubr.bf16.mxu0 %v4547
    %6184 = vmatmul.mubr.bf16.gmra.mrb[0].mxu0 %v4546
    %v6185 = vpop.f32.mrb[0].mxu0
    %v6186 = vadd.f32 %v6145, %v6185
    %v6187 = vpop.f32.mrb[0].mxu0
    %v6188 = vadd.f32 %v6147, %v6187
    %v6189 = vpop.f32.mrb[0].mxu0
    %v6190 = vpop.f32.mrb[0].mxu0
    %6191 = vdwg.mxu0
    %6192 = vmatprep.subr.bf16.mxu0 %v5727
    %6193 = vmatpush1.bf16.msra.mxu0 %v5726
    %6194 = vmatprep.subr.bf16.mxu0 %v5731
    %6195 = vmatpush1.bf16.msra.mxu0 %v5730
    %6196 = vmatprep.subr.bf16.mxu0 %v5735
    %6197 = vmatpush1.bf16.msra.mxu0 %v5734
    %6198 = vmatprep.subr.bf16.mxu0 %v5739
    %6199 = vmatpush1.bf16.msra.mxu0 %v5738
    %6200 = vmatprep.subr.bf16.mxu0 %v5743
    %6201 = vmatpush1.bf16.msra.mxu0 %v5742
    %6202 = vmatprep.subr.bf16.mxu0 %v5747
    %6203 = vmatpush1.bf16.msra.mxu0 %v5746
    %6204 = vmatprep.subr.bf16.mxu0 %v5751
    %6205 = vmatpush1.bf16.msra.mxu0 %v5750
    %6206 = vmatprep.subr.bf16.mxu0 %v5755
    %6207 = vmatpush1.bf16.msra.mxu0 %v5754
    %6208 = vmatprep.subr.bf16.mxu0 %v5759
    %6209 = vmatpush1.bf16.msra.mxu0 %v5758
    %6210 = vmatprep.subr.bf16.mxu0 %v5763
    %6211 = vmatpush1.bf16.msra.mxu0 %v5762
    %6212 = vmatprep.subr.bf16.mxu0 %v5767
    %6213 = vmatpush1.bf16.msra.mxu0 %v5766
    %6214 = vmatprep.subr.bf16.mxu0 %v5771
    %6215 = vmatpush1.bf16.msra.mxu0 %v5770
    %6216 = vmatprep.subr.bf16.mxu0 %v5775
    %6217 = vmatpush1.bf16.msra.mxu0 %v5774
    %6218 = vmatprep.subr.bf16.mxu0 %v5779
    %6219 = vmatpush1.bf16.msra.mxu0 %v5778
    %6220 = vmatprep.subr.bf16.mxu0 %v5783
    %6221 = vmatpush1.bf16.msra.mxu0 %v5782
    %6222 = vmatprep.subr.bf16.mxu0 %v5787
    %6223 = vmatpush1.bf16.msra.mxu0 %v5786
    %6224 = vmatprep.mubr.bf16.mxu0 %v4549
    %6225 = vmatmul.mubr.bf16.gmra.mrb[0].mxu0 %v4548
    %v6226 = vpop.f32.mrb[0].mxu0
    %v6227 = vadd.f32 %v6186, %v6226
    %v6228 = vpop.f32.mrb[0].mxu0
    %v6229 = vadd.f32 %v6188, %v6228
    %v6230 = vpop.f32.mrb[0].mxu0
    %v6231 = vpop.f32.mrb[0].mxu0
    %6232 = vdwg.mxu0
    %6233 = vmatprep.subr.bf16.mxu0 %v5791
    %6234 = vmatpush1.bf16.msra.mxu0 %v5790
    %6235 = vmatprep.subr.bf16.mxu0 %v5795
    %6236 = vmatpush1.bf16.msra.mxu0 %v5794
    %6237 = vmatprep.subr.bf16.mxu0 %v5799
    %6238 = vmatpush1.bf16.msra.mxu0 %v5798
    %6239 = vmatprep.subr.bf16.mxu0 %v5803
    %6240 = vmatpush1.bf16.msra.mxu0 %v5802
    %6241 = vmatprep.subr.bf16.mxu0 %v5807
    %6242 = vmatpush1.bf16.msra.mxu0 %v5806
    %6243 = vmatprep.subr.bf16.mxu0 %v5811
    %6244 = vmatpush1.bf16.msra.mxu0 %v5810
    %6245 = vmatprep.subr.bf16.mxu0 %v5815
    %6246 = vmatpush1.bf16.msra.mxu0 %v5814
    %6247 = vmatprep.subr.bf16.mxu0 %v5819
    %6248 = vmatpush1.bf16.msra.mxu0 %v5818
    %6249 = vmatprep.subr.bf16.mxu0 %v5823
    %6250 = vmatpush1.bf16.msra.mxu0 %v5822
    %6251 = vmatprep.subr.bf16.mxu0 %v5827
    %6252 = vmatpush1.bf16.msra.mxu0 %v5826
    %6253 = vmatprep.subr.bf16.mxu0 %v5831
    %6254 = vmatpush1.bf16.msra.mxu0 %v5830
    %6255 = vmatprep.subr.bf16.mxu0 %v5835
    %6256 = vmatpush1.bf16.msra.mxu0 %v5834
    %6257 = vmatprep.subr.bf16.mxu0 %v5839
    %6258 = vmatpush1.bf16.msra.mxu0 %v5838
    %6259 = vmatprep.subr.bf16.mxu0 %v5843
    %6260 = vmatpush1.bf16.msra.mxu0 %v5842
    %6261 = vmatprep.subr.bf16.mxu0 %v5847
    %6262 = vmatpush1.bf16.msra.mxu0 %v5846
    %6263 = vmatprep.subr.bf16.mxu0 %v5851
    %6264 = vmatpush1.bf16.msra.mxu0 %v5850
    %6265 = vmatprep.mubr.bf16.mxu0 %v4551
    %6266 = vmatmul.mubr.bf16.gmra.mrb[0].mxu0 %v4550
    %v6267 = vpop.f32.mrb[0].mxu0
    %v6268 = vadd.f32 %v6227, %v6267
    %v6269 = vpop.f32.mrb[0].mxu0
    %v6270 = vadd.f32 %v6229, %v6269
    %v6271 = vpop.f32.mrb[0].mxu0
    %v6272 = vpop.f32.mrb[0].mxu0
    %6273 = vdwg.mxu0
    %6274 = vmatprep.subr.bf16.mxu0 %v5601
    %6275 = vmatpush1.bf16.msra.mxu0 %v5600
    %6276 = vmatprep.subr.bf16.mxu0 %v5605
    %6277 = vmatpush1.bf16.msra.mxu0 %v5604
    %6278 = vmatprep.subr.bf16.mxu0 %v5609
    %6279 = vmatpush1.bf16.msra.mxu0 %v5608
    %6280 = vmatprep.subr.bf16.mxu0 %v5613
    %6281 = vmatpush1.bf16.msra.mxu0 %v5612
    %6282 = vmatprep.subr.bf16.mxu0 %v5617
    %6283 = vmatpush1.bf16.msra.mxu0 %v5616
    %6284 = vmatprep.subr.bf16.mxu0 %v5621
    %6285 = vmatpush1.bf16.msra.mxu0 %v5620
    %6286 = vmatprep.subr.bf16.mxu0 %v5625
    %6287 = vmatpush1.bf16.msra.mxu0 %v5624
    %6288 = vmatprep.subr.bf16.mxu0 %v5629
    %6289 = vmatpush1.bf16.msra.mxu0 %v5628
    %6290 = vmatprep.subr.bf16.mxu0 %v5633
    %6291 = vmatpush1.bf16.msra.mxu0 %v5632
    %6292 = vmatprep.subr.bf16.mxu0 %v5637
    %6293 = vmatpush1.bf16.msra.mxu0 %v5636
    %6294 = vmatprep.subr.bf16.mxu0 %v5641
    %6295 = vmatpush1.bf16.msra.mxu0 %v5640
    %6296 = vmatprep.subr.bf16.mxu0 %v5645
    %6297 = vmatpush1.bf16.msra.mxu0 %v5644
    %6298 = vmatprep.subr.bf16.mxu0 %v5649
    %6299 = vmatpush1.bf16.msra.mxu0 %v5648
    %6300 = vmatprep.subr.bf16.mxu0 %v5653
    %6301 = vmatpush1.bf16.msra.mxu0 %v5652
    %6302 = vmatprep.subr.bf16.mxu0 %v5657
    %6303 = vmatpush1.bf16.msra.mxu0 %v5656
    %6304 = vmatprep.subr.bf16.mxu0 %v5661
    %6305 = vmatpush1.bf16.msra.mxu0 %v5660
    %6306 = vmatprep.mubr.bf16.mxu0 %v4545
    %6307 = vmatmul.mubr.bf16.gmra.mrb[0].mxu0 %v4544
    %v6308 = vpop.f32.mrb[0].mxu0
    %v6309 = vadd.f32 %v4821, %v6308
    %v6310 = vpop.f32.mrb[0].mxu0
    %v6311 = vadd.f32 %v4825, %v6310
    %v6312 = vpop.f32.mrb[0].mxu0
    %v6313 = vpop.f32.mrb[0].mxu0
    %6314 = vdwg.mxu0
    %6315 = vmatprep.subr.bf16.mxu0 %v5665
    %6316 = vmatpush1.bf16.msra.mxu0 %v5664
    %6317 = vmatprep.subr.bf16.mxu0 %v5669
    %6318 = vmatpush1.bf16.msra.mxu0 %v5668
    %6319 = vmatprep.subr.bf16.mxu0 %v5673
    %6320 = vmatpush1.bf16.msra.mxu0 %v5672
    %6321 = vmatprep.subr.bf16.mxu0 %v5677
    %6322 = vmatpush1.bf16.msra.mxu0 %v5676
    %6323 = vmatprep.subr.bf16.mxu0 %v5681
    %6324 = vmatpush1.bf16.msra.mxu0 %v5680
    %6325 = vmatprep.subr.bf16.mxu0 %v5685
    %6326 = vmatpush1.bf16.msra.mxu0 %v5684
    %6327 = vmatprep.subr.bf16.mxu0 %v5689
    %6328 = vmatpush1.bf16.msra.mxu0 %v5688
    %6329 = vmatprep.subr.bf16.mxu0 %v5693
    %6330 = vmatpush1.bf16.msra.mxu0 %v5692
    %6331 = vmatprep.subr.bf16.mxu0 %v5697
    %6332 = vmatpush1.bf16.msra.mxu0 %v5696
    %6333 = vmatprep.subr.bf16.mxu0 %v5701
    %6334 = vmatpush1.bf16.msra.mxu0 %v5700
    %6335 = vmatprep.subr.bf16.mxu0 %v5705
    %6336 = vmatpush1.bf16.msra.mxu0 %v5704
    %6337 = vmatprep.subr.bf16.mxu0 %v5709
    %6338 = vmatpush1.bf16.msra.mxu0 %v5708
    %6339 = vmatprep.subr.bf16.mxu0 %v5713
    %6340 = vmatpush1.bf16.msra.mxu0 %v5712
    %6341 = vmatprep.subr.bf16.mxu0 %v5717
    %6342 = vmatpush1.bf16.msra.mxu0 %v5716
    %6343 = vmatprep.subr.bf16.mxu0 %v5721
    %6344 = vmatpush1.bf16.msra.mxu0 %v5720
    %6345 = vmatprep.subr.bf16.mxu0 %v5725
    %6346 = vmatpush1.bf16.msra.mxu0 %v5724
    %6347 = vmatprep.mubr.bf16.mxu0 %v4547
    %6348 = vmatmul.mubr.bf16.gmra.mrb[0].mxu0 %v4546
    %v6349 = vpop.f32.mrb[0].mxu0
    %v6350 = vadd.f32 %v6309, %v6349
    %v6351 = vpop.f32.mrb[0].mxu0
    %v6352 = vadd.f32 %v6311, %v6351
    %v6353 = vpop.f32.mrb[0].mxu0
    %v6354 = vpop.f32.mrb[0].mxu0
    %6355 = vdwg.mxu0
    %6356 = vmatprep.subr.bf16.mxu0 %v5729
    %6357 = vmatpush1.bf16.msra.mxu0 %v5728
    %6358 = vmatprep.subr.bf16.mxu0 %v5733
    %6359 = vmatpush1.bf16.msra.mxu0 %v5732
    %6360 = vmatprep.subr.bf16.mxu0 %v5737
    %6361 = vmatpush1.bf16.msra.mxu0 %v5736
    %6362 = vmatprep.subr.bf16.mxu0 %v5741
    %6363 = vmatpush1.bf16.msra.mxu0 %v5740
    %6364 = vmatprep.subr.bf16.mxu0 %v5745
    %6365 = vmatpush1.bf16.msra.mxu0 %v5744
    %6366 = vmatprep.subr.bf16.mxu0 %v5749
    %6367 = vmatpush1.bf16.msra.mxu0 %v5748
    %6368 = vmatprep.subr.bf16.mxu0 %v5753
    %6369 = vmatpush1.bf16.msra.mxu0 %v5752
    %6370 = vmatprep.subr.bf16.mxu0 %v5757
    %6371 = vmatpush1.bf16.msra.mxu0 %v5756
    %6372 = vmatprep.subr.bf16.mxu0 %v5761
    %6373 = vmatpush1.bf16.msra.mxu0 %v5760
    %6374 = vmatprep.subr.bf16.mxu0 %v5765
    %6375 = vmatpush1.bf16.msra.mxu0 %v5764
    %6376 = vmatprep.subr.bf16.mxu0 %v5769
    %6377 = vmatpush1.bf16.msra.mxu0 %v5768
    %6378 = vmatprep.subr.bf16.mxu0 %v5773
    %6379 = vmatpush1.bf16.msra.mxu0 %v5772
    %6380 = vmatprep.subr.bf16.mxu0 %v5777
    %6381 = vmatpush1.bf16.msra.mxu0 %v5776
    %6382 = vmatprep.subr.bf16.mxu0 %v5781
    %6383 = vmatpush1.bf16.msra.mxu0 %v5780
    %6384 = vmatprep.subr.bf16.mxu0 %v5785
    %6385 = vmatpush1.bf16.msra.mxu0 %v5784
    %6386 = vmatprep.subr.bf16.mxu0 %v5789
    %6387 = vmatpush1.bf16.msra.mxu0 %v5788
    %6388 = vmatprep.mubr.bf16.mxu0 %v4549
    %6389 = vmatmul.mubr.bf16.gmra.mrb[0].mxu0 %v4548
    %v6390 = vpop.f32.mrb[0].mxu0
    %v6391 = vadd.f32 %v6350, %v6390
    %v6392 = vpop.f32.mrb[0].mxu0
    %v6393 = vadd.f32 %v6352, %v6392
    %v6394 = vpop.f32.mrb[0].mxu0
    %v6395 = vpop.f32.mrb[0].mxu0
    %6396 = vdwg.mxu0
    %6397 = vmatprep.subr.bf16.mxu0 %v5793
    %6398 = vmatpush1.bf16.msra.mxu0 %v5792
    %6399 = vmatprep.subr.bf16.mxu0 %v5797
    %6400 = vmatpush1.bf16.msra.mxu0 %v5796
    %6401 = vmatprep.subr.bf16.mxu0 %v5801
    %6402 = vmatpush1.bf16.msra.mxu0 %v5800
    %6403 = vmatprep.subr.bf16.mxu0 %v5805
    %6404 = vmatpush1.bf16.msra.mxu0 %v5804
    %6405 = vmatprep.subr.bf16.mxu0 %v5809
    %6406 = vmatpush1.bf16.msra.mxu0 %v5808
    %6407 = vmatprep.subr.bf16.mxu0 %v5813
    %6408 = vmatpush1.bf16.msra.mxu0 %v5812
    %6409 = vmatprep.subr.bf16.mxu0 %v5817
    %6410 = vmatpush1.bf16.msra.mxu0 %v5816
    %6411 = vmatprep.subr.bf16.mxu0 %v5821
    %6412 = vmatpush1.bf16.msra.mxu0 %v5820
    %6413 = vmatprep.subr.bf16.mxu0 %v5825
    %6414 = vmatpush1.bf16.msra.mxu0 %v5824
    %6415 = vmatprep.subr.bf16.mxu0 %v5829
    %6416 = vmatpush1.bf16.msra.mxu0 %v5828
    %6417 = vmatprep.subr.bf16.mxu0 %v5833
    %6418 = vmatpush1.bf16.msra.mxu0 %v5832
    %6419 = vmatprep.subr.bf16.mxu0 %v5837
    %6420 = vmatpush1.bf16.msra.mxu0 %v5836
    %6421 = vmatprep.subr.bf16.mxu0 %v5841
    %6422 = vmatpush1.bf16.msra.mxu0 %v5840
    %6423 = vmatprep.subr.bf16.mxu0 %v5845
    %6424 = vmatpush1.bf16.msra.mxu0 %v5844
    %6425 = vmatprep.subr.bf16.mxu0 %v5849
    %6426 = vmatpush1.bf16.msra.mxu0 %v5848
    %6427 = vmatprep.subr.bf16.mxu0 %v5853
    %6428 = vmatpush1.bf16.msra.mxu0 %v5852
    %6429 = vmatprep.mubr.bf16.mxu0 %v4551
    %6430 = vmatmul.mubr.bf16.gmra.mrb[0].mxu0 %v4550
    %v6431 = vpop.f32.mrb[0].mxu0
    %v6432 = vadd.f32 %v6391, %v6431
    %v6433 = vpop.f32.mrb[0].mxu0
    %v6434 = vadd.f32 %v6393, %v6433
    %v6435 = vpop.f32.mrb[0].mxu0
    %v6436 = vpop.f32.mrb[0].mxu0
    %6437 = vdwg.mxu0
    %v6438 = vmax.f32 %v6268, 0.0
    %v6439 = vmax.f32 %v6270, 0.0
    %v6440 = vmax.f32 %v6432, 0.0
    %v6441 = vmax.f32 %v6434, 0.0
    %v6442 = vpack.c.bf16 %v6438, %v6438
    %v6443 = vpack.c.bf16 %v6439, %v6439
    %v6444 = vpack.c.bf16 %v6440, %v6440
    %v6445 = vpack.c.bf16 %v6441, %v6441
    %v6446 = vld [vmem:[#allocation11] sm:$0xff]
    %v6447 = vld [vmem:[#allocation11 + $0x8] sm:$0xff]
    %v6448 = vld [vmem:[#allocation11 + $0x10] sm:$0xff]
    %v6449 = vld [vmem:[#allocation11 + $0x18] sm:$0xff]
    %v6450 = vld [vmem:[#allocation11 + $0x20] sm:$0xff]
    %v6451 = vld [vmem:[#allocation11 + $0x28] sm:$0xff]
    %v6452 = vld [vmem:[#allocation11 + $0x30] sm:$0xff]
    %v6453 = vld [vmem:[#allocation11 + $0x38] sm:$0xff]
    %v6454 = vld [vmem:[#allocation11 + $0x40] sm:$0xff]
    %v6455 = vld [vmem:[#allocation11 + $0x48] sm:$0xff]
    %v6456 = vld [vmem:[#allocation11 + $0x50] sm:$0xff]
    %v6457 = vld [vmem:[#allocation11 + $0x58] sm:$0xff]
    %v6458 = vld [vmem:[#allocation11 + $0x60] sm:$0xff]
    %v6459 = vld [vmem:[#allocation11 + $0x68] sm:$0xff]
    %v6460 = vld [vmem:[#allocation11 + $0x70] sm:$0xff]
    %v6461 = vld [vmem:[#allocation11 + $0x78] sm:$0xff]
    %v6462 = vld [vmem:[#allocation11 + $0x80] sm:$0xff]
    %v6463 = vld [vmem:[#allocation11 + $0x88] sm:$0xff]
    %v6464 = vld [vmem:[#allocation11 + $0x90] sm:$0xff]
    %v6465 = vld [vmem:[#allocation11 + $0x98] sm:$0xff]
    %v6466 = vld [vmem:[#allocation11 + $0xa0] sm:$0xff]
    %v6467 = vld [vmem:[#allocation11 + $0xa8] sm:$0xff]
    %v6468 = vld [vmem:[#allocation11 + $0xb0] sm:$0xff]
    %v6469 = vld [vmem:[#allocation11 + $0xb8] sm:$0xff]
    %v6470 = vld [vmem:[#allocation11 + $0xc0] sm:$0xff]
    %v6471 = vld [vmem:[#allocation11 + $0xc8] sm:$0xff]
    %v6472 = vld [vmem:[#allocation11 + $0xd0] sm:$0xff]
    %v6473 = vld [vmem:[#allocation11 + $0xd8] sm:$0xff]
    %v6474 = vld [vmem:[#allocation11 + $0xe0] sm:$0xff]
    %v6475 = vld [vmem:[#allocation11 + $0xe8] sm:$0xff]
    %v6476 = vld [vmem:[#allocation11 + $0xf0] sm:$0xff]
    %v6477 = vld [vmem:[#allocation11 + $0xf8] sm:$0xff]
    %v6478 = vld [vmem:[#allocation11 + $0x100] sm:$0xff]
    %v6479 = vld [vmem:[#allocation11 + $0x108] sm:$0xff]
    %v6480 = vld [vmem:[#allocation11 + $0x110] sm:$0xff]
    %v6481 = vld [vmem:[#allocation11 + $0x118] sm:$0xff]
    %v6482 = vld [vmem:[#allocation11 + $0x120] sm:$0xff]
    %v6483 = vld [vmem:[#allocation11 + $0x128] sm:$0xff]
    %v6484 = vld [vmem:[#allocation11 + $0x130] sm:$0xff]
    %v6485 = vld [vmem:[#allocation11 + $0x138] sm:$0xff]
    %v6486 = vld [vmem:[#allocation11 + $0x140] sm:$0xff]
    %v6487 = vld [vmem:[#allocation11 + $0x148] sm:$0xff]
    %v6488 = vld [vmem:[#allocation11 + $0x150] sm:$0xff]
    %v6489 = vld [vmem:[#allocation11 + $0x158] sm:$0xff]
    %v6490 = vld [vmem:[#allocation11 + $0x160] sm:$0xff]
    %v6491 = vld [vmem:[#allocation11 + $0x168] sm:$0xff]
    %v6492 = vld [vmem:[#allocation11 + $0x170] sm:$0xff]
    %v6493 = vld [vmem:[#allocation11 + $0x178] sm:$0xff]
    %v6494 = vld [vmem:[#allocation11 + $0x180] sm:$0xff]
    %v6495 = vld [vmem:[#allocation11 + $0x188] sm:$0xff]
    %v6496 = vld [vmem:[#allocation11 + $0x190] sm:$0xff]
    %v6497 = vld [vmem:[#allocation11 + $0x198] sm:$0xff]
    %v6498 = vld [vmem:[#allocation11 + $0x1a0] sm:$0xff]
    %v6499 = vld [vmem:[#allocation11 + $0x1a8] sm:$0xff]
    %v6500 = vld [vmem:[#allocation11 + $0x1b0] sm:$0xff]
    %v6501 = vld [vmem:[#allocation11 + $0x1b8] sm:$0xff]
    %v6502 = vld [vmem:[#allocation11 + $0x1c0] sm:$0xff]
    %v6503 = vld [vmem:[#allocation11 + $0x1c8] sm:$0xff]
    %v6504 = vld [vmem:[#allocation11 + $0x1d0] sm:$0xff]
    %v6505 = vld [vmem:[#allocation11 + $0x1d8] sm:$0xff]
    %v6506 = vld [vmem:[#allocation11 + $0x1e0] sm:$0xff]
    %v6507 = vld [vmem:[#allocation11 + $0x1e8] sm:$0xff]
    %v6508 = vld [vmem:[#allocation11 + $0x1f0] sm:$0xff]
    %v6509 = vld [vmem:[#allocation11 + $0x1f8] sm:$0xff]
    %v6510 = vld [vmem:[#allocation13] sm:$0x3]
    %v6512 = vlaneseq
    %v6513 = vshrl.u32 %v6512, 7
    %v6514 = vsub.s32 0, %v6513
    %v6515 = vrot.slane %v6510, %v6514
    %v6516 = vlaneseq
    %v6517 = vshrl.u32 %v6516, 7
    %v6518 = vsub.s32 1, %v6517
    %v6519 = vrot.slane %v6510, %v6518
    %v6586 = vunpack.c.l.b16 %v6446
    %v6587 = vunpack.c.h.b16 %v6446
    %v6588 = vunpack.c.l.b16 %v6447
    %v6589 = vunpack.c.h.b16 %v6447
    %v6590 = vunpack.c.l.b16 %v6448
    %v6591 = vunpack.c.h.b16 %v6448
    %v6592 = vunpack.c.l.b16 %v6449
    %v6593 = vunpack.c.h.b16 %v6449
    %v6594 = vunpack.c.l.b16 %v6450
    %v6595 = vunpack.c.h.b16 %v6450
    %v6596 = vunpack.c.l.b16 %v6451
    %v6597 = vunpack.c.h.b16 %v6451
    %v6598 = vunpack.c.l.b16 %v6452
    %v6599 = vunpack.c.h.b16 %v6452
    %v6600 = vunpack.c.l.b16 %v6453
    %v6601 = vunpack.c.h.b16 %v6453
    %v6602 = vunpack.c.l.b16 %v6454
    %v6603 = vunpack.c.h.b16 %v6454
    %v6604 = vunpack.c.l.b16 %v6455
    %v6605 = vunpack.c.h.b16 %v6455
    %v6606 = vunpack.c.l.b16 %v6456
    %v6607 = vunpack.c.h.b16 %v6456
    %v6608 = vunpack.c.l.b16 %v6457
    %v6609 = vunpack.c.h.b16 %v6457
    %v6610 = vunpack.c.l.b16 %v6458
    %v6611 = vunpack.c.h.b16 %v6458
    %v6612 = vunpack.c.l.b16 %v6459
    %v6613 = vunpack.c.h.b16 %v6459
    %v6614 = vunpack.c.l.b16 %v6460
    %v6615 = vunpack.c.h.b16 %v6460
    %v6616 = vunpack.c.l.b16 %v6461
    %v6617 = vunpack.c.h.b16 %v6461
    %v6618 = vunpack.c.l.b16 %v6462
    %v6619 = vunpack.c.h.b16 %v6462
    %v6620 = vunpack.c.l.b16 %v6463
    %v6621 = vunpack.c.h.b16 %v6463
    %v6622 = vunpack.c.l.b16 %v6464
    %v6623 = vunpack.c.h.b16 %v6464
    %v6624 = vunpack.c.l.b16 %v6465
    %v6625 = vunpack.c.h.b16 %v6465
    %v6626 = vunpack.c.l.b16 %v6466
    %v6627 = vunpack.c.h.b16 %v6466
    %v6628 = vunpack.c.l.b16 %v6467
    %v6629 = vunpack.c.h.b16 %v6467
    %v6630 = vunpack.c.l.b16 %v6468
    %v6631 = vunpack.c.h.b16 %v6468
    %v6632 = vunpack.c.l.b16 %v6469
    %v6633 = vunpack.c.h.b16 %v6469
    %v6634 = vunpack.c.l.b16 %v6470
    %v6635 = vunpack.c.h.b16 %v6470
    %v6636 = vunpack.c.l.b16 %v6471
    %v6637 = vunpack.c.h.b16 %v6471
    %v6638 = vunpack.c.l.b16 %v6472
    %v6639 = vunpack.c.h.b16 %v6472
    %v6640 = vunpack.c.l.b16 %v6473
    %v6641 = vunpack.c.h.b16 %v6473
    %v6642 = vunpack.c.l.b16 %v6474
    %v6643 = vunpack.c.h.b16 %v6474
    %v6644 = vunpack.c.l.b16 %v6475
    %v6645 = vunpack.c.h.b16 %v6475
    %v6646 = vunpack.c.l.b16 %v6476
    %v6647 = vunpack.c.h.b16 %v6476
    %v6648 = vunpack.c.l.b16 %v6477
    %v6649 = vunpack.c.h.b16 %v6477
    %v6650 = vunpack.c.l.b16 %v6478
    %v6651 = vunpack.c.h.b16 %v6478
    %v6652 = vunpack.c.l.b16 %v6479
    %v6653 = vunpack.c.h.b16 %v6479
    %v6654 = vunpack.c.l.b16 %v6480
    %v6655 = vunpack.c.h.b16 %v6480
    %v6656 = vunpack.c.l.b16 %v6481
    %v6657 = vunpack.c.h.b16 %v6481
    %v6658 = vunpack.c.l.b16 %v6482
    %v6659 = vunpack.c.h.b16 %v6482
    %v6660 = vunpack.c.l.b16 %v6483
    %v6661 = vunpack.c.h.b16 %v6483
    %v6662 = vunpack.c.l.b16 %v6484
    %v6663 = vunpack.c.h.b16 %v6484
    %v6664 = vunpack.c.l.b16 %v6485
    %v6665 = vunpack.c.h.b16 %v6485
    %v6666 = vunpack.c.l.b16 %v6486
    %v6667 = vunpack.c.h.b16 %v6486
    %v6668 = vunpack.c.l.b16 %v6487
    %v6669 = vunpack.c.h.b16 %v6487
    %v6670 = vunpack.c.l.b16 %v6488
    %v6671 = vunpack.c.h.b16 %v6488
    %v6672 = vunpack.c.l.b16 %v6489
    %v6673 = vunpack.c.h.b16 %v6489
    %v6674 = vunpack.c.l.b16 %v6490
    %v6675 = vunpack.c.h.b16 %v6490
    %v6676 = vunpack.c.l.b16 %v6491
    %v6677 = vunpack.c.h.b16 %v6491
    %v6678 = vunpack.c.l.b16 %v6492
    %v6679 = vunpack.c.h.b16 %v6492
    %v6680 = vunpack.c.l.b16 %v6493
    %v6681 = vunpack.c.h.b16 %v6493
    %v6682 = vunpack.c.l.b16 %v6494
    %v6683 = vunpack.c.h.b16 %v6494
    %v6684 = vunpack.c.l.b16 %v6495
    %v6685 = vunpack.c.h.b16 %v6495
    %v6686 = vunpack.c.l.b16 %v6496
    %v6687 = vunpack.c.h.b16 %v6496
    %v6688 = vunpack.c.l.b16 %v6497
    %v6689 = vunpack.c.h.b16 %v6497
    %v6690 = vunpack.c.l.b16 %v6498
    %v6691 = vunpack.c.h.b16 %v6498
    %v6692 = vunpack.c.l.b16 %v6499
    %v6693 = vunpack.c.h.b16 %v6499
    %v6694 = vunpack.c.l.b16 %v6500
    %v6695 = vunpack.c.h.b16 %v6500
    %v6696 = vunpack.c.l.b16 %v6501
    %v6697 = vunpack.c.h.b16 %v6501
    %v6698 = vunpack.c.l.b16 %v6502
    %v6699 = vunpack.c.h.b16 %v6502
    %v6700 = vunpack.c.l.b16 %v6503
    %v6701 = vunpack.c.h.b16 %v6503
    %v6702 = vunpack.c.l.b16 %v6504
    %v6703 = vunpack.c.h.b16 %v6504
    %v6704 = vunpack.c.l.b16 %v6505
    %v6705 = vunpack.c.h.b16 %v6505
    %v6706 = vunpack.c.l.b16 %v6506
    %v6707 = vunpack.c.h.b16 %v6506
    %v6708 = vunpack.c.l.b16 %v6507
    %v6709 = vunpack.c.h.b16 %v6507
    %v6710 = vunpack.c.l.b16 %v6508
    %v6711 = vunpack.c.h.b16 %v6508
    %v6712 = vunpack.c.l.b16 %v6509
    %v6713 = vunpack.c.h.b16 %v6509
    %v6714 = vpack.c.b16 %v6588, %v6586
    %v6715 = vpack.c.b16 %v6589, %v6587
    %v6716 = vpack.c.b16 %v6592, %v6590
    %v6717 = vpack.c.b16 %v6593, %v6591
    %v6718 = vpack.c.b16 %v6596, %v6594
    %v6719 = vpack.c.b16 %v6597, %v6595
    %v6720 = vpack.c.b16 %v6600, %v6598
    %v6721 = vpack.c.b16 %v6601, %v6599
    %v6722 = vpack.c.b16 %v6604, %v6602
    %v6723 = vpack.c.b16 %v6605, %v6603
    %v6724 = vpack.c.b16 %v6608, %v6606
    %v6725 = vpack.c.b16 %v6609, %v6607
    %v6726 = vpack.c.b16 %v6612, %v6610
    %v6727 = vpack.c.b16 %v6613, %v6611
    %v6728 = vpack.c.b16 %v6616, %v6614
    %v6729 = vpack.c.b16 %v6617, %v6615
    %v6730 = vpack.c.b16 %v6620, %v6618
    %v6731 = vpack.c.b16 %v6621, %v6619
    %v6732 = vpack.c.b16 %v6624, %v6622
    %v6733 = vpack.c.b16 %v6625, %v6623
    %v6734 = vpack.c.b16 %v6628, %v6626
    %v6735 = vpack.c.b16 %v6629, %v6627
    %v6736 = vpack.c.b16 %v6632, %v6630
    %v6737 = vpack.c.b16 %v6633, %v6631
    %v6738 = vpack.c.b16 %v6636, %v6634
    %v6739 = vpack.c.b16 %v6637, %v6635
    %v6740 = vpack.c.b16 %v6640, %v6638
    %v6741 = vpack.c.b16 %v6641, %v6639
    %v6742 = vpack.c.b16 %v6644, %v6642
    %v6743 = vpack.c.b16 %v6645, %v6643
    %v6744 = vpack.c.b16 %v6648, %v6646
    %v6745 = vpack.c.b16 %v6649, %v6647
    %v6746 = vpack.c.b16 %v6652, %v6650
    %v6747 = vpack.c.b16 %v6653, %v6651
    %v6748 = vpack.c.b16 %v6656, %v6654
    %v6749 = vpack.c.b16 %v6657, %v6655
    %v6750 = vpack.c.b16 %v6660, %v6658
    %v6751 = vpack.c.b16 %v6661, %v6659
    %v6752 = vpack.c.b16 %v6664, %v6662
    %v6753 = vpack.c.b16 %v6665, %v6663
    %v6754 = vpack.c.b16 %v6668, %v6666
    %v6755 = vpack.c.b16 %v6669, %v6667
    %v6756 = vpack.c.b16 %v6672, %v6670
    %v6757 = vpack.c.b16 %v6673, %v6671
    %v6758 = vpack.c.b16 %v6676, %v6674
    %v6759 = vpack.c.b16 %v6677, %v6675
    %v6760 = vpack.c.b16 %v6680, %v6678
    %v6761 = vpack.c.b16 %v6681, %v6679
    %v6762 = vpack.c.b16 %v6684, %v6682
    %v6763 = vpack.c.b16 %v6685, %v6683
    %v6764 = vpack.c.b16 %v6688, %v6686
    %v6765 = vpack.c.b16 %v6689, %v6687
    %v6766 = vpack.c.b16 %v6692, %v6690
    %v6767 = vpack.c.b16 %v6693, %v6691
    %v6768 = vpack.c.b16 %v6696, %v6694
    %v6769 = vpack.c.b16 %v6697, %v6695
    %v6770 = vpack.c.b16 %v6700, %v6698
    %v6771 = vpack.c.b16 %v6701, %v6699
    %v6772 = vpack.c.b16 %v6704, %v6702
    %v6773 = vpack.c.b16 %v6705, %v6703
    %v6774 = vpack.c.b16 %v6708, %v6706
    %v6775 = vpack.c.b16 %v6709, %v6707
    %v6776 = vpack.c.b16 %v6712, %v6710
    %v6777 = vpack.c.b16 %v6713, %v6711
    %6842 = vmatprep.subr.bf16.mxu0 %v6715
    %6843 = vmatpush1.bf16.msra.mxu0 %v6714
    %6844 = vmatprep.subr.bf16.mxu0 %v6717
    %6845 = vmatpush1.bf16.msra.mxu0 %v6716
    %6846 = vmatprep.subr.bf16.mxu0 %v6719
    %6847 = vmatpush1.bf16.msra.mxu0 %v6718
    %6848 = vmatprep.subr.bf16.mxu0 %v6721
    %6849 = vmatpush1.bf16.msra.mxu0 %v6720
    %6850 = vmatprep.subr.bf16.mxu0 %v6723
    %6851 = vmatpush1.bf16.msra.mxu0 %v6722
    %6852 = vmatprep.subr.bf16.mxu0 %v6725
    %6853 = vmatpush1.bf16.msra.mxu0 %v6724
    %6854 = vmatprep.subr.bf16.mxu0 %v6727
    %6855 = vmatpush1.bf16.msra.mxu0 %v6726
    %6856 = vmatprep.subr.bf16.mxu0 %v6729
    %6857 = vmatpush1.bf16.msra.mxu0 %v6728
    %6858 = vmatprep.subr.bf16.mxu0 %v6731
    %6859 = vmatpush1.bf16.msra.mxu0 %v6730
    %6860 = vmatprep.subr.bf16.mxu0 %v6733
    %6861 = vmatpush1.bf16.msra.mxu0 %v6732
    %6862 = vmatprep.subr.bf16.mxu0 %v6735
    %6863 = vmatpush1.bf16.msra.mxu0 %v6734
    %6864 = vmatprep.subr.bf16.mxu0 %v6737
    %6865 = vmatpush1.bf16.msra.mxu0 %v6736
    %6866 = vmatprep.subr.bf16.mxu0 %v6739
    %6867 = vmatpush1.bf16.msra.mxu0 %v6738
    %6868 = vmatprep.subr.bf16.mxu0 %v6741
    %6869 = vmatpush1.bf16.msra.mxu0 %v6740
    %6870 = vmatprep.subr.bf16.mxu0 %v6743
    %6871 = vmatpush1.bf16.msra.mxu0 %v6742
    %6872 = vmatprep.subr.bf16.mxu0 %v6745
    %6873 = vmatpush1.bf16.msra.mxu0 %v6744
    %6874 = vmatprep.mubr.bf16.mxu0 %v6443
    %6875 = vmatmul.mubr.bf16.gmra.mrb[0].mxu0 %v6442
    %v6876 = vpop.f32.mrb[0].mxu0
    %v6877 = vadd.f32 %v6515, %v6876
    %v6878 = vpop.f32.mrb[0].mxu0
    %v6879 = vadd.f32 %v6519, %v6878
    %v6880 = vpop.f32.mrb[0].mxu0
    %v6881 = vpop.f32.mrb[0].mxu0
    %6882 = vdwg.mxu0
    %6883 = vmatprep.subr.bf16.mxu0 %v6747
    %6884 = vmatpush1.bf16.msra.mxu0 %v6746
    %6885 = vmatprep.subr.bf16.mxu0 %v6749
    %6886 = vmatpush1.bf16.msra.mxu0 %v6748
    %6887 = vmatprep.subr.bf16.mxu0 %v6751
    %6888 = vmatpush1.bf16.msra.mxu0 %v6750
    %6889 = vmatprep.subr.bf16.mxu0 %v6753
    %6890 = vmatpush1.bf16.msra.mxu0 %v6752
    %6891 = vmatprep.subr.bf16.mxu0 %v6755
    %6892 = vmatpush1.bf16.msra.mxu0 %v6754
    %6893 = vmatprep.subr.bf16.mxu0 %v6757
    %6894 = vmatpush1.bf16.msra.mxu0 %v6756
    %6895 = vmatprep.subr.bf16.mxu0 %v6759
    %6896 = vmatpush1.bf16.msra.mxu0 %v6758
    %6897 = vmatprep.subr.bf16.mxu0 %v6761
    %6898 = vmatpush1.bf16.msra.mxu0 %v6760
    %6899 = vmatprep.subr.bf16.mxu0 %v6763
    %6900 = vmatpush1.bf16.msra.mxu0 %v6762
    %6901 = vmatprep.subr.bf16.mxu0 %v6765
    %6902 = vmatpush1.bf16.msra.mxu0 %v6764
    %6903 = vmatprep.subr.bf16.mxu0 %v6767
    %6904 = vmatpush1.bf16.msra.mxu0 %v6766
    %6905 = vmatprep.subr.bf16.mxu0 %v6769
    %6906 = vmatpush1.bf16.msra.mxu0 %v6768
    %6907 = vmatprep.subr.bf16.mxu0 %v6771
    %6908 = vmatpush1.bf16.msra.mxu0 %v6770
    %6909 = vmatprep.subr.bf16.mxu0 %v6773
    %6910 = vmatpush1.bf16.msra.mxu0 %v6772
    %6911 = vmatprep.subr.bf16.mxu0 %v6775
    %6912 = vmatpush1.bf16.msra.mxu0 %v6774
    %6913 = vmatprep.subr.bf16.mxu0 %v6777
    %6914 = vmatpush1.bf16.msra.mxu0 %v6776
    %6915 = vmatprep.mubr.bf16.mxu0 %v6445
    %6916 = vmatmul.mubr.bf16.gmra.mrb[0].mxu0 %v6444
    %v6917 = vpop.f32.mrb[0].mxu0
    %v6918 = vadd.f32 %v6877, %v6917
    %v6919 = vpop.f32.mrb[0].mxu0
    %v6920 = vadd.f32 %v6879, %v6919
    %v6921 = vpop.f32.mrb[0].mxu0
    %v6922 = vpop.f32.mrb[0].mxu0
    %6923 = vdwg.mxu0
    %v6924 = vmax.f32 %v6918, 0.0
    %v6925 = vmax.f32 %v6920, 0.0
    %v6926 = vpack.c.bf16 %v6924, %v6924
    %v6927 = vpack.c.bf16 %v6925, %v6925
    %v6928 = vld [vmem:[#allocation14] sm:$0xf]
    %v6929 = vld [vmem:[#allocation14 + $0x4] sm:$0xf]
    %v6930 = vld [vmem:[#allocation14 + $0x8] sm:$0xf]
    %v6931 = vld [vmem:[#allocation14 + $0xc] sm:$0xf]
    %v6932 = vld [vmem:[#allocation14 + $0x10] sm:$0xf]
    %v6933 = vld [vmem:[#allocation14 + $0x14] sm:$0xf]
    %v6934 = vld [vmem:[#allocation14 + $0x18] sm:$0xf]
    %v6935 = vld [vmem:[#allocation14 + $0x1c] sm:$0xf]
    %v6936 = vld [vmem:[#allocation14 + $0x20] sm:$0xf]
    %v6937 = vld [vmem:[#allocation14 + $0x24] sm:$0xf]
    %v6938 = vld [vmem:[#allocation14 + $0x28] sm:$0xf]
    %v6939 = vld [vmem:[#allocation14 + $0x2c] sm:$0xf]
    %v6940 = vld [vmem:[#allocation14 + $0x30] sm:$0xf]
    %v6941 = vld [vmem:[#allocation14 + $0x34] sm:$0xf]
    %v6942 = vld [vmem:[#allocation14 + $0x38] sm:$0xf]
    %v6943 = vld [vmem:[#allocation14 + $0x3c] sm:$0xf]
    %v6944 = vld [vmem:[#allocation14 + $0x40] sm:$0xf]
    %v6945 = vld [vmem:[#allocation14 + $0x44] sm:$0xf]
    %v6946 = vld [vmem:[#allocation14 + $0x48] sm:$0xf]
    %v6947 = vld [vmem:[#allocation14 + $0x4c] sm:$0xf]
    %v6948 = vld [vmem:[#allocation14 + $0x50] sm:$0xf]
    %v6949 = vld [vmem:[#allocation14 + $0x54] sm:$0xf]
    %v6950 = vld [vmem:[#allocation14 + $0x58] sm:$0xf]
    %v6951 = vld [vmem:[#allocation14 + $0x5c] sm:$0xf]
    %v6952 = vld [vmem:[#allocation14 + $0x60] sm:$0xf]
    %v6953 = vld [vmem:[#allocation14 + $0x64] sm:$0xf]
    %v6954 = vld [vmem:[#allocation14 + $0x68] sm:$0xf]
    %v6955 = vld [vmem:[#allocation14 + $0x6c] sm:$0xf]
    %v6956 = vld [vmem:[#allocation14 + $0x70] sm:$0xf]
    %v6957 = vld [vmem:[#allocation14 + $0x74] sm:$0xf]
    %v6958 = vld [vmem:[#allocation14 + $0x78] sm:$0xf]
    %v6959 = vld [vmem:[#allocation14 + $0x7c] sm:$0xf]
    %v6960 = vld [vmem:[#allocation16] sm:$0x1]
    %v6962 = vlaneseq
    %v6963 = vshrl.u32 %v6962, 7
    %v6964 = vsub.s32 0, %v6963
    %v6965 = vrot.slane %v6960, %v6964
    %v6999 = vunpack.c.l.b16 %v6928
    %v7000 = vunpack.c.l.b16 %v6929
    %v7001 = vunpack.c.l.b16 %v6930
    %v7002 = vunpack.c.l.b16 %v6931
    %v7003 = vunpack.c.l.b16 %v6932
    %v7004 = vunpack.c.l.b16 %v6933
    %v7005 = vunpack.c.l.b16 %v6934
    %v7006 = vunpack.c.l.b16 %v6935
    %v7007 = vunpack.c.l.b16 %v6936
    %v7008 = vunpack.c.l.b16 %v6937
    %v7009 = vunpack.c.l.b16 %v6938
    %v7010 = vunpack.c.l.b16 %v6939
    %v7011 = vunpack.c.l.b16 %v6940
    %v7012 = vunpack.c.l.b16 %v6941
    %v7013 = vunpack.c.l.b16 %v6942
    %v7014 = vunpack.c.l.b16 %v6943
    %v7015 = vunpack.c.l.b16 %v6944
    %v7016 = vunpack.c.l.b16 %v6945
    %v7017 = vunpack.c.l.b16 %v6946
    %v7018 = vunpack.c.l.b16 %v6947
    %v7019 = vunpack.c.l.b16 %v6948
    %v7020 = vunpack.c.l.b16 %v6949
    %v7021 = vunpack.c.l.b16 %v6950
    %v7022 = vunpack.c.l.b16 %v6951
    %v7023 = vunpack.c.l.b16 %v6952
    %v7024 = vunpack.c.l.b16 %v6953
    %v7025 = vunpack.c.l.b16 %v6954
    %v7026 = vunpack.c.l.b16 %v6955
    %v7027 = vunpack.c.l.b16 %v6956
    %v7028 = vunpack.c.l.b16 %v6957
    %v7029 = vunpack.c.l.b16 %v6958
    %v7030 = vunpack.c.l.b16 %v6959
    %v7031 = vpack.c.b16 %v7000, %v6999
    %v7032 = vpack.c.b16 %v7002, %v7001
    %v7033 = vpack.c.b16 %v7004, %v7003
    %v7034 = vpack.c.b16 %v7006, %v7005
    %v7035 = vpack.c.b16 %v7008, %v7007
    %v7036 = vpack.c.b16 %v7010, %v7009
    %v7037 = vpack.c.b16 %v7012, %v7011
    %v7038 = vpack.c.b16 %v7014, %v7013
    %v7039 = vpack.c.b16 %v7016, %v7015
    %v7040 = vpack.c.b16 %v7018, %v7017
    %v7041 = vpack.c.b16 %v7020, %v7019
    %v7042 = vpack.c.b16 %v7022, %v7021
    %v7043 = vpack.c.b16 %v7024, %v7023
    %v7044 = vpack.c.b16 %v7026, %v7025
    %v7045 = vpack.c.b16 %v7028, %v7027
    %v7046 = vpack.c.b16 %v7030, %v7029
    %7063 = vmatprep.subr.bf16.mxu0 0
    %7064 = vmatpush1.bf16.msra.mxu0 %v7031
    %7065 = vmatprep.subr.bf16.mxu0 0
    %7066 = vmatpush1.bf16.msra.mxu0 %v7032
    %7067 = vmatprep.subr.bf16.mxu0 0
    %7068 = vmatpush1.bf16.msra.mxu0 %v7033
    %7069 = vmatprep.subr.bf16.mxu0 0
    %7070 = vmatpush1.bf16.msra.mxu0 %v7034
    %7071 = vmatprep.subr.bf16.mxu0 0
    %7072 = vmatpush1.bf16.msra.mxu0 %v7035
    %7073 = vmatprep.subr.bf16.mxu0 0
    %7074 = vmatpush1.bf16.msra.mxu0 %v7036
    %7075 = vmatprep.subr.bf16.mxu0 0
    %7076 = vmatpush1.bf16.msra.mxu0 %v7037
    %7077 = vmatprep.subr.bf16.mxu0 0
    %7078 = vmatpush1.bf16.msra.mxu0 %v7038
    %7079 = vmatprep.subr.bf16.mxu0 0
    %7080 = vmatpush1.bf16.msra.mxu0 %v7039
    %7081 = vmatprep.subr.bf16.mxu0 0
    %7082 = vmatpush1.bf16.msra.mxu0 %v7040
    %7083 = vmatprep.subr.bf16.mxu0 0
    %7084 = vmatpush1.bf16.msra.mxu0 %v7041
    %7085 = vmatprep.subr.bf16.mxu0 0
    %7086 = vmatpush1.bf16.msra.mxu0 %v7042
    %7087 = vmatprep.subr.bf16.mxu0 0
    %7088 = vmatpush1.bf16.msra.mxu0 %v7043
    %7089 = vmatprep.subr.bf16.mxu0 0
    %7090 = vmatpush1.bf16.msra.mxu0 %v7044
    %7091 = vmatprep.subr.bf16.mxu0 0
    %7092 = vmatpush1.bf16.msra.mxu0 %v7045
    %7093 = vmatprep.subr.bf16.mxu0 0
    %7094 = vmatpush1.bf16.msra.mxu0 %v7046
    %7095 = vmatprep.mubr.bf16.mxu0 %v6927
    %7096 = vmatmul.mubr.bf16.gmra.mrb[0].mxu0 %v6926
    %v7097 = vpop.f32.mrb[0].mxu0
    %v7098 = vadd.f32 %v6965, %v7097
    %v7099 = vpop.f32.mrb[0].mxu0
    %v7100 = vpop.f32.mrb[0].mxu0
    %v7101 = vpop.f32.mrb[0].mxu0
    %7102 = vdwg.mxu0
    %v7103 = vmax.f32 %v7098, 0.0
    %v7104 = vpack.c.bf16 %v7103, %v7103
    %v7105 = vld [vmem:[%s11] sm:$0xf]
    %v7106 = vld [vmem:[%s11 + $0x4] sm:$0xf]
    %v7107 = vld [vmem:[%s11 + $0x8] sm:$0xf]
    %v7108 = vld [vmem:[%s11 + $0xc] sm:$0xf]
    %v7109 = vld [vmem:[%s11 + $0x10] sm:$0xf]
    %v7110 = vld [vmem:[%s11 + $0x14] sm:$0xf]
    %v7111 = vld [vmem:[%s11 + $0x18] sm:$0xf]
    %v7112 = vld [vmem:[%s11 + $0x1c] sm:$0xf]
    %v7113 = vld [vmem:[%s11 + $0x20] sm:$0xf]
    %v7114 = vld [vmem:[%s11 + $0x24] sm:$0xf]
    %v7115 = vld [vmem:[%s11 + $0x28] sm:$0xf]
    %v7116 = vld [vmem:[%s11 + $0x2c] sm:$0xf]
    %v7117 = vld [vmem:[%s11 + $0x30] sm:$0xf]
    %v7118 = vld [vmem:[%s11 + $0x34] sm:$0xf]
    %v7119 = vld [vmem:[%s11 + $0x38] sm:$0xf]
    %v7120 = vld [vmem:[%s11 + $0x3c] sm:$0xf]
    %v7121 = vld [vmem:[%s12] sm:$0x1]
    %v7123 = vlaneseq
    %v7124 = vshrl.u32 %v7123, 7
    %v7125 = vsub.s32 0, %v7124
    %v7126 = vrot.slane %v7121, %v7125
    %v7144 = vunpack.c.l.b16 %v7105
    %v7145 = vunpack.c.l.b16 %v7106
    %v7146 = vunpack.c.l.b16 %v7107
    %v7147 = vunpack.c.l.b16 %v7108
    %v7148 = vunpack.c.l.b16 %v7109
    %v7149 = vunpack.c.l.b16 %v7110
    %v7150 = vunpack.c.l.b16 %v7111
    %v7151 = vunpack.c.l.b16 %v7112
    %v7152 = vunpack.c.l.b16 %v7113
    %v7153 = vunpack.c.l.b16 %v7114
    %v7154 = vunpack.c.l.b16 %v7115
    %v7155 = vunpack.c.l.b16 %v7116
    %v7156 = vunpack.c.l.b16 %v7117
    %v7157 = vunpack.c.l.b16 %v7118
    %v7158 = vunpack.c.l.b16 %v7119
    %v7159 = vunpack.c.l.b16 %v7120
    %v7160 = vpack.c.b16 %v7145, %v7144
    %v7161 = vpack.c.b16 %v7147, %v7146
    %v7162 = vpack.c.b16 %v7149, %v7148
    %v7163 = vpack.c.b16 %v7151, %v7150
    %v7164 = vpack.c.b16 %v7153, %v7152
    %v7165 = vpack.c.b16 %v7155, %v7154
    %v7166 = vpack.c.b16 %v7157, %v7156
    %v7167 = vpack.c.b16 %v7159, %v7158
    %7176 = vmatprep.subr.bf16.mxu0 0
    %7177 = vmatpush1.bf16.msra.mxu0 %v7160
    %7178 = vmatprep.subr.bf16.mxu0 0
    %7179 = vmatpush1.bf16.msra.mxu0 %v7161
    %7180 = vmatprep.subr.bf16.mxu0 0
    %7181 = vmatpush1.bf16.msra.mxu0 %v7162
    %7182 = vmatprep.subr.bf16.mxu0 0
    %7183 = vmatpush1.bf16.msra.mxu0 %v7163
    %7184 = vmatprep.subr.bf16.mxu0 0
    %7185 = vmatpush1.bf16.msra.mxu0 %v7164
    %7186 = vmatprep.subr.bf16.mxu0 0
    %7187 = vmatpush1.bf16.msra.mxu0 %v7165
    %7188 = vmatprep.subr.bf16.mxu0 0
    %7189 = vmatpush1.bf16.msra.mxu0 %v7166
    %7190 = vmatprep.subr.bf16.mxu0 0
    %7191 = vmatpush1.bf16.msra.mxu0 %v7167
    %7192 = vmatprep.subr.bf16.mxu0 0
    %7193 = vmatpush1.bf16.msra.mxu0 0
    %7194 = vmatprep.subr.bf16.mxu0 0
    %7195 = vmatpush1.bf16.msra.mxu0 0
    %7196 = vmatprep.subr.bf16.mxu0 0
    %7197 = vmatpush1.bf16.msra.mxu0 0
    %7198 = vmatprep.subr.bf16.mxu0 0
    %7199 = vmatpush1.bf16.msra.mxu0 0
    %7200 = vmatprep.subr.bf16.mxu0 0
    %7201 = vmatpush1.bf16.msra.mxu0 0
    %7202 = vmatprep.subr.bf16.mxu0 0
    %7203 = vmatpush1.bf16.msra.mxu0 0
    %7204 = vmatprep.subr.bf16.mxu0 0
    %7205 = vmatpush1.bf16.msra.mxu0 0
    %7206 = vmatprep.subr.bf16.mxu0 0
    %7207 = vmatpush1.bf16.msra.mxu0 0
    %7208 = vmatprep.mubr.bf16.mxu0 0
    %7209 = vmatmul.mubr.bf16.gmra.mrb[0].mxu0 %v7104
    %v7210 = vpop.f32.mrb[0].mxu0
    %v7211 = vadd.f32 %v7126, %v7210
    %v7212 = vpop.f32.mrb[0].mxu0
    %v7213 = vpop.f32.mrb[0].mxu0
    %v7214 = vpop.f32.mrb[0].mxu0
    %7215 = vdwg.mxu0
    %v7216 = vmax.f32 %v7211, 0.0
    %7217 = vst [vmem:[#allocation17] sm:$0xff] %v7216
    // Predicated region
    $region90: #{_mlps_forward.1} parent=1 // pred_check
      _
    $region91: #{_mlps_forward.1} parent=1 // pred_check_branch
      %7219 = sbr.rel (0) target = $region93
    $region92: #{_mlps_forward.1} parent=1 // pred_region
      %s7221 = ssub.s32 128, 128
      %7222 = vsyncadd [#allocation4], %s7221
      %s7224 = sshll.u32 [#allocation17], 4
      %s7225 = int_to_ptr.vmem [resolvable:$true] %s7224
      %7227 = dma.vmem_to_hbm [thread:$0]  %s7225, 128, %s13, [#allocation4]
    $region93: #{_mlps_forward.1} parent=1 // pred_fallthru
      _
    // Predicated region
    $region94: #{_mlps_forward.1} parent=1 // pred_check
      _
    $region95: #{_mlps_forward.1} parent=1 // pred_check_branch
      %7229 = sbr.rel (0) target = $region97
    $region96: #{_mlps_forward.1} parent=1 // pred_region
      %7230 = dma.done [#allocation4], 128
    $region97: #{_mlps_forward.1} parent=1 // pred_fallthru
      _
    %7231 = vsyncpa [#allocation3], 1
    %7232 = vsyncpa [#allocation6], 1
    %7233 = vsyncpa [#allocation9], 1
    %7234 = vsyncpa [#allocation12], 1
    %7235 = vsyncpa [#allocation15], 1
    %7236 = vsyncpa [#allocation4], 1

</llo_original>
